<compile_context>
chip_gen: v7x
topology: tpu7x:2x2x1
jax: 0.10.0
libtpu: 0.0.40
codegen_flags: <defaults>
</compile_context>

<pallas_src>
import functools

import jax
import jax.numpy as jnp
from jax.experimental import pallas as pl
from jax.experimental.pallas import tpu as pltpu

EPS = 1e-5


def _vmem_limit_bytes():
    cap = 128 * 1024 * 1024
    try:
        info = pltpu.get_tpu_info()
        cap = int(getattr(info, "vmem_capacity_bytes", cap))
    except Exception:
        pass
    # leave headroom: at most half of physical VMEM, never more than 64 MiB
    return int(min(64 * 1024 * 1024, cap // 2))


_VMEM_LIMIT = _vmem_limit_bytes()


def _cparams(*sem):
    return pltpu.CompilerParams(dimension_semantics=tuple(sem),
                                vmem_limit_bytes=_VMEM_LIMIT)


# ---------------------------------------------------------------------------
# Kernels
# ---------------------------------------------------------------------------
def _conv_kernel(a_ref, w_ref, b_ref, o_ref):
    """Conv(k=3,s=2,p=1) tile as one matmul.

    a: (tm, 9*Cin) bf16 packed activation taps (ky, kx, ci order),
    w: (9*Cin, Cout) bf16, b: (1, Cout) f32.  f32 accumulate / output.
    """
    o_ref[...] = jnp.dot(a_ref[...], w_ref[...],
                         preferred_element_type=jnp.float32) + b_ref[...]


def _bn_relu_pool_kernel(yee_ref, yeoc_ref, yoe_ref, yooc_ref, sc_ref, sh_ref,
                         o_ref, *, c):
    """Fused BN-affine + ReLU + MaxPool(3,2,1) for one image, channels-last.

    Inputs are row/col parity splits of the conv output, lanes = (ow, c).
    The *_c arrays carry one leading zero pixel column (the kx=-1 pad); its
    affine params are zeroed so the pad stays 0 (== -inf pad after ReLU).
    """
    sc_b = sc_ref[...]              # (1, (W2+1)*C), first C entries are 0
    sh_b = sh_ref[...]
    sc = sc_b[:, c:]                # (1, W2*C)
    sh = sh_b[:, c:]

    aee = jnp.maximum(yee_ref[0] * sc + sh, 0.0)          # even row, col 2w
    aoe = jnp.maximum(yoe_ref[0] * sc + sh, 0.0)          # odd  row, col 2w
    aeo_f = jnp.maximum(yeoc_ref[0] * sc_b + sh_b, 0.0)   # even row, odd cols (+pad)
    aoo_f = jnp.maximum(yooc_ref[0] * sc_b + sh_b, 0.0)   # odd  row, odd cols (+pad)

    lw = aee.shape[-1]
    # column (kx) max: taps 2w, 2w+1, 2w-1  (last one = shifted padded view)
    me = jnp.maximum(jnp.maximum(aee, aeo_f[:, c:]), aeo_f[:, :lw])   # row 2h
    mo = jnp.maximum(jnp.maximum(aoe, aoo_f[:, c:]), aoo_f[:, :lw])   # row 2h+1
    # row (ky) max: rows 2h, 2h+1, 2h-1 (shift mo down by one output row)
    mo_up = jnp.concatenate([jnp.zeros((1, lw), mo.dtype), mo[:-1, :]], axis=0)
    o_ref[0] = jnp.maximum(jnp.maximum(me, mo), mo_up)


def _mlp_kernel(x_ref, w1_ref, b1_ref, w2_ref, b2_ref, w3_ref, b3_ref, o_ref):
    """fc1 -> relu -> fc2 -> relu -> fc3, fused.  bf16 MXU operands, f32 math."""
    h = jnp.dot(x_ref[...], w1_ref[...], preferred_element_type=jnp.float32)
    h = jnp.maximum(h + b1_ref[...], 0.0)
    h = jnp.dot(h.astype(jnp.bfloat16), w2_ref[...],
                preferred_element_type=jnp.float32)
    h = jnp.maximum(h + b2_ref[...], 0.0)
    h = jnp.dot(h.astype(jnp.bfloat16), w3_ref[...],
                preferred_element_type=jnp.float32)
    o_ref[...] = h + b3_ref[...]


# ---------------------------------------------------------------------------
# Pallas wrappers
# ---------------------------------------------------------------------------
def _largest_row_tile(rows_per_image, cap=4096):
    """Largest multiple of 8 that divides rows_per_image and is <= cap."""
    best = 8
    d = 8
    while d <= min(rows_per_image, cap):
        if rows_per_image % d == 0:
            best = d
        d += 8
    return best


def conv3x3_s2_p1(x_nhwc, w_packed, bias):
    """Conv2d(Cin->Cout, k=3, s=2, p=1), NHWC in, returns (N*Ho*Wo, Cout) f32."""
    n, h, w, cin = x_nhwc.shape
    cout = w_packed.shape[-1]
    ho, wo = h // 2, w // 2
    xp = jnp.pad(x_nhwc, ((0, 0), (1, 1), (1, 1), (0, 0)))

    # pack all 9 taps (ky, kx) into one (M, 9*Cin) bf16 matrix; K order (ky,kx,ci)
    taps = []
    for ky in range(3):
        rows = xp[:, ky:ky + 2 * ho:2]                               # (N,Ho,W+2,Cin)
        for kx in range(3):
            taps.append(rows[:, :, kx:kx + 2 * wo:2, :])             # (N,Ho,Wo,Cin)
    a = jnp.stack(taps, axis=3)                                      # (N,Ho,Wo,9,Cin)
    a = a.reshape(n * ho * wo, 9 * cin).astype(jnp.bfloat16)

    k = 9 * cin
    m = n * ho * wo
    tm = _largest_row_tile(ho * wo)
    grid = (m // tm,)

    return pl.pallas_call(
        _conv_kernel,
        out_shape=jax.ShapeDtypeStruct((m, cout), jnp.float32),
        grid=grid,
        in_specs=[pl.BlockSpec((tm, k), lambda i: (i, 0)),
                  pl.BlockSpec((k, cout), lambda i: (0, 0)),
                  pl.BlockSpec((1, cout), lambda i: (0, 0))],
        out_specs=pl.BlockSpec((tm, cout), lambda i: (i, 0)),
        compiler_params=_cparams("parallel"),
    )(a, w_packed, bias)


def bn_relu_maxpool(y_rows, shape_nhwc, gamma, beta):
    """Training-mode BatchNorm + ReLU + MaxPool(3,2,1), fused in one kernel.

    y_rows: (N*Ho*Wo, C) f32 conv output (NHWC row order).
    Returns (N, Ho//2, (Wo//2)*C) f32 == NHWC (N, Ho/2, Wo/2, C) row-major.
    """
    n, ho, wo, c = shape_nhwc
    h2, w2 = ho // 2, wo // 2
    m = y_rows.shape[0]

    # single-pass batch statistics over (N, H, W) -- biased variance (PyTorch train)
    s1 = jnp.sum(y_rows, axis=0)
    s2 = jnp.sum(y_rows * y_rows, axis=0)
    mu = s1 / m
    var = jnp.maximum(s2 / m - mu * mu, 0.0)
    scale = gamma * jax.lax.rsqrt(var + EPS)
    shift = beta - mu * scale
    zero_c = jnp.zeros((c,), jnp.float32)
    sc_big = jnp.concatenate([zero_c, jnp.tile(scale, w2)]).reshape(1, (w2 + 1) * c)
    sh_big = jnp.concatenate([zero_c, jnp.tile(shift, w2)]).reshape(1, (w2 + 1) * c)

    y4 = y_rows.reshape(n, ho, wo, c)
    pad_col = ((0, 0), (0, 0), (1, 0), (0, 0))
    yee = y4[:, 0::2, 0::2, :].reshape(n, h2, w2 * c)
    yoe = y4[:, 1::2, 0::2, :].reshape(n, h2, w2 * c)
    yeoc = jnp.pad(y4[:, 0::2, 1::2, :], pad_col).reshape(n, h2, (w2 + 1) * c)
    yooc = jnp.pad(y4[:, 1::2, 1::2, :], pad_col).reshape(n, h2, (w2 + 1) * c)

    img_spec = pl.BlockSpec((1, h2, w2 * c), lambda i: (i, 0, 0))
    imgp_spec = pl.BlockSpec((1, h2, (w2 + 1) * c), lambda i: (i, 0, 0))
    vec_spec = pl.BlockSpec((1, (w2 + 1) * c), lambda i: (0, 0))

    return pl.pallas_call(
        functools.partial(_bn_relu_pool_kernel, c=c),
        out_shape=jax.ShapeDtypeStruct((n, h2, w2 * c), jnp.float32),
        grid=(n,),
        in_specs=[img_spec, imgp_spec, img_spec, imgp_spec, vec_spec, vec_spec],
        out_specs=pl.BlockSpec((1, h2, w2 * c), lambda i: (i, 0, 0)),
        compiler_params=_cparams("parallel"),
    )(yee, yeoc, yoe, yooc, sc_big, sh_big)


def mlp_head(x_bf16, w1, b1, w2, b2, w3, b3):
    m, k1 = x_bf16.shape
    d1, d2, d3 = w1.shape[1], w2.shape[1], w3.shape[1]

    def full(shape):
        return pl.BlockSpec(shape, lambda i, _n=len(shape): (0,) * _n)

    # single invocation on purpose: M = batch rows, all three FCs fused in VMEM
    return pl.pallas_call(
        _mlp_kernel,
        out_shape=jax.ShapeDtypeStruct((m, d3), jnp.float32),
        grid=(1,),
        in_specs=[full((m, k1)), full((k1, d1)), full((1, d1)),
                  full((d1, d2)), full((1, d2)),
                  full((d2, d3)), full((1, d3))],
        out_specs=full((m, d3)),
        compiler_params=_cparams("arbitrary"),
    )(x_bf16, w1, b1, w2, b2, w3, b3)


# ---------------------------------------------------------------------------
# Parameters + forward
# ---------------------------------------------------------------------------
def init_params(key, dim):
    ks = jax.random.split(key, 10)
    f32 = jnp.float32
    return {
        # PyTorch layouts: Conv2d (Cout, Cin, 3, 3), Linear (out, in)
        "conv1_w": 0.10 * jax.random.normal(ks[0], (12, dim[0], 3, 3), f32),
        "conv1_b": 0.05 * jax.random.normal(ks[1], (12,), f32),
        "conv2_w": 0.10 * jax.random.normal(ks[2], (12, 12, 3, 3), f32),
        "conv2_b": 0.05 * jax.random.normal(ks[3], (12,), f32),
        "bn1_gamma": jnp.ones((12,), f32), "bn1_beta": jnp.zeros((12,), f32),
        "bn2_gamma": jnp.ones((12,), f32), "bn2_beta": jnp.zeros((12,), f32),
        "fc1_w": 0.02 * jax.random.normal(ks[4], (dim[1], 14 * 14 * 12), f32),
        "fc1_b": 0.02 * jax.random.normal(ks[5], (dim[1],), f32),
        "fc2_w": 0.05 * jax.random.normal(ks[6], (dim[2], dim[1]), f32),
        "fc2_b": 0.02 * jax.random.normal(ks[7], (dim[2],), f32),
        "fc3_w": 0.05 * jax.random.normal(ks[8], (dim[3], dim[2]), f32),
        "fc3_b": 0.02 * jax.random.normal(ks[9], (dim[3],), f32),
    }


def _conv_weight_packed(w_oihw):
    """(Cout, Cin, 3, 3) -> (9*Cin, Cout) bf16 with K ordered (ky, kx, ci)."""
    cout, cin = w_oihw.shape[0], w_oihw.shape[1]
    w = jnp.transpose(w_oihw, (2, 3, 1, 0))          # (ky, kx, ci, co)
    return w.reshape(9 * cin, cout).astype(jnp.bfloat16)


def prepare_params(p):
    """One-time repack of PyTorch-layout params into kernel layouts."""
    d1 = p["fc1_w"].shape[0]
    # fc1 columns: PyTorch flatten order (c, h, w) -> our NHWC flatten (h, w, c)
    fc1 = p["fc1_w"].reshape(d1, 12, 14, 14).transpose(0, 2, 3, 1).reshape(d1, -1)
    return {
        "conv1_wk": _conv_weight_packed(p["conv1_w"]),
        "conv1_b": p["conv1_b"].reshape(1, -1),
        "conv2_wk": _conv_weight_packed(p["conv2_w"]),
        "conv2_b": p["conv2_b"].reshape(1, -1),
        "bn1_gamma": p["bn1_gamma"], "bn1_beta": p["bn1_beta"],
        "bn2_gamma": p["bn2_gamma"], "bn2_beta": p["bn2_beta"],
        "fc1_w": fc1.T.astype(jnp.bfloat16), "fc1_b": p["fc1_b"].reshape(1, -1),
        "fc2_w": p["fc2_w"].T.astype(jnp.bfloat16), "fc2_b": p["fc2_b"].reshape(1, -1),
        "fc3_w": p["fc3_w"].T.astype(jnp.bfloat16), "fc3_b": p["fc3_b"].reshape(1, -1),
    }


@jax.jit
def visual_modality_forward(prep, x_nchw):
    """x: (N, dim0, 224, 224) NCHW -> (N, dim3).  (fc1 hard-codes 14*14*12.)"""
    n = x_nchw.shape[0]
    x = jnp.transpose(x_nchw, (0, 2, 3, 1))                      # boundary NCHW->NHWC

    # conv1(+bias) -> bn1(batch stats)+relu+pool1 (fused), all NHWC
    y = conv3x3_s2_p1(x, prep["conv1_wk"], prep["conv1_b"])      # (N*112*112, 12)
    y = bn_relu_maxpool(y, (n, 112, 112, 12),
                        prep["bn1_gamma"], prep["bn1_beta"])     # (N, 56, 56*12)

    # conv2(+bias) -> bn2+relu+pool2 (fused)
    y = conv3x3_s2_p1(y.reshape(n, 56, 56, 12),
                      prep["conv2_wk"], prep["conv2_b"])         # (N*28*28, 12)
    y = bn_relu_maxpool(y, (n, 28, 28, 12),
                        prep["bn2_gamma"], prep["bn2_beta"])     # (N, 14, 14*12)

    # flatten in (h, w, c) order (fc1 weights permuted to match), fused MLP
    y = y.reshape(n, 14 * 14 * 12).astype(jnp.bfloat16)
    return mlp_head(y, prep["fc1_w"], prep["fc1_b"],
                    prep["fc2_w"], prep["fc2_b"],
                    prep["fc3_w"], prep["fc3_b"])


if __name__ == "__main__":
    # fc1 hard-codes in_features = 14*14*12, which implies 224x224 spatial input.
    dim = (3, 64, 32, 10)        # (in_channels, hidden1, hidden2, out)
    batch = 2

    key = jax.random.PRNGKey(0)
    kx, kp = jax.random.split(key)
    x = jax.random.normal(kx, (batch, dim[0], 224, 224), dtype=jnp.float32)
    params = init_params(kp, dim)
    prep = prepare_params(params)

    out = visual_modality_forward(prep, x)
    out = jax.block_until_ready(out)
    assert out.shape == (batch, dim[3]) and out.dtype == jnp.float32
    assert bool(jnp.all(jnp.isfinite(out)))
    print("KERNEL_OK")
</pallas_src>

<mosaic_0001>
module attributes {stable_mosaic.version = 11 : i64} {
  func.func @_conv_kernel(%arg0: i32, %arg1: memref<3136x27xbf16, #tpu.memory_space<vmem>>, %arg2: memref<27x12xbf16, #tpu.memory_space<vmem>>, %arg3: memref<1x12xf32, #tpu.memory_space<vmem>>, %arg4: memref<3136x12xf32, #tpu.memory_space<vmem>>) attributes {dimension_semantics = [#tpu.dimension_semantics<parallel>], iteration_bounds = array<i64: 8>, scalar_prefetch = 0 : i64, scratch_operands = 0 : i64, tpu.core_type = #tpu.core_type<tc>, window_params = [{transform_indices = @transform_0, window_bounds = array<i64: 3136, 27>}, {pipeline_mode = #tpu.pipeline_mode<synchronous>, transform_indices = @transform_1, window_bounds = array<i64: 27, 12>}, {pipeline_mode = #tpu.pipeline_mode<synchronous>, transform_indices = @transform_2, window_bounds = array<i64: 1, 12>}, {transform_indices = @transform_3, window_bounds = array<i64: 3136, 12>}]} {
    %c0 = arith.constant 0 : index
    %c0_0 = arith.constant 0 : index
    %0 = vector.load %arg1[%c0, %c0_0] : memref<3136x27xbf16, #tpu.memory_space<vmem>>, vector<3136x27xbf16>
    %c0_1 = arith.constant 0 : index
    %c0_2 = arith.constant 0 : index
    %1 = vector.load %arg2[%c0_1, %c0_2] : memref<27x12xbf16, #tpu.memory_space<vmem>>, vector<27x12xbf16>
    %cst = arith.constant dense<0.000000e+00> : vector<3136x12xf32>
    %2 = tpu.matmul %0, %1, %cst {dimension_numbers = #tpu.dot_dimension_numbers<[1], [0], [0], [1], [0, 0, 1, 1], [], []>} : vector<3136x27xbf16>, vector<27x12xbf16>, vector<3136x12xf32> -> vector<3136x12xf32>
    %c0_3 = arith.constant 0 : index
    %c0_4 = arith.constant 0 : index
    %3 = vector.load %arg3[%c0_3, %c0_4] : memref<1x12xf32, #tpu.memory_space<vmem>>, vector<1x12xf32>
    %4 = vector.broadcast %3 : vector<1x12xf32> to vector<3136x12xf32>
    %5 = arith.addf %2, %4 : vector<3136x12xf32>
    %c0_5 = arith.constant 0 : index
    %c0_6 = arith.constant 0 : index
    %6 = vector.load %arg4[%c0_5, %c0_6] : memref<3136x12xf32, #tpu.memory_space<vmem>>, vector<3136x12xf32>
    tpu.vector_store %arg4[%c0_5, %c0_6], %5 {strides = array<i32>} : memref<3136x12xf32, #tpu.memory_space<vmem>>, vector<3136x12xf32>,
    return
  }
  func.func @transform_0(%arg0: i32) -> (i32, i32) {
    %c0_i32 = arith.constant 0 : i32
    %c0_i32_0 = arith.constant 0 : i32
    return %arg0, %c0_i32 : i32, i32
  }
  func.func @transform_1(%arg0: i32) -> (i32, i32) {
    %c0_i32 = arith.constant 0 : i32
    %c0_i32_0 = arith.constant 0 : i32
    %c0_i32_1 = arith.constant 0 : i32
    return %c0_i32, %c0_i32_0 : i32, i32
  }
  func.func @transform_2(%arg0: i32) -> (i32, i32) {
    %c0_i32 = arith.constant 0 : i32
    %c0_i32_0 = arith.constant 0 : i32
    %c0_i32_1 = arith.constant 0 : i32
    return %c0_i32, %c0_i32_0 : i32, i32
  }
  func.func @transform_3(%arg0: i32) -> (i32, i32) {
    %c0_i32 = arith.constant 0 : i32
    %c0_i32_0 = arith.constant 0 : i32
    return %arg0, %c0_i32 : i32, i32
  }
}

module attributes {stable_mosaic.version = 11 : i64} {
  func.func @_bn_relu_pool_kernel(%arg0: i32, %arg1: memref<1x56x672xf32, #tpu.memory_space<vmem>>, %arg2: memref<1x56x684xf32, #tpu.memory_space<vmem>>, %arg3: memref<1x56x672xf32, #tpu.memory_space<vmem>>, %arg4: memref<1x56x684xf32, #tpu.memory_space<vmem>>, %arg5: memref<1x684xf32, #tpu.memory_space<vmem>>, %arg6: memref<1x684xf32, #tpu.memory_space<vmem>>, %arg7: memref<1x56x672xf32, #tpu.memory_space<vmem>>) attributes {dimension_semantics = [#tpu.dimension_semantics<parallel>], iteration_bounds = array<i64: 2>, scalar_prefetch = 0 : i64, scratch_operands = 0 : i64, tpu.core_type = #tpu.core_type<tc>, window_params = [{transform_indices = @transform_0, window_bounds = array<i64: 1, 56, 672>}, {transform_indices = @transform_1, window_bounds = array<i64: 1, 56, 684>}, {transform_indices = @transform_2, window_bounds = array<i64: 1, 56, 672>}, {transform_indices = @transform_3, window_bounds = array<i64: 1, 56, 684>}, {pipeline_mode = #tpu.pipeline_mode<synchronous>, transform_indices = @transform_4, window_bounds = array<i64: 1, 684>}, {pipeline_mode = #tpu.pipeline_mode<synchronous>, transform_indices = @transform_5, window_bounds = array<i64: 1, 684>}, {transform_indices = @transform_6, window_bounds = array<i64: 1, 56, 672>}]} {
    %c0 = arith.constant 0 : index
    %c0_0 = arith.constant 0 : index
    %0 = vector.load %arg5[%c0, %c0_0] : memref<1x684xf32, #tpu.memory_space<vmem>>, vector<1x684xf32>
    %c0_1 = arith.constant 0 : index
    %c0_2 = arith.constant 0 : index
    %1 = vector.load %arg6[%c0_1, %c0_2] : memref<1x684xf32, #tpu.memory_space<vmem>>, vector<1x684xf32>
    %2 = vector.extract_strided_slice %0 {offsets = [0, 12], sizes = [1, 672], strides = [1, 1]} : vector<1x684xf32> to vector<1x672xf32>
    %3 = vector.extract_strided_slice %1 {offsets = [0, 12], sizes = [1, 672], strides = [1, 1]} : vector<1x684xf32> to vector<1x672xf32>
    %c0_3 = arith.constant 0 : index
    %c0_4 = arith.constant 0 : index
    %c0_5 = arith.constant 0 : index
    %4 = vector.load %arg1[%c0_3, %c0_4, %c0_5] : memref<1x56x672xf32, #tpu.memory_space<vmem>>, vector<1x56x672xf32>
    %5 = vector.shape_cast %4 : vector<1x56x672xf32> to vector<56x672xf32>
    %6 = vector.broadcast %2 : vector<1x672xf32> to vector<56x672xf32>
    %7 = arith.mulf %5, %6 : vector<56x672xf32>
    %8 = vector.broadcast %3 : vector<1x672xf32> to vector<56x672xf32>
    %9 = arith.addf %7, %8 : vector<56x672xf32>
    %cst = arith.constant 0.000000e+00 : f32
    %10 = vector.broadcast %cst : f32 to vector<56x672xf32>
    %11 = arith.maximumf %9, %10 : vector<56x672xf32>
    %c0_6 = arith.constant 0 : index
    %c0_7 = arith.constant 0 : index
    %c0_8 = arith.constant 0 : index
    %12 = vector.load %arg3[%c0_6, %c0_7, %c0_8] : memref<1x56x672xf32, #tpu.memory_space<vmem>>, vector<1x56x672xf32>
    %13 = vector.shape_cast %12 : vector<1x56x672xf32> to vector<56x672xf32>
    %14 = vector.broadcast %2 : vector<1x672xf32> to vector<56x672xf32>
    %15 = arith.mulf %13, %14 : vector<56x672xf32>
    %16 = vector.broadcast %3 : vector<1x672xf32> to vector<56x672xf32>
    %17 = arith.addf %15, %16 : vector<56x672xf32>
    %cst_9 = arith.constant 0.000000e+00 : f32
    %18 = vector.broadcast %cst_9 : f32 to vector<56x672xf32>
    %19 = arith.maximumf %17, %18 : vector<56x672xf32>
    %c0_10 = arith.constant 0 : index
    %c0_11 = arith.constant 0 : index
    %c0_12 = arith.constant 0 : index
    %20 = vector.load %arg2[%c0_10, %c0_11, %c0_12] : memref<1x56x684xf32, #tpu.memory_space<vmem>>, vector<1x56x684xf32>
    %21 = vector.shape_cast %20 : vector<1x56x684xf32> to vector<56x684xf32>
    %22 = vector.broadcast %0 : vector<1x684xf32> to vector<56x684xf32>
    %23 = arith.mulf %21, %22 : vector<56x684xf32>
    %24 = vector.broadcast %1 : vector<1x684xf32> to vector<56x684xf32>
    %25 = arith.addf %23, %24 : vector<56x684xf32>
    %cst_13 = arith.constant 0.000000e+00 : f32
    %26 = vector.broadcast %cst_13 : f32 to vector<56x684xf32>
    %27 = arith.maximumf %25, %26 : vector<56x684xf32>
    %c0_14 = arith.constant 0 : index
    %c0_15 = arith.constant 0 : index
    %c0_16 = arith.constant 0 : index
    %28 = vector.load %arg4[%c0_14, %c0_15, %c0_16] : memref<1x56x684xf32, #tpu.memory_space<vmem>>, vector<1x56x684xf32>
    %29 = vector.shape_cast %28 : vector<1x56x684xf32> to vector<56x684xf32>
    %30 = vector.broadcast %0 : vector<1x684xf32> to vector<56x684xf32>
    %31 = arith.mulf %29, %30 : vector<56x684xf32>
    %32 = vector.broadcast %1 : vector<1x684xf32> to vector<56x684xf32>
    %33 = arith.addf %31, %32 : vector<56x684xf32>
    %cst_17 = arith.constant 0.000000e+00 : f32
    %34 = vector.broadcast %cst_17 : f32 to vector<56x684xf32>
    %35 = arith.maximumf %33, %34 : vector<56x684xf32>
    %36 = vector.extract_strided_slice %27 {offsets = [0, 12], sizes = [56, 672], strides = [1, 1]} : vector<56x684xf32> to vector<56x672xf32>
    %37 = arith.maximumf %11, %36 : vector<56x672xf32>
    %38 = vector.extract_strided_slice %27 {offsets = [0, 0], sizes = [56, 672], strides = [1, 1]} : vector<56x684xf32> to vector<56x672xf32>
    %39 = arith.maximumf %37, %38 : vector<56x672xf32>
    %40 = vector.extract_strided_slice %35 {offsets = [0, 12], sizes = [56, 672], strides = [1, 1]} : vector<56x684xf32> to vector<56x672xf32>
    %41 = arith.maximumf %19, %40 : vector<56x672xf32>
    %42 = vector.extract_strided_slice %35 {offsets = [0, 0], sizes = [56, 672], strides = [1, 1]} : vector<56x684xf32> to vector<56x672xf32>
    %43 = arith.maximumf %41, %42 : vector<56x672xf32>
    %cst_18 = arith.constant 0.000000e+00 : f32
    %44 = vector.broadcast %cst_18 : f32 to vector<1x672xf32>
    %45 = vector.extract_strided_slice %43 {offsets = [0, 0], sizes = [55, 672], strides = [1, 1]} : vector<56x672xf32> to vector<55x672xf32>
    %46 = tpu.concatenate %44, %45 in 0 : vector<1x672xf32>, vector<55x672xf32> -> vector<56x672xf32>
    %47 = arith.maximumf %39, %43 : vector<56x672xf32>
    %48 = arith.maximumf %47, %46 : vector<56x672xf32>
    %c0_19 = arith.constant 0 : index
    %c0_20 = arith.constant 0 : index
    %c0_21 = arith.constant 0 : index
    %49 = vector.load %arg7[%c0_19, %c0_20, %c0_21] : memref<1x56x672xf32, #tpu.memory_space<vmem>>, vector<1x56x672xf32>
    %50 = vector.shape_cast %49 : vector<1x56x672xf32> to vector<56x672xf32>
    %51 = vector.shape_cast %48 : vector<56x672xf32> to vector<1x56x672xf32>
    tpu.vector_store %arg7[%c0_19, %c0_20, %c0_21], %51 {strides = array<i32>} : memref<1x56x672xf32, #tpu.memory_space<vmem>>, vector<1x56x672xf32>,
    return
  }
  func.func @transform_0(%arg0: i32) -> (i32, i32, i32) {
    %c0_i32 = arith.constant 0 : i32
    %c0_i32_0 = arith.constant 0 : i32
    %c0_i32_1 = arith.constant 0 : i32
    return %arg0, %c0_i32, %c0_i32_0 : i32, i32, i32
  }
  func.func @transform_1(%arg0: i32) -> (i32, i32, i32) {
    %c0_i32 = arith.constant 0 : i32
    %c0_i32_0 = arith.constant 0 : i32
    %c0_i32_1 = arith.constant 0 : i32
    return %arg0, %c0_i32, %c0_i32_0 : i32, i32, i32
  }
  func.func @transform_2(%arg0: i32) -> (i32, i32, i32) {
    %c0_i32 = arith.constant 0 : i32
    %c0_i32_0 = arith.constant 0 : i32
    %c0_i32_1 = arith.constant 0 : i32
    return %arg0, %c0_i32, %c0_i32_0 : i32, i32, i32
  }
  func.func @transform_3(%arg0: i32) -> (i32, i32, i32) {
    %c0_i32 = arith.constant 0 : i32
    %c0_i32_0 = arith.constant 0 : i32
    %c0_i32_1 = arith.constant 0 : i32
    return %arg0, %c0_i32, %c0_i32_0 : i32, i32, i32
  }
  func.func @transform_4(%arg0: i32) -> (i32, i32) {
    %c0_i32 = arith.constant 0 : i32
    %c0_i32_0 = arith.constant 0 : i32
    %c0_i32_1 = arith.constant 0 : i32
    return %c0_i32, %c0_i32_0 : i32, i32
  }
  func.func @transform_5(%arg0: i32) -> (i32, i32) {
    %c0_i32 = arith.constant 0 : i32
    %c0_i32_0 = arith.constant 0 : i32
    %c0_i32_1 = arith.constant 0 : i32
    return %c0_i32, %c0_i32_0 : i32, i32
  }
  func.func @transform_6(%arg0: i32) -> (i32, i32, i32) {
    %c0_i32 = arith.constant 0 : i32
    %c0_i32_0 = arith.constant 0 : i32
    %c0_i32_1 = arith.constant 0 : i32
    return %arg0, %c0_i32, %c0_i32_0 : i32, i32, i32
  }
}

module attributes {stable_mosaic.version = 11 : i64} {
  func.func @_conv_kernel(%arg0: i32, %arg1: memref<784x108xbf16, #tpu.memory_space<vmem>>, %arg2: memref<108x12xbf16, #tpu.memory_space<vmem>>, %arg3: memref<1x12xf32, #tpu.memory_space<vmem>>, %arg4: memref<784x12xf32, #tpu.memory_space<vmem>>) attributes {dimension_semantics = [#tpu.dimension_semantics<parallel>], iteration_bounds = array<i64: 2>, scalar_prefetch = 0 : i64, scratch_operands = 0 : i64, tpu.core_type = #tpu.core_type<tc>, window_params = [{transform_indices = @transform_0, window_bounds = array<i64: 784, 108>}, {pipeline_mode = #tpu.pipeline_mode<synchronous>, transform_indices = @transform_1, window_bounds = array<i64: 108, 12>}, {pipeline_mode = #tpu.pipeline_mode<synchronous>, transform_indices = @transform_2, window_bounds = array<i64: 1, 12>}, {transform_indices = @transform_3, window_bounds = array<i64: 784, 12>}]} {
    %c0 = arith.constant 0 : index
    %c0_0 = arith.constant 0 : index
    %0 = vector.load %arg1[%c0, %c0_0] : memref<784x108xbf16, #tpu.memory_space<vmem>>, vector<784x108xbf16>
    %c0_1 = arith.constant 0 : index
    %c0_2 = arith.constant 0 : index
    %1 = vector.load %arg2[%c0_1, %c0_2] : memref<108x12xbf16, #tpu.memory_space<vmem>>, vector<108x12xbf16>
    %cst = arith.constant dense<0.000000e+00> : vector<784x12xf32>
    %2 = tpu.matmul %0, %1, %cst {dimension_numbers = #tpu.dot_dimension_numbers<[1], [0], [0], [1], [0, 0, 1, 1], [], []>} : vector<784x108xbf16>, vector<108x12xbf16>, vector<784x12xf32> -> vector<784x12xf32>
    %c0_3 = arith.constant 0 : index
    %c0_4 = arith.constant 0 : index
    %3 = vector.load %arg3[%c0_3, %c0_4] : memref<1x12xf32, #tpu.memory_space<vmem>>, vector<1x12xf32>
    %4 = vector.broadcast %3 : vector<1x12xf32> to vector<784x12xf32>
    %5 = arith.addf %2, %4 : vector<784x12xf32>
    %c0_5 = arith.constant 0 : index
    %c0_6 = arith.constant 0 : index
    %6 = vector.load %arg4[%c0_5, %c0_6] : memref<784x12xf32, #tpu.memory_space<vmem>>, vector<784x12xf32>
    tpu.vector_store %arg4[%c0_5, %c0_6], %5 {strides = array<i32>} : memref<784x12xf32, #tpu.memory_space<vmem>>, vector<784x12xf32>,
    return
  }
  func.func @transform_0(%arg0: i32) -> (i32, i32) {
    %c0_i32 = arith.constant 0 : i32
    %c0_i32_0 = arith.constant 0 : i32
    return %arg0, %c0_i32 : i32, i32
  }
  func.func @transform_1(%arg0: i32) -> (i32, i32) {
    %c0_i32 = arith.constant 0 : i32
    %c0_i32_0 = arith.constant 0 : i32
    %c0_i32_1 = arith.constant 0 : i32
    return %c0_i32, %c0_i32_0 : i32, i32
  }
  func.func @transform_2(%arg0: i32) -> (i32, i32) {
    %c0_i32 = arith.constant 0 : i32
    %c0_i32_0 = arith.constant 0 : i32
    %c0_i32_1 = arith.constant 0 : i32
    return %c0_i32, %c0_i32_0 : i32, i32
  }
  func.func @transform_3(%arg0: i32) -> (i32, i32) {
    %c0_i32 = arith.constant 0 : i32
    %c0_i32_0 = arith.constant 0 : i32
    return %arg0, %c0_i32 : i32, i32
  }
}

module attributes {stable_mosaic.version = 11 : i64} {
  func.func @_bn_relu_pool_kernel(%arg0: i32, %arg1: memref<1x14x168xf32, #tpu.memory_space<vmem>>, %arg2: memref<1x14x180xf32, #tpu.memory_space<vmem>>, %arg3: memref<1x14x168xf32, #tpu.memory_space<vmem>>, %arg4: memref<1x14x180xf32, #tpu.memory_space<vmem>>, %arg5: memref<1x180xf32, #tpu.memory_space<vmem>>, %arg6: memref<1x180xf32, #tpu.memory_space<vmem>>, %arg7: memref<1x14x168xf32, #tpu.memory_space<vmem>>) attributes {dimension_semantics = [#tpu.dimension_semantics<parallel>], iteration_bounds = array<i64: 2>, scalar_prefetch = 0 : i64, scratch_operands = 0 : i64, tpu.core_type = #tpu.core_type<tc>, window_params = [{transform_indices = @transform_0, window_bounds = array<i64: 1, 14, 168>}, {transform_indices = @transform_1, window_bounds = array<i64: 1, 14, 180>}, {transform_indices = @transform_2, window_bounds = array<i64: 1, 14, 168>}, {transform_indices = @transform_3, window_bounds = array<i64: 1, 14, 180>}, {pipeline_mode = #tpu.pipeline_mode<synchronous>, transform_indices = @transform_4, window_bounds = array<i64: 1, 180>}, {pipeline_mode = #tpu.pipeline_mode<synchronous>, transform_indices = @transform_5, window_bounds = array<i64: 1, 180>}, {transform_indices = @transform_6, window_bounds = array<i64: 1, 14, 168>}]} {
    %c0 = arith.constant 0 : index
    %c0_0 = arith.constant 0 : index
    %0 = vector.load %arg5[%c0, %c0_0] : memref<1x180xf32, #tpu.memory_space<vmem>>, vector<1x180xf32>
    %c0_1 = arith.constant 0 : index
    %c0_2 = arith.constant 0 : index
    %1 = vector.load %arg6[%c0_1, %c0_2] : memref<1x180xf32, #tpu.memory_space<vmem>>, vector<1x180xf32>
    %2 = vector.extract_strided_slice %0 {offsets = [0, 12], sizes = [1, 168], strides = [1, 1]} : vector<1x180xf32> to vector<1x168xf32>
    %3 = vector.extract_strided_slice %1 {offsets = [0, 12], sizes = [1, 168], strides = [1, 1]} : vector<1x180xf32> to vector<1x168xf32>
    %c0_3 = arith.constant 0 : index
    %c0_4 = arith.constant 0 : index
    %c0_5 = arith.constant 0 : index
    %4 = vector.load %arg1[%c0_3, %c0_4, %c0_5] : memref<1x14x168xf32, #tpu.memory_space<vmem>>, vector<1x14x168xf32>
    %5 = vector.shape_cast %4 : vector<1x14x168xf32> to vector<14x168xf32>
    %6 = vector.broadcast %2 : vector<1x168xf32> to vector<14x168xf32>
    %7 = arith.mulf %5, %6 : vector<14x168xf32>
    %8 = vector.broadcast %3 : vector<1x168xf32> to vector<14x168xf32>
    %9 = arith.addf %7, %8 : vector<14x168xf32>
    %cst = arith.constant 0.000000e+00 : f32
    %10 = vector.broadcast %cst : f32 to vector<14x168xf32>
    %11 = arith.maximumf %9, %10 : vector<14x168xf32>
    %c0_6 = arith.constant 0 : index
    %c0_7 = arith.constant 0 : index
    %c0_8 = arith.constant 0 : index
    %12 = vector.load %arg3[%c0_6, %c0_7, %c0_8] : memref<1x14x168xf32, #tpu.memory_space<vmem>>, vector<1x14x168xf32>
    %13 = vector.shape_cast %12 : vector<1x14x168xf32> to vector<14x168xf32>
    %14 = vector.broadcast %2 : vector<1x168xf32> to vector<14x168xf32>
    %15 = arith.mulf %13, %14 : vector<14x168xf32>
    %16 = vector.broadcast %3 : vector<1x168xf32> to vector<14x168xf32>
    %17 = arith.addf %15, %16 : vector<14x168xf32>
    %cst_9 = arith.constant 0.000000e+00 : f32
    %18 = vector.broadcast %cst_9 : f32 to vector<14x168xf32>
    %19 = arith.maximumf %17, %18 : vector<14x168xf32>
    %c0_10 = arith.constant 0 : index
    %c0_11 = arith.constant 0 : index
    %c0_12 = arith.constant 0 : index
    %20 = vector.load %arg2[%c0_10, %c0_11, %c0_12] : memref<1x14x180xf32, #tpu.memory_space<vmem>>, vector<1x14x180xf32>
    %21 = vector.shape_cast %20 : vector<1x14x180xf32> to vector<14x180xf32>
    %22 = vector.broadcast %0 : vector<1x180xf32> to vector<14x180xf32>
    %23 = arith.mulf %21, %22 : vector<14x180xf32>
    %24 = vector.broadcast %1 : vector<1x180xf32> to vector<14x180xf32>
    %25 = arith.addf %23, %24 : vector<14x180xf32>
    %cst_13 = arith.constant 0.000000e+00 : f32
    %26 = vector.broadcast %cst_13 : f32 to vector<14x180xf32>
    %27 = arith.maximumf %25, %26 : vector<14x180xf32>
    %c0_14 = arith.constant 0 : index
    %c0_15 = arith.constant 0 : index
    %c0_16 = arith.constant 0 : index
    %28 = vector.load %arg4[%c0_14, %c0_15, %c0_16] : memref<1x14x180xf32, #tpu.memory_space<vmem>>, vector<1x14x180xf32>
    %29 = vector.shape_cast %28 : vector<1x14x180xf32> to vector<14x180xf32>
    %30 = vector.broadcast %0 : vector<1x180xf32> to vector<14x180xf32>
    %31 = arith.mulf %29, %30 : vector<14x180xf32>
    %32 = vector.broadcast %1 : vector<1x180xf32> to vector<14x180xf32>
    %33 = arith.addf %31, %32 : vector<14x180xf32>
    %cst_17 = arith.constant 0.000000e+00 : f32
    %34 = vector.broadcast %cst_17 : f32 to vector<14x180xf32>
    %35 = arith.maximumf %33, %34 : vector<14x180xf32>
    %36 = vector.extract_strided_slice %27 {offsets = [0, 12], sizes = [14, 168], strides = [1, 1]} : vector<14x180xf32> to vector<14x168xf32>
    %37 = arith.maximumf %11, %36 : vector<14x168xf32>
    %38 = vector.extract_strided_slice %27 {offsets = [0, 0], sizes = [14, 168], strides = [1, 1]} : vector<14x180xf32> to vector<14x168xf32>
    %39 = arith.maximumf %37, %38 : vector<14x168xf32>
    %40 = vector.extract_strided_slice %35 {offsets = [0, 12], sizes = [14, 168], strides = [1, 1]} : vector<14x180xf32> to vector<14x168xf32>
    %41 = arith.maximumf %19, %40 : vector<14x168xf32>
    %42 = vector.extract_strided_slice %35 {offsets = [0, 0], sizes = [14, 168], strides = [1, 1]} : vector<14x180xf32> to vector<14x168xf32>
    %43 = arith.maximumf %41, %42 : vector<14x168xf32>
    %cst_18 = arith.constant 0.000000e+00 : f32
    %44 = vector.broadcast %cst_18 : f32 to vector<1x168xf32>
    %45 = vector.extract_strided_slice %43 {offsets = [0, 0], sizes = [13, 168], strides = [1, 1]} : vector<14x168xf32> to vector<13x168xf32>
    %46 = tpu.concatenate %44, %45 in 0 : vector<1x168xf32>, vector<13x168xf32> -> vector<14x168xf32>
    %47 = arith.maximumf %39, %43 : vector<14x168xf32>
    %48 = arith.maximumf %47, %46 : vector<14x168xf32>
    %c0_19 = arith.constant 0 : index
    %c0_20 = arith.constant 0 : index
    %c0_21 = arith.constant 0 : index
    %49 = vector.load %arg7[%c0_19, %c0_20, %c0_21] : memref<1x14x168xf32, #tpu.memory_space<vmem>>, vector<1x14x168xf32>
    %50 = vector.shape_cast %49 : vector<1x14x168xf32> to vector<14x168xf32>
    %51 = vector.shape_cast %48 : vector<14x168xf32> to vector<1x14x168xf32>
    tpu.vector_store %arg7[%c0_19, %c0_20, %c0_21], %51 {strides = array<i32>} : memref<1x14x168xf32, #tpu.memory_space<vmem>>, vector<1x14x168xf32>,
    return
  }
  func.func @transform_0(%arg0: i32) -> (i32, i32, i32) {
    %c0_i32 = arith.constant 0 : i32
    %c0_i32_0 = arith.constant 0 : i32
    %c0_i32_1 = arith.constant 0 : i32
    return %arg0, %c0_i32, %c0_i32_0 : i32, i32, i32
  }
  func.func @transform_1(%arg0: i32) -> (i32, i32, i32) {
    %c0_i32 = arith.constant 0 : i32
    %c0_i32_0 = arith.constant 0 : i32
    %c0_i32_1 = arith.constant 0 : i32
    return %arg0, %c0_i32, %c0_i32_0 : i32, i32, i32
  }
  func.func @transform_2(%arg0: i32) -> (i32, i32, i32) {
    %c0_i32 = arith.constant 0 : i32
    %c0_i32_0 = arith.constant 0 : i32
    %c0_i32_1 = arith.constant 0 : i32
    return %arg0, %c0_i32, %c0_i32_0 : i32, i32, i32
  }
  func.func @transform_3(%arg0: i32) -> (i32, i32, i32) {
    %c0_i32 = arith.constant 0 : i32
    %c0_i32_0 = arith.constant 0 : i32
    %c0_i32_1 = arith.constant 0 : i32
    return %arg0, %c0_i32, %c0_i32_0 : i32, i32, i32
  }
  func.func @transform_4(%arg0: i32) -> (i32, i32) {
    %c0_i32 = arith.constant 0 : i32
    %c0_i32_0 = arith.constant 0 : i32
    %c0_i32_1 = arith.constant 0 : i32
    return %c0_i32, %c0_i32_0 : i32, i32
  }
  func.func @transform_5(%arg0: i32) -> (i32, i32) {
    %c0_i32 = arith.constant 0 : i32
    %c0_i32_0 = arith.constant 0 : i32
    %c0_i32_1 = arith.constant 0 : i32
    return %c0_i32, %c0_i32_0 : i32, i32
  }
  func.func @transform_6(%arg0: i32) -> (i32, i32, i32) {
    %c0_i32 = arith.constant 0 : i32
    %c0_i32_0 = arith.constant 0 : i32
    %c0_i32_1 = arith.constant 0 : i32
    return %arg0, %c0_i32, %c0_i32_0 : i32, i32, i32
  }
}

module attributes {stable_mosaic.version = 11 : i64} {
  func.func @_mlp_kernel(%arg0: i32, %arg1: memref<2x2352xbf16, #tpu.memory_space<vmem>>, %arg2: memref<2352x64xbf16, #tpu.memory_space<vmem>>, %arg3: memref<1x64xf32, #tpu.memory_space<vmem>>, %arg4: memref<64x32xbf16, #tpu.memory_space<vmem>>, %arg5: memref<1x32xf32, #tpu.memory_space<vmem>>, %arg6: memref<32x10xbf16, #tpu.memory_space<vmem>>, %arg7: memref<1x10xf32, #tpu.memory_space<vmem>>, %arg8: memref<2x10xf32, #tpu.memory_space<vmem>>) attributes {dimension_semantics = [#tpu.dimension_semantics<arbitrary>], iteration_bounds = array<i64: 1>, scalar_prefetch = 0 : i64, scratch_operands = 0 : i64, tpu.core_type = #tpu.core_type<tc>, window_params = [{pipeline_mode = #tpu.pipeline_mode<synchronous>, transform_indices = @transform_0, window_bounds = array<i64: 2, 2352>}, {pipeline_mode = #tpu.pipeline_mode<synchronous>, transform_indices = @transform_1, window_bounds = array<i64: 2352, 64>}, {pipeline_mode = #tpu.pipeline_mode<synchronous>, transform_indices = @transform_2, window_bounds = array<i64: 1, 64>}, {pipeline_mode = #tpu.pipeline_mode<synchronous>, transform_indices = @transform_3, window_bounds = array<i64: 64, 32>}, {pipeline_mode = #tpu.pipeline_mode<synchronous>, transform_indices = @transform_4, window_bounds = array<i64: 1, 32>}, {pipeline_mode = #tpu.pipeline_mode<synchronous>, transform_indices = @transform_5, window_bounds = array<i64: 32, 10>}, {pipeline_mode = #tpu.pipeline_mode<synchronous>, transform_indices = @transform_6, window_bounds = array<i64: 1, 10>}, {pipeline_mode = #tpu.pipeline_mode<synchronous>, transform_indices = @transform_7, window_bounds = array<i64: 2, 10>}]} {
    %c0 = arith.constant 0 : index
    %c0_0 = arith.constant 0 : index
    %0 = vector.load %arg1[%c0, %c0_0] : memref<2x2352xbf16, #tpu.memory_space<vmem>>, vector<2x2352xbf16>
    %c0_1 = arith.constant 0 : index
    %c0_2 = arith.constant 0 : index
    %1 = vector.load %arg2[%c0_1, %c0_2] : memref<2352x64xbf16, #tpu.memory_space<vmem>>, vector<2352x64xbf16>
    %cst = arith.constant dense<0.000000e+00> : vector<2x64xf32>
    %2 = tpu.matmul %0, %1, %cst {dimension_numbers = #tpu.dot_dimension_numbers<[1], [0], [0], [1], [0, 0, 1, 1], [], []>} : vector<2x2352xbf16>, vector<2352x64xbf16>, vector<2x64xf32> -> vector<2x64xf32>
    %c0_3 = arith.constant 0 : index
    %c0_4 = arith.constant 0 : index
    %3 = vector.load %arg3[%c0_3, %c0_4] : memref<1x64xf32, #tpu.memory_space<vmem>>, vector<1x64xf32>
    %4 = vector.broadcast %3 : vector<1x64xf32> to vector<2x64xf32>
    %5 = arith.addf %2, %4 : vector<2x64xf32>
    %cst_5 = arith.constant 0.000000e+00 : f32
    %6 = vector.broadcast %cst_5 : f32 to vector<2x64xf32>
    %7 = arith.maximumf %5, %6 : vector<2x64xf32>
    %8 = arith.truncf %7 : vector<2x64xf32> to vector<2x64xbf16>
    %c0_6 = arith.constant 0 : index
    %c0_7 = arith.constant 0 : index
    %9 = vector.load %arg4[%c0_6, %c0_7] : memref<64x32xbf16, #tpu.memory_space<vmem>>, vector<64x32xbf16>
    %cst_8 = arith.constant dense<0.000000e+00> : vector<2x32xf32>
    %10 = tpu.matmul %8, %9, %cst_8 {dimension_numbers = #tpu.dot_dimension_numbers<[1], [0], [0], [1], [0, 0, 1, 1], [], []>} : vector<2x64xbf16>, vector<64x32xbf16>, vector<2x32xf32> -> vector<2x32xf32>
    %c0_9 = arith.constant 0 : index
    %c0_10 = arith.constant 0 : index
    %11 = vector.load %arg5[%c0_9, %c0_10] : memref<1x32xf32, #tpu.memory_space<vmem>>, vector<1x32xf32>
    %12 = vector.broadcast %11 : vector<1x32xf32> to vector<2x32xf32>
    %13 = arith.addf %10, %12 : vector<2x32xf32>
    %cst_11 = arith.constant 0.000000e+00 : f32
    %14 = vector.broadcast %cst_11 : f32 to vector<2x32xf32>
    %15 = arith.maximumf %13, %14 : vector<2x32xf32>
    %16 = arith.truncf %15 : vector<2x32xf32> to vector<2x32xbf16>
    %c0_12 = arith.constant 0 : index
    %c0_13 = arith.constant 0 : index
    %17 = vector.load %arg6[%c0_12, %c0_13] : memref<32x10xbf16, #tpu.memory_space<vmem>>, vector<32x10xbf16>
    %cst_14 = arith.constant dense<0.000000e+00> : vector<2x10xf32>
    %18 = tpu.matmul %16, %17, %cst_14 {dimension_numbers = #tpu.dot_dimension_numbers<[1], [0], [0], [1], [0, 0, 1, 1], [], []>} : vector<2x32xbf16>, vector<32x10xbf16>, vector<2x10xf32> -> vector<2x10xf32>
    %c0_15 = arith.constant 0 : index
    %c0_16 = arith.constant 0 : index
    %19 = vector.load %arg7[%c0_15, %c0_16] : memref<1x10xf32, #tpu.memory_space<vmem>>, vector<1x10xf32>
    %20 = vector.broadcast %19 : vector<1x10xf32> to vector<2x10xf32>
    %21 = arith.addf %18, %20 : vector<2x10xf32>
    %c0_17 = arith.constant 0 : index
    %c0_18 = arith.constant 0 : index
    %22 = vector.load %arg8[%c0_17, %c0_18] : memref<2x10xf32, #tpu.memory_space<vmem>>, vector<2x10xf32>
    tpu.vector_store %arg8[%c0_17, %c0_18], %21 {strides = array<i32>} : memref<2x10xf32, #tpu.memory_space<vmem>>, vector<2x10xf32>,
    return
  }
  func.func @transform_0(%arg0: i32) -> (i32, i32) {
    %c0_i32 = arith.constant 0 : i32
    %c0_i32_0 = arith.constant 0 : i32
    %c0_i32_1 = arith.constant 0 : i32
    return %c0_i32, %c0_i32_0 : i32, i32
  }
  func.func @transform_1(%arg0: i32) -> (i32, i32) {
    %c0_i32 = arith.constant 0 : i32
    %c0_i32_0 = arith.constant 0 : i32
    %c0_i32_1 = arith.constant 0 : i32
    return %c0_i32, %c0_i32_0 : i32, i32
  }
  func.func @transform_2(%arg0: i32) -> (i32, i32) {
    %c0_i32 = arith.constant 0 : i32
    %c0_i32_0 = arith.constant 0 : i32
    %c0_i32_1 = arith.constant 0 : i32
    return %c0_i32, %c0_i32_0 : i32, i32
  }
  func.func @transform_3(%arg0: i32) -> (i32, i32) {
    %c0_i32 = arith.constant 0 : i32
    %c0_i32_0 = arith.constant 0 : i32
    %c0_i32_1 = arith.constant 0 : i32
    return %c0_i32, %c0_i32_0 : i32, i32
  }
  func.func @transform_4(%arg0: i32) -> (i32, i32) {
    %c0_i32 = arith.constant 0 : i32
    %c0_i32_0 = arith.constant 0 : i32
    %c0_i32_1 = arith.constant 0 : i32
    return %c0_i32, %c0_i32_0 : i32, i32
  }
  func.func @transform_5(%arg0: i32) -> (i32, i32) {
    %c0_i32 = arith.constant 0 : i32
    %c0_i32_0 = arith.constant 0 : i32
    %c0_i32_1 = arith.constant 0 : i32
    return %c0_i32, %c0_i32_0 : i32, i32
  }
  func.func @transform_6(%arg0: i32) -> (i32, i32) {
    %c0_i32 = arith.constant 0 : i32
    %c0_i32_0 = arith.constant 0 : i32
    %c0_i32_1 = arith.constant 0 : i32
    return %c0_i32, %c0_i32_0 : i32, i32
  }
  func.func @transform_7(%arg0: i32) -> (i32, i32) {
    %c0_i32 = arith.constant 0 : i32
    %c0_i32_0 = arith.constant 0 : i32
    %c0_i32_1 = arith.constant 0 : i32
    return %c0_i32, %c0_i32_0 : i32, i32
  }
}

</mosaic_0001>

<llo_original>
// kernel: tile.23
$region0: #{tile.23}
  #allocation0 [shape = 's32[1]{0}', space=sflag, size = 0x4, scoped, tag = 'scoped memory for tile.23']
  %s0 = inlined_call_operand.vmem [shape: f32[12], index: 0, kind: input, shape index: {}]
  %s1 = inlined_call_operand.vmem [shape: f32[56,12], index: 1, kind: output, shape index: {}]
  // Predicated region
  $region2: #{tile.23} parent=0 // pred_check
    _
  $region3: #{tile.23} parent=0 // pred_check_branch
    %3 = sbr.rel (0) target = $region5
  $region4: #{tile.23} parent=0 // pred_region
    _
  $region5: #{tile.23} parent=0 // pred_fallthru
    _
  %v4 = vld [vmem:[%s0] ss:$0 sm:$0xff]
  %5 = vst [vmem:[%s1] sm:$0xff] %v4
  %s6 = scalar_lea.vmem %s1, 8
  %7 = vst [vmem:[%s6] sm:$0xff] %v4
  %s8 = scalar_lea.vmem %s1, 16
  %9 = vst [vmem:[%s8] sm:$0xff] %v4
  %s10 = scalar_lea.vmem %s1, 24
  %11 = vst [vmem:[%s10] sm:$0xff] %v4
  %s12 = scalar_lea.vmem %s1, 32
  %13 = vst [vmem:[%s12] sm:$0xff] %v4
  %s14 = scalar_lea.vmem %s1, 40
  %15 = vst [vmem:[%s14] sm:$0xff] %v4
  %s16 = scalar_lea.vmem %s1, 48
  %17 = vst [vmem:[%s16] sm:$0xff] %v4

// kernel: tile.24
$region0: #{tile.24}
  %s0 = inlined_call_operand.vmem [shape: f32[56,12], index: 0, kind: input, shape index: {}]
  %s1 = inlined_call_operand.vmem [shape: f32[672], index: 1, kind: output, shape index: {}]
  %v2 = vld [vmem:[%s0] sm:$0x1]
  %s3 = scalar_lea.vmem %s0, 31
  %v4 = vld [vmem:[%s3] sm:$0x2]
  %vm5 = vcmask 1041409
  %v6 = vsel %vm5, %v4, %v2
  %vm7 = vcmask 97280
  %8 = vst.msk [vmem:[%s1] ss:$3 sm:$0x3] %vm7, %v6
  %s9 = scalar_lea.vmem %s0, 21
  %v10 = vld [vmem:[%s9] sm:$0x1]
  %s11 = scalar_lea.vmem %s0, 52
  %v12 = vld [vmem:[%s11] sm:$0x2]
  %vm13 = vcmask 1041409
  %v14 = vsel %vm13, %v12, %v10
  %s15 = scalar_lea.vmem %s0, 21
  %v16 = vld [vmem:[%s15] sm:$0x1]
  %s17 = scalar_lea.vmem %s0, 52
  %v18 = vld [vmem:[%s17] sm:$0x2]
  %vm19 = vcmask 1041409
  %v20 = vsel %vm19, %v18, %v16
  %vm21 = vcmask 31744
  %v22 = vsel %vm21, %v20, %v14
  %23 = vrot.lane.b32.xlu0 %v22, 124
  %v24 = vpop.permute.xlu0 %23
  %vm25 = vcmask 64512
  %s26 = scalar_lea.vmem %s1, 2
  %27 = vst.msk [vmem:[%s26] ss:$3 sm:$0x3] %vm25, %v24
  %vm28 = vcmask 1048544
  %s29 = scalar_lea.vmem %s1, 1
  %30 = vst.msk [vmem:[%s29] ss:$3 sm:$0x3] %vm28, %v24
  %s31 = scalar_lea.vmem %s0, 10
  %v32 = vld [vmem:[%s31] sm:$0x1]
  %s33 = scalar_lea.vmem %s0, 41
  %v34 = vld [vmem:[%s33] sm:$0x2]
  %vm35 = vcmask 1041409
  %v36 = vsel %vm35, %v34, %v32
  %s37 = scalar_lea.vmem %s0, 10
  %v38 = vld [vmem:[%s37] sm:$0x1]
  %s39 = scalar_lea.vmem %s0, 41
  %v40 = vld [vmem:[%s39] sm:$0x2]
  %vm41 = vcmask 1041409
  %v42 = vsel %vm41, %v40, %v38
  %vm43 = vcmask 64512
  %v44 = vsel %vm43, %v42, %v36
  %45 = vrot.lane.b32.xlu0 %v44, 120
  %v46 = vpop.permute.xlu0 %45
  %vm47 = vcmask 31744
  %s48 = scalar_lea.vmem %s1, 1
  %49 = vst.msk [vmem:[%s48] ss:$3 sm:$0x3] %vm47, %v46
  %vm50 = vcmask 1048512
  %51 = vst.msk [vmem:[%s1] ss:$3 sm:$0x3] %vm50, %v46
  %s52 = scalar_lea.vmem %s0, 31
  %v53 = vld [vmem:[%s52] sm:$0x1]
  %54 = vrot.lane.b32.xlu0 %v53, 116
  %v55 = vpop.permute.xlu0 %54
  %vm56 = vcmask 1048480
  %s57 = scalar_lea.vmem %s1, 2
  %58 = vst.msk [vmem:[%s57] sm:$0x1] %vm56, %v55
  %s59 = scalar_lea.vmem %s0, 20
  %v60 = vld [vmem:[%s59] sm:$0x1]
  %s61 = scalar_lea.vmem %s0, 51
  %v62 = vld [vmem:[%s61] sm:$0x2]
  %vm63 = vcmask 1041409
  %v64 = vsel %vm63, %v62, %v60
  %65 = vrot.lane.b32.xlu0 %v64, 112
  %v66 = vpop.permute.xlu0 %65
  %vm67 = vcmask 1015680
  %s68 = scalar_lea.vmem %s1, 1
  %69 = vst.msk [vmem:[%s68] ss:$3 sm:$0x3] %vm67, %v66
  %s70 = scalar_lea.vmem %s0, 9
  %v71 = vld [vmem:[%s70] sm:$0x1]
  %s72 = scalar_lea.vmem %s0, 40
  %v73 = vld [vmem:[%s72] sm:$0x2]
  %vm74 = vcmask 1041409
  %v75 = vsel %vm74, %v73, %v71
  %76 = vrot.lane.b32.xlu0 %v75, 108
  %v77 = vpop.permute.xlu0 %76
  %vm78 = vcmask 982880
  %79 = vst.msk [vmem:[%s1] ss:$3 sm:$0x3] %vm78, %v77
  %s80 = scalar_lea.vmem %s0, 30
  %v81 = vld [vmem:[%s80] sm:$0x1]
  %82 = vrot.lane.b32.xlu0 %v81, 104
  %v83 = vpop.permute.xlu0 %82
  %vm84 = vcmask 950080
  %s85 = scalar_lea.vmem %s1, 2
  %86 = vst.msk [vmem:[%s85] sm:$0x1] %vm84, %v83
  %s87 = scalar_lea.vmem %s0, 19
  %v88 = vld [vmem:[%s87] sm:$0x1]
  %s89 = scalar_lea.vmem %s0, 50
  %v90 = vld [vmem:[%s89] sm:$0x2]
  %vm91 = vcmask 1041409
  %v92 = vsel %vm91, %v90, %v88
  %93 = vrot.lane.b32.xlu0 %v92, 100
  %v94 = vpop.permute.xlu0 %93
  %vm95 = vcmask 917280
  %s96 = scalar_lea.vmem %s1, 1
  %97 = vst.msk [vmem:[%s96] ss:$3 sm:$0x3] %vm95, %v94
  %s98 = scalar_lea.vmem %s0, 8
  %v99 = vld [vmem:[%s98] sm:$0x1]
  %s100 = scalar_lea.vmem %s0, 39
  %v101 = vld [vmem:[%s100] sm:$0x2]
  %vm102 = vcmask 1041409
  %v103 = vsel %vm102, %v101, %v99
  %104 = vrot.lane.b32.xlu0 %v103, 96
  %v105 = vpop.permute.xlu0 %104
  %vm106 = vcmask 884480
  %107 = vst.msk [vmem:[%s1] ss:$3 sm:$0x3] %vm106, %v105
  %s108 = scalar_lea.vmem %s0, 29
  %v109 = vld [vmem:[%s108] sm:$0x1]
  %110 = vrot.lane.b32.xlu0 %v109, 92
  %v111 = vpop.permute.xlu0 %110
  %vm112 = vcmask 851680
  %s113 = scalar_lea.vmem %s1, 2
  %114 = vst.msk [vmem:[%s113] sm:$0x1] %vm112, %v111
  %s115 = scalar_lea.vmem %s0, 18
  %v116 = vld [vmem:[%s115] sm:$0x1]
  %s117 = scalar_lea.vmem %s0, 49
  %v118 = vld [vmem:[%s117] sm:$0x2]
  %vm119 = vcmask 1041409
  %v120 = vsel %vm119, %v118, %v116
  %121 = vrot.lane.b32.xlu0 %v120, 88
  %v122 = vpop.permute.xlu0 %121
  %vm123 = vcmask 818880
  %s124 = scalar_lea.vmem %s1, 1
  %125 = vst.msk [vmem:[%s124] ss:$3 sm:$0x3] %vm123, %v122
  %s126 = scalar_lea.vmem %s0, 7
  %v127 = vld [vmem:[%s126] sm:$0x1]
  %s128 = scalar_lea.vmem %s0, 38
  %v129 = vld [vmem:[%s128] sm:$0x2]
  %vm130 = vcmask 1041409
  %v131 = vsel %vm130, %v129, %v127
  %132 = vrot.lane.b32.xlu0 %v131, 84
  %v133 = vpop.permute.xlu0 %132
  %vm134 = vcmask 786080
  %135 = vst.msk [vmem:[%s1] ss:$3 sm:$0x3] %vm134, %v133
  %s136 = scalar_lea.vmem %s0, 28
  %v137 = vld [vmem:[%s136] sm:$0x1]
  %138 = vrot.lane.b32.xlu0 %v137, 80
  %v139 = vpop.permute.xlu0 %138
  %vm140 = vcmask 753280
  %s141 = scalar_lea.vmem %s1, 2
  %142 = vst.msk [vmem:[%s141] sm:$0x1] %vm140, %v139
  %s143 = scalar_lea.vmem %s0, 17
  %v144 = vld [vmem:[%s143] sm:$0x1]
  %s145 = scalar_lea.vmem %s0, 48
  %v146 = vld [vmem:[%s145] sm:$0x2]
  %vm147 = vcmask 1041409
  %v148 = vsel %vm147, %v146, %v144
  %149 = vrot.lane.b32.xlu0 %v148, 76
  %v150 = vpop.permute.xlu0 %149
  %vm151 = vcmask 720480
  %s152 = scalar_lea.vmem %s1, 1
  %153 = vst.msk [vmem:[%s152] ss:$3 sm:$0x3] %vm151, %v150
  %s154 = scalar_lea.vmem %s0, 6
  %v155 = vld [vmem:[%s154] sm:$0x1]
  %s156 = scalar_lea.vmem %s0, 37
  %v157 = vld [vmem:[%s156] sm:$0x2]
  %vm158 = vcmask 1041409
  %v159 = vsel %vm158, %v157, %v155
  %160 = vrot.lane.b32.xlu0 %v159, 72
  %v161 = vpop.permute.xlu0 %160
  %vm162 = vcmask 687680
  %163 = vst.msk [vmem:[%s1] ss:$3 sm:$0x3] %vm162, %v161
  %s164 = scalar_lea.vmem %s0, 27
  %v165 = vld [vmem:[%s164] sm:$0x1]
  %166 = vrot.lane.b32.xlu0 %v165, 68
  %v167 = vpop.permute.xlu0 %166
  %vm168 = vcmask 654880
  %s169 = scalar_lea.vmem %s1, 2
  %170 = vst.msk [vmem:[%s169] sm:$0x1] %vm168, %v167
  %s171 = scalar_lea.vmem %s0, 16
  %v172 = vld [vmem:[%s171] sm:$0x1]
  %s173 = scalar_lea.vmem %s0, 47
  %v174 = vld [vmem:[%s173] sm:$0x2]
  %vm175 = vcmask 1041409
  %v176 = vsel %vm175, %v174, %v172
  %177 = vrot.lane.b32.xlu0 %v176, 64
  %v178 = vpop.permute.xlu0 %177
  %vm179 = vcmask 622080
  %s180 = scalar_lea.vmem %s1, 1
  %181 = vst.msk [vmem:[%s180] ss:$3 sm:$0x3] %vm179, %v178
  %s182 = scalar_lea.vmem %s0, 5
  %v183 = vld [vmem:[%s182] sm:$0x1]
  %s184 = scalar_lea.vmem %s0, 36
  %v185 = vld [vmem:[%s184] sm:$0x2]
  %vm186 = vcmask 1041409
  %v187 = vsel %vm186, %v185, %v183
  %188 = vrot.lane.b32.xlu0 %v187, 60
  %v189 = vpop.permute.xlu0 %188
  %vm190 = vcmask 589280
  %191 = vst.msk [vmem:[%s1] ss:$3 sm:$0x3] %vm190, %v189
  %s192 = scalar_lea.vmem %s0, 26
  %v193 = vld [vmem:[%s192] sm:$0x1]
  %194 = vrot.lane.b32.xlu0 %v193, 56
  %v195 = vpop.permute.xlu0 %194
  %vm196 = vcmask 556480
  %s197 = scalar_lea.vmem %s1, 2
  %198 = vst.msk [vmem:[%s197] sm:$0x1] %vm196, %v195
  %s199 = scalar_lea.vmem %s0, 15
  %v200 = vld [vmem:[%s199] sm:$0x1]
  %s201 = scalar_lea.vmem %s0, 46
  %v202 = vld [vmem:[%s201] sm:$0x2]
  %vm203 = vcmask 1041409
  %v204 = vsel %vm203, %v202, %v200
  %205 = vrot.lane.b32.xlu0 %v204, 52
  %v206 = vpop.permute.xlu0 %205
  %vm207 = vcmask 523680
  %s208 = scalar_lea.vmem %s1, 1
  %209 = vst.msk [vmem:[%s208] ss:$3 sm:$0x3] %vm207, %v206
  %s210 = scalar_lea.vmem %s0, 4
  %v211 = vld [vmem:[%s210] sm:$0x1]
  %s212 = scalar_lea.vmem %s0, 35
  %v213 = vld [vmem:[%s212] sm:$0x2]
  %vm214 = vcmask 1041409
  %v215 = vsel %vm214, %v213, %v211
  %216 = vrot.lane.b32.xlu0 %v215, 48
  %v217 = vpop.permute.xlu0 %216
  %vm218 = vcmask 490880
  %219 = vst.msk [vmem:[%s1] ss:$3 sm:$0x3] %vm218, %v217
  %s220 = scalar_lea.vmem %s0, 25
  %v221 = vld [vmem:[%s220] sm:$0x1]
  %222 = vrot.lane.b32.xlu0 %v221, 44
  %v223 = vpop.permute.xlu0 %222
  %vm224 = vcmask 458080
  %s225 = scalar_lea.vmem %s1, 2
  %226 = vst.msk [vmem:[%s225] sm:$0x1] %vm224, %v223
  %s227 = scalar_lea.vmem %s0, 14
  %v228 = vld [vmem:[%s227] sm:$0x1]
  %s229 = scalar_lea.vmem %s0, 45
  %v230 = vld [vmem:[%s229] sm:$0x2]
  %vm231 = vcmask 1041409
  %v232 = vsel %vm231, %v230, %v228
  %233 = vrot.lane.b32.xlu0 %v232, 40
  %v234 = vpop.permute.xlu0 %233
  %vm235 = vcmask 425280
  %s236 = scalar_lea.vmem %s1, 1
  %237 = vst.msk [vmem:[%s236] ss:$3 sm:$0x3] %vm235, %v234
  %s238 = scalar_lea.vmem %s0, 3
  %v239 = vld [vmem:[%s238] sm:$0x1]
  %s240 = scalar_lea.vmem %s0, 34
  %v241 = vld [vmem:[%s240] sm:$0x2]
  %vm242 = vcmask 1041409
  %v243 = vsel %vm242, %v241, %v239
  %244 = vrot.lane.b32.xlu0 %v243, 36
  %v245 = vpop.permute.xlu0 %244
  %vm246 = vcmask 392480
  %247 = vst.msk [vmem:[%s1] ss:$3 sm:$0x3] %vm246, %v245
  %s248 = scalar_lea.vmem %s0, 24
  %v249 = vld [vmem:[%s248] sm:$0x1]
  %250 = vrot.lane.b32.xlu0 %v249, 32
  %v251 = vpop.permute.xlu0 %250
  %vm252 = vcmask 359680
  %s253 = scalar_lea.vmem %s1, 2
  %254 = vst.msk [vmem:[%s253] sm:$0x1] %vm252, %v251
  %s255 = scalar_lea.vmem %s0, 13
  %v256 = vld [vmem:[%s255] sm:$0x1]
  %s257 = scalar_lea.vmem %s0, 44
  %v258 = vld [vmem:[%s257] sm:$0x2]
  %vm259 = vcmask 1041409
  %v260 = vsel %vm259, %v258, %v256
  %261 = vrot.lane.b32.xlu0 %v260, 28
  %v262 = vpop.permute.xlu0 %261
  %vm263 = vcmask 326880
  %s264 = scalar_lea.vmem %s1, 1
  %265 = vst.msk [vmem:[%s264] ss:$3 sm:$0x3] %vm263, %v262
  %s266 = scalar_lea.vmem %s0, 2
  %v267 = vld [vmem:[%s266] sm:$0x1]
  %s268 = scalar_lea.vmem %s0, 33
  %v269 = vld [vmem:[%s268] sm:$0x2]
  %vm270 = vcmask 1041409
  %v271 = vsel %vm270, %v269, %v267
  %272 = vrot.lane.b32.xlu0 %v271, 24
  %v273 = vpop.permute.xlu0 %272
  %vm274 = vcmask 294080
  %275 = vst.msk [vmem:[%s1] ss:$3 sm:$0x3] %vm274, %v273
  %s276 = scalar_lea.vmem %s0, 23
  %v277 = vld [vmem:[%s276] sm:$0x1]
  %s278 = scalar_lea.vmem %s0, 54
  %v279 = vld [vmem:[%s278] sm:$0x2]
  %vm280 = vcmask 1041409
  %v281 = vsel %vm280, %v279, %v277
  %282 = vrot.lane.b32.xlu0 %v281, 20
  %v283 = vpop.permute.xlu0 %282
  %vm284 = vcmask 261280
  %s285 = scalar_lea.vmem %s1, 2
  %286 = vst.msk [vmem:[%s285] ss:$3 sm:$0x3] %vm284, %v283
  %s287 = scalar_lea.vmem %s0, 12
  %v288 = vld [vmem:[%s287] sm:$0x1]
  %s289 = scalar_lea.vmem %s0, 43
  %v290 = vld [vmem:[%s289] sm:$0x2]
  %vm291 = vcmask 1041409
  %v292 = vsel %vm291, %v290, %v288
  %293 = vrot.lane.b32.xlu0 %v292, 16
  %v294 = vpop.permute.xlu0 %293
  %vm295 = vcmask 228480
  %s296 = scalar_lea.vmem %s1, 1
  %297 = vst.msk [vmem:[%s296] ss:$3 sm:$0x3] %vm295, %v294
  %s298 = scalar_lea.vmem %s0, 1
  %v299 = vld [vmem:[%s298] sm:$0x1]
  %s300 = scalar_lea.vmem %s0, 32
  %v301 = vld [vmem:[%s300] sm:$0x2]
  %vm302 = vcmask 1041409
  %v303 = vsel %vm302, %v301, %v299
  %304 = vrot.lane.b32.xlu0 %v303, 12
  %v305 = vpop.permute.xlu0 %304
  %vm306 = vcmask 195680
  %307 = vst.msk [vmem:[%s1] ss:$3 sm:$0x3] %vm306, %v305
  %s308 = scalar_lea.vmem %s0, 22
  %v309 = vld [vmem:[%s308] sm:$0x1]
  %s310 = scalar_lea.vmem %s0, 53
  %v311 = vld [vmem:[%s310] sm:$0x2]
  %vm312 = vcmask 1041409
  %v313 = vsel %vm312, %v311, %v309
  %314 = vrot.lane.b32.xlu0 %v313, 8
  %v315 = vpop.permute.xlu0 %314
  %vm316 = vcmask 162880
  %s317 = scalar_lea.vmem %s1, 2
  %318 = vst.msk [vmem:[%s317] ss:$3 sm:$0x3] %vm316, %v315
  %s319 = scalar_lea.vmem %s0, 11
  %v320 = vld [vmem:[%s319] sm:$0x1]
  %s321 = scalar_lea.vmem %s0, 42
  %v322 = vld [vmem:[%s321] sm:$0x2]
  %vm323 = vcmask 1041409
  %v324 = vsel %vm323, %v322, %v320
  %325 = vrot.lane.b32.xlu0 %v324, 4
  %v326 = vpop.permute.xlu0 %325
  %vm327 = vcmask 130080
  %s328 = scalar_lea.vmem %s1, 1
  %329 = vst.msk [vmem:[%s328] ss:$3 sm:$0x3] %vm327, %v326

// kernel: visual_modality_forward.5
$region0: #{visual_modality_forward.5}
  #allocation0 [shape = 'u32[]', space=smem, size = 0x4, offset = 0x4, fixed_abs, tag = 'smem constant byte address 0x4 - core index']
  #allocation1 [shape = 'u32[144,128]{1,0:T(1,128)}', space=vmem, size = 0x12000, scoped, tag = 'internal scratch']
  %s0 = inlined_call_operand.hbm [shape: bf16[25088,27], index: 0, kind: input, shape index: {}]
  %s1 = inlined_call_operand.hbm [shape: bf16[27,12], index: 1, kind: input, shape index: {}]
  %s2 = inlined_call_operand.hbm [shape: f32[1,12], index: 2, kind: input, shape index: {}]
  %s3 = inlined_call_operand.hbm [shape: f32[25088,12], index: 3, kind: output, shape index: {}]
  %s4 = sld [smem:[#allocation0]]
  $region57: #{visual_modality_forward.5} parent=0
    _
  %s6 = ssub.s32 1, %s4
  %s7 = scalar_select 0, %s6, %s4
  $region1: #{visual_modality_forward.5} parent=0
    #allocation2 [shape = 'u8[1605632]{0}', space=vmem, size = 0x188000, scoped, tag = 'input window, operand 0']
    #allocation3 [shape = 's32[2]{0}', space=sflag, size = 0x8, scoped, tag = 'scoped memory for visual_modality_forward.5']
    #allocation4 [shape = 's32[2]{0}', space=sflag, size = 0x8, scoped, tag = 'scoped memory for visual_modality_forward.5']
    #allocation5 [shape = 'u8[8192]{0}', space=vmem, size = 0x2000, scoped, tag = 'input window, operand 1, single buffered']
    #allocation6 [shape = 's32[1]{0}', space=sflag, size = 0x4, scoped, tag = 'scoped memory for visual_modality_forward.5']
    #allocation7 [shape = 'u8[512]{0}', space=vmem, size = 0x400, scoped, tag = 'input window, operand 2, single buffered']
    #allocation8 [shape = 'u8[3211264]{0}', space=vmem, size = 0x310000, scoped, tag = 'output window, operand 0']
    %8 = vsyncpa [#allocation3], 0
    %s9 = scalar_lea.sflag [#allocation3], 1
    %10 = vsyncpa %s9, 0
    %11 = vsyncpa [#allocation6], 0
    %12 = vsyncpa [#allocation4], 0
    %s13 = scalar_lea.sflag [#allocation4], 1
    %14 = vsyncpa %s13, 0
    loop: start=0, step=1, limit=10
    $region2: #{visual_modality_forward.5} parent=1 // loop_pre_header
      _
    $region3: #{visual_modality_forward.5} parent=1 // loop_header
      %s16 = sphi 0, %s20
      %p17 = scmp.ge.s32.totalorder %s16, 10
      %s26 = sphi 0, %s28
      %s29 = sphi 0, %s26
      %s30 = sphi 0, %s29
      %s46 = sphi 0, %s30
      %s50 = sphi 0, %s50
      %s52 = sphi 0, %s50
      %s53 = sphi 0, %s52
      %s67 = sphi 0, %s53
      %s71 = sphi 0, %s71
      %s73 = sphi 0, %s71
      %s74 = sphi 0, %s73
      %s88 = sphi 0, %s74
      %s94 = sphi 0, %s96
      %s97 = sphi 0, %s94
      %s98 = sphi 0, %s97
      %s114 = sphi 0, %s98
    $region4: #{visual_modality_forward.5} parent=1 // loop_header_branch
      %19 = sbr.rel (%p17) target = $region8
    $region5: #{visual_modality_forward.5} parent=1 // loop_body
      %s21 = ssub.s32 %s16, 1
      %s22 = ssub.s32 %s16, 2
      %s23 = sadd.s32 %s16, 1
      %s24 = ssub.s32 %s16, %s23
      %p25 = scmp.eq.s32.totalorder %s24, 0
      %s27 = sadd.s32 %s26, 1
      %s28 = scalar_select %p25, %s26, %s27
      %p31 = pneg %p25
      %p32 = scmp.eq.s32.totalorder %s16, 7
      %p33 = por %p31, %p32
      %p34 = scmp.ne.s32.totalorder %s26, %s29
      %p35 = scmp.eq.s32.totalorder %s16, 0
      %p36 = por %p34, %p35
      %p37 = scmp.ne.s32.totalorder %s26, %s29
      %p38 = scmp.eq.s32.totalorder %s21, 7
      %p39 = por %p37, %p38
      %p40 = scmp.ne.s32.totalorder %s29, %s30
      %p41 = scmp.eq.s32.totalorder %s21, 0
      %p42 = por %p40, %p41
      %p43 = scmp.ne.s32.totalorder %s29, %s30
      %p44 = scmp.eq.s32.totalorder %s22, 7
      %p45 = por %p43, %p44
      %p47 = scmp.ne.s32.totalorder %s30, %s46
      %p48 = scmp.eq.s32.totalorder %s22, 0
      %p49 = por %p47, %p48
      %s51 = sadd.s32 %s50, 1
      %p54 = scmp.eq.s32.totalorder %s16, 7
      %p55 = scmp.ne.s32.totalorder %s50, %s52
      %p56 = scmp.eq.s32.totalorder %s16, 0
      %p57 = por %p55, %p56
      %p58 = scmp.ne.s32.totalorder %s50, %s52
      %p59 = scmp.eq.s32.totalorder %s21, 7
      %p60 = por %p58, %p59
      %p61 = scmp.ne.s32.totalorder %s52, %s53
      %p62 = scmp.eq.s32.totalorder %s21, 0
      %p63 = por %p61, %p62
      %p64 = scmp.ne.s32.totalorder %s52, %s53
      %p65 = scmp.eq.s32.totalorder %s22, 7
      %p66 = por %p64, %p65
      %p68 = scmp.ne.s32.totalorder %s53, %s67
      %p69 = scmp.eq.s32.totalorder %s22, 0
      %p70 = por %p68, %p69
      %s72 = sadd.s32 %s71, 1
      %p75 = scmp.eq.s32.totalorder %s16, 7
      %p76 = scmp.ne.s32.totalorder %s71, %s73
      %p77 = scmp.eq.s32.totalorder %s16, 0
      %p78 = por %p76, %p77
      %p79 = scmp.ne.s32.totalorder %s71, %s73
      %p80 = scmp.eq.s32.totalorder %s21, 7
      %p81 = por %p79, %p80
      %p82 = scmp.ne.s32.totalorder %s73, %s74
      %p83 = scmp.eq.s32.totalorder %s21, 0
      %p84 = por %p82, %p83
      %p85 = scmp.ne.s32.totalorder %s73, %s74
      %p86 = scmp.eq.s32.totalorder %s22, 7
      %p87 = por %p85, %p86
      %p89 = scmp.ne.s32.totalorder %s74, %s88
      %p90 = scmp.eq.s32.totalorder %s22, 0
      %p91 = por %p89, %p90
      %s92 = ssub.s32 %s16, %s23
      %p93 = scmp.eq.s32.totalorder %s92, 0
      %s95 = sadd.s32 %s94, 1
      %s96 = scalar_select %p93, %s94, %s95
      %p99 = pneg %p93
      %p100 = scmp.eq.s32.totalorder %s16, 7
      %p101 = por %p99, %p100
      %p102 = scmp.ne.s32.totalorder %s94, %s97
      %p103 = scmp.eq.s32.totalorder %s16, 0
      %p104 = por %p102, %p103
      %p105 = scmp.ne.s32.totalorder %s94, %s97
      %p106 = scmp.eq.s32.totalorder %s21, 7
      %p107 = por %p105, %p106
      %p108 = scmp.ne.s32.totalorder %s97, %s98
      %p109 = scmp.eq.s32.totalorder %s21, 0
      %p110 = por %p108, %p109
      %p111 = scmp.ne.s32.totalorder %s97, %s98
      %p112 = scmp.eq.s32.totalorder %s22, 7
      %p113 = por %p111, %p112
      %p115 = scmp.ne.s32.totalorder %s98, %s114
      %p116 = scmp.eq.s32.totalorder %s22, 0
      %p117 = por %p115, %p116
      %p118 = scmp.le.s32.totalorder 1, %s16
      %p119 = scmp.lt.s32.totalorder %s16, 9
      %p120 = pnand %p118, %p119
      %p121 = pneg %p120
      // Predicated region
      $region9: #{visual_modality_forward.5} parent=5 // pred_check
        _
      $region10: #{visual_modality_forward.5} parent=5 // pred_check_branch
        %123 = sbr.rel (%p120) target = $region12
      $region11: #{visual_modality_forward.5} parent=5 // pred_region
        %s124 = ssub.s32 %s16, 1
        // Predicated region
        $region13: #{visual_modality_forward.5} parent=11 // pred_check
          %p125 = pneg %p63
        $region14: #{visual_modality_forward.5} parent=11 // pred_check_branch
          %127 = sbr.rel (%p125) target = $region16
        $region15: #{visual_modality_forward.5} parent=11 // pred_region
          %s129 = ssub.s32 256, 256
          %130 = vsyncadd [#allocation6], %s129
          %s131 = sshll.u32 [#allocation5], 4
          %s132 = int_to_ptr.vmem [resolvable:$true] %s131
          %137 = dma.hbm_to_vmem [thread:$0]  %s1, 256, %s132, [#allocation6], 64, 64, 4
        $region16: #{visual_modality_forward.5} parent=11 // pred_fallthru
          _
        // Predicated region
        $region17: #{visual_modality_forward.5} parent=11 // pred_check
          %p138 = pneg %p84
        $region18: #{visual_modality_forward.5} parent=11 // pred_check_branch
          %140 = sbr.rel (%p138) target = $region20
        $region19: #{visual_modality_forward.5} parent=11 // pred_region
          %s142 = ssub.s32 16, 16
          %143 = vsyncadd [#allocation6], %s142
          %s145 = sshll.u32 [#allocation7], 4
          %s146 = int_to_ptr.vmem [resolvable:$true] %s145
          %148 = dma.hbm_to_vmem [thread:$0]  %s2, 16, %s146, [#allocation6]
        $region20: #{visual_modality_forward.5} parent=11 // pred_fallthru
          _
      $region12: #{visual_modality_forward.5} parent=5 // pred_fallthru
        _
      %p149 = scmp.lt.s32.totalorder %s16, 8
      // Predicated region
      $region21: #{visual_modality_forward.5} parent=5 // pred_check
        %p150 = pneg %p149
      $region22: #{visual_modality_forward.5} parent=5 // pred_check_branch
        %152 = sbr.rel (%p150) target = $region24
      $region23: #{visual_modality_forward.5} parent=5 // pred_region
        // Predicated region
        $region25: #{visual_modality_forward.5} parent=23 // pred_check
          %p153 = pneg %p36
        $region26: #{visual_modality_forward.5} parent=23 // pred_check_branch
          %155 = sbr.rel (%p153) target = $region28
        $region27: #{visual_modality_forward.5} parent=23 // pred_region
          %s156 = sand.u32 %s26, 1
          %s157 = scalar_lea.sflag [#allocation3], %s156
          %s158 = sand.u32 %s26, 1
          %s159 = smul.addr %s158, 1568
          %s160 = scalar_lea.vmem [#allocation2], %s159
          %s161 = smul.u32 392, %s16
          %s163 = ssub.s32 25088, 25088
          %164 = vsyncadd %s157, %s163
          %s165 = smul.addr %s161, 64
          %s166 = scalar_lea.hbm %s0, %s165
          %s167 = sshll.u32 %s160, 4
          %s168 = int_to_ptr.vmem [resolvable:$true] %s167
          %173 = dma.hbm_to_vmem [thread:$0]  %s166, 25088, %s168, %s157, 64, 64, 4
        $region28: #{visual_modality_forward.5} parent=23 // pred_fallthru
          _
      $region24: #{visual_modality_forward.5} parent=5 // pred_fallthru
        _
      %p174 = scmp.le.s32.totalorder 1, %s16
      %p175 = scmp.lt.s32.totalorder %s16, 9
      %p176 = pnand %p174, %p175
      %p177 = pneg %p176
      // Predicated region
      $region29: #{visual_modality_forward.5} parent=5 // pred_check
        _
      $region30: #{visual_modality_forward.5} parent=5 // pred_check_branch
        %179 = sbr.rel (%p176) target = $region32
      $region31: #{visual_modality_forward.5} parent=5 // pred_region
        %s180 = ssub.s32 %s16, 1
        %s181 = sand.u32 %s29, 1
        %s182 = scalar_lea.sflag [#allocation3], %s181
        %s183 = sand.u32 %s29, 1
        %s184 = smul.addr %s183, 1568
        %s185 = scalar_lea.vmem [#allocation2], %s184
        // Predicated region
        $region33: #{visual_modality_forward.5} parent=31 // pred_check
          %p186 = pneg %p42
        $region34: #{visual_modality_forward.5} parent=31 // pred_check_branch
          %188 = sbr.rel (%p186) target = $region36
        $region35: #{visual_modality_forward.5} parent=31 // pred_region
          %189 = dma.done %s182, 25088
        $region36: #{visual_modality_forward.5} parent=31 // pred_fallthru
          _
        // Predicated region
        $region37: #{visual_modality_forward.5} parent=31 // pred_check
          %p190 = pneg %p63
        $region38: #{visual_modality_forward.5} parent=31 // pred_check_branch
          %192 = sbr.rel (%p190) target = $region40
        $region39: #{visual_modality_forward.5} parent=31 // pred_region
          %193 = dma.done [#allocation6], 256
        $region40: #{visual_modality_forward.5} parent=31 // pred_fallthru
          _
        // Predicated region
        $region41: #{visual_modality_forward.5} parent=31 // pred_check
          %p194 = pneg %p84
        $region42: #{visual_modality_forward.5} parent=31 // pred_check_branch
          %196 = sbr.rel (%p194) target = $region44
        $region43: #{visual_modality_forward.5} parent=31 // pred_region
          %197 = dma.done [#allocation6], 16
        $region44: #{visual_modality_forward.5} parent=31 // pred_fallthru
          _
        %s198 = sand.u32 %s29, 1
        %s199 = scalar_lea.sflag [#allocation3], %s198
        %s200 = sand.u32 %s29, 1
        %s201 = smul.addr %s200, 1568
        %s202 = scalar_lea.vmem [#allocation2], %s201
        %p203 = pneg %p42
        %p204 = pneg %p39
        %p205 = pneg %p63
        %p206 = pneg %p60
        %p207 = pneg %p84
        %p208 = pneg %p81
        %p209 = pneg %p110
        %p210 = pneg %p107
        %s211 = sand.u32 %s97, 1
        %s212 = scalar_lea.sflag [#allocation4], %s211
        %s213 = sand.u32 %s97, 1
        %s214 = smul.addr %s213, 3136
        %s215 = scalar_lea.vmem [#allocation8], %s214
        %s216 = smul.u32 392, %s21
        %s217 = smul.u32 392, %s21
        %v219 = vld [vmem:[%s185] sm:$0xf]
        %v220 = vld [vmem:[%s185 + $0x4] sm:$0xf]
        %v221 = vld [vmem:[%s185 + $0x8] sm:$0xf]
        %v222 = vld [vmem:[%s185 + $0xc] sm:$0xf]
        %v223 = vld [vmem:[%s185 + $0x10] sm:$0xf]
        %v224 = vld [vmem:[%s185 + $0x14] sm:$0xf]
        %v225 = vld [vmem:[%s185 + $0x18] sm:$0xf]
        %v226 = vld [vmem:[%s185 + $0x1c] sm:$0xf]
        %v227 = vld [vmem:[%s185 + $0x20] sm:$0xf]
        %v228 = vld [vmem:[%s185 + $0x24] sm:$0xf]
        %v229 = vld [vmem:[%s185 + $0x28] sm:$0xf]
        %v230 = vld [vmem:[%s185 + $0x2c] sm:$0xf]
        %v231 = vld [vmem:[%s185 + $0x30] sm:$0xf]
        %v232 = vld [vmem:[%s185 + $0x34] sm:$0xf]
        %v233 = vld [vmem:[%s185 + $0x38] sm:$0xf]
        %v234 = vld [vmem:[%s185 + $0x3c] sm:$0xf]
        %v235 = vld [vmem:[%s185 + $0x40] sm:$0xf]
        %v236 = vld [vmem:[%s185 + $0x44] sm:$0xf]
        %v237 = vld [vmem:[%s185 + $0x48] sm:$0xf]
        %v238 = vld [vmem:[%s185 + $0x4c] sm:$0xf]
        %v239 = vld [vmem:[%s185 + $0x50] sm:$0xf]
        %v240 = vld [vmem:[%s185 + $0x54] sm:$0xf]
        %v241 = vld [vmem:[%s185 + $0x58] sm:$0xf]
        %v242 = vld [vmem:[%s185 + $0x5c] sm:$0xf]
        %v243 = vld [vmem:[%s185 + $0x60] sm:$0xf]
        %v244 = vld [vmem:[%s185 + $0x64] sm:$0xf]
        %v245 = vld [vmem:[%s185 + $0x68] sm:$0xf]
        %v246 = vld [vmem:[%s185 + $0x6c] sm:$0xf]
        %v247 = vld [vmem:[%s185 + $0x70] sm:$0xf]
        %v248 = vld [vmem:[%s185 + $0x74] sm:$0xf]
        %v249 = vld [vmem:[%s185 + $0x78] sm:$0xf]
        %v250 = vld [vmem:[%s185 + $0x7c] sm:$0xf]
        %v251 = vld [vmem:[%s185 + $0x80] sm:$0xf]
        %v252 = vld [vmem:[%s185 + $0x84] sm:$0xf]
        %v253 = vld [vmem:[%s185 + $0x88] sm:$0xf]
        %v254 = vld [vmem:[%s185 + $0x8c] sm:$0xf]
        %v255 = vld [vmem:[%s185 + $0x90] sm:$0xf]
        %v256 = vld [vmem:[%s185 + $0x94] sm:$0xf]
        %v257 = vld [vmem:[%s185 + $0x98] sm:$0xf]
        %v258 = vld [vmem:[%s185 + $0x9c] sm:$0xf]
        %v259 = vld [vmem:[%s185 + $0xa0] sm:$0xf]
        %v260 = vld [vmem:[%s185 + $0xa4] sm:$0xf]
        %v261 = vld [vmem:[%s185 + $0xa8] sm:$0xf]
        %v262 = vld [vmem:[%s185 + $0xac] sm:$0xf]
        %v263 = vld [vmem:[%s185 + $0xb0] sm:$0xf]
        %v264 = vld [vmem:[%s185 + $0xb4] sm:$0xf]
        %v265 = vld [vmem:[%s185 + $0xb8] sm:$0xf]
        %v266 = vld [vmem:[%s185 + $0xbc] sm:$0xf]
        %v267 = vld [vmem:[%s185 + $0xc0] sm:$0xf]
        %v268 = vld [vmem:[%s185 + $0xc4] sm:$0xf]
        %v269 = vld [vmem:[%s185 + $0xc8] sm:$0xf]
        %v270 = vld [vmem:[%s185 + $0xcc] sm:$0xf]
        %v271 = vld [vmem:[%s185 + $0xd0] sm:$0xf]
        %v272 = vld [vmem:[%s185 + $0xd4] sm:$0xf]
        %v273 = vld [vmem:[%s185 + $0xd8] sm:$0xf]
        %v274 = vld [vmem:[%s185 + $0xdc] sm:$0xf]
        %v275 = vld [vmem:[%s185 + $0xe0] sm:$0xf]
        %v276 = vld [vmem:[%s185 + $0xe4] sm:$0xf]
        %v277 = vld [vmem:[%s185 + $0xe8] sm:$0xf]
        %v278 = vld [vmem:[%s185 + $0xec] sm:$0xf]
        %v279 = vld [vmem:[%s185 + $0xf0] sm:$0xf]
        %v280 = vld [vmem:[%s185 + $0xf4] sm:$0xf]
        %v281 = vld [vmem:[%s185 + $0xf8] sm:$0xf]
        %v282 = vld [vmem:[%s185 + $0xfc] sm:$0xf]
        %v283 = vld [vmem:[%s185 + $0x100] sm:$0xf]
        %v284 = vld [vmem:[%s185 + $0x104] sm:$0xf]
        %v285 = vld [vmem:[%s185 + $0x108] sm:$0xf]
        %v286 = vld [vmem:[%s185 + $0x10c] sm:$0xf]
        %v287 = vld [vmem:[%s185 + $0x110] sm:$0xf]
        %v288 = vld [vmem:[%s185 + $0x114] sm:$0xf]
        %v289 = vld [vmem:[%s185 + $0x118] sm:$0xf]
        %v290 = vld [vmem:[%s185 + $0x11c] sm:$0xf]
        %v291 = vld [vmem:[%s185 + $0x120] sm:$0xf]
        %v292 = vld [vmem:[%s185 + $0x124] sm:$0xf]
        %v293 = vld [vmem:[%s185 + $0x128] sm:$0xf]
        %v294 = vld [vmem:[%s185 + $0x12c] sm:$0xf]
        %v295 = vld [vmem:[%s185 + $0x130] sm:$0xf]
        %v296 = vld [vmem:[%s185 + $0x134] sm:$0xf]
        %v297 = vld [vmem:[%s185 + $0x138] sm:$0xf]
        %v298 = vld [vmem:[%s185 + $0x13c] sm:$0xf]
        %v299 = vld [vmem:[%s185 + $0x140] sm:$0xf]
        %v300 = vld [vmem:[%s185 + $0x144] sm:$0xf]
        %v301 = vld [vmem:[%s185 + $0x148] sm:$0xf]
        %v302 = vld [vmem:[%s185 + $0x14c] sm:$0xf]
        %v303 = vld [vmem:[%s185 + $0x150] sm:$0xf]
        %v304 = vld [vmem:[%s185 + $0x154] sm:$0xf]
        %v305 = vld [vmem:[%s185 + $0x158] sm:$0xf]
        %v306 = vld [vmem:[%s185 + $0x15c] sm:$0xf]
        %v307 = vld [vmem:[%s185 + $0x160] sm:$0xf]
        %v308 = vld [vmem:[%s185 + $0x164] sm:$0xf]
        %v309 = vld [vmem:[%s185 + $0x168] sm:$0xf]
        %v310 = vld [vmem:[%s185 + $0x16c] sm:$0xf]
        %v311 = vld [vmem:[%s185 + $0x170] sm:$0xf]
        %v312 = vld [vmem:[%s185 + $0x174] sm:$0xf]
        %v313 = vld [vmem:[%s185 + $0x178] sm:$0xf]
        %v314 = vld [vmem:[%s185 + $0x17c] sm:$0xf]
        %v315 = vld [vmem:[%s185 + $0x180] sm:$0xf]
        %v316 = vld [vmem:[%s185 + $0x184] sm:$0xf]
        %v317 = vld [vmem:[%s185 + $0x188] sm:$0xf]
        %v318 = vld [vmem:[%s185 + $0x18c] sm:$0xf]
        %v319 = vld [vmem:[%s185 + $0x190] sm:$0xf]
        %v320 = vld [vmem:[%s185 + $0x194] sm:$0xf]
        %v321 = vld [vmem:[%s185 + $0x198] sm:$0xf]
        %v322 = vld [vmem:[%s185 + $0x19c] sm:$0xf]
        %v323 = vld [vmem:[%s185 + $0x1a0] sm:$0xf]
        %v324 = vld [vmem:[%s185 + $0x1a4] sm:$0xf]
        %v325 = vld [vmem:[%s185 + $0x1a8] sm:$0xf]
        %v326 = vld [vmem:[%s185 + $0x1ac] sm:$0xf]
        %v327 = vld [vmem:[%s185 + $0x1b0] sm:$0xf]
        %v328 = vld [vmem:[%s185 + $0x1b4] sm:$0xf]
        %v329 = vld [vmem:[%s185 + $0x1b8] sm:$0xf]
        %v330 = vld [vmem:[%s185 + $0x1bc] sm:$0xf]
        %v331 = vld [vmem:[%s185 + $0x1c0] sm:$0xf]
        %v332 = vld [vmem:[%s185 + $0x1c4] sm:$0xf]
        %v333 = vld [vmem:[%s185 + $0x1c8] sm:$0xf]
        %v334 = vld [vmem:[%s185 + $0x1cc] sm:$0xf]
        %v335 = vld [vmem:[%s185 + $0x1d0] sm:$0xf]
        %v336 = vld [vmem:[%s185 + $0x1d4] sm:$0xf]
        %v337 = vld [vmem:[%s185 + $0x1d8] sm:$0xf]
        %v338 = vld [vmem:[%s185 + $0x1dc] sm:$0xf]
        %v339 = vld [vmem:[%s185 + $0x1e0] sm:$0xf]
        %v340 = vld [vmem:[%s185 + $0x1e4] sm:$0xf]
        %v341 = vld [vmem:[%s185 + $0x1e8] sm:$0xf]
        %v342 = vld [vmem:[%s185 + $0x1ec] sm:$0xf]
        %v343 = vld [vmem:[%s185 + $0x1f0] sm:$0xf]
        %v344 = vld [vmem:[%s185 + $0x1f4] sm:$0xf]
        %v345 = vld [vmem:[%s185 + $0x1f8] sm:$0xf]
        %v346 = vld [vmem:[%s185 + $0x1fc] sm:$0xf]
        %v347 = vld [vmem:[%s185 + $0x200] sm:$0xf]
        %v348 = vld [vmem:[%s185 + $0x204] sm:$0xf]
        %v349 = vld [vmem:[%s185 + $0x208] sm:$0xf]
        %v350 = vld [vmem:[%s185 + $0x20c] sm:$0xf]
        %v351 = vld [vmem:[%s185 + $0x210] sm:$0xf]
        %v352 = vld [vmem:[%s185 + $0x214] sm:$0xf]
        %v353 = vld [vmem:[%s185 + $0x218] sm:$0xf]
        %v354 = vld [vmem:[%s185 + $0x21c] sm:$0xf]
        %v355 = vld [vmem:[%s185 + $0x220] sm:$0xf]
        %v356 = vld [vmem:[%s185 + $0x224] sm:$0xf]
        %v357 = vld [vmem:[%s185 + $0x228] sm:$0xf]
        %v358 = vld [vmem:[%s185 + $0x22c] sm:$0xf]
        %v359 = vld [vmem:[%s185 + $0x230] sm:$0xf]
        %v360 = vld [vmem:[%s185 + $0x234] sm:$0xf]
        %v361 = vld [vmem:[%s185 + $0x238] sm:$0xf]
        %v362 = vld [vmem:[%s185 + $0x23c] sm:$0xf]
        %v363 = vld [vmem:[%s185 + $0x240] sm:$0xf]
        %v364 = vld [vmem:[%s185 + $0x244] sm:$0xf]
        %v365 = vld [vmem:[%s185 + $0x248] sm:$0xf]
        %v366 = vld [vmem:[%s185 + $0x24c] sm:$0xf]
        %v367 = vld [vmem:[%s185 + $0x250] sm:$0xf]
        %v368 = vld [vmem:[%s185 + $0x254] sm:$0xf]
        %v369 = vld [vmem:[%s185 + $0x258] sm:$0xf]
        %v370 = vld [vmem:[%s185 + $0x25c] sm:$0xf]
        %v371 = vld [vmem:[%s185 + $0x260] sm:$0xf]
        %v372 = vld [vmem:[%s185 + $0x264] sm:$0xf]
        %v373 = vld [vmem:[%s185 + $0x268] sm:$0xf]
        %v374 = vld [vmem:[%s185 + $0x26c] sm:$0xf]
        %v375 = vld [vmem:[%s185 + $0x270] sm:$0xf]
        %v376 = vld [vmem:[%s185 + $0x274] sm:$0xf]
        %v377 = vld [vmem:[%s185 + $0x278] sm:$0xf]
        %v378 = vld [vmem:[%s185 + $0x27c] sm:$0xf]
        %v379 = vld [vmem:[%s185 + $0x280] sm:$0xf]
        %v380 = vld [vmem:[%s185 + $0x284] sm:$0xf]
        %v381 = vld [vmem:[%s185 + $0x288] sm:$0xf]
        %v382 = vld [vmem:[%s185 + $0x28c] sm:$0xf]
        %v383 = vld [vmem:[%s185 + $0x290] sm:$0xf]
        %v384 = vld [vmem:[%s185 + $0x294] sm:$0xf]
        %v385 = vld [vmem:[%s185 + $0x298] sm:$0xf]
        %v386 = vld [vmem:[%s185 + $0x29c] sm:$0xf]
        %v387 = vld [vmem:[%s185 + $0x2a0] sm:$0xf]
        %v388 = vld [vmem:[%s185 + $0x2a4] sm:$0xf]
        %v389 = vld [vmem:[%s185 + $0x2a8] sm:$0xf]
        %v390 = vld [vmem:[%s185 + $0x2ac] sm:$0xf]
        %v391 = vld [vmem:[%s185 + $0x2b0] sm:$0xf]
        %v392 = vld [vmem:[%s185 + $0x2b4] sm:$0xf]
        %v393 = vld [vmem:[%s185 + $0x2b8] sm:$0xf]
        %v394 = vld [vmem:[%s185 + $0x2bc] sm:$0xf]
        %v395 = vld [vmem:[%s185 + $0x2c0] sm:$0xf]
        %v396 = vld [vmem:[%s185 + $0x2c4] sm:$0xf]
        %v397 = vld [vmem:[%s185 + $0x2c8] sm:$0xf]
        %v398 = vld [vmem:[%s185 + $0x2cc] sm:$0xf]
        %v399 = vld [vmem:[%s185 + $0x2d0] sm:$0xf]
        %v400 = vld [vmem:[%s185 + $0x2d4] sm:$0xf]
        %v401 = vld [vmem:[%s185 + $0x2d8] sm:$0xf]
        %v402 = vld [vmem:[%s185 + $0x2dc] sm:$0xf]
        %v403 = vld [vmem:[%s185 + $0x2e0] sm:$0xf]
        %v404 = vld [vmem:[%s185 + $0x2e4] sm:$0xf]
        %v405 = vld [vmem:[%s185 + $0x2e8] sm:$0xf]
        %v406 = vld [vmem:[%s185 + $0x2ec] sm:$0xf]
        %v407 = vld [vmem:[%s185 + $0x2f0] sm:$0xf]
        %v408 = vld [vmem:[%s185 + $0x2f4] sm:$0xf]
        %v409 = vld [vmem:[%s185 + $0x2f8] sm:$0xf]
        %v410 = vld [vmem:[%s185 + $0x2fc] sm:$0xf]
        %v411 = vld [vmem:[%s185 + $0x300] sm:$0xf]
        %v412 = vld [vmem:[%s185 + $0x304] sm:$0xf]
        %v413 = vld [vmem:[%s185 + $0x308] sm:$0xf]
        %v414 = vld [vmem:[%s185 + $0x30c] sm:$0xf]
        %v415 = vld [vmem:[%s185 + $0x310] sm:$0xf]
        %v416 = vld [vmem:[%s185 + $0x314] sm:$0xf]
        %v417 = vld [vmem:[%s185 + $0x318] sm:$0xf]
        %v418 = vld [vmem:[%s185 + $0x31c] sm:$0xf]
        %v419 = vld [vmem:[%s185 + $0x320] sm:$0xf]
        %v420 = vld [vmem:[%s185 + $0x324] sm:$0xf]
        %v421 = vld [vmem:[%s185 + $0x328] sm:$0xf]
        %v422 = vld [vmem:[%s185 + $0x32c] sm:$0xf]
        %v423 = vld [vmem:[%s185 + $0x330] sm:$0xf]
        %v424 = vld [vmem:[%s185 + $0x334] sm:$0xf]
        %v425 = vld [vmem:[%s185 + $0x338] sm:$0xf]
        %v426 = vld [vmem:[%s185 + $0x33c] sm:$0xf]
        %v427 = vld [vmem:[%s185 + $0x340] sm:$0xf]
        %v428 = vld [vmem:[%s185 + $0x344] sm:$0xf]
        %v429 = vld [vmem:[%s185 + $0x348] sm:$0xf]
        %v430 = vld [vmem:[%s185 + $0x34c] sm:$0xf]
        %v431 = vld [vmem:[%s185 + $0x350] sm:$0xf]
        %v432 = vld [vmem:[%s185 + $0x354] sm:$0xf]
        %v433 = vld [vmem:[%s185 + $0x358] sm:$0xf]
        %v434 = vld [vmem:[%s185 + $0x35c] sm:$0xf]
        %v435 = vld [vmem:[%s185 + $0x360] sm:$0xf]
        %v436 = vld [vmem:[%s185 + $0x364] sm:$0xf]
        %v437 = vld [vmem:[%s185 + $0x368] sm:$0xf]
        %v438 = vld [vmem:[%s185 + $0x36c] sm:$0xf]
        %v439 = vld [vmem:[%s185 + $0x370] sm:$0xf]
        %v440 = vld [vmem:[%s185 + $0x374] sm:$0xf]
        %v441 = vld [vmem:[%s185 + $0x378] sm:$0xf]
        %v442 = vld [vmem:[%s185 + $0x37c] sm:$0xf]
        %v443 = vld [vmem:[%s185 + $0x380] sm:$0xf]
        %v444 = vld [vmem:[%s185 + $0x384] sm:$0xf]
        %v445 = vld [vmem:[%s185 + $0x388] sm:$0xf]
        %v446 = vld [vmem:[%s185 + $0x38c] sm:$0xf]
        %v447 = vld [vmem:[%s185 + $0x390] sm:$0xf]
        %v448 = vld [vmem:[%s185 + $0x394] sm:$0xf]
        %v449 = vld [vmem:[%s185 + $0x398] sm:$0xf]
        %v450 = vld [vmem:[%s185 + $0x39c] sm:$0xf]
        %v451 = vld [vmem:[%s185 + $0x3a0] sm:$0xf]
        %v452 = vld [vmem:[%s185 + $0x3a4] sm:$0xf]
        %v453 = vld [vmem:[%s185 + $0x3a8] sm:$0xf]
        %v454 = vld [vmem:[%s185 + $0x3ac] sm:$0xf]
        %v455 = vld [vmem:[%s185 + $0x3b0] sm:$0xf]
        %v456 = vld [vmem:[%s185 + $0x3b4] sm:$0xf]
        %v457 = vld [vmem:[%s185 + $0x3b8] sm:$0xf]
        %v458 = vld [vmem:[%s185 + $0x3bc] sm:$0xf]
        %v459 = vld [vmem:[%s185 + $0x3c0] sm:$0xf]
        %v460 = vld [vmem:[%s185 + $0x3c4] sm:$0xf]
        %v461 = vld [vmem:[%s185 + $0x3c8] sm:$0xf]
        %v462 = vld [vmem:[%s185 + $0x3cc] sm:$0xf]
        %v463 = vld [vmem:[%s185 + $0x3d0] sm:$0xf]
        %v464 = vld [vmem:[%s185 + $0x3d4] sm:$0xf]
        %v465 = vld [vmem:[%s185 + $0x3d8] sm:$0xf]
        %v466 = vld [vmem:[%s185 + $0x3dc] sm:$0xf]
        %v467 = vld [vmem:[%s185 + $0x3e0] sm:$0xf]
        %v468 = vld [vmem:[%s185 + $0x3e4] sm:$0xf]
        %v469 = vld [vmem:[%s185 + $0x3e8] sm:$0xf]
        %v470 = vld [vmem:[%s185 + $0x3ec] sm:$0xf]
        %v471 = vld [vmem:[%s185 + $0x3f0] sm:$0xf]
        %v472 = vld [vmem:[%s185 + $0x3f4] sm:$0xf]
        %v473 = vld [vmem:[%s185 + $0x3f8] sm:$0xf]
        %v474 = vld [vmem:[%s185 + $0x3fc] sm:$0xf]
        %v475 = vld [vmem:[%s185 + $0x400] sm:$0xf]
        %v476 = vld [vmem:[%s185 + $0x404] sm:$0xf]
        %v477 = vld [vmem:[%s185 + $0x408] sm:$0xf]
        %v478 = vld [vmem:[%s185 + $0x40c] sm:$0xf]
        %v479 = vld [vmem:[%s185 + $0x410] sm:$0xf]
        %v480 = vld [vmem:[%s185 + $0x414] sm:$0xf]
        %v481 = vld [vmem:[%s185 + $0x418] sm:$0xf]
        %v482 = vld [vmem:[%s185 + $0x41c] sm:$0xf]
        %v483 = vld [vmem:[%s185 + $0x420] sm:$0xf]
        %v484 = vld [vmem:[%s185 + $0x424] sm:$0xf]
        %v485 = vld [vmem:[%s185 + $0x428] sm:$0xf]
        %v486 = vld [vmem:[%s185 + $0x42c] sm:$0xf]
        %v487 = vld [vmem:[%s185 + $0x430] sm:$0xf]
        %v488 = vld [vmem:[%s185 + $0x434] sm:$0xf]
        %v489 = vld [vmem:[%s185 + $0x438] sm:$0xf]
        %v490 = vld [vmem:[%s185 + $0x43c] sm:$0xf]
        %v491 = vld [vmem:[%s185 + $0x440] sm:$0xf]
        %v492 = vld [vmem:[%s185 + $0x444] sm:$0xf]
        %v493 = vld [vmem:[%s185 + $0x448] sm:$0xf]
        %v494 = vld [vmem:[%s185 + $0x44c] sm:$0xf]
        %v495 = vld [vmem:[%s185 + $0x450] sm:$0xf]
        %v496 = vld [vmem:[%s185 + $0x454] sm:$0xf]
        %v497 = vld [vmem:[%s185 + $0x458] sm:$0xf]
        %v498 = vld [vmem:[%s185 + $0x45c] sm:$0xf]
        %v499 = vld [vmem:[%s185 + $0x460] sm:$0xf]
        %v500 = vld [vmem:[%s185 + $0x464] sm:$0xf]
        %v501 = vld [vmem:[%s185 + $0x468] sm:$0xf]
        %v502 = vld [vmem:[%s185 + $0x46c] sm:$0xf]
        %v503 = vld [vmem:[%s185 + $0x470] sm:$0xf]
        %v504 = vld [vmem:[%s185 + $0x474] sm:$0xf]
        %v505 = vld [vmem:[%s185 + $0x478] sm:$0xf]
        %v506 = vld [vmem:[%s185 + $0x47c] sm:$0xf]
        %v507 = vld [vmem:[%s185 + $0x480] sm:$0xf]
        %v508 = vld [vmem:[%s185 + $0x484] sm:$0xf]
        %v509 = vld [vmem:[%s185 + $0x488] sm:$0xf]
        %v510 = vld [vmem:[%s185 + $0x48c] sm:$0xf]
        %v511 = vld [vmem:[%s185 + $0x490] sm:$0xf]
        %v512 = vld [vmem:[%s185 + $0x494] sm:$0xf]
        %v513 = vld [vmem:[%s185 + $0x498] sm:$0xf]
        %v514 = vld [vmem:[%s185 + $0x49c] sm:$0xf]
        %v515 = vld [vmem:[%s185 + $0x4a0] sm:$0xf]
        %v516 = vld [vmem:[%s185 + $0x4a4] sm:$0xf]
        %v517 = vld [vmem:[%s185 + $0x4a8] sm:$0xf]
        %v518 = vld [vmem:[%s185 + $0x4ac] sm:$0xf]
        %v519 = vld [vmem:[%s185 + $0x4b0] sm:$0xf]
        %v520 = vld [vmem:[%s185 + $0x4b4] sm:$0xf]
        %v521 = vld [vmem:[%s185 + $0x4b8] sm:$0xf]
        %v522 = vld [vmem:[%s185 + $0x4bc] sm:$0xf]
        %v523 = vld [vmem:[%s185 + $0x4c0] sm:$0xf]
        %v524 = vld [vmem:[%s185 + $0x4c4] sm:$0xf]
        %v525 = vld [vmem:[%s185 + $0x4c8] sm:$0xf]
        %v526 = vld [vmem:[%s185 + $0x4cc] sm:$0xf]
        %v527 = vld [vmem:[%s185 + $0x4d0] sm:$0xf]
        %v528 = vld [vmem:[%s185 + $0x4d4] sm:$0xf]
        %v529 = vld [vmem:[%s185 + $0x4d8] sm:$0xf]
        %v530 = vld [vmem:[%s185 + $0x4dc] sm:$0xf]
        %v531 = vld [vmem:[%s185 + $0x4e0] sm:$0xf]
        %v532 = vld [vmem:[%s185 + $0x4e4] sm:$0xf]
        %v533 = vld [vmem:[%s185 + $0x4e8] sm:$0xf]
        %v534 = vld [vmem:[%s185 + $0x4ec] sm:$0xf]
        %v535 = vld [vmem:[%s185 + $0x4f0] sm:$0xf]
        %v536 = vld [vmem:[%s185 + $0x4f4] sm:$0xf]
        %v537 = vld [vmem:[%s185 + $0x4f8] sm:$0xf]
        %v538 = vld [vmem:[%s185 + $0x4fc] sm:$0xf]
        %v539 = vld [vmem:[%s185 + $0x500] sm:$0xf]
        %v540 = vld [vmem:[%s185 + $0x504] sm:$0xf]
        %v541 = vld [vmem:[%s185 + $0x508] sm:$0xf]
        %v542 = vld [vmem:[%s185 + $0x50c] sm:$0xf]
        %v543 = vld [vmem:[%s185 + $0x510] sm:$0xf]
        %v544 = vld [vmem:[%s185 + $0x514] sm:$0xf]
        %v545 = vld [vmem:[%s185 + $0x518] sm:$0xf]
        %v546 = vld [vmem:[%s185 + $0x51c] sm:$0xf]
        %v547 = vld [vmem:[%s185 + $0x520] sm:$0xf]
        %v548 = vld [vmem:[%s185 + $0x524] sm:$0xf]
        %v549 = vld [vmem:[%s185 + $0x528] sm:$0xf]
        %v550 = vld [vmem:[%s185 + $0x52c] sm:$0xf]
        %v551 = vld [vmem:[%s185 + $0x530] sm:$0xf]
        %v552 = vld [vmem:[%s185 + $0x534] sm:$0xf]
        %v553 = vld [vmem:[%s185 + $0x538] sm:$0xf]
        %v554 = vld [vmem:[%s185 + $0x53c] sm:$0xf]
        %v555 = vld [vmem:[%s185 + $0x540] sm:$0xf]
        %v556 = vld [vmem:[%s185 + $0x544] sm:$0xf]
        %v557 = vld [vmem:[%s185 + $0x548] sm:$0xf]
        %v558 = vld [vmem:[%s185 + $0x54c] sm:$0xf]
        %v559 = vld [vmem:[%s185 + $0x550] sm:$0xf]
        %v560 = vld [vmem:[%s185 + $0x554] sm:$0xf]
        %v561 = vld [vmem:[%s185 + $0x558] sm:$0xf]
        %v562 = vld [vmem:[%s185 + $0x55c] sm:$0xf]
        %v563 = vld [vmem:[%s185 + $0x560] sm:$0xf]
        %v564 = vld [vmem:[%s185 + $0x564] sm:$0xf]
        %v565 = vld [vmem:[%s185 + $0x568] sm:$0xf]
        %v566 = vld [vmem:[%s185 + $0x56c] sm:$0xf]
        %v567 = vld [vmem:[%s185 + $0x570] sm:$0xf]
        %v568 = vld [vmem:[%s185 + $0x574] sm:$0xf]
        %v569 = vld [vmem:[%s185 + $0x578] sm:$0xf]
        %v570 = vld [vmem:[%s185 + $0x57c] sm:$0xf]
        %v571 = vld [vmem:[%s185 + $0x580] sm:$0xf]
        %v572 = vld [vmem:[%s185 + $0x584] sm:$0xf]
        %v573 = vld [vmem:[%s185 + $0x588] sm:$0xf]
        %v574 = vld [vmem:[%s185 + $0x58c] sm:$0xf]
        %v575 = vld [vmem:[%s185 + $0x590] sm:$0xf]
        %v576 = vld [vmem:[%s185 + $0x594] sm:$0xf]
        %v577 = vld [vmem:[%s185 + $0x598] sm:$0xf]
        %v578 = vld [vmem:[%s185 + $0x59c] sm:$0xf]
        %v579 = vld [vmem:[%s185 + $0x5a0] sm:$0xf]
        %v580 = vld [vmem:[%s185 + $0x5a4] sm:$0xf]
        %v581 = vld [vmem:[%s185 + $0x5a8] sm:$0xf]
        %v582 = vld [vmem:[%s185 + $0x5ac] sm:$0xf]
        %v583 = vld [vmem:[%s185 + $0x5b0] sm:$0xf]
        %v584 = vld [vmem:[%s185 + $0x5b4] sm:$0xf]
        %v585 = vld [vmem:[%s185 + $0x5b8] sm:$0xf]
        %v586 = vld [vmem:[%s185 + $0x5bc] sm:$0xf]
        %v587 = vld [vmem:[%s185 + $0x5c0] sm:$0xf]
        %v588 = vld [vmem:[%s185 + $0x5c4] sm:$0xf]
        %v589 = vld [vmem:[%s185 + $0x5c8] sm:$0xf]
        %v590 = vld [vmem:[%s185 + $0x5cc] sm:$0xf]
        %v591 = vld [vmem:[%s185 + $0x5d0] sm:$0xf]
        %v592 = vld [vmem:[%s185 + $0x5d4] sm:$0xf]
        %v593 = vld [vmem:[%s185 + $0x5d8] sm:$0xf]
        %v594 = vld [vmem:[%s185 + $0x5dc] sm:$0xf]
        %v595 = vld [vmem:[%s185 + $0x5e0] sm:$0xf]
        %v596 = vld [vmem:[%s185 + $0x5e4] sm:$0xf]
        %v597 = vld [vmem:[%s185 + $0x5e8] sm:$0xf]
        %v598 = vld [vmem:[%s185 + $0x5ec] sm:$0xf]
        %v599 = vld [vmem:[%s185 + $0x5f0] sm:$0xf]
        %v600 = vld [vmem:[%s185 + $0x5f4] sm:$0xf]
        %v601 = vld [vmem:[%s185 + $0x5f8] sm:$0xf]
        %v602 = vld [vmem:[%s185 + $0x5fc] sm:$0xf]
        %v603 = vld [vmem:[%s185 + $0x600] sm:$0xf]
        %v604 = vld [vmem:[%s185 + $0x604] sm:$0xf]
        %v605 = vld [vmem:[%s185 + $0x608] sm:$0xf]
        %v606 = vld [vmem:[%s185 + $0x60c] sm:$0xf]
        %v607 = vld [vmem:[%s185 + $0x610] sm:$0xf]
        %v608 = vld [vmem:[%s185 + $0x614] sm:$0xf]
        %v609 = vld [vmem:[%s185 + $0x618] sm:$0xf]
        %v610 = vld [vmem:[%s185 + $0x61c] sm:$0xf]
        %v611 = vld [vmem:[#allocation5] sm:$0xf]
        %v612 = vld [vmem:[#allocation5 + $0x4] sm:$0xf]
        %v613 = vld [vmem:[#allocation5 + $0x8] sm:$0xf]
        %v614 = vld [vmem:[#allocation5 + $0xc] sm:$0x3]
        %v615 = vld [vmem:[#allocation7] sm:$0x1]
        %v617 = vlaneseq
        %v618 = vshrl.u32 %v617, 7
        %v619 = vsub.s32 0, %v618
        %v620 = vrot.slane %v615, %v619
        %v1014 = vunpack.c.l.b16 %v219
        %v1015 = vunpack.c.l.b16 %v220
        %v1016 = vunpack.c.l.b16 %v221
        %v1017 = vunpack.c.l.b16 %v222
        %v1018 = vunpack.c.l.b16 %v223
        %v1019 = vunpack.c.l.b16 %v224
        %v1020 = vunpack.c.l.b16 %v225
        %v1021 = vunpack.c.l.b16 %v226
        %v1022 = vunpack.c.l.b16 %v227
        %v1023 = vunpack.c.l.b16 %v228
        %v1024 = vunpack.c.l.b16 %v229
        %v1025 = vunpack.c.l.b16 %v230
        %v1026 = vunpack.c.l.b16 %v231
        %v1027 = vunpack.c.l.b16 %v232
        %v1028 = vunpack.c.l.b16 %v233
        %v1029 = vunpack.c.l.b16 %v234
        %v1030 = vunpack.c.l.b16 %v235
        %v1031 = vunpack.c.l.b16 %v236
        %v1032 = vunpack.c.l.b16 %v237
        %v1033 = vunpack.c.l.b16 %v238
        %v1034 = vunpack.c.l.b16 %v239
        %v1035 = vunpack.c.l.b16 %v240
        %v1036 = vunpack.c.l.b16 %v241
        %v1037 = vunpack.c.l.b16 %v242
        %v1038 = vunpack.c.l.b16 %v243
        %v1039 = vunpack.c.l.b16 %v244
        %v1040 = vunpack.c.l.b16 %v245
        %v1041 = vunpack.c.l.b16 %v246
        %v1042 = vunpack.c.l.b16 %v247
        %v1043 = vunpack.c.l.b16 %v248
        %v1044 = vunpack.c.l.b16 %v249
        %v1045 = vunpack.c.l.b16 %v250
        %v1046 = vunpack.c.l.b16 %v251
        %v1047 = vunpack.c.l.b16 %v252
        %v1048 = vunpack.c.l.b16 %v253
        %v1049 = vunpack.c.l.b16 %v254
        %v1050 = vunpack.c.l.b16 %v255
        %v1051 = vunpack.c.l.b16 %v256
        %v1052 = vunpack.c.l.b16 %v257
        %v1053 = vunpack.c.l.b16 %v258
        %v1054 = vunpack.c.l.b16 %v259
        %v1055 = vunpack.c.l.b16 %v260
        %v1056 = vunpack.c.l.b16 %v261
        %v1057 = vunpack.c.l.b16 %v262
        %v1058 = vunpack.c.l.b16 %v263
        %v1059 = vunpack.c.l.b16 %v264
        %v1060 = vunpack.c.l.b16 %v265
        %v1061 = vunpack.c.l.b16 %v266
        %v1062 = vunpack.c.l.b16 %v267
        %v1063 = vunpack.c.l.b16 %v268
        %v1064 = vunpack.c.l.b16 %v269
        %v1065 = vunpack.c.l.b16 %v270
        %v1066 = vunpack.c.l.b16 %v271
        %v1067 = vunpack.c.l.b16 %v272
        %v1068 = vunpack.c.l.b16 %v273
        %v1069 = vunpack.c.l.b16 %v274
        %v1070 = vunpack.c.l.b16 %v275
        %v1071 = vunpack.c.l.b16 %v276
        %v1072 = vunpack.c.l.b16 %v277
        %v1073 = vunpack.c.l.b16 %v278
        %v1074 = vunpack.c.l.b16 %v279
        %v1075 = vunpack.c.l.b16 %v280
        %v1076 = vunpack.c.l.b16 %v281
        %v1077 = vunpack.c.l.b16 %v282
        %v1078 = vunpack.c.l.b16 %v283
        %v1079 = vunpack.c.l.b16 %v284
        %v1080 = vunpack.c.l.b16 %v285
        %v1081 = vunpack.c.l.b16 %v286
        %v1082 = vunpack.c.l.b16 %v287
        %v1083 = vunpack.c.l.b16 %v288
        %v1084 = vunpack.c.l.b16 %v289
        %v1085 = vunpack.c.l.b16 %v290
        %v1086 = vunpack.c.l.b16 %v291
        %v1087 = vunpack.c.l.b16 %v292
        %v1088 = vunpack.c.l.b16 %v293
        %v1089 = vunpack.c.l.b16 %v294
        %v1090 = vunpack.c.l.b16 %v295
        %v1091 = vunpack.c.l.b16 %v296
        %v1092 = vunpack.c.l.b16 %v297
        %v1093 = vunpack.c.l.b16 %v298
        %v1094 = vunpack.c.l.b16 %v299
        %v1095 = vunpack.c.l.b16 %v300
        %v1096 = vunpack.c.l.b16 %v301
        %v1097 = vunpack.c.l.b16 %v302
        %v1098 = vunpack.c.l.b16 %v303
        %v1099 = vunpack.c.l.b16 %v304
        %v1100 = vunpack.c.l.b16 %v305
        %v1101 = vunpack.c.l.b16 %v306
        %v1102 = vunpack.c.l.b16 %v307
        %v1103 = vunpack.c.l.b16 %v308
        %v1104 = vunpack.c.l.b16 %v309
        %v1105 = vunpack.c.l.b16 %v310
        %v1106 = vunpack.c.l.b16 %v311
        %v1107 = vunpack.c.l.b16 %v312
        %v1108 = vunpack.c.l.b16 %v313
        %v1109 = vunpack.c.l.b16 %v314
        %v1110 = vunpack.c.l.b16 %v315
        %v1111 = vunpack.c.l.b16 %v316
        %v1112 = vunpack.c.l.b16 %v317
        %v1113 = vunpack.c.l.b16 %v318
        %v1114 = vunpack.c.l.b16 %v319
        %v1115 = vunpack.c.l.b16 %v320
        %v1116 = vunpack.c.l.b16 %v321
        %v1117 = vunpack.c.l.b16 %v322
        %v1118 = vunpack.c.l.b16 %v323
        %v1119 = vunpack.c.l.b16 %v324
        %v1120 = vunpack.c.l.b16 %v325
        %v1121 = vunpack.c.l.b16 %v326
        %v1122 = vunpack.c.l.b16 %v327
        %v1123 = vunpack.c.l.b16 %v328
        %v1124 = vunpack.c.l.b16 %v329
        %v1125 = vunpack.c.l.b16 %v330
        %v1126 = vunpack.c.l.b16 %v331
        %v1127 = vunpack.c.l.b16 %v332
        %v1128 = vunpack.c.l.b16 %v333
        %v1129 = vunpack.c.l.b16 %v334
        %v1130 = vunpack.c.l.b16 %v335
        %v1131 = vunpack.c.l.b16 %v336
        %v1132 = vunpack.c.l.b16 %v337
        %v1133 = vunpack.c.l.b16 %v338
        %v1134 = vunpack.c.l.b16 %v339
        %v1135 = vunpack.c.l.b16 %v340
        %v1136 = vunpack.c.l.b16 %v341
        %v1137 = vunpack.c.l.b16 %v342
        %v1138 = vunpack.c.l.b16 %v343
        %v1139 = vunpack.c.l.b16 %v344
        %v1140 = vunpack.c.l.b16 %v345
        %v1141 = vunpack.c.l.b16 %v346
        %v1142 = vunpack.c.l.b16 %v347
        %v1143 = vunpack.c.l.b16 %v348
        %v1144 = vunpack.c.l.b16 %v349
        %v1145 = vunpack.c.l.b16 %v350
        %v1146 = vunpack.c.l.b16 %v351
        %v1147 = vunpack.c.l.b16 %v352
        %v1148 = vunpack.c.l.b16 %v353
        %v1149 = vunpack.c.l.b16 %v354
        %v1150 = vunpack.c.l.b16 %v355
        %v1151 = vunpack.c.l.b16 %v356
        %v1152 = vunpack.c.l.b16 %v357
        %v1153 = vunpack.c.l.b16 %v358
        %v1154 = vunpack.c.l.b16 %v359
        %v1155 = vunpack.c.l.b16 %v360
        %v1156 = vunpack.c.l.b16 %v361
        %v1157 = vunpack.c.l.b16 %v362
        %v1158 = vunpack.c.l.b16 %v363
        %v1159 = vunpack.c.l.b16 %v364
        %v1160 = vunpack.c.l.b16 %v365
        %v1161 = vunpack.c.l.b16 %v366
        %v1162 = vunpack.c.l.b16 %v367
        %v1163 = vunpack.c.l.b16 %v368
        %v1164 = vunpack.c.l.b16 %v369
        %v1165 = vunpack.c.l.b16 %v370
        %v1166 = vunpack.c.l.b16 %v371
        %v1167 = vunpack.c.l.b16 %v372
        %v1168 = vunpack.c.l.b16 %v373
        %v1169 = vunpack.c.l.b16 %v374
        %v1170 = vunpack.c.l.b16 %v375
        %v1171 = vunpack.c.l.b16 %v376
        %v1172 = vunpack.c.l.b16 %v377
        %v1173 = vunpack.c.l.b16 %v378
        %v1174 = vunpack.c.l.b16 %v379
        %v1175 = vunpack.c.l.b16 %v380
        %v1176 = vunpack.c.l.b16 %v381
        %v1177 = vunpack.c.l.b16 %v382
        %v1178 = vunpack.c.l.b16 %v383
        %v1179 = vunpack.c.l.b16 %v384
        %v1180 = vunpack.c.l.b16 %v385
        %v1181 = vunpack.c.l.b16 %v386
        %v1182 = vunpack.c.l.b16 %v387
        %v1183 = vunpack.c.l.b16 %v388
        %v1184 = vunpack.c.l.b16 %v389
        %v1185 = vunpack.c.l.b16 %v390
        %v1186 = vunpack.c.l.b16 %v391
        %v1187 = vunpack.c.l.b16 %v392
        %v1188 = vunpack.c.l.b16 %v393
        %v1189 = vunpack.c.l.b16 %v394
        %v1190 = vunpack.c.l.b16 %v395
        %v1191 = vunpack.c.l.b16 %v396
        %v1192 = vunpack.c.l.b16 %v397
        %v1193 = vunpack.c.l.b16 %v398
        %v1194 = vunpack.c.l.b16 %v399
        %v1195 = vunpack.c.l.b16 %v400
        %v1196 = vunpack.c.l.b16 %v401
        %v1197 = vunpack.c.l.b16 %v402
        %v1198 = vunpack.c.l.b16 %v403
        %v1199 = vunpack.c.l.b16 %v404
        %v1200 = vunpack.c.l.b16 %v405
        %v1201 = vunpack.c.l.b16 %v406
        %v1202 = vunpack.c.l.b16 %v407
        %v1203 = vunpack.c.l.b16 %v408
        %v1204 = vunpack.c.l.b16 %v409
        %v1205 = vunpack.c.l.b16 %v410
        %v1206 = vunpack.c.l.b16 %v411
        %v1207 = vunpack.c.l.b16 %v412
        %v1208 = vunpack.c.l.b16 %v413
        %v1209 = vunpack.c.l.b16 %v414
        %v1210 = vunpack.c.l.b16 %v415
        %v1211 = vunpack.c.l.b16 %v416
        %v1212 = vunpack.c.l.b16 %v417
        %v1213 = vunpack.c.l.b16 %v418
        %v1214 = vunpack.c.l.b16 %v419
        %v1215 = vunpack.c.l.b16 %v420
        %v1216 = vunpack.c.l.b16 %v421
        %v1217 = vunpack.c.l.b16 %v422
        %v1218 = vunpack.c.l.b16 %v423
        %v1219 = vunpack.c.l.b16 %v424
        %v1220 = vunpack.c.l.b16 %v425
        %v1221 = vunpack.c.l.b16 %v426
        %v1222 = vunpack.c.l.b16 %v427
        %v1223 = vunpack.c.l.b16 %v428
        %v1224 = vunpack.c.l.b16 %v429
        %v1225 = vunpack.c.l.b16 %v430
        %v1226 = vunpack.c.l.b16 %v431
        %v1227 = vunpack.c.l.b16 %v432
        %v1228 = vunpack.c.l.b16 %v433
        %v1229 = vunpack.c.l.b16 %v434
        %v1230 = vunpack.c.l.b16 %v435
        %v1231 = vunpack.c.l.b16 %v436
        %v1232 = vunpack.c.l.b16 %v437
        %v1233 = vunpack.c.l.b16 %v438
        %v1234 = vunpack.c.l.b16 %v439
        %v1235 = vunpack.c.l.b16 %v440
        %v1236 = vunpack.c.l.b16 %v441
        %v1237 = vunpack.c.l.b16 %v442
        %v1238 = vunpack.c.l.b16 %v443
        %v1239 = vunpack.c.l.b16 %v444
        %v1240 = vunpack.c.l.b16 %v445
        %v1241 = vunpack.c.l.b16 %v446
        %v1242 = vunpack.c.l.b16 %v447
        %v1243 = vunpack.c.l.b16 %v448
        %v1244 = vunpack.c.l.b16 %v449
        %v1245 = vunpack.c.l.b16 %v450
        %v1246 = vunpack.c.l.b16 %v451
        %v1247 = vunpack.c.l.b16 %v452
        %v1248 = vunpack.c.l.b16 %v453
        %v1249 = vunpack.c.l.b16 %v454
        %v1250 = vunpack.c.l.b16 %v455
        %v1251 = vunpack.c.l.b16 %v456
        %v1252 = vunpack.c.l.b16 %v457
        %v1253 = vunpack.c.l.b16 %v458
        %v1254 = vunpack.c.l.b16 %v459
        %v1255 = vunpack.c.l.b16 %v460
        %v1256 = vunpack.c.l.b16 %v461
        %v1257 = vunpack.c.l.b16 %v462
        %v1258 = vunpack.c.l.b16 %v463
        %v1259 = vunpack.c.l.b16 %v464
        %v1260 = vunpack.c.l.b16 %v465
        %v1261 = vunpack.c.l.b16 %v466
        %v1262 = vunpack.c.l.b16 %v467
        %v1263 = vunpack.c.l.b16 %v468
        %v1264 = vunpack.c.l.b16 %v469
        %v1265 = vunpack.c.l.b16 %v470
        %v1266 = vunpack.c.l.b16 %v471
        %v1267 = vunpack.c.l.b16 %v472
        %v1268 = vunpack.c.l.b16 %v473
        %v1269 = vunpack.c.l.b16 %v474
        %v1270 = vunpack.c.l.b16 %v475
        %v1271 = vunpack.c.l.b16 %v476
        %v1272 = vunpack.c.l.b16 %v477
        %v1273 = vunpack.c.l.b16 %v478
        %v1274 = vunpack.c.l.b16 %v479
        %v1275 = vunpack.c.l.b16 %v480
        %v1276 = vunpack.c.l.b16 %v481
        %v1277 = vunpack.c.l.b16 %v482
        %v1278 = vunpack.c.l.b16 %v483
        %v1279 = vunpack.c.l.b16 %v484
        %v1280 = vunpack.c.l.b16 %v485
        %v1281 = vunpack.c.l.b16 %v486
        %v1282 = vunpack.c.l.b16 %v487
        %v1283 = vunpack.c.l.b16 %v488
        %v1284 = vunpack.c.l.b16 %v489
        %v1285 = vunpack.c.l.b16 %v490
        %v1286 = vunpack.c.l.b16 %v491
        %v1287 = vunpack.c.l.b16 %v492
        %v1288 = vunpack.c.l.b16 %v493
        %v1289 = vunpack.c.l.b16 %v494
        %v1290 = vunpack.c.l.b16 %v495
        %v1291 = vunpack.c.l.b16 %v496
        %v1292 = vunpack.c.l.b16 %v497
        %v1293 = vunpack.c.l.b16 %v498
        %v1294 = vunpack.c.l.b16 %v499
        %v1295 = vunpack.c.l.b16 %v500
        %v1296 = vunpack.c.l.b16 %v501
        %v1297 = vunpack.c.l.b16 %v502
        %v1298 = vunpack.c.l.b16 %v503
        %v1299 = vunpack.c.l.b16 %v504
        %v1300 = vunpack.c.l.b16 %v505
        %v1301 = vunpack.c.l.b16 %v506
        %v1302 = vunpack.c.l.b16 %v507
        %v1303 = vunpack.c.l.b16 %v508
        %v1304 = vunpack.c.l.b16 %v509
        %v1305 = vunpack.c.l.b16 %v510
        %v1306 = vunpack.c.l.b16 %v511
        %v1307 = vunpack.c.l.b16 %v512
        %v1308 = vunpack.c.l.b16 %v513
        %v1309 = vunpack.c.l.b16 %v514
        %v1310 = vunpack.c.l.b16 %v515
        %v1311 = vunpack.c.l.b16 %v516
        %v1312 = vunpack.c.l.b16 %v517
        %v1313 = vunpack.c.l.b16 %v518
        %v1314 = vunpack.c.l.b16 %v519
        %v1315 = vunpack.c.l.b16 %v520
        %v1316 = vunpack.c.l.b16 %v521
        %v1317 = vunpack.c.l.b16 %v522
        %v1318 = vunpack.c.l.b16 %v523
        %v1319 = vunpack.c.l.b16 %v524
        %v1320 = vunpack.c.l.b16 %v525
        %v1321 = vunpack.c.l.b16 %v526
        %v1322 = vunpack.c.l.b16 %v527
        %v1323 = vunpack.c.l.b16 %v528
        %v1324 = vunpack.c.l.b16 %v529
        %v1325 = vunpack.c.l.b16 %v530
        %v1326 = vunpack.c.l.b16 %v531
        %v1327 = vunpack.c.l.b16 %v532
        %v1328 = vunpack.c.l.b16 %v533
        %v1329 = vunpack.c.l.b16 %v534
        %v1330 = vunpack.c.l.b16 %v535
        %v1331 = vunpack.c.l.b16 %v536
        %v1332 = vunpack.c.l.b16 %v537
        %v1333 = vunpack.c.l.b16 %v538
        %v1334 = vunpack.c.l.b16 %v539
        %v1335 = vunpack.c.l.b16 %v540
        %v1336 = vunpack.c.l.b16 %v541
        %v1337 = vunpack.c.l.b16 %v542
        %v1338 = vunpack.c.l.b16 %v543
        %v1339 = vunpack.c.l.b16 %v544
        %v1340 = vunpack.c.l.b16 %v545
        %v1341 = vunpack.c.l.b16 %v546
        %v1342 = vunpack.c.l.b16 %v547
        %v1343 = vunpack.c.l.b16 %v548
        %v1344 = vunpack.c.l.b16 %v549
        %v1345 = vunpack.c.l.b16 %v550
        %v1346 = vunpack.c.l.b16 %v551
        %v1347 = vunpack.c.l.b16 %v552
        %v1348 = vunpack.c.l.b16 %v553
        %v1349 = vunpack.c.l.b16 %v554
        %v1350 = vunpack.c.l.b16 %v555
        %v1351 = vunpack.c.l.b16 %v556
        %v1352 = vunpack.c.l.b16 %v557
        %v1353 = vunpack.c.l.b16 %v558
        %v1354 = vunpack.c.l.b16 %v559
        %v1355 = vunpack.c.l.b16 %v560
        %v1356 = vunpack.c.l.b16 %v561
        %v1357 = vunpack.c.l.b16 %v562
        %v1358 = vunpack.c.l.b16 %v563
        %v1359 = vunpack.c.l.b16 %v564
        %v1360 = vunpack.c.l.b16 %v565
        %v1361 = vunpack.c.l.b16 %v566
        %v1362 = vunpack.c.l.b16 %v567
        %v1363 = vunpack.c.l.b16 %v568
        %v1364 = vunpack.c.l.b16 %v569
        %v1365 = vunpack.c.l.b16 %v570
        %v1366 = vunpack.c.l.b16 %v571
        %v1367 = vunpack.c.l.b16 %v572
        %v1368 = vunpack.c.l.b16 %v573
        %v1369 = vunpack.c.l.b16 %v574
        %v1370 = vunpack.c.l.b16 %v575
        %v1371 = vunpack.c.l.b16 %v576
        %v1372 = vunpack.c.l.b16 %v577
        %v1373 = vunpack.c.l.b16 %v578
        %v1374 = vunpack.c.l.b16 %v579
        %v1375 = vunpack.c.l.b16 %v580
        %v1376 = vunpack.c.l.b16 %v581
        %v1377 = vunpack.c.l.b16 %v582
        %v1378 = vunpack.c.l.b16 %v583
        %v1379 = vunpack.c.l.b16 %v584
        %v1380 = vunpack.c.l.b16 %v585
        %v1381 = vunpack.c.l.b16 %v586
        %v1382 = vunpack.c.l.b16 %v587
        %v1383 = vunpack.c.l.b16 %v588
        %v1384 = vunpack.c.l.b16 %v589
        %v1385 = vunpack.c.l.b16 %v590
        %v1386 = vunpack.c.l.b16 %v591
        %v1387 = vunpack.c.l.b16 %v592
        %v1388 = vunpack.c.l.b16 %v593
        %v1389 = vunpack.c.l.b16 %v594
        %v1390 = vunpack.c.l.b16 %v595
        %v1391 = vunpack.c.l.b16 %v596
        %v1392 = vunpack.c.l.b16 %v597
        %v1393 = vunpack.c.l.b16 %v598
        %v1394 = vunpack.c.l.b16 %v599
        %v1395 = vunpack.c.l.b16 %v600
        %v1396 = vunpack.c.l.b16 %v601
        %v1397 = vunpack.c.l.b16 %v602
        %v1398 = vunpack.c.l.b16 %v603
        %v1399 = vunpack.c.l.b16 %v604
        %v1400 = vunpack.c.l.b16 %v605
        %v1401 = vunpack.c.l.b16 %v606
        %v1402 = vunpack.c.l.b16 %v607
        %v1403 = vunpack.c.l.b16 %v608
        %v1404 = vunpack.c.l.b16 %v609
        %v1405 = vunpack.c.l.b16 %v610
        %v1406 = vpack.c.b16 %v1015, %v1014
        %v1407 = vpack.c.b16 %v1017, %v1016
        %v1408 = vpack.c.b16 %v1019, %v1018
        %v1409 = vpack.c.b16 %v1021, %v1020
        %v1410 = vpack.c.b16 %v1023, %v1022
        %v1411 = vpack.c.b16 %v1025, %v1024
        %v1412 = vpack.c.b16 %v1027, %v1026
        %v1413 = vpack.c.b16 %v1029, %v1028
        %v1414 = vpack.c.b16 %v1031, %v1030
        %v1415 = vpack.c.b16 %v1033, %v1032
        %v1416 = vpack.c.b16 %v1035, %v1034
        %v1417 = vpack.c.b16 %v1037, %v1036
        %v1418 = vpack.c.b16 %v1039, %v1038
        %v1419 = vpack.c.b16 %v1041, %v1040
        %v1420 = vpack.c.b16 %v1043, %v1042
        %v1421 = vpack.c.b16 %v1045, %v1044
        %v1422 = vpack.c.b16 %v1047, %v1046
        %v1423 = vpack.c.b16 %v1049, %v1048
        %v1424 = vpack.c.b16 %v1051, %v1050
        %v1425 = vpack.c.b16 %v1053, %v1052
        %v1426 = vpack.c.b16 %v1055, %v1054
        %v1427 = vpack.c.b16 %v1057, %v1056
        %v1428 = vpack.c.b16 %v1059, %v1058
        %v1429 = vpack.c.b16 %v1061, %v1060
        %v1430 = vpack.c.b16 %v1063, %v1062
        %v1431 = vpack.c.b16 %v1065, %v1064
        %v1432 = vpack.c.b16 %v1067, %v1066
        %v1433 = vpack.c.b16 %v1069, %v1068
        %v1434 = vpack.c.b16 %v1071, %v1070
        %v1435 = vpack.c.b16 %v1073, %v1072
        %v1436 = vpack.c.b16 %v1075, %v1074
        %v1437 = vpack.c.b16 %v1077, %v1076
        %v1438 = vpack.c.b16 %v1079, %v1078
        %v1439 = vpack.c.b16 %v1081, %v1080
        %v1440 = vpack.c.b16 %v1083, %v1082
        %v1441 = vpack.c.b16 %v1085, %v1084
        %v1442 = vpack.c.b16 %v1087, %v1086
        %v1443 = vpack.c.b16 %v1089, %v1088
        %v1444 = vpack.c.b16 %v1091, %v1090
        %v1445 = vpack.c.b16 %v1093, %v1092
        %v1446 = vpack.c.b16 %v1095, %v1094
        %v1447 = vpack.c.b16 %v1097, %v1096
        %v1448 = vpack.c.b16 %v1099, %v1098
        %v1449 = vpack.c.b16 %v1101, %v1100
        %v1450 = vpack.c.b16 %v1103, %v1102
        %v1451 = vpack.c.b16 %v1105, %v1104
        %v1452 = vpack.c.b16 %v1107, %v1106
        %v1453 = vpack.c.b16 %v1109, %v1108
        %v1454 = vpack.c.b16 %v1111, %v1110
        %v1455 = vpack.c.b16 %v1113, %v1112
        %v1456 = vpack.c.b16 %v1115, %v1114
        %v1457 = vpack.c.b16 %v1117, %v1116
        %v1458 = vpack.c.b16 %v1119, %v1118
        %v1459 = vpack.c.b16 %v1121, %v1120
        %v1460 = vpack.c.b16 %v1123, %v1122
        %v1461 = vpack.c.b16 %v1125, %v1124
        %v1462 = vpack.c.b16 %v1127, %v1126
        %v1463 = vpack.c.b16 %v1129, %v1128
        %v1464 = vpack.c.b16 %v1131, %v1130
        %v1465 = vpack.c.b16 %v1133, %v1132
        %v1466 = vpack.c.b16 %v1135, %v1134
        %v1467 = vpack.c.b16 %v1137, %v1136
        %v1468 = vpack.c.b16 %v1139, %v1138
        %v1469 = vpack.c.b16 %v1141, %v1140
        %v1470 = vpack.c.b16 %v1143, %v1142
        %v1471 = vpack.c.b16 %v1145, %v1144
        %v1472 = vpack.c.b16 %v1147, %v1146
        %v1473 = vpack.c.b16 %v1149, %v1148
        %v1474 = vpack.c.b16 %v1151, %v1150
        %v1475 = vpack.c.b16 %v1153, %v1152
        %v1476 = vpack.c.b16 %v1155, %v1154
        %v1477 = vpack.c.b16 %v1157, %v1156
        %v1478 = vpack.c.b16 %v1159, %v1158
        %v1479 = vpack.c.b16 %v1161, %v1160
        %v1480 = vpack.c.b16 %v1163, %v1162
        %v1481 = vpack.c.b16 %v1165, %v1164
        %v1482 = vpack.c.b16 %v1167, %v1166
        %v1483 = vpack.c.b16 %v1169, %v1168
        %v1484 = vpack.c.b16 %v1171, %v1170
        %v1485 = vpack.c.b16 %v1173, %v1172
        %v1486 = vpack.c.b16 %v1175, %v1174
        %v1487 = vpack.c.b16 %v1177, %v1176
        %v1488 = vpack.c.b16 %v1179, %v1178
        %v1489 = vpack.c.b16 %v1181, %v1180
        %v1490 = vpack.c.b16 %v1183, %v1182
        %v1491 = vpack.c.b16 %v1185, %v1184
        %v1492 = vpack.c.b16 %v1187, %v1186
        %v1493 = vpack.c.b16 %v1189, %v1188
        %v1494 = vpack.c.b16 %v1191, %v1190
        %v1495 = vpack.c.b16 %v1193, %v1192
        %v1496 = vpack.c.b16 %v1195, %v1194
        %v1497 = vpack.c.b16 %v1197, %v1196
        %v1498 = vpack.c.b16 %v1199, %v1198
        %v1499 = vpack.c.b16 %v1201, %v1200
        %v1500 = vpack.c.b16 %v1203, %v1202
        %v1501 = vpack.c.b16 %v1205, %v1204
        %v1502 = vpack.c.b16 %v1207, %v1206
        %v1503 = vpack.c.b16 %v1209, %v1208
        %v1504 = vpack.c.b16 %v1211, %v1210
        %v1505 = vpack.c.b16 %v1213, %v1212
        %v1506 = vpack.c.b16 %v1215, %v1214
        %v1507 = vpack.c.b16 %v1217, %v1216
        %v1508 = vpack.c.b16 %v1219, %v1218
        %v1509 = vpack.c.b16 %v1221, %v1220
        %v1510 = vpack.c.b16 %v1223, %v1222
        %v1511 = vpack.c.b16 %v1225, %v1224
        %v1512 = vpack.c.b16 %v1227, %v1226
        %v1513 = vpack.c.b16 %v1229, %v1228
        %v1514 = vpack.c.b16 %v1231, %v1230
        %v1515 = vpack.c.b16 %v1233, %v1232
        %v1516 = vpack.c.b16 %v1235, %v1234
        %v1517 = vpack.c.b16 %v1237, %v1236
        %v1518 = vpack.c.b16 %v1239, %v1238
        %v1519 = vpack.c.b16 %v1241, %v1240
        %v1520 = vpack.c.b16 %v1243, %v1242
        %v1521 = vpack.c.b16 %v1245, %v1244
        %v1522 = vpack.c.b16 %v1247, %v1246
        %v1523 = vpack.c.b16 %v1249, %v1248
        %v1524 = vpack.c.b16 %v1251, %v1250
        %v1525 = vpack.c.b16 %v1253, %v1252
        %v1526 = vpack.c.b16 %v1255, %v1254
        %v1527 = vpack.c.b16 %v1257, %v1256
        %v1528 = vpack.c.b16 %v1259, %v1258
        %v1529 = vpack.c.b16 %v1261, %v1260
        %v1530 = vpack.c.b16 %v1263, %v1262
        %v1531 = vpack.c.b16 %v1265, %v1264
        %v1532 = vpack.c.b16 %v1267, %v1266
        %v1533 = vpack.c.b16 %v1269, %v1268
        %v1534 = vpack.c.b16 %v1271, %v1270
        %v1535 = vpack.c.b16 %v1273, %v1272
        %v1536 = vpack.c.b16 %v1275, %v1274
        %v1537 = vpack.c.b16 %v1277, %v1276
        %v1538 = vpack.c.b16 %v1279, %v1278
        %v1539 = vpack.c.b16 %v1281, %v1280
        %v1540 = vpack.c.b16 %v1283, %v1282
        %v1541 = vpack.c.b16 %v1285, %v1284
        %v1542 = vpack.c.b16 %v1287, %v1286
        %v1543 = vpack.c.b16 %v1289, %v1288
        %v1544 = vpack.c.b16 %v1291, %v1290
        %v1545 = vpack.c.b16 %v1293, %v1292
        %v1546 = vpack.c.b16 %v1295, %v1294
        %v1547 = vpack.c.b16 %v1297, %v1296
        %v1548 = vpack.c.b16 %v1299, %v1298
        %v1549 = vpack.c.b16 %v1301, %v1300
        %v1550 = vpack.c.b16 %v1303, %v1302
        %v1551 = vpack.c.b16 %v1305, %v1304
        %v1552 = vpack.c.b16 %v1307, %v1306
        %v1553 = vpack.c.b16 %v1309, %v1308
        %v1554 = vpack.c.b16 %v1311, %v1310
        %v1555 = vpack.c.b16 %v1313, %v1312
        %v1556 = vpack.c.b16 %v1315, %v1314
        %v1557 = vpack.c.b16 %v1317, %v1316
        %v1558 = vpack.c.b16 %v1319, %v1318
        %v1559 = vpack.c.b16 %v1321, %v1320
        %v1560 = vpack.c.b16 %v1323, %v1322
        %v1561 = vpack.c.b16 %v1325, %v1324
        %v1562 = vpack.c.b16 %v1327, %v1326
        %v1563 = vpack.c.b16 %v1329, %v1328
        %v1564 = vpack.c.b16 %v1331, %v1330
        %v1565 = vpack.c.b16 %v1333, %v1332
        %v1566 = vpack.c.b16 %v1335, %v1334
        %v1567 = vpack.c.b16 %v1337, %v1336
        %v1568 = vpack.c.b16 %v1339, %v1338
        %v1569 = vpack.c.b16 %v1341, %v1340
        %v1570 = vpack.c.b16 %v1343, %v1342
        %v1571 = vpack.c.b16 %v1345, %v1344
        %v1572 = vpack.c.b16 %v1347, %v1346
        %v1573 = vpack.c.b16 %v1349, %v1348
        %v1574 = vpack.c.b16 %v1351, %v1350
        %v1575 = vpack.c.b16 %v1353, %v1352
        %v1576 = vpack.c.b16 %v1355, %v1354
        %v1577 = vpack.c.b16 %v1357, %v1356
        %v1578 = vpack.c.b16 %v1359, %v1358
        %v1579 = vpack.c.b16 %v1361, %v1360
        %v1580 = vpack.c.b16 %v1363, %v1362
        %v1581 = vpack.c.b16 %v1365, %v1364
        %v1582 = vpack.c.b16 %v1367, %v1366
        %v1583 = vpack.c.b16 %v1369, %v1368
        %v1584 = vpack.c.b16 %v1371, %v1370
        %v1585 = vpack.c.b16 %v1373, %v1372
        %v1586 = vpack.c.b16 %v1375, %v1374
        %v1587 = vpack.c.b16 %v1377, %v1376
        %v1588 = vpack.c.b16 %v1379, %v1378
        %v1589 = vpack.c.b16 %v1381, %v1380
        %v1590 = vpack.c.b16 %v1383, %v1382
        %v1591 = vpack.c.b16 %v1385, %v1384
        %v1592 = vpack.c.b16 %v1387, %v1386
        %v1593 = vpack.c.b16 %v1389, %v1388
        %v1594 = vpack.c.b16 %v1391, %v1390
        %v1595 = vpack.c.b16 %v1393, %v1392
        %v1596 = vpack.c.b16 %v1395, %v1394
        %v1597 = vpack.c.b16 %v1397, %v1396
        %v1598 = vpack.c.b16 %v1399, %v1398
        %v1599 = vpack.c.b16 %v1401, %v1400
        %v1600 = vpack.c.b16 %v1403, %v1402
        %v1601 = vpack.c.b16 %v1405, %v1404
        %v1606 = vunpack.c.l.b16 %v611
        %v1607 = vunpack.c.l.b16 %v612
        %v1608 = vunpack.c.l.b16 %v613
        %v1609 = vunpack.c.l.b16 %v614
        %v1610 = vpack.c.b16 %v1607, %v1606
        %v1611 = vpack.c.b16 %v1609, %v1608
        %vm1613 = vcmask 220160
        %v1615 = vsel %vm1613, %v1406, 0
        %v1618 = vsel %vm1613, %v1407, 0
        %v1621 = vsel %vm1613, %v1408, 0
        %v1624 = vsel %vm1613, %v1409, 0
        %v1627 = vsel %vm1613, %v1410, 0
        %v1630 = vsel %vm1613, %v1411, 0
        %v1633 = vsel %vm1613, %v1412, 0
        %v1636 = vsel %vm1613, %v1413, 0
        %v1639 = vsel %vm1613, %v1414, 0
        %v1642 = vsel %vm1613, %v1415, 0
        %v1645 = vsel %vm1613, %v1416, 0
        %v1648 = vsel %vm1613, %v1417, 0
        %v1651 = vsel %vm1613, %v1418, 0
        %v1654 = vsel %vm1613, %v1419, 0
        %v1657 = vsel %vm1613, %v1420, 0
        %v1660 = vsel %vm1613, %v1421, 0
        %v1663 = vsel %vm1613, %v1422, 0
        %v1666 = vsel %vm1613, %v1423, 0
        %v1669 = vsel %vm1613, %v1424, 0
        %v1672 = vsel %vm1613, %v1425, 0
        %v1675 = vsel %vm1613, %v1426, 0
        %v1678 = vsel %vm1613, %v1427, 0
        %v1681 = vsel %vm1613, %v1428, 0
        %v1684 = vsel %vm1613, %v1429, 0
        %v1687 = vsel %vm1613, %v1430, 0
        %v1690 = vsel %vm1613, %v1431, 0
        %v1693 = vsel %vm1613, %v1432, 0
        %v1696 = vsel %vm1613, %v1433, 0
        %v1699 = vsel %vm1613, %v1434, 0
        %v1702 = vsel %vm1613, %v1435, 0
        %v1705 = vsel %vm1613, %v1436, 0
        %v1708 = vsel %vm1613, %v1437, 0
        %v1711 = vsel %vm1613, %v1438, 0
        %v1714 = vsel %vm1613, %v1439, 0
        %v1717 = vsel %vm1613, %v1440, 0
        %v1720 = vsel %vm1613, %v1441, 0
        %v1723 = vsel %vm1613, %v1442, 0
        %v1726 = vsel %vm1613, %v1443, 0
        %v1729 = vsel %vm1613, %v1444, 0
        %v1732 = vsel %vm1613, %v1445, 0
        %v1735 = vsel %vm1613, %v1446, 0
        %v1738 = vsel %vm1613, %v1447, 0
        %v1741 = vsel %vm1613, %v1448, 0
        %v1744 = vsel %vm1613, %v1449, 0
        %v1747 = vsel %vm1613, %v1450, 0
        %v1750 = vsel %vm1613, %v1451, 0
        %v1753 = vsel %vm1613, %v1452, 0
        %v1756 = vsel %vm1613, %v1453, 0
        %v1759 = vsel %vm1613, %v1454, 0
        %v1762 = vsel %vm1613, %v1455, 0
        %v1765 = vsel %vm1613, %v1456, 0
        %v1768 = vsel %vm1613, %v1457, 0
        %v1771 = vsel %vm1613, %v1458, 0
        %v1774 = vsel %vm1613, %v1459, 0
        %v1777 = vsel %vm1613, %v1460, 0
        %v1780 = vsel %vm1613, %v1461, 0
        %v1783 = vsel %vm1613, %v1462, 0
        %v1786 = vsel %vm1613, %v1463, 0
        %v1789 = vsel %vm1613, %v1464, 0
        %v1792 = vsel %vm1613, %v1465, 0
        %v1795 = vsel %vm1613, %v1466, 0
        %v1798 = vsel %vm1613, %v1467, 0
        %v1801 = vsel %vm1613, %v1468, 0
        %v1804 = vsel %vm1613, %v1469, 0
        %v1807 = vsel %vm1613, %v1470, 0
        %v1810 = vsel %vm1613, %v1471, 0
        %v1813 = vsel %vm1613, %v1472, 0
        %v1816 = vsel %vm1613, %v1473, 0
        %v1819 = vsel %vm1613, %v1474, 0
        %v1822 = vsel %vm1613, %v1475, 0
        %v1825 = vsel %vm1613, %v1476, 0
        %v1828 = vsel %vm1613, %v1477, 0
        %v1831 = vsel %vm1613, %v1478, 0
        %v1834 = vsel %vm1613, %v1479, 0
        %v1837 = vsel %vm1613, %v1480, 0
        %v1840 = vsel %vm1613, %v1481, 0
        %v1843 = vsel %vm1613, %v1482, 0
        %v1846 = vsel %vm1613, %v1483, 0
        %v1849 = vsel %vm1613, %v1484, 0
        %v1852 = vsel %vm1613, %v1485, 0
        %v1855 = vsel %vm1613, %v1486, 0
        %v1858 = vsel %vm1613, %v1487, 0
        %v1861 = vsel %vm1613, %v1488, 0
        %v1864 = vsel %vm1613, %v1489, 0
        %v1867 = vsel %vm1613, %v1490, 0
        %v1870 = vsel %vm1613, %v1491, 0
        %v1873 = vsel %vm1613, %v1492, 0
        %v1876 = vsel %vm1613, %v1493, 0
        %v1879 = vsel %vm1613, %v1494, 0
        %v1882 = vsel %vm1613, %v1495, 0
        %v1885 = vsel %vm1613, %v1496, 0
        %v1888 = vsel %vm1613, %v1497, 0
        %v1891 = vsel %vm1613, %v1498, 0
        %v1894 = vsel %vm1613, %v1499, 0
        %v1897 = vsel %vm1613, %v1500, 0
        %v1900 = vsel %vm1613, %v1501, 0
        %v1903 = vsel %vm1613, %v1502, 0
        %v1906 = vsel %vm1613, %v1503, 0
        %v1909 = vsel %vm1613, %v1504, 0
        %v1912 = vsel %vm1613, %v1505, 0
        %v1915 = vsel %vm1613, %v1506, 0
        %v1918 = vsel %vm1613, %v1507, 0
        %v1921 = vsel %vm1613, %v1508, 0
        %v1924 = vsel %vm1613, %v1509, 0
        %v1927 = vsel %vm1613, %v1510, 0
        %v1930 = vsel %vm1613, %v1511, 0
        %v1933 = vsel %vm1613, %v1512, 0
        %v1936 = vsel %vm1613, %v1513, 0
        %v1939 = vsel %vm1613, %v1514, 0
        %v1942 = vsel %vm1613, %v1515, 0
        %v1945 = vsel %vm1613, %v1516, 0
        %v1948 = vsel %vm1613, %v1517, 0
        %v1951 = vsel %vm1613, %v1518, 0
        %v1954 = vsel %vm1613, %v1519, 0
        %v1957 = vsel %vm1613, %v1520, 0
        %v1960 = vsel %vm1613, %v1521, 0
        %v1963 = vsel %vm1613, %v1522, 0
        %v1966 = vsel %vm1613, %v1523, 0
        %v1969 = vsel %vm1613, %v1524, 0
        %v1972 = vsel %vm1613, %v1525, 0
        %v1975 = vsel %vm1613, %v1526, 0
        %v1978 = vsel %vm1613, %v1527, 0
        %v1981 = vsel %vm1613, %v1528, 0
        %v1984 = vsel %vm1613, %v1529, 0
        %v1987 = vsel %vm1613, %v1530, 0
        %v1990 = vsel %vm1613, %v1531, 0
        %v1993 = vsel %vm1613, %v1532, 0
        %v1996 = vsel %vm1613, %v1533, 0
        %v1999 = vsel %vm1613, %v1534, 0
        %v2002 = vsel %vm1613, %v1535, 0
        %v2005 = vsel %vm1613, %v1536, 0
        %v2008 = vsel %vm1613, %v1537, 0
        %v2011 = vsel %vm1613, %v1538, 0
        %v2014 = vsel %vm1613, %v1539, 0
        %v2017 = vsel %vm1613, %v1540, 0
        %v2020 = vsel %vm1613, %v1541, 0
        %v2023 = vsel %vm1613, %v1542, 0
        %v2026 = vsel %vm1613, %v1543, 0
        %v2029 = vsel %vm1613, %v1544, 0
        %v2032 = vsel %vm1613, %v1545, 0
        %v2035 = vsel %vm1613, %v1546, 0
        %v2038 = vsel %vm1613, %v1547, 0
        %v2041 = vsel %vm1613, %v1548, 0
        %v2044 = vsel %vm1613, %v1549, 0
        %v2047 = vsel %vm1613, %v1550, 0
        %v2050 = vsel %vm1613, %v1551, 0
        %v2053 = vsel %vm1613, %v1552, 0
        %v2056 = vsel %vm1613, %v1553, 0
        %v2059 = vsel %vm1613, %v1554, 0
        %v2062 = vsel %vm1613, %v1555, 0
        %v2065 = vsel %vm1613, %v1556, 0
        %v2068 = vsel %vm1613, %v1557, 0
        %v2071 = vsel %vm1613, %v1558, 0
        %v2074 = vsel %vm1613, %v1559, 0
        %v2077 = vsel %vm1613, %v1560, 0
        %v2080 = vsel %vm1613, %v1561, 0
        %v2083 = vsel %vm1613, %v1562, 0
        %v2086 = vsel %vm1613, %v1563, 0
        %v2089 = vsel %vm1613, %v1564, 0
        %v2092 = vsel %vm1613, %v1565, 0
        %v2095 = vsel %vm1613, %v1566, 0
        %v2098 = vsel %vm1613, %v1567, 0
        %v2101 = vsel %vm1613, %v1568, 0
        %v2104 = vsel %vm1613, %v1569, 0
        %v2107 = vsel %vm1613, %v1570, 0
        %v2110 = vsel %vm1613, %v1571, 0
        %v2113 = vsel %vm1613, %v1572, 0
        %v2116 = vsel %vm1613, %v1573, 0
        %v2119 = vsel %vm1613, %v1574, 0
        %v2122 = vsel %vm1613, %v1575, 0
        %v2125 = vsel %vm1613, %v1576, 0
        %v2128 = vsel %vm1613, %v1577, 0
        %v2131 = vsel %vm1613, %v1578, 0
        %v2134 = vsel %vm1613, %v1579, 0
        %v2137 = vsel %vm1613, %v1580, 0
        %v2140 = vsel %vm1613, %v1581, 0
        %v2143 = vsel %vm1613, %v1582, 0
        %v2146 = vsel %vm1613, %v1583, 0
        %v2149 = vsel %vm1613, %v1584, 0
        %v2152 = vsel %vm1613, %v1585, 0
        %v2155 = vsel %vm1613, %v1586, 0
        %v2158 = vsel %vm1613, %v1587, 0
        %v2161 = vsel %vm1613, %v1588, 0
        %v2164 = vsel %vm1613, %v1589, 0
        %v2167 = vsel %vm1613, %v1590, 0
        %v2170 = vsel %vm1613, %v1591, 0
        %v2173 = vsel %vm1613, %v1592, 0
        %v2176 = vsel %vm1613, %v1593, 0
        %v2179 = vsel %vm1613, %v1594, 0
        %v2182 = vsel %vm1613, %v1595, 0
        %v2185 = vsel %vm1613, %v1596, 0
        %v2188 = vsel %vm1613, %v1597, 0
        %v2191 = vsel %vm1613, %v1598, 0
        %v2194 = vsel %vm1613, %v1599, 0
        %v2197 = vsel %vm1613, %v1600, 0
        %v2200 = vsel %vm1613, %v1601, 0
        %vm2202 = vcmask 1044480
        %vm2203 = vcmask 1045504
        %v2204 = vsel %vm2202, 4294967295, 65535
        %v2205 = vsel %vm2203, %v2204, 0
        %v2207 = vand.u32 %v1611, %v2205
        %2209 = vmatprep.subr.bf16.mxu0 0
        %2210 = vmatpush1.bf16.msra.mxu0 %v1610
        %2211 = vmatprep.subr.bf16.mxu0 0
        %2212 = vmatpush1.bf16.msra.mxu0 %v2207
        %2213 = vmatprep.subr.bf16.mxu0 0
        %2214 = vmatpush1.bf16.msra.mxu0 0
        %2215 = vmatprep.subr.bf16.mxu0 0
        %2216 = vmatpush1.bf16.msra.mxu0 0
        %2217 = vmatprep.subr.bf16.mxu0 0
        %2218 = vmatpush1.bf16.msra.mxu0 0
        %2219 = vmatprep.subr.bf16.mxu0 0
        %2220 = vmatpush1.bf16.msra.mxu0 0
        %2221 = vmatprep.subr.bf16.mxu0 0
        %2222 = vmatpush1.bf16.msra.mxu0 0
        %2223 = vmatprep.subr.bf16.mxu0 0
        %2224 = vmatpush1.bf16.msra.mxu0 0
        %2225 = vmatprep.subr.bf16.mxu0 0
        %2226 = vmatpush1.bf16.msra.mxu0 0
        %2227 = vmatprep.subr.bf16.mxu0 0
        %2228 = vmatpush1.bf16.msra.mxu0 0
        %2229 = vmatprep.subr.bf16.mxu0 0
        %2230 = vmatpush1.bf16.msra.mxu0 0
        %2231 = vmatprep.subr.bf16.mxu0 0
        %2232 = vmatpush1.bf16.msra.mxu0 0
        %2233 = vmatprep.subr.bf16.mxu0 0
        %2234 = vmatpush1.bf16.msra.mxu0 0
        %2235 = vmatprep.subr.bf16.mxu0 0
        %2236 = vmatpush1.bf16.msra.mxu0 0
        %2237 = vmatprep.subr.bf16.mxu0 0
        %2238 = vmatpush1.bf16.msra.mxu0 0
        %2239 = vmatprep.subr.bf16.mxu0 0
        %2240 = vmatpush1.bf16.msra.mxu0 0
        %2241 = vmatprep.mubr.bf16.mxu0 0
        %2242 = vmatmul.mubr.bf16.gmra.mrb[0].mxu0 %v1615
        %v2243 = vpop.f32.mrb[0].mxu0
        %v2244 = vadd.f32 %v620, %v2243
        %v2245 = vpop.f32.mrb[0].mxu0
        %v2246 = vpop.f32.mrb[0].mxu0
        %v2247 = vadd.f32 %v620, %v2246
        %v2248 = vpop.f32.mrb[0].mxu0
        %2249 = vmatprep.mubr.bf16.mxu0 0
        %2250 = vmatmul.mubr.bf16.gmra.mrb[0].mxu0 %v1618
        %v2251 = vpop.f32.mrb[0].mxu0
        %v2252 = vadd.f32 %v620, %v2251
        %v2253 = vpop.f32.mrb[0].mxu0
        %v2254 = vpop.f32.mrb[0].mxu0
        %v2255 = vadd.f32 %v620, %v2254
        %v2256 = vpop.f32.mrb[0].mxu0
        %2257 = vmatprep.mubr.bf16.mxu0 0
        %2258 = vmatmul.mubr.bf16.gmra.mrb[0].mxu0 %v1621
        %v2259 = vpop.f32.mrb[0].mxu0
        %v2260 = vadd.f32 %v620, %v2259
        %v2261 = vpop.f32.mrb[0].mxu0
        %v2262 = vpop.f32.mrb[0].mxu0
        %v2263 = vadd.f32 %v620, %v2262
        %v2264 = vpop.f32.mrb[0].mxu0
        %2265 = vmatprep.mubr.bf16.mxu0 0
        %2266 = vmatmul.mubr.bf16.gmra.mrb[0].mxu0 %v1624
        %v2267 = vpop.f32.mrb[0].mxu0
        %v2268 = vadd.f32 %v620, %v2267
        %v2269 = vpop.f32.mrb[0].mxu0
        %v2270 = vpop.f32.mrb[0].mxu0
        %v2271 = vadd.f32 %v620, %v2270
        %v2272 = vpop.f32.mrb[0].mxu0
        %2273 = vmatprep.mubr.bf16.mxu0 0
        %2274 = vmatmul.mubr.bf16.gmra.mrb[0].mxu0 %v1627
        %v2275 = vpop.f32.mrb[0].mxu0
        %v2276 = vadd.f32 %v620, %v2275
        %v2277 = vpop.f32.mrb[0].mxu0
        %v2278 = vpop.f32.mrb[0].mxu0
        %v2279 = vadd.f32 %v620, %v2278
        %v2280 = vpop.f32.mrb[0].mxu0
        %2281 = vmatprep.mubr.bf16.mxu0 0
        %2282 = vmatmul.mubr.bf16.gmra.mrb[0].mxu0 %v1630
        %v2283 = vpop.f32.mrb[0].mxu0
        %v2284 = vadd.f32 %v620, %v2283
        %v2285 = vpop.f32.mrb[0].mxu0
        %v2286 = vpop.f32.mrb[0].mxu0
        %v2287 = vadd.f32 %v620, %v2286
        %v2288 = vpop.f32.mrb[0].mxu0
        %2289 = vmatprep.mubr.bf16.mxu0 0
        %2290 = vmatmul.mubr.bf16.gmra.mrb[0].mxu0 %v1633
        %v2291 = vpop.f32.mrb[0].mxu0
        %v2292 = vadd.f32 %v620, %v2291
        %v2293 = vpop.f32.mrb[0].mxu0
        %v2294 = vpop.f32.mrb[0].mxu0
        %v2295 = vadd.f32 %v620, %v2294
        %v2296 = vpop.f32.mrb[0].mxu0
        %2297 = vmatprep.mubr.bf16.mxu0 0
        %2298 = vmatmul.mubr.bf16.gmra.mrb[0].mxu0 %v1636
        %v2299 = vpop.f32.mrb[0].mxu0
        %v2300 = vadd.f32 %v620, %v2299
        %v2301 = vpop.f32.mrb[0].mxu0
        %v2302 = vpop.f32.mrb[0].mxu0
        %v2303 = vadd.f32 %v620, %v2302
        %v2304 = vpop.f32.mrb[0].mxu0
        %2305 = vmatprep.mubr.bf16.mxu0 0
        %2306 = vmatmul.mubr.bf16.gmra.mrb[0].mxu0 %v1639
        %v2307 = vpop.f32.mrb[0].mxu0
        %v2308 = vadd.f32 %v620, %v2307
        %v2309 = vpop.f32.mrb[0].mxu0
        %v2310 = vpop.f32.mrb[0].mxu0
        %v2311 = vadd.f32 %v620, %v2310
        %v2312 = vpop.f32.mrb[0].mxu0
        %2313 = vmatprep.mubr.bf16.mxu0 0
        %2314 = vmatmul.mubr.bf16.gmra.mrb[0].mxu0 %v1642
        %v2315 = vpop.f32.mrb[0].mxu0
        %v2316 = vadd.f32 %v620, %v2315
        %v2317 = vpop.f32.mrb[0].mxu0
        %v2318 = vpop.f32.mrb[0].mxu0
        %v2319 = vadd.f32 %v620, %v2318
        %v2320 = vpop.f32.mrb[0].mxu0
        %2321 = vmatprep.mubr.bf16.mxu0 0
        %2322 = vmatmul.mubr.bf16.gmra.mrb[0].mxu0 %v1645
        %v2323 = vpop.f32.mrb[0].mxu0
        %v2324 = vadd.f32 %v620, %v2323
        %v2325 = vpop.f32.mrb[0].mxu0
        %v2326 = vpop.f32.mrb[0].mxu0
        %v2327 = vadd.f32 %v620, %v2326
        %v2328 = vpop.f32.mrb[0].mxu0
        %2329 = vmatprep.mubr.bf16.mxu0 0
        %2330 = vmatmul.mubr.bf16.gmra.mrb[0].mxu0 %v1648
        %v2331 = vpop.f32.mrb[0].mxu0
        %v2332 = vadd.f32 %v620, %v2331
        %v2333 = vpop.f32.mrb[0].mxu0
        %v2334 = vpop.f32.mrb[0].mxu0
        %v2335 = vadd.f32 %v620, %v2334
        %v2336 = vpop.f32.mrb[0].mxu0
        %2337 = vmatprep.mubr.bf16.mxu0 0
        %2338 = vmatmul.mubr.bf16.gmra.mrb[0].mxu0 %v1651
        %v2339 = vpop.f32.mrb[0].mxu0
        %v2340 = vadd.f32 %v620, %v2339
        %v2341 = vpop.f32.mrb[0].mxu0
        %v2342 = vpop.f32.mrb[0].mxu0
        %v2343 = vadd.f32 %v620, %v2342
        %v2344 = vpop.f32.mrb[0].mxu0
        %2345 = vmatprep.mubr.bf16.mxu0 0
        %2346 = vmatmul.mubr.bf16.gmra.mrb[0].mxu0 %v1654
        %v2347 = vpop.f32.mrb[0].mxu0
        %v2348 = vadd.f32 %v620, %v2347
        %v2349 = vpop.f32.mrb[0].mxu0
        %v2350 = vpop.f32.mrb[0].mxu0
        %v2351 = vadd.f32 %v620, %v2350
        %v2352 = vpop.f32.mrb[0].mxu0
        %2353 = vmatprep.mubr.bf16.mxu0 0
        %2354 = vmatmul.mubr.bf16.gmra.mrb[0].mxu0 %v1657
        %v2355 = vpop.f32.mrb[0].mxu0
        %v2356 = vadd.f32 %v620, %v2355
        %v2357 = vpop.f32.mrb[0].mxu0
        %v2358 = vpop.f32.mrb[0].mxu0
        %v2359 = vadd.f32 %v620, %v2358
        %v2360 = vpop.f32.mrb[0].mxu0
        %2361 = vmatprep.mubr.bf16.mxu0 0
        %2362 = vmatmul.mubr.bf16.gmra.mrb[0].mxu0 %v1660
        %v2363 = vpop.f32.mrb[0].mxu0
        %v2364 = vadd.f32 %v620, %v2363
        %v2365 = vpop.f32.mrb[0].mxu0
        %v2366 = vpop.f32.mrb[0].mxu0
        %v2367 = vadd.f32 %v620, %v2366
        %v2368 = vpop.f32.mrb[0].mxu0
        %2369 = vmatprep.mubr.bf16.mxu0 0
        %2370 = vmatmul.mubr.bf16.gmra.mrb[0].mxu0 %v1663
        %v2371 = vpop.f32.mrb[0].mxu0
        %v2372 = vadd.f32 %v620, %v2371
        %v2373 = vpop.f32.mrb[0].mxu0
        %v2374 = vpop.f32.mrb[0].mxu0
        %v2375 = vadd.f32 %v620, %v2374
        %v2376 = vpop.f32.mrb[0].mxu0
        %2377 = vmatprep.mubr.bf16.mxu0 0
        %2378 = vmatmul.mubr.bf16.gmra.mrb[0].mxu0 %v1666
        %v2379 = vpop.f32.mrb[0].mxu0
        %v2380 = vadd.f32 %v620, %v2379
        %v2381 = vpop.f32.mrb[0].mxu0
        %v2382 = vpop.f32.mrb[0].mxu0
        %v2383 = vadd.f32 %v620, %v2382
        %v2384 = vpop.f32.mrb[0].mxu0
        %2385 = vmatprep.mubr.bf16.mxu0 0
        %2386 = vmatmul.mubr.bf16.gmra.mrb[0].mxu0 %v1669
        %v2387 = vpop.f32.mrb[0].mxu0
        %v2388 = vadd.f32 %v620, %v2387
        %v2389 = vpop.f32.mrb[0].mxu0
        %v2390 = vpop.f32.mrb[0].mxu0
        %v2391 = vadd.f32 %v620, %v2390
        %v2392 = vpop.f32.mrb[0].mxu0
        %2393 = vmatprep.mubr.bf16.mxu0 0
        %2394 = vmatmul.mubr.bf16.gmra.mrb[0].mxu0 %v1672
        %v2395 = vpop.f32.mrb[0].mxu0
        %v2396 = vadd.f32 %v620, %v2395
        %v2397 = vpop.f32.mrb[0].mxu0
        %v2398 = vpop.f32.mrb[0].mxu0
        %v2399 = vadd.f32 %v620, %v2398
        %v2400 = vpop.f32.mrb[0].mxu0
        %2401 = vmatprep.mubr.bf16.mxu0 0
        %2402 = vmatmul.mubr.bf16.gmra.mrb[0].mxu0 %v1675
        %v2403 = vpop.f32.mrb[0].mxu0
        %v2404 = vadd.f32 %v620, %v2403
        %v2405 = vpop.f32.mrb[0].mxu0
        %v2406 = vpop.f32.mrb[0].mxu0
        %v2407 = vadd.f32 %v620, %v2406
        %v2408 = vpop.f32.mrb[0].mxu0
        %2409 = vmatprep.mubr.bf16.mxu0 0
        %2410 = vmatmul.mubr.bf16.gmra.mrb[0].mxu0 %v1678
        %v2411 = vpop.f32.mrb[0].mxu0
        %v2412 = vadd.f32 %v620, %v2411
        %v2413 = vpop.f32.mrb[0].mxu0
        %v2414 = vpop.f32.mrb[0].mxu0
        %v2415 = vadd.f32 %v620, %v2414
        %v2416 = vpop.f32.mrb[0].mxu0
        %2417 = vmatprep.mubr.bf16.mxu0 0
        %2418 = vmatmul.mubr.bf16.gmra.mrb[0].mxu0 %v1681
        %v2419 = vpop.f32.mrb[0].mxu0
        %v2420 = vadd.f32 %v620, %v2419
        %v2421 = vpop.f32.mrb[0].mxu0
        %v2422 = vpop.f32.mrb[0].mxu0
        %v2423 = vadd.f32 %v620, %v2422
        %v2424 = vpop.f32.mrb[0].mxu0
        %2425 = vmatprep.mubr.bf16.mxu0 0
        %2426 = vmatmul.mubr.bf16.gmra.mrb[0].mxu0 %v1684
        %v2427 = vpop.f32.mrb[0].mxu0
        %v2428 = vadd.f32 %v620, %v2427
        %v2429 = vpop.f32.mrb[0].mxu0
        %v2430 = vpop.f32.mrb[0].mxu0
        %v2431 = vadd.f32 %v620, %v2430
        %v2432 = vpop.f32.mrb[0].mxu0
        %2433 = vmatprep.mubr.bf16.mxu0 0
        %2434 = vmatmul.mubr.bf16.gmra.mrb[0].mxu0 %v1687
        %v2435 = vpop.f32.mrb[0].mxu0
        %v2436 = vadd.f32 %v620, %v2435
        %v2437 = vpop.f32.mrb[0].mxu0
        %v2438 = vpop.f32.mrb[0].mxu0
        %v2439 = vadd.f32 %v620, %v2438
        %v2440 = vpop.f32.mrb[0].mxu0
        %2441 = vmatprep.mubr.bf16.mxu0 0
        %2442 = vmatmul.mubr.bf16.gmra.mrb[0].mxu0 %v1690
        %v2443 = vpop.f32.mrb[0].mxu0
        %v2444 = vadd.f32 %v620, %v2443
        %v2445 = vpop.f32.mrb[0].mxu0
        %v2446 = vpop.f32.mrb[0].mxu0
        %v2447 = vadd.f32 %v620, %v2446
        %v2448 = vpop.f32.mrb[0].mxu0
        %2449 = vmatprep.mubr.bf16.mxu0 0
        %2450 = vmatmul.mubr.bf16.gmra.mrb[0].mxu0 %v1693
        %v2451 = vpop.f32.mrb[0].mxu0
        %v2452 = vadd.f32 %v620, %v2451
        %v2453 = vpop.f32.mrb[0].mxu0
        %v2454 = vpop.f32.mrb[0].mxu0
        %v2455 = vadd.f32 %v620, %v2454
        %v2456 = vpop.f32.mrb[0].mxu0
        %2457 = vmatprep.mubr.bf16.mxu0 0
        %2458 = vmatmul.mubr.bf16.gmra.mrb[0].mxu0 %v1696
        %v2459 = vpop.f32.mrb[0].mxu0
        %v2460 = vadd.f32 %v620, %v2459
        %v2461 = vpop.f32.mrb[0].mxu0
        %v2462 = vpop.f32.mrb[0].mxu0
        %v2463 = vadd.f32 %v620, %v2462
        %v2464 = vpop.f32.mrb[0].mxu0
        %2465 = vmatprep.mubr.bf16.mxu0 0
        %2466 = vmatmul.mubr.bf16.gmra.mrb[0].mxu0 %v1699
        %v2467 = vpop.f32.mrb[0].mxu0
        %v2468 = vadd.f32 %v620, %v2467
        %v2469 = vpop.f32.mrb[0].mxu0
        %v2470 = vpop.f32.mrb[0].mxu0
        %v2471 = vadd.f32 %v620, %v2470
        %v2472 = vpop.f32.mrb[0].mxu0
        %2473 = vmatprep.mubr.bf16.mxu0 0
        %2474 = vmatmul.mubr.bf16.gmra.mrb[0].mxu0 %v1702
        %v2475 = vpop.f32.mrb[0].mxu0
        %v2476 = vadd.f32 %v620, %v2475
        %v2477 = vpop.f32.mrb[0].mxu0
        %v2478 = vpop.f32.mrb[0].mxu0
        %v2479 = vadd.f32 %v620, %v2478
        %v2480 = vpop.f32.mrb[0].mxu0
        %2481 = vmatprep.mubr.bf16.mxu0 0
        %2482 = vmatmul.mubr.bf16.gmra.mrb[0].mxu0 %v1705
        %v2483 = vpop.f32.mrb[0].mxu0
        %v2484 = vadd.f32 %v620, %v2483
        %v2485 = vpop.f32.mrb[0].mxu0
        %v2486 = vpop.f32.mrb[0].mxu0
        %v2487 = vadd.f32 %v620, %v2486
        %v2488 = vpop.f32.mrb[0].mxu0
        %2489 = vmatprep.mubr.bf16.mxu0 0
        %2490 = vmatmul.mubr.bf16.gmra.mrb[0].mxu0 %v1708
        %v2491 = vpop.f32.mrb[0].mxu0
        %v2492 = vadd.f32 %v620, %v2491
        %v2493 = vpop.f32.mrb[0].mxu0
        %v2494 = vpop.f32.mrb[0].mxu0
        %v2495 = vadd.f32 %v620, %v2494
        %v2496 = vpop.f32.mrb[0].mxu0
        %2497 = vmatprep.mubr.bf16.mxu0 0
        %2498 = vmatmul.mubr.bf16.gmra.mrb[0].mxu0 %v1711
        %v2499 = vpop.f32.mrb[0].mxu0
        %v2500 = vadd.f32 %v620, %v2499
        %v2501 = vpop.f32.mrb[0].mxu0
        %v2502 = vpop.f32.mrb[0].mxu0
        %v2503 = vadd.f32 %v620, %v2502
        %v2504 = vpop.f32.mrb[0].mxu0
        %2505 = vmatprep.mubr.bf16.mxu0 0
        %2506 = vmatmul.mubr.bf16.gmra.mrb[0].mxu0 %v1714
        %v2507 = vpop.f32.mrb[0].mxu0
        %v2508 = vadd.f32 %v620, %v2507
        %v2509 = vpop.f32.mrb[0].mxu0
        %v2510 = vpop.f32.mrb[0].mxu0
        %v2511 = vadd.f32 %v620, %v2510
        %v2512 = vpop.f32.mrb[0].mxu0
        %2513 = vmatprep.mubr.bf16.mxu0 0
        %2514 = vmatmul.mubr.bf16.gmra.mrb[0].mxu0 %v1717
        %v2515 = vpop.f32.mrb[0].mxu0
        %v2516 = vadd.f32 %v620, %v2515
        %v2517 = vpop.f32.mrb[0].mxu0
        %v2518 = vpop.f32.mrb[0].mxu0
        %v2519 = vadd.f32 %v620, %v2518
        %v2520 = vpop.f32.mrb[0].mxu0
        %2521 = vmatprep.mubr.bf16.mxu0 0
        %2522 = vmatmul.mubr.bf16.gmra.mrb[0].mxu0 %v1720
        %v2523 = vpop.f32.mrb[0].mxu0
        %v2524 = vadd.f32 %v620, %v2523
        %v2525 = vpop.f32.mrb[0].mxu0
        %v2526 = vpop.f32.mrb[0].mxu0
        %v2527 = vadd.f32 %v620, %v2526
        %v2528 = vpop.f32.mrb[0].mxu0
        %2529 = vmatprep.mubr.bf16.mxu0 0
        %2530 = vmatmul.mubr.bf16.gmra.mrb[0].mxu0 %v1723
        %v2531 = vpop.f32.mrb[0].mxu0
        %v2532 = vadd.f32 %v620, %v2531
        %v2533 = vpop.f32.mrb[0].mxu0
        %v2534 = vpop.f32.mrb[0].mxu0
        %v2535 = vadd.f32 %v620, %v2534
        %v2536 = vpop.f32.mrb[0].mxu0
        %2537 = vmatprep.mubr.bf16.mxu0 0
        %2538 = vmatmul.mubr.bf16.gmra.mrb[0].mxu0 %v1726
        %v2539 = vpop.f32.mrb[0].mxu0
        %v2540 = vadd.f32 %v620, %v2539
        %v2541 = vpop.f32.mrb[0].mxu0
        %v2542 = vpop.f32.mrb[0].mxu0
        %v2543 = vadd.f32 %v620, %v2542
        %v2544 = vpop.f32.mrb[0].mxu0
        %2545 = vmatprep.mubr.bf16.mxu0 0
        %2546 = vmatmul.mubr.bf16.gmra.mrb[0].mxu0 %v1729
        %v2547 = vpop.f32.mrb[0].mxu0
        %v2548 = vadd.f32 %v620, %v2547
        %v2549 = vpop.f32.mrb[0].mxu0
        %v2550 = vpop.f32.mrb[0].mxu0
        %v2551 = vadd.f32 %v620, %v2550
        %v2552 = vpop.f32.mrb[0].mxu0
        %2553 = vmatprep.mubr.bf16.mxu0 0
        %2554 = vmatmul.mubr.bf16.gmra.mrb[0].mxu0 %v1732
        %v2555 = vpop.f32.mrb[0].mxu0
        %v2556 = vadd.f32 %v620, %v2555
        %v2557 = vpop.f32.mrb[0].mxu0
        %v2558 = vpop.f32.mrb[0].mxu0
        %v2559 = vadd.f32 %v620, %v2558
        %v2560 = vpop.f32.mrb[0].mxu0
        %2561 = vmatprep.mubr.bf16.mxu0 0
        %2562 = vmatmul.mubr.bf16.gmra.mrb[0].mxu0 %v1735
        %v2563 = vpop.f32.mrb[0].mxu0
        %v2564 = vadd.f32 %v620, %v2563
        %v2565 = vpop.f32.mrb[0].mxu0
        %v2566 = vpop.f32.mrb[0].mxu0
        %v2567 = vadd.f32 %v620, %v2566
        %v2568 = vpop.f32.mrb[0].mxu0
        %2569 = vmatprep.mubr.bf16.mxu0 0
        %2570 = vmatmul.mubr.bf16.gmra.mrb[0].mxu0 %v1738
        %v2571 = vpop.f32.mrb[0].mxu0
        %v2572 = vadd.f32 %v620, %v2571
        %v2573 = vpop.f32.mrb[0].mxu0
        %v2574 = vpop.f32.mrb[0].mxu0
        %v2575 = vadd.f32 %v620, %v2574
        %v2576 = vpop.f32.mrb[0].mxu0
        %2577 = vmatprep.mubr.bf16.mxu0 0
        %2578 = vmatmul.mubr.bf16.gmra.mrb[0].mxu0 %v1741
        %v2579 = vpop.f32.mrb[0].mxu0
        %v2580 = vadd.f32 %v620, %v2579
        %v2581 = vpop.f32.mrb[0].mxu0
        %v2582 = vpop.f32.mrb[0].mxu0
        %v2583 = vadd.f32 %v620, %v2582
        %v2584 = vpop.f32.mrb[0].mxu0
        %2585 = vmatprep.mubr.bf16.mxu0 0
        %2586 = vmatmul.mubr.bf16.gmra.mrb[0].mxu0 %v1744
        %v2587 = vpop.f32.mrb[0].mxu0
        %v2588 = vadd.f32 %v620, %v2587
        %v2589 = vpop.f32.mrb[0].mxu0
        %v2590 = vpop.f32.mrb[0].mxu0
        %v2591 = vadd.f32 %v620, %v2590
        %v2592 = vpop.f32.mrb[0].mxu0
        %2593 = vmatprep.mubr.bf16.mxu0 0
        %2594 = vmatmul.mubr.bf16.gmra.mrb[0].mxu0 %v1747
        %v2595 = vpop.f32.mrb[0].mxu0
        %v2596 = vadd.f32 %v620, %v2595
        %v2597 = vpop.f32.mrb[0].mxu0
        %v2598 = vpop.f32.mrb[0].mxu0
        %v2599 = vadd.f32 %v620, %v2598
        %v2600 = vpop.f32.mrb[0].mxu0
        %2601 = vmatprep.mubr.bf16.mxu0 0
        %2602 = vmatmul.mubr.bf16.gmra.mrb[0].mxu0 %v1750
        %v2603 = vpop.f32.mrb[0].mxu0
        %v2604 = vadd.f32 %v620, %v2603
        %v2605 = vpop.f32.mrb[0].mxu0
        %v2606 = vpop.f32.mrb[0].mxu0
        %v2607 = vadd.f32 %v620, %v2606
        %v2608 = vpop.f32.mrb[0].mxu0
        %2609 = vmatprep.mubr.bf16.mxu0 0
        %2610 = vmatmul.mubr.bf16.gmra.mrb[0].mxu0 %v1753
        %v2611 = vpop.f32.mrb[0].mxu0
        %v2612 = vadd.f32 %v620, %v2611
        %v2613 = vpop.f32.mrb[0].mxu0
        %v2614 = vpop.f32.mrb[0].mxu0
        %v2615 = vadd.f32 %v620, %v2614
        %v2616 = vpop.f32.mrb[0].mxu0
        %2617 = vmatprep.mubr.bf16.mxu0 0
        %2618 = vmatmul.mubr.bf16.gmra.mrb[0].mxu0 %v1756
        %v2619 = vpop.f32.mrb[0].mxu0
        %v2620 = vadd.f32 %v620, %v2619
        %v2621 = vpop.f32.mrb[0].mxu0
        %v2622 = vpop.f32.mrb[0].mxu0
        %v2623 = vadd.f32 %v620, %v2622
        %v2624 = vpop.f32.mrb[0].mxu0
        %2625 = vmatprep.mubr.bf16.mxu0 0
        %2626 = vmatmul.mubr.bf16.gmra.mrb[0].mxu0 %v1759
        %v2627 = vpop.f32.mrb[0].mxu0
        %v2628 = vadd.f32 %v620, %v2627
        %v2629 = vpop.f32.mrb[0].mxu0
        %v2630 = vpop.f32.mrb[0].mxu0
        %v2631 = vadd.f32 %v620, %v2630
        %v2632 = vpop.f32.mrb[0].mxu0
        %2633 = vmatprep.mubr.bf16.mxu0 0
        %2634 = vmatmul.mubr.bf16.gmra.mrb[0].mxu0 %v1762
        %v2635 = vpop.f32.mrb[0].mxu0
        %v2636 = vadd.f32 %v620, %v2635
        %v2637 = vpop.f32.mrb[0].mxu0
        %v2638 = vpop.f32.mrb[0].mxu0
        %v2639 = vadd.f32 %v620, %v2638
        %v2640 = vpop.f32.mrb[0].mxu0
        %2641 = vmatprep.mubr.bf16.mxu0 0
        %2642 = vmatmul.mubr.bf16.gmra.mrb[0].mxu0 %v1765
        %v2643 = vpop.f32.mrb[0].mxu0
        %v2644 = vadd.f32 %v620, %v2643
        %v2645 = vpop.f32.mrb[0].mxu0
        %v2646 = vpop.f32.mrb[0].mxu0
        %v2647 = vadd.f32 %v620, %v2646
        %v2648 = vpop.f32.mrb[0].mxu0
        %2649 = vmatprep.mubr.bf16.mxu0 0
        %2650 = vmatmul.mubr.bf16.gmra.mrb[0].mxu0 %v1768
        %v2651 = vpop.f32.mrb[0].mxu0
        %v2652 = vadd.f32 %v620, %v2651
        %v2653 = vpop.f32.mrb[0].mxu0
        %v2654 = vpop.f32.mrb[0].mxu0
        %v2655 = vadd.f32 %v620, %v2654
        %v2656 = vpop.f32.mrb[0].mxu0
        %2657 = vmatprep.mubr.bf16.mxu0 0
        %2658 = vmatmul.mubr.bf16.gmra.mrb[0].mxu0 %v1771
        %v2659 = vpop.f32.mrb[0].mxu0
        %v2660 = vadd.f32 %v620, %v2659
        %v2661 = vpop.f32.mrb[0].mxu0
        %v2662 = vpop.f32.mrb[0].mxu0
        %v2663 = vadd.f32 %v620, %v2662
        %v2664 = vpop.f32.mrb[0].mxu0
        %2665 = vmatprep.mubr.bf16.mxu0 0
        %2666 = vmatmul.mubr.bf16.gmra.mrb[0].mxu0 %v1774
        %v2667 = vpop.f32.mrb[0].mxu0
        %v2668 = vadd.f32 %v620, %v2667
        %v2669 = vpop.f32.mrb[0].mxu0
        %v2670 = vpop.f32.mrb[0].mxu0
        %v2671 = vadd.f32 %v620, %v2670
        %v2672 = vpop.f32.mrb[0].mxu0
        %2673 = vmatprep.mubr.bf16.mxu0 0
        %2674 = vmatmul.mubr.bf16.gmra.mrb[0].mxu0 %v1777
        %v2675 = vpop.f32.mrb[0].mxu0
        %v2676 = vadd.f32 %v620, %v2675
        %v2677 = vpop.f32.mrb[0].mxu0
        %v2678 = vpop.f32.mrb[0].mxu0
        %v2679 = vadd.f32 %v620, %v2678
        %v2680 = vpop.f32.mrb[0].mxu0
        %2681 = vmatprep.mubr.bf16.mxu0 0
        %2682 = vmatmul.mubr.bf16.gmra.mrb[0].mxu0 %v1780
        %v2683 = vpop.f32.mrb[0].mxu0
        %v2684 = vadd.f32 %v620, %v2683
        %v2685 = vpop.f32.mrb[0].mxu0
        %v2686 = vpop.f32.mrb[0].mxu0
        %v2687 = vadd.f32 %v620, %v2686
        %v2688 = vpop.f32.mrb[0].mxu0
        %2689 = vmatprep.mubr.bf16.mxu0 0
        %2690 = vmatmul.mubr.bf16.gmra.mrb[0].mxu0 %v1783
        %v2691 = vpop.f32.mrb[0].mxu0
        %v2692 = vadd.f32 %v620, %v2691
        %v2693 = vpop.f32.mrb[0].mxu0
        %v2694 = vpop.f32.mrb[0].mxu0
        %v2695 = vadd.f32 %v620, %v2694
        %v2696 = vpop.f32.mrb[0].mxu0
        %2697 = vmatprep.mubr.bf16.mxu0 0
        %2698 = vmatmul.mubr.bf16.gmra.mrb[0].mxu0 %v1786
        %v2699 = vpop.f32.mrb[0].mxu0
        %v2700 = vadd.f32 %v620, %v2699
        %v2701 = vpop.f32.mrb[0].mxu0
        %v2702 = vpop.f32.mrb[0].mxu0
        %v2703 = vadd.f32 %v620, %v2702
        %v2704 = vpop.f32.mrb[0].mxu0
        %2705 = vmatprep.mubr.bf16.mxu0 0
        %2706 = vmatmul.mubr.bf16.gmra.mrb[0].mxu0 %v1789
        %v2707 = vpop.f32.mrb[0].mxu0
        %v2708 = vadd.f32 %v620, %v2707
        %v2709 = vpop.f32.mrb[0].mxu0
        %v2710 = vpop.f32.mrb[0].mxu0
        %v2711 = vadd.f32 %v620, %v2710
        %v2712 = vpop.f32.mrb[0].mxu0
        %2713 = vmatprep.mubr.bf16.mxu0 0
        %2714 = vmatmul.mubr.bf16.gmra.mrb[0].mxu0 %v1792
        %v2715 = vpop.f32.mrb[0].mxu0
        %v2716 = vadd.f32 %v620, %v2715
        %v2717 = vpop.f32.mrb[0].mxu0
        %v2718 = vpop.f32.mrb[0].mxu0
        %v2719 = vadd.f32 %v620, %v2718
        %v2720 = vpop.f32.mrb[0].mxu0
        %2721 = vmatprep.mubr.bf16.mxu0 0
        %2722 = vmatmul.mubr.bf16.gmra.mrb[0].mxu0 %v1795
        %v2723 = vpop.f32.mrb[0].mxu0
        %v2724 = vadd.f32 %v620, %v2723
        %v2725 = vpop.f32.mrb[0].mxu0
        %v2726 = vpop.f32.mrb[0].mxu0
        %v2727 = vadd.f32 %v620, %v2726
        %v2728 = vpop.f32.mrb[0].mxu0
        %2729 = vmatprep.mubr.bf16.mxu0 0
        %2730 = vmatmul.mubr.bf16.gmra.mrb[0].mxu0 %v1798
        %v2731 = vpop.f32.mrb[0].mxu0
        %v2732 = vadd.f32 %v620, %v2731
        %v2733 = vpop.f32.mrb[0].mxu0
        %v2734 = vpop.f32.mrb[0].mxu0
        %v2735 = vadd.f32 %v620, %v2734
        %v2736 = vpop.f32.mrb[0].mxu0
        %2737 = vmatprep.mubr.bf16.mxu0 0
        %2738 = vmatmul.mubr.bf16.gmra.mrb[0].mxu0 %v1801
        %v2739 = vpop.f32.mrb[0].mxu0
        %v2740 = vadd.f32 %v620, %v2739
        %v2741 = vpop.f32.mrb[0].mxu0
        %v2742 = vpop.f32.mrb[0].mxu0
        %v2743 = vadd.f32 %v620, %v2742
        %v2744 = vpop.f32.mrb[0].mxu0
        %2745 = vmatprep.mubr.bf16.mxu0 0
        %2746 = vmatmul.mubr.bf16.gmra.mrb[0].mxu0 %v1804
        %v2747 = vpop.f32.mrb[0].mxu0
        %v2748 = vadd.f32 %v620, %v2747
        %v2749 = vpop.f32.mrb[0].mxu0
        %v2750 = vpop.f32.mrb[0].mxu0
        %v2751 = vadd.f32 %v620, %v2750
        %v2752 = vpop.f32.mrb[0].mxu0
        %2753 = vmatprep.mubr.bf16.mxu0 0
        %2754 = vmatmul.mubr.bf16.gmra.mrb[0].mxu0 %v1807
        %v2755 = vpop.f32.mrb[0].mxu0
        %v2756 = vadd.f32 %v620, %v2755
        %v2757 = vpop.f32.mrb[0].mxu0
        %v2758 = vpop.f32.mrb[0].mxu0
        %v2759 = vadd.f32 %v620, %v2758
        %v2760 = vpop.f32.mrb[0].mxu0
        %2761 = vmatprep.mubr.bf16.mxu0 0
        %2762 = vmatmul.mubr.bf16.gmra.mrb[0].mxu0 %v1810
        %v2763 = vpop.f32.mrb[0].mxu0
        %v2764 = vadd.f32 %v620, %v2763
        %v2765 = vpop.f32.mrb[0].mxu0
        %v2766 = vpop.f32.mrb[0].mxu0
        %v2767 = vadd.f32 %v620, %v2766
        %v2768 = vpop.f32.mrb[0].mxu0
        %2769 = vmatprep.mubr.bf16.mxu0 0
        %2770 = vmatmul.mubr.bf16.gmra.mrb[0].mxu0 %v1813
        %v2771 = vpop.f32.mrb[0].mxu0
        %v2772 = vadd.f32 %v620, %v2771
        %v2773 = vpop.f32.mrb[0].mxu0
        %v2774 = vpop.f32.mrb[0].mxu0
        %v2775 = vadd.f32 %v620, %v2774
        %v2776 = vpop.f32.mrb[0].mxu0
        %2777 = vmatprep.mubr.bf16.mxu0 0
        %2778 = vmatmul.mubr.bf16.gmra.mrb[0].mxu0 %v1816
        %v2779 = vpop.f32.mrb[0].mxu0
        %v2780 = vadd.f32 %v620, %v2779
        %v2781 = vpop.f32.mrb[0].mxu0
        %v2782 = vpop.f32.mrb[0].mxu0
        %v2783 = vadd.f32 %v620, %v2782
        %v2784 = vpop.f32.mrb[0].mxu0
        %2785 = vmatprep.mubr.bf16.mxu0 0
        %2786 = vmatmul.mubr.bf16.gmra.mrb[0].mxu0 %v1819
        %v2787 = vpop.f32.mrb[0].mxu0
        %v2788 = vadd.f32 %v620, %v2787
        %v2789 = vpop.f32.mrb[0].mxu0
        %v2790 = vpop.f32.mrb[0].mxu0
        %v2791 = vadd.f32 %v620, %v2790
        %v2792 = vpop.f32.mrb[0].mxu0
        %2793 = vmatprep.mubr.bf16.mxu0 0
        %2794 = vmatmul.mubr.bf16.gmra.mrb[0].mxu0 %v1822
        %v2795 = vpop.f32.mrb[0].mxu0
        %v2796 = vadd.f32 %v620, %v2795
        %v2797 = vpop.f32.mrb[0].mxu0
        %v2798 = vpop.f32.mrb[0].mxu0
        %v2799 = vadd.f32 %v620, %v2798
        %v2800 = vpop.f32.mrb[0].mxu0
        %2801 = vmatprep.mubr.bf16.mxu0 0
        %2802 = vmatmul.mubr.bf16.gmra.mrb[0].mxu0 %v1825
        %v2803 = vpop.f32.mrb[0].mxu0
        %v2804 = vadd.f32 %v620, %v2803
        %v2805 = vpop.f32.mrb[0].mxu0
        %v2806 = vpop.f32.mrb[0].mxu0
        %v2807 = vadd.f32 %v620, %v2806
        %v2808 = vpop.f32.mrb[0].mxu0
        %2809 = vmatprep.mubr.bf16.mxu0 0
        %2810 = vmatmul.mubr.bf16.gmra.mrb[0].mxu0 %v1828
        %v2811 = vpop.f32.mrb[0].mxu0
        %v2812 = vadd.f32 %v620, %v2811
        %v2813 = vpop.f32.mrb[0].mxu0
        %v2814 = vpop.f32.mrb[0].mxu0
        %v2815 = vadd.f32 %v620, %v2814
        %v2816 = vpop.f32.mrb[0].mxu0
        %2817 = vmatprep.mubr.bf16.mxu0 0
        %2818 = vmatmul.mubr.bf16.gmra.mrb[0].mxu0 %v1831
        %v2819 = vpop.f32.mrb[0].mxu0
        %v2820 = vadd.f32 %v620, %v2819
        %v2821 = vpop.f32.mrb[0].mxu0
        %v2822 = vpop.f32.mrb[0].mxu0
        %v2823 = vadd.f32 %v620, %v2822
        %v2824 = vpop.f32.mrb[0].mxu0
        %2825 = vmatprep.mubr.bf16.mxu0 0
        %2826 = vmatmul.mubr.bf16.gmra.mrb[0].mxu0 %v1834
        %v2827 = vpop.f32.mrb[0].mxu0
        %v2828 = vadd.f32 %v620, %v2827
        %v2829 = vpop.f32.mrb[0].mxu0
        %v2830 = vpop.f32.mrb[0].mxu0
        %v2831 = vadd.f32 %v620, %v2830
        %v2832 = vpop.f32.mrb[0].mxu0
        %2833 = vmatprep.mubr.bf16.mxu0 0
        %2834 = vmatmul.mubr.bf16.gmra.mrb[0].mxu0 %v1837
        %v2835 = vpop.f32.mrb[0].mxu0
        %v2836 = vadd.f32 %v620, %v2835
        %v2837 = vpop.f32.mrb[0].mxu0
        %v2838 = vpop.f32.mrb[0].mxu0
        %v2839 = vadd.f32 %v620, %v2838
        %v2840 = vpop.f32.mrb[0].mxu0
        %2841 = vmatprep.mubr.bf16.mxu0 0
        %2842 = vmatmul.mubr.bf16.gmra.mrb[0].mxu0 %v1840
        %v2843 = vpop.f32.mrb[0].mxu0
        %v2844 = vadd.f32 %v620, %v2843
        %v2845 = vpop.f32.mrb[0].mxu0
        %v2846 = vpop.f32.mrb[0].mxu0
        %v2847 = vadd.f32 %v620, %v2846
        %v2848 = vpop.f32.mrb[0].mxu0
        %2849 = vmatprep.mubr.bf16.mxu0 0
        %2850 = vmatmul.mubr.bf16.gmra.mrb[0].mxu0 %v1843
        %v2851 = vpop.f32.mrb[0].mxu0
        %v2852 = vadd.f32 %v620, %v2851
        %v2853 = vpop.f32.mrb[0].mxu0
        %v2854 = vpop.f32.mrb[0].mxu0
        %v2855 = vadd.f32 %v620, %v2854
        %v2856 = vpop.f32.mrb[0].mxu0
        %2857 = vmatprep.mubr.bf16.mxu0 0
        %2858 = vmatmul.mubr.bf16.gmra.mrb[0].mxu0 %v1846
        %v2859 = vpop.f32.mrb[0].mxu0
        %v2860 = vadd.f32 %v620, %v2859
        %v2861 = vpop.f32.mrb[0].mxu0
        %v2862 = vpop.f32.mrb[0].mxu0
        %v2863 = vadd.f32 %v620, %v2862
        %v2864 = vpop.f32.mrb[0].mxu0
        %2865 = vmatprep.mubr.bf16.mxu0 0
        %2866 = vmatmul.mubr.bf16.gmra.mrb[0].mxu0 %v1849
        %v2867 = vpop.f32.mrb[0].mxu0
        %v2868 = vadd.f32 %v620, %v2867
        %v2869 = vpop.f32.mrb[0].mxu0
        %v2870 = vpop.f32.mrb[0].mxu0
        %v2871 = vadd.f32 %v620, %v2870
        %v2872 = vpop.f32.mrb[0].mxu0
        %2873 = vmatprep.mubr.bf16.mxu0 0
        %2874 = vmatmul.mubr.bf16.gmra.mrb[0].mxu0 %v1852
        %v2875 = vpop.f32.mrb[0].mxu0
        %v2876 = vadd.f32 %v620, %v2875
        %v2877 = vpop.f32.mrb[0].mxu0
        %v2878 = vpop.f32.mrb[0].mxu0
        %v2879 = vadd.f32 %v620, %v2878
        %v2880 = vpop.f32.mrb[0].mxu0
        %2881 = vmatprep.mubr.bf16.mxu0 0
        %2882 = vmatmul.mubr.bf16.gmra.mrb[0].mxu0 %v1855
        %v2883 = vpop.f32.mrb[0].mxu0
        %v2884 = vadd.f32 %v620, %v2883
        %v2885 = vpop.f32.mrb[0].mxu0
        %v2886 = vpop.f32.mrb[0].mxu0
        %v2887 = vadd.f32 %v620, %v2886
        %v2888 = vpop.f32.mrb[0].mxu0
        %2889 = vmatprep.mubr.bf16.mxu0 0
        %2890 = vmatmul.mubr.bf16.gmra.mrb[0].mxu0 %v1858
        %v2891 = vpop.f32.mrb[0].mxu0
        %v2892 = vadd.f32 %v620, %v2891
        %v2893 = vpop.f32.mrb[0].mxu0
        %v2894 = vpop.f32.mrb[0].mxu0
        %v2895 = vadd.f32 %v620, %v2894
        %v2896 = vpop.f32.mrb[0].mxu0
        %2897 = vmatprep.mubr.bf16.mxu0 0
        %2898 = vmatmul.mubr.bf16.gmra.mrb[0].mxu0 %v1861
        %v2899 = vpop.f32.mrb[0].mxu0
        %v2900 = vadd.f32 %v620, %v2899
        %v2901 = vpop.f32.mrb[0].mxu0
        %v2902 = vpop.f32.mrb[0].mxu0
        %v2903 = vadd.f32 %v620, %v2902
        %v2904 = vpop.f32.mrb[0].mxu0
        %2905 = vmatprep.mubr.bf16.mxu0 0
        %2906 = vmatmul.mubr.bf16.gmra.mrb[0].mxu0 %v1864
        %v2907 = vpop.f32.mrb[0].mxu0
        %v2908 = vadd.f32 %v620, %v2907
        %v2909 = vpop.f32.mrb[0].mxu0
        %v2910 = vpop.f32.mrb[0].mxu0
        %v2911 = vadd.f32 %v620, %v2910
        %v2912 = vpop.f32.mrb[0].mxu0
        %2913 = vmatprep.mubr.bf16.mxu0 0
        %2914 = vmatmul.mubr.bf16.gmra.mrb[0].mxu0 %v1867
        %v2915 = vpop.f32.mrb[0].mxu0
        %v2916 = vadd.f32 %v620, %v2915
        %v2917 = vpop.f32.mrb[0].mxu0
        %v2918 = vpop.f32.mrb[0].mxu0
        %v2919 = vadd.f32 %v620, %v2918
        %v2920 = vpop.f32.mrb[0].mxu0
        %2921 = vmatprep.mubr.bf16.mxu0 0
        %2922 = vmatmul.mubr.bf16.gmra.mrb[0].mxu0 %v1870
        %v2923 = vpop.f32.mrb[0].mxu0
        %v2924 = vadd.f32 %v620, %v2923
        %v2925 = vpop.f32.mrb[0].mxu0
        %v2926 = vpop.f32.mrb[0].mxu0
        %v2927 = vadd.f32 %v620, %v2926
        %v2928 = vpop.f32.mrb[0].mxu0
        %2929 = vmatprep.mubr.bf16.mxu0 0
        %2930 = vmatmul.mubr.bf16.gmra.mrb[0].mxu0 %v1873
        %v2931 = vpop.f32.mrb[0].mxu0
        %v2932 = vadd.f32 %v620, %v2931
        %v2933 = vpop.f32.mrb[0].mxu0
        %v2934 = vpop.f32.mrb[0].mxu0
        %v2935 = vadd.f32 %v620, %v2934
        %v2936 = vpop.f32.mrb[0].mxu0
        %2937 = vmatprep.mubr.bf16.mxu0 0
        %2938 = vmatmul.mubr.bf16.gmra.mrb[0].mxu0 %v1876
        %v2939 = vpop.f32.mrb[0].mxu0
        %v2940 = vadd.f32 %v620, %v2939
        %v2941 = vpop.f32.mrb[0].mxu0
        %v2942 = vpop.f32.mrb[0].mxu0
        %v2943 = vadd.f32 %v620, %v2942
        %v2944 = vpop.f32.mrb[0].mxu0
        %2945 = vmatprep.mubr.bf16.mxu0 0
        %2946 = vmatmul.mubr.bf16.gmra.mrb[0].mxu0 %v1879
        %v2947 = vpop.f32.mrb[0].mxu0
        %v2948 = vadd.f32 %v620, %v2947
        %v2949 = vpop.f32.mrb[0].mxu0
        %v2950 = vpop.f32.mrb[0].mxu0
        %v2951 = vadd.f32 %v620, %v2950
        %v2952 = vpop.f32.mrb[0].mxu0
        %2953 = vmatprep.mubr.bf16.mxu0 0
        %2954 = vmatmul.mubr.bf16.gmra.mrb[0].mxu0 %v1882
        %v2955 = vpop.f32.mrb[0].mxu0
        %v2956 = vadd.f32 %v620, %v2955
        %v2957 = vpop.f32.mrb[0].mxu0
        %v2958 = vpop.f32.mrb[0].mxu0
        %v2959 = vadd.f32 %v620, %v2958
        %v2960 = vpop.f32.mrb[0].mxu0
        %2961 = vmatprep.mubr.bf16.mxu0 0
        %2962 = vmatmul.mubr.bf16.gmra.mrb[0].mxu0 %v1885
        %v2963 = vpop.f32.mrb[0].mxu0
        %v2964 = vadd.f32 %v620, %v2963
        %v2965 = vpop.f32.mrb[0].mxu0
        %v2966 = vpop.f32.mrb[0].mxu0
        %v2967 = vadd.f32 %v620, %v2966
        %v2968 = vpop.f32.mrb[0].mxu0
        %2969 = vmatprep.mubr.bf16.mxu0 0
        %2970 = vmatmul.mubr.bf16.gmra.mrb[0].mxu0 %v1888
        %v2971 = vpop.f32.mrb[0].mxu0
        %v2972 = vadd.f32 %v620, %v2971
        %v2973 = vpop.f32.mrb[0].mxu0
        %v2974 = vpop.f32.mrb[0].mxu0
        %v2975 = vadd.f32 %v620, %v2974
        %v2976 = vpop.f32.mrb[0].mxu0
        %2977 = vmatprep.mubr.bf16.mxu0 0
        %2978 = vmatmul.mubr.bf16.gmra.mrb[0].mxu0 %v1891
        %v2979 = vpop.f32.mrb[0].mxu0
        %v2980 = vadd.f32 %v620, %v2979
        %v2981 = vpop.f32.mrb[0].mxu0
        %v2982 = vpop.f32.mrb[0].mxu0
        %v2983 = vadd.f32 %v620, %v2982
        %v2984 = vpop.f32.mrb[0].mxu0
        %2985 = vmatprep.mubr.bf16.mxu0 0
        %2986 = vmatmul.mubr.bf16.gmra.mrb[0].mxu0 %v1894
        %v2987 = vpop.f32.mrb[0].mxu0
        %v2988 = vadd.f32 %v620, %v2987
        %v2989 = vpop.f32.mrb[0].mxu0
        %v2990 = vpop.f32.mrb[0].mxu0
        %v2991 = vadd.f32 %v620, %v2990
        %v2992 = vpop.f32.mrb[0].mxu0
        %2993 = vmatprep.mubr.bf16.mxu0 0
        %2994 = vmatmul.mubr.bf16.gmra.mrb[0].mxu0 %v1897
        %v2995 = vpop.f32.mrb[0].mxu0
        %v2996 = vadd.f32 %v620, %v2995
        %v2997 = vpop.f32.mrb[0].mxu0
        %v2998 = vpop.f32.mrb[0].mxu0
        %v2999 = vadd.f32 %v620, %v2998
        %v3000 = vpop.f32.mrb[0].mxu0
        %3001 = vmatprep.mubr.bf16.mxu0 0
        %3002 = vmatmul.mubr.bf16.gmra.mrb[0].mxu0 %v1900
        %v3003 = vpop.f32.mrb[0].mxu0
        %v3004 = vadd.f32 %v620, %v3003
        %v3005 = vpop.f32.mrb[0].mxu0
        %v3006 = vpop.f32.mrb[0].mxu0
        %v3007 = vadd.f32 %v620, %v3006
        %v3008 = vpop.f32.mrb[0].mxu0
        %3009 = vmatprep.mubr.bf16.mxu0 0
        %3010 = vmatmul.mubr.bf16.gmra.mrb[0].mxu0 %v1903
        %v3011 = vpop.f32.mrb[0].mxu0
        %v3012 = vadd.f32 %v620, %v3011
        %v3013 = vpop.f32.mrb[0].mxu0
        %v3014 = vpop.f32.mrb[0].mxu0
        %v3015 = vadd.f32 %v620, %v3014
        %v3016 = vpop.f32.mrb[0].mxu0
        %3017 = vmatprep.mubr.bf16.mxu0 0
        %3018 = vmatmul.mubr.bf16.gmra.mrb[0].mxu0 %v1906
        %v3019 = vpop.f32.mrb[0].mxu0
        %v3020 = vadd.f32 %v620, %v3019
        %v3021 = vpop.f32.mrb[0].mxu0
        %v3022 = vpop.f32.mrb[0].mxu0
        %v3023 = vadd.f32 %v620, %v3022
        %v3024 = vpop.f32.mrb[0].mxu0
        %3025 = vmatprep.mubr.bf16.mxu0 0
        %3026 = vmatmul.mubr.bf16.gmra.mrb[0].mxu0 %v1909
        %v3027 = vpop.f32.mrb[0].mxu0
        %v3028 = vadd.f32 %v620, %v3027
        %v3029 = vpop.f32.mrb[0].mxu0
        %v3030 = vpop.f32.mrb[0].mxu0
        %v3031 = vadd.f32 %v620, %v3030
        %v3032 = vpop.f32.mrb[0].mxu0
        %3033 = vmatprep.mubr.bf16.mxu0 0
        %3034 = vmatmul.mubr.bf16.gmra.mrb[0].mxu0 %v1912
        %v3035 = vpop.f32.mrb[0].mxu0
        %v3036 = vadd.f32 %v620, %v3035
        %v3037 = vpop.f32.mrb[0].mxu0
        %v3038 = vpop.f32.mrb[0].mxu0
        %v3039 = vadd.f32 %v620, %v3038
        %v3040 = vpop.f32.mrb[0].mxu0
        %3041 = vmatprep.mubr.bf16.mxu0 0
        %3042 = vmatmul.mubr.bf16.gmra.mrb[0].mxu0 %v1915
        %v3043 = vpop.f32.mrb[0].mxu0
        %v3044 = vadd.f32 %v620, %v3043
        %v3045 = vpop.f32.mrb[0].mxu0
        %v3046 = vpop.f32.mrb[0].mxu0
        %v3047 = vadd.f32 %v620, %v3046
        %v3048 = vpop.f32.mrb[0].mxu0
        %3049 = vmatprep.mubr.bf16.mxu0 0
        %3050 = vmatmul.mubr.bf16.gmra.mrb[0].mxu0 %v1918
        %v3051 = vpop.f32.mrb[0].mxu0
        %v3052 = vadd.f32 %v620, %v3051
        %v3053 = vpop.f32.mrb[0].mxu0
        %v3054 = vpop.f32.mrb[0].mxu0
        %v3055 = vadd.f32 %v620, %v3054
        %v3056 = vpop.f32.mrb[0].mxu0
        %3057 = vmatprep.mubr.bf16.mxu0 0
        %3058 = vmatmul.mubr.bf16.gmra.mrb[0].mxu0 %v1921
        %v3059 = vpop.f32.mrb[0].mxu0
        %v3060 = vadd.f32 %v620, %v3059
        %v3061 = vpop.f32.mrb[0].mxu0
        %v3062 = vpop.f32.mrb[0].mxu0
        %v3063 = vadd.f32 %v620, %v3062
        %v3064 = vpop.f32.mrb[0].mxu0
        %3065 = vmatprep.mubr.bf16.mxu0 0
        %3066 = vmatmul.mubr.bf16.gmra.mrb[0].mxu0 %v1924
        %v3067 = vpop.f32.mrb[0].mxu0
        %v3068 = vadd.f32 %v620, %v3067
        %v3069 = vpop.f32.mrb[0].mxu0
        %v3070 = vpop.f32.mrb[0].mxu0
        %v3071 = vadd.f32 %v620, %v3070
        %v3072 = vpop.f32.mrb[0].mxu0
        %3073 = vmatprep.mubr.bf16.mxu0 0
        %3074 = vmatmul.mubr.bf16.gmra.mrb[0].mxu0 %v1927
        %v3075 = vpop.f32.mrb[0].mxu0
        %v3076 = vadd.f32 %v620, %v3075
        %v3077 = vpop.f32.mrb[0].mxu0
        %v3078 = vpop.f32.mrb[0].mxu0
        %v3079 = vadd.f32 %v620, %v3078
        %v3080 = vpop.f32.mrb[0].mxu0
        %3081 = vmatprep.mubr.bf16.mxu0 0
        %3082 = vmatmul.mubr.bf16.gmra.mrb[0].mxu0 %v1930
        %v3083 = vpop.f32.mrb[0].mxu0
        %v3084 = vadd.f32 %v620, %v3083
        %v3085 = vpop.f32.mrb[0].mxu0
        %v3086 = vpop.f32.mrb[0].mxu0
        %v3087 = vadd.f32 %v620, %v3086
        %v3088 = vpop.f32.mrb[0].mxu0
        %3089 = vmatprep.mubr.bf16.mxu0 0
        %3090 = vmatmul.mubr.bf16.gmra.mrb[0].mxu0 %v1933
        %v3091 = vpop.f32.mrb[0].mxu0
        %v3092 = vadd.f32 %v620, %v3091
        %v3093 = vpop.f32.mrb[0].mxu0
        %v3094 = vpop.f32.mrb[0].mxu0
        %v3095 = vadd.f32 %v620, %v3094
        %v3096 = vpop.f32.mrb[0].mxu0
        %3097 = vmatprep.mubr.bf16.mxu0 0
        %3098 = vmatmul.mubr.bf16.gmra.mrb[0].mxu0 %v1936
        %v3099 = vpop.f32.mrb[0].mxu0
        %v3100 = vadd.f32 %v620, %v3099
        %v3101 = vpop.f32.mrb[0].mxu0
        %v3102 = vpop.f32.mrb[0].mxu0
        %v3103 = vadd.f32 %v620, %v3102
        %v3104 = vpop.f32.mrb[0].mxu0
        %3105 = vmatprep.mubr.bf16.mxu0 0
        %3106 = vmatmul.mubr.bf16.gmra.mrb[0].mxu0 %v1939
        %v3107 = vpop.f32.mrb[0].mxu0
        %v3108 = vadd.f32 %v620, %v3107
        %v3109 = vpop.f32.mrb[0].mxu0
        %v3110 = vpop.f32.mrb[0].mxu0
        %v3111 = vadd.f32 %v620, %v3110
        %v3112 = vpop.f32.mrb[0].mxu0
        %3113 = vmatprep.mubr.bf16.mxu0 0
        %3114 = vmatmul.mubr.bf16.gmra.mrb[0].mxu0 %v1942
        %v3115 = vpop.f32.mrb[0].mxu0
        %v3116 = vadd.f32 %v620, %v3115
        %v3117 = vpop.f32.mrb[0].mxu0
        %v3118 = vpop.f32.mrb[0].mxu0
        %v3119 = vadd.f32 %v620, %v3118
        %v3120 = vpop.f32.mrb[0].mxu0
        %3121 = vmatprep.mubr.bf16.mxu0 0
        %3122 = vmatmul.mubr.bf16.gmra.mrb[0].mxu0 %v1945
        %v3123 = vpop.f32.mrb[0].mxu0
        %v3124 = vadd.f32 %v620, %v3123
        %v3125 = vpop.f32.mrb[0].mxu0
        %v3126 = vpop.f32.mrb[0].mxu0
        %v3127 = vadd.f32 %v620, %v3126
        %v3128 = vpop.f32.mrb[0].mxu0
        %3129 = vmatprep.mubr.bf16.mxu0 0
        %3130 = vmatmul.mubr.bf16.gmra.mrb[0].mxu0 %v1948
        %v3131 = vpop.f32.mrb[0].mxu0
        %v3132 = vadd.f32 %v620, %v3131
        %v3133 = vpop.f32.mrb[0].mxu0
        %v3134 = vpop.f32.mrb[0].mxu0
        %v3135 = vadd.f32 %v620, %v3134
        %v3136 = vpop.f32.mrb[0].mxu0
        %3137 = vmatprep.mubr.bf16.mxu0 0
        %3138 = vmatmul.mubr.bf16.gmra.mrb[0].mxu0 %v1951
        %v3139 = vpop.f32.mrb[0].mxu0
        %v3140 = vadd.f32 %v620, %v3139
        %v3141 = vpop.f32.mrb[0].mxu0
        %v3142 = vpop.f32.mrb[0].mxu0
        %v3143 = vadd.f32 %v620, %v3142
        %v3144 = vpop.f32.mrb[0].mxu0
        %3145 = vmatprep.mubr.bf16.mxu0 0
        %3146 = vmatmul.mubr.bf16.gmra.mrb[0].mxu0 %v1954
        %v3147 = vpop.f32.mrb[0].mxu0
        %v3148 = vadd.f32 %v620, %v3147
        %v3149 = vpop.f32.mrb[0].mxu0
        %v3150 = vpop.f32.mrb[0].mxu0
        %v3151 = vadd.f32 %v620, %v3150
        %v3152 = vpop.f32.mrb[0].mxu0
        %3153 = vmatprep.mubr.bf16.mxu0 0
        %3154 = vmatmul.mubr.bf16.gmra.mrb[0].mxu0 %v1957
        %v3155 = vpop.f32.mrb[0].mxu0
        %v3156 = vadd.f32 %v620, %v3155
        %v3157 = vpop.f32.mrb[0].mxu0
        %v3158 = vpop.f32.mrb[0].mxu0
        %v3159 = vadd.f32 %v620, %v3158
        %v3160 = vpop.f32.mrb[0].mxu0
        %3161 = vmatprep.mubr.bf16.mxu0 0
        %3162 = vmatmul.mubr.bf16.gmra.mrb[0].mxu0 %v1960
        %v3163 = vpop.f32.mrb[0].mxu0
        %v3164 = vadd.f32 %v620, %v3163
        %v3165 = vpop.f32.mrb[0].mxu0
        %v3166 = vpop.f32.mrb[0].mxu0
        %v3167 = vadd.f32 %v620, %v3166
        %v3168 = vpop.f32.mrb[0].mxu0
        %3169 = vmatprep.mubr.bf16.mxu0 0
        %3170 = vmatmul.mubr.bf16.gmra.mrb[0].mxu0 %v1963
        %v3171 = vpop.f32.mrb[0].mxu0
        %v3172 = vadd.f32 %v620, %v3171
        %v3173 = vpop.f32.mrb[0].mxu0
        %v3174 = vpop.f32.mrb[0].mxu0
        %v3175 = vadd.f32 %v620, %v3174
        %v3176 = vpop.f32.mrb[0].mxu0
        %3177 = vmatprep.mubr.bf16.mxu0 0
        %3178 = vmatmul.mubr.bf16.gmra.mrb[0].mxu0 %v1966
        %v3179 = vpop.f32.mrb[0].mxu0
        %v3180 = vadd.f32 %v620, %v3179
        %v3181 = vpop.f32.mrb[0].mxu0
        %v3182 = vpop.f32.mrb[0].mxu0
        %v3183 = vadd.f32 %v620, %v3182
        %v3184 = vpop.f32.mrb[0].mxu0
        %3185 = vmatprep.mubr.bf16.mxu0 0
        %3186 = vmatmul.mubr.bf16.gmra.mrb[0].mxu0 %v1969
        %v3187 = vpop.f32.mrb[0].mxu0
        %v3188 = vadd.f32 %v620, %v3187
        %v3189 = vpop.f32.mrb[0].mxu0
        %v3190 = vpop.f32.mrb[0].mxu0
        %v3191 = vadd.f32 %v620, %v3190
        %v3192 = vpop.f32.mrb[0].mxu0
        %3193 = vmatprep.mubr.bf16.mxu0 0
        %3194 = vmatmul.mubr.bf16.gmra.mrb[0].mxu0 %v1972
        %v3195 = vpop.f32.mrb[0].mxu0
        %v3196 = vadd.f32 %v620, %v3195
        %v3197 = vpop.f32.mrb[0].mxu0
        %v3198 = vpop.f32.mrb[0].mxu0
        %v3199 = vadd.f32 %v620, %v3198
        %v3200 = vpop.f32.mrb[0].mxu0
        %3201 = vmatprep.mubr.bf16.mxu0 0
        %3202 = vmatmul.mubr.bf16.gmra.mrb[0].mxu0 %v1975
        %v3203 = vpop.f32.mrb[0].mxu0
        %v3204 = vadd.f32 %v620, %v3203
        %v3205 = vpop.f32.mrb[0].mxu0
        %v3206 = vpop.f32.mrb[0].mxu0
        %v3207 = vadd.f32 %v620, %v3206
        %v3208 = vpop.f32.mrb[0].mxu0
        %3209 = vmatprep.mubr.bf16.mxu0 0
        %3210 = vmatmul.mubr.bf16.gmra.mrb[0].mxu0 %v1978
        %v3211 = vpop.f32.mrb[0].mxu0
        %v3212 = vadd.f32 %v620, %v3211
        %v3213 = vpop.f32.mrb[0].mxu0
        %v3214 = vpop.f32.mrb[0].mxu0
        %v3215 = vadd.f32 %v620, %v3214
        %v3216 = vpop.f32.mrb[0].mxu0
        %3217 = vmatprep.mubr.bf16.mxu0 0
        %3218 = vmatmul.mubr.bf16.gmra.mrb[0].mxu0 %v1981
        %v3219 = vpop.f32.mrb[0].mxu0
        %v3220 = vadd.f32 %v620, %v3219
        %v3221 = vpop.f32.mrb[0].mxu0
        %v3222 = vpop.f32.mrb[0].mxu0
        %v3223 = vadd.f32 %v620, %v3222
        %v3224 = vpop.f32.mrb[0].mxu0
        %3225 = vmatprep.mubr.bf16.mxu0 0
        %3226 = vmatmul.mubr.bf16.gmra.mrb[0].mxu0 %v1984
        %v3227 = vpop.f32.mrb[0].mxu0
        %v3228 = vadd.f32 %v620, %v3227
        %v3229 = vpop.f32.mrb[0].mxu0
        %v3230 = vpop.f32.mrb[0].mxu0
        %v3231 = vadd.f32 %v620, %v3230
        %v3232 = vpop.f32.mrb[0].mxu0
        %3233 = vmatprep.mubr.bf16.mxu0 0
        %3234 = vmatmul.mubr.bf16.gmra.mrb[0].mxu0 %v1987
        %v3235 = vpop.f32.mrb[0].mxu0
        %v3236 = vadd.f32 %v620, %v3235
        %v3237 = vpop.f32.mrb[0].mxu0
        %v3238 = vpop.f32.mrb[0].mxu0
        %v3239 = vadd.f32 %v620, %v3238
        %v3240 = vpop.f32.mrb[0].mxu0
        %3241 = vmatprep.mubr.bf16.mxu0 0
        %3242 = vmatmul.mubr.bf16.gmra.mrb[0].mxu0 %v1990
        %v3243 = vpop.f32.mrb[0].mxu0
        %v3244 = vadd.f32 %v620, %v3243
        %v3245 = vpop.f32.mrb[0].mxu0
        %v3246 = vpop.f32.mrb[0].mxu0
        %v3247 = vadd.f32 %v620, %v3246
        %v3248 = vpop.f32.mrb[0].mxu0
        %3249 = vmatprep.mubr.bf16.mxu0 0
        %3250 = vmatmul.mubr.bf16.gmra.mrb[0].mxu0 %v1993
        %v3251 = vpop.f32.mrb[0].mxu0
        %v3252 = vadd.f32 %v620, %v3251
        %v3253 = vpop.f32.mrb[0].mxu0
        %v3254 = vpop.f32.mrb[0].mxu0
        %v3255 = vadd.f32 %v620, %v3254
        %v3256 = vpop.f32.mrb[0].mxu0
        %3257 = vmatprep.mubr.bf16.mxu0 0
        %3258 = vmatmul.mubr.bf16.gmra.mrb[0].mxu0 %v1996
        %v3259 = vpop.f32.mrb[0].mxu0
        %v3260 = vadd.f32 %v620, %v3259
        %v3261 = vpop.f32.mrb[0].mxu0
        %v3262 = vpop.f32.mrb[0].mxu0
        %v3263 = vadd.f32 %v620, %v3262
        %v3264 = vpop.f32.mrb[0].mxu0
        %3265 = vmatprep.mubr.bf16.mxu0 0
        %3266 = vmatmul.mubr.bf16.gmra.mrb[0].mxu0 %v1999
        %v3267 = vpop.f32.mrb[0].mxu0
        %v3268 = vadd.f32 %v620, %v3267
        %v3269 = vpop.f32.mrb[0].mxu0
        %v3270 = vpop.f32.mrb[0].mxu0
        %v3271 = vadd.f32 %v620, %v3270
        %v3272 = vpop.f32.mrb[0].mxu0
        %3273 = vmatprep.mubr.bf16.mxu0 0
        %3274 = vmatmul.mubr.bf16.gmra.mrb[0].mxu0 %v2002
        %v3275 = vpop.f32.mrb[0].mxu0
        %v3276 = vadd.f32 %v620, %v3275
        %v3277 = vpop.f32.mrb[0].mxu0
        %v3278 = vpop.f32.mrb[0].mxu0
        %v3279 = vadd.f32 %v620, %v3278
        %v3280 = vpop.f32.mrb[0].mxu0
        %3281 = vmatprep.mubr.bf16.mxu0 0
        %3282 = vmatmul.mubr.bf16.gmra.mrb[0].mxu0 %v2005
        %v3283 = vpop.f32.mrb[0].mxu0
        %v3284 = vadd.f32 %v620, %v3283
        %v3285 = vpop.f32.mrb[0].mxu0
        %v3286 = vpop.f32.mrb[0].mxu0
        %v3287 = vadd.f32 %v620, %v3286
        %v3288 = vpop.f32.mrb[0].mxu0
        %3289 = vmatprep.mubr.bf16.mxu0 0
        %3290 = vmatmul.mubr.bf16.gmra.mrb[0].mxu0 %v2008
        %v3291 = vpop.f32.mrb[0].mxu0
        %v3292 = vadd.f32 %v620, %v3291
        %v3293 = vpop.f32.mrb[0].mxu0
        %v3294 = vpop.f32.mrb[0].mxu0
        %v3295 = vadd.f32 %v620, %v3294
        %v3296 = vpop.f32.mrb[0].mxu0
        %3297 = vmatprep.mubr.bf16.mxu0 0
        %3298 = vmatmul.mubr.bf16.gmra.mrb[0].mxu0 %v2011
        %v3299 = vpop.f32.mrb[0].mxu0
        %v3300 = vadd.f32 %v620, %v3299
        %v3301 = vpop.f32.mrb[0].mxu0
        %v3302 = vpop.f32.mrb[0].mxu0
        %v3303 = vadd.f32 %v620, %v3302
        %v3304 = vpop.f32.mrb[0].mxu0
        %3305 = vmatprep.mubr.bf16.mxu0 0
        %3306 = vmatmul.mubr.bf16.gmra.mrb[0].mxu0 %v2014
        %v3307 = vpop.f32.mrb[0].mxu0
        %v3308 = vadd.f32 %v620, %v3307
        %v3309 = vpop.f32.mrb[0].mxu0
        %v3310 = vpop.f32.mrb[0].mxu0
        %v3311 = vadd.f32 %v620, %v3310
        %v3312 = vpop.f32.mrb[0].mxu0
        %3313 = vmatprep.mubr.bf16.mxu0 0
        %3314 = vmatmul.mubr.bf16.gmra.mrb[0].mxu0 %v2017
        %v3315 = vpop.f32.mrb[0].mxu0
        %v3316 = vadd.f32 %v620, %v3315
        %v3317 = vpop.f32.mrb[0].mxu0
        %v3318 = vpop.f32.mrb[0].mxu0
        %v3319 = vadd.f32 %v620, %v3318
        %v3320 = vpop.f32.mrb[0].mxu0
        %3321 = vmatprep.mubr.bf16.mxu0 0
        %3322 = vmatmul.mubr.bf16.gmra.mrb[0].mxu0 %v2020
        %v3323 = vpop.f32.mrb[0].mxu0
        %v3324 = vadd.f32 %v620, %v3323
        %v3325 = vpop.f32.mrb[0].mxu0
        %v3326 = vpop.f32.mrb[0].mxu0
        %v3327 = vadd.f32 %v620, %v3326
        %v3328 = vpop.f32.mrb[0].mxu0
        %3329 = vmatprep.mubr.bf16.mxu0 0
        %3330 = vmatmul.mubr.bf16.gmra.mrb[0].mxu0 %v2023
        %v3331 = vpop.f32.mrb[0].mxu0
        %v3332 = vadd.f32 %v620, %v3331
        %v3333 = vpop.f32.mrb[0].mxu0
        %v3334 = vpop.f32.mrb[0].mxu0
        %v3335 = vadd.f32 %v620, %v3334
        %v3336 = vpop.f32.mrb[0].mxu0
        %3337 = vmatprep.mubr.bf16.mxu0 0
        %3338 = vmatmul.mubr.bf16.gmra.mrb[0].mxu0 %v2026
        %v3339 = vpop.f32.mrb[0].mxu0
        %v3340 = vadd.f32 %v620, %v3339
        %v3341 = vpop.f32.mrb[0].mxu0
        %v3342 = vpop.f32.mrb[0].mxu0
        %v3343 = vadd.f32 %v620, %v3342
        %v3344 = vpop.f32.mrb[0].mxu0
        %3345 = vmatprep.mubr.bf16.mxu0 0
        %3346 = vmatmul.mubr.bf16.gmra.mrb[0].mxu0 %v2029
        %v3347 = vpop.f32.mrb[0].mxu0
        %v3348 = vadd.f32 %v620, %v3347
        %v3349 = vpop.f32.mrb[0].mxu0
        %v3350 = vpop.f32.mrb[0].mxu0
        %v3351 = vadd.f32 %v620, %v3350
        %v3352 = vpop.f32.mrb[0].mxu0
        %3353 = vmatprep.mubr.bf16.mxu0 0
        %3354 = vmatmul.mubr.bf16.gmra.mrb[0].mxu0 %v2032
        %v3355 = vpop.f32.mrb[0].mxu0
        %v3356 = vadd.f32 %v620, %v3355
        %v3357 = vpop.f32.mrb[0].mxu0
        %v3358 = vpop.f32.mrb[0].mxu0
        %v3359 = vadd.f32 %v620, %v3358
        %v3360 = vpop.f32.mrb[0].mxu0
        %3361 = vmatprep.mubr.bf16.mxu0 0
        %3362 = vmatmul.mubr.bf16.gmra.mrb[0].mxu0 %v2035
        %v3363 = vpop.f32.mrb[0].mxu0
        %v3364 = vadd.f32 %v620, %v3363
        %v3365 = vpop.f32.mrb[0].mxu0
        %v3366 = vpop.f32.mrb[0].mxu0
        %v3367 = vadd.f32 %v620, %v3366
        %v3368 = vpop.f32.mrb[0].mxu0
        %3369 = vmatprep.mubr.bf16.mxu0 0
        %3370 = vmatmul.mubr.bf16.gmra.mrb[0].mxu0 %v2038
        %v3371 = vpop.f32.mrb[0].mxu0
        %v3372 = vadd.f32 %v620, %v3371
        %v3373 = vpop.f32.mrb[0].mxu0
        %v3374 = vpop.f32.mrb[0].mxu0
        %v3375 = vadd.f32 %v620, %v3374
        %v3376 = vpop.f32.mrb[0].mxu0
        %3377 = vmatprep.mubr.bf16.mxu0 0
        %3378 = vmatmul.mubr.bf16.gmra.mrb[0].mxu0 %v2041
        %v3379 = vpop.f32.mrb[0].mxu0
        %v3380 = vadd.f32 %v620, %v3379
        %v3381 = vpop.f32.mrb[0].mxu0
        %v3382 = vpop.f32.mrb[0].mxu0
        %v3383 = vadd.f32 %v620, %v3382
        %v3384 = vpop.f32.mrb[0].mxu0
        %3385 = vmatprep.mubr.bf16.mxu0 0
        %3386 = vmatmul.mubr.bf16.gmra.mrb[0].mxu0 %v2044
        %v3387 = vpop.f32.mrb[0].mxu0
        %v3388 = vadd.f32 %v620, %v3387
        %v3389 = vpop.f32.mrb[0].mxu0
        %v3390 = vpop.f32.mrb[0].mxu0
        %v3391 = vadd.f32 %v620, %v3390
        %v3392 = vpop.f32.mrb[0].mxu0
        %3393 = vmatprep.mubr.bf16.mxu0 0
        %3394 = vmatmul.mubr.bf16.gmra.mrb[0].mxu0 %v2047
        %v3395 = vpop.f32.mrb[0].mxu0
        %v3396 = vadd.f32 %v620, %v3395
        %v3397 = vpop.f32.mrb[0].mxu0
        %v3398 = vpop.f32.mrb[0].mxu0
        %v3399 = vadd.f32 %v620, %v3398
        %v3400 = vpop.f32.mrb[0].mxu0
        %3401 = vmatprep.mubr.bf16.mxu0 0
        %3402 = vmatmul.mubr.bf16.gmra.mrb[0].mxu0 %v2050
        %v3403 = vpop.f32.mrb[0].mxu0
        %v3404 = vadd.f32 %v620, %v3403
        %v3405 = vpop.f32.mrb[0].mxu0
        %v3406 = vpop.f32.mrb[0].mxu0
        %v3407 = vadd.f32 %v620, %v3406
        %v3408 = vpop.f32.mrb[0].mxu0
        %3409 = vmatprep.mubr.bf16.mxu0 0
        %3410 = vmatmul.mubr.bf16.gmra.mrb[0].mxu0 %v2053
        %v3411 = vpop.f32.mrb[0].mxu0
        %v3412 = vadd.f32 %v620, %v3411
        %v3413 = vpop.f32.mrb[0].mxu0
        %v3414 = vpop.f32.mrb[0].mxu0
        %v3415 = vadd.f32 %v620, %v3414
        %v3416 = vpop.f32.mrb[0].mxu0
        %3417 = vmatprep.mubr.bf16.mxu0 0
        %3418 = vmatmul.mubr.bf16.gmra.mrb[0].mxu0 %v2056
        %v3419 = vpop.f32.mrb[0].mxu0
        %v3420 = vadd.f32 %v620, %v3419
        %v3421 = vpop.f32.mrb[0].mxu0
        %v3422 = vpop.f32.mrb[0].mxu0
        %v3423 = vadd.f32 %v620, %v3422
        %v3424 = vpop.f32.mrb[0].mxu0
        %3425 = vmatprep.mubr.bf16.mxu0 0
        %3426 = vmatmul.mubr.bf16.gmra.mrb[0].mxu0 %v2059
        %v3427 = vpop.f32.mrb[0].mxu0
        %v3428 = vadd.f32 %v620, %v3427
        %v3429 = vpop.f32.mrb[0].mxu0
        %v3430 = vpop.f32.mrb[0].mxu0
        %v3431 = vadd.f32 %v620, %v3430
        %v3432 = vpop.f32.mrb[0].mxu0
        %3433 = vmatprep.mubr.bf16.mxu0 0
        %3434 = vmatmul.mubr.bf16.gmra.mrb[0].mxu0 %v2062
        %v3435 = vpop.f32.mrb[0].mxu0
        %v3436 = vadd.f32 %v620, %v3435
        %v3437 = vpop.f32.mrb[0].mxu0
        %v3438 = vpop.f32.mrb[0].mxu0
        %v3439 = vadd.f32 %v620, %v3438
        %v3440 = vpop.f32.mrb[0].mxu0
        %3441 = vmatprep.mubr.bf16.mxu0 0
        %3442 = vmatmul.mubr.bf16.gmra.mrb[0].mxu0 %v2065
        %v3443 = vpop.f32.mrb[0].mxu0
        %v3444 = vadd.f32 %v620, %v3443
        %v3445 = vpop.f32.mrb[0].mxu0
        %v3446 = vpop.f32.mrb[0].mxu0
        %v3447 = vadd.f32 %v620, %v3446
        %v3448 = vpop.f32.mrb[0].mxu0
        %3449 = vmatprep.mubr.bf16.mxu0 0
        %3450 = vmatmul.mubr.bf16.gmra.mrb[0].mxu0 %v2068
        %v3451 = vpop.f32.mrb[0].mxu0
        %v3452 = vadd.f32 %v620, %v3451
        %v3453 = vpop.f32.mrb[0].mxu0
        %v3454 = vpop.f32.mrb[0].mxu0
        %v3455 = vadd.f32 %v620, %v3454
        %v3456 = vpop.f32.mrb[0].mxu0
        %3457 = vmatprep.mubr.bf16.mxu0 0
        %3458 = vmatmul.mubr.bf16.gmra.mrb[0].mxu0 %v2071
        %v3459 = vpop.f32.mrb[0].mxu0
        %v3460 = vadd.f32 %v620, %v3459
        %v3461 = vpop.f32.mrb[0].mxu0
        %v3462 = vpop.f32.mrb[0].mxu0
        %v3463 = vadd.f32 %v620, %v3462
        %v3464 = vpop.f32.mrb[0].mxu0
        %3465 = vmatprep.mubr.bf16.mxu0 0
        %3466 = vmatmul.mubr.bf16.gmra.mrb[0].mxu0 %v2074
        %v3467 = vpop.f32.mrb[0].mxu0
        %v3468 = vadd.f32 %v620, %v3467
        %v3469 = vpop.f32.mrb[0].mxu0
        %v3470 = vpop.f32.mrb[0].mxu0
        %v3471 = vadd.f32 %v620, %v3470
        %v3472 = vpop.f32.mrb[0].mxu0
        %3473 = vmatprep.mubr.bf16.mxu0 0
        %3474 = vmatmul.mubr.bf16.gmra.mrb[0].mxu0 %v2077
        %v3475 = vpop.f32.mrb[0].mxu0
        %v3476 = vadd.f32 %v620, %v3475
        %v3477 = vpop.f32.mrb[0].mxu0
        %v3478 = vpop.f32.mrb[0].mxu0
        %v3479 = vadd.f32 %v620, %v3478
        %v3480 = vpop.f32.mrb[0].mxu0
        %3481 = vmatprep.mubr.bf16.mxu0 0
        %3482 = vmatmul.mubr.bf16.gmra.mrb[0].mxu0 %v2080
        %v3483 = vpop.f32.mrb[0].mxu0
        %v3484 = vadd.f32 %v620, %v3483
        %v3485 = vpop.f32.mrb[0].mxu0
        %v3486 = vpop.f32.mrb[0].mxu0
        %v3487 = vadd.f32 %v620, %v3486
        %v3488 = vpop.f32.mrb[0].mxu0
        %3489 = vmatprep.mubr.bf16.mxu0 0
        %3490 = vmatmul.mubr.bf16.gmra.mrb[0].mxu0 %v2083
        %v3491 = vpop.f32.mrb[0].mxu0
        %v3492 = vadd.f32 %v620, %v3491
        %v3493 = vpop.f32.mrb[0].mxu0
        %v3494 = vpop.f32.mrb[0].mxu0
        %v3495 = vadd.f32 %v620, %v3494
        %v3496 = vpop.f32.mrb[0].mxu0
        %3497 = vmatprep.mubr.bf16.mxu0 0
        %3498 = vmatmul.mubr.bf16.gmra.mrb[0].mxu0 %v2086
        %v3499 = vpop.f32.mrb[0].mxu0
        %v3500 = vadd.f32 %v620, %v3499
        %v3501 = vpop.f32.mrb[0].mxu0
        %v3502 = vpop.f32.mrb[0].mxu0
        %v3503 = vadd.f32 %v620, %v3502
        %v3504 = vpop.f32.mrb[0].mxu0
        %3505 = vmatprep.mubr.bf16.mxu0 0
        %3506 = vmatmul.mubr.bf16.gmra.mrb[0].mxu0 %v2089
        %v3507 = vpop.f32.mrb[0].mxu0
        %v3508 = vadd.f32 %v620, %v3507
        %v3509 = vpop.f32.mrb[0].mxu0
        %v3510 = vpop.f32.mrb[0].mxu0
        %v3511 = vadd.f32 %v620, %v3510
        %v3512 = vpop.f32.mrb[0].mxu0
        %3513 = vmatprep.mubr.bf16.mxu0 0
        %3514 = vmatmul.mubr.bf16.gmra.mrb[0].mxu0 %v2092
        %v3515 = vpop.f32.mrb[0].mxu0
        %v3516 = vadd.f32 %v620, %v3515
        %v3517 = vpop.f32.mrb[0].mxu0
        %v3518 = vpop.f32.mrb[0].mxu0
        %v3519 = vadd.f32 %v620, %v3518
        %v3520 = vpop.f32.mrb[0].mxu0
        %3521 = vmatprep.mubr.bf16.mxu0 0
        %3522 = vmatmul.mubr.bf16.gmra.mrb[0].mxu0 %v2095
        %v3523 = vpop.f32.mrb[0].mxu0
        %v3524 = vadd.f32 %v620, %v3523
        %v3525 = vpop.f32.mrb[0].mxu0
        %v3526 = vpop.f32.mrb[0].mxu0
        %v3527 = vadd.f32 %v620, %v3526
        %v3528 = vpop.f32.mrb[0].mxu0
        %3529 = vmatprep.mubr.bf16.mxu0 0
        %3530 = vmatmul.mubr.bf16.gmra.mrb[0].mxu0 %v2098
        %v3531 = vpop.f32.mrb[0].mxu0
        %v3532 = vadd.f32 %v620, %v3531
        %v3533 = vpop.f32.mrb[0].mxu0
        %v3534 = vpop.f32.mrb[0].mxu0
        %v3535 = vadd.f32 %v620, %v3534
        %v3536 = vpop.f32.mrb[0].mxu0
        %3537 = vmatprep.mubr.bf16.mxu0 0
        %3538 = vmatmul.mubr.bf16.gmra.mrb[0].mxu0 %v2101
        %v3539 = vpop.f32.mrb[0].mxu0
        %v3540 = vadd.f32 %v620, %v3539
        %v3541 = vpop.f32.mrb[0].mxu0
        %v3542 = vpop.f32.mrb[0].mxu0
        %v3543 = vadd.f32 %v620, %v3542
        %v3544 = vpop.f32.mrb[0].mxu0
        %3545 = vmatprep.mubr.bf16.mxu0 0
        %3546 = vmatmul.mubr.bf16.gmra.mrb[0].mxu0 %v2104
        %v3547 = vpop.f32.mrb[0].mxu0
        %v3548 = vadd.f32 %v620, %v3547
        %v3549 = vpop.f32.mrb[0].mxu0
        %v3550 = vpop.f32.mrb[0].mxu0
        %v3551 = vadd.f32 %v620, %v3550
        %v3552 = vpop.f32.mrb[0].mxu0
        %3553 = vmatprep.mubr.bf16.mxu0 0
        %3554 = vmatmul.mubr.bf16.gmra.mrb[0].mxu0 %v2107
        %v3555 = vpop.f32.mrb[0].mxu0
        %v3556 = vadd.f32 %v620, %v3555
        %v3557 = vpop.f32.mrb[0].mxu0
        %v3558 = vpop.f32.mrb[0].mxu0
        %v3559 = vadd.f32 %v620, %v3558
        %v3560 = vpop.f32.mrb[0].mxu0
        %3561 = vmatprep.mubr.bf16.mxu0 0
        %3562 = vmatmul.mubr.bf16.gmra.mrb[0].mxu0 %v2110
        %v3563 = vpop.f32.mrb[0].mxu0
        %v3564 = vadd.f32 %v620, %v3563
        %v3565 = vpop.f32.mrb[0].mxu0
        %v3566 = vpop.f32.mrb[0].mxu0
        %v3567 = vadd.f32 %v620, %v3566
        %v3568 = vpop.f32.mrb[0].mxu0
        %3569 = vmatprep.mubr.bf16.mxu0 0
        %3570 = vmatmul.mubr.bf16.gmra.mrb[0].mxu0 %v2113
        %v3571 = vpop.f32.mrb[0].mxu0
        %v3572 = vadd.f32 %v620, %v3571
        %v3573 = vpop.f32.mrb[0].mxu0
        %v3574 = vpop.f32.mrb[0].mxu0
        %v3575 = vadd.f32 %v620, %v3574
        %v3576 = vpop.f32.mrb[0].mxu0
        %3577 = vmatprep.mubr.bf16.mxu0 0
        %3578 = vmatmul.mubr.bf16.gmra.mrb[0].mxu0 %v2116
        %v3579 = vpop.f32.mrb[0].mxu0
        %v3580 = vadd.f32 %v620, %v3579
        %v3581 = vpop.f32.mrb[0].mxu0
        %v3582 = vpop.f32.mrb[0].mxu0
        %v3583 = vadd.f32 %v620, %v3582
        %v3584 = vpop.f32.mrb[0].mxu0
        %3585 = vmatprep.mubr.bf16.mxu0 0
        %3586 = vmatmul.mubr.bf16.gmra.mrb[0].mxu0 %v2119
        %v3587 = vpop.f32.mrb[0].mxu0
        %v3588 = vadd.f32 %v620, %v3587
        %v3589 = vpop.f32.mrb[0].mxu0
        %v3590 = vpop.f32.mrb[0].mxu0
        %v3591 = vadd.f32 %v620, %v3590
        %v3592 = vpop.f32.mrb[0].mxu0
        %3593 = vmatprep.mubr.bf16.mxu0 0
        %3594 = vmatmul.mubr.bf16.gmra.mrb[0].mxu0 %v2122
        %v3595 = vpop.f32.mrb[0].mxu0
        %v3596 = vadd.f32 %v620, %v3595
        %v3597 = vpop.f32.mrb[0].mxu0
        %v3598 = vpop.f32.mrb[0].mxu0
        %v3599 = vadd.f32 %v620, %v3598
        %v3600 = vpop.f32.mrb[0].mxu0
        %3601 = vmatprep.mubr.bf16.mxu0 0
        %3602 = vmatmul.mubr.bf16.gmra.mrb[0].mxu0 %v2125
        %v3603 = vpop.f32.mrb[0].mxu0
        %v3604 = vadd.f32 %v620, %v3603
        %v3605 = vpop.f32.mrb[0].mxu0
        %v3606 = vpop.f32.mrb[0].mxu0
        %v3607 = vadd.f32 %v620, %v3606
        %v3608 = vpop.f32.mrb[0].mxu0
        %3609 = vmatprep.mubr.bf16.mxu0 0
        %3610 = vmatmul.mubr.bf16.gmra.mrb[0].mxu0 %v2128
        %v3611 = vpop.f32.mrb[0].mxu0
        %v3612 = vadd.f32 %v620, %v3611
        %v3613 = vpop.f32.mrb[0].mxu0
        %v3614 = vpop.f32.mrb[0].mxu0
        %v3615 = vadd.f32 %v620, %v3614
        %v3616 = vpop.f32.mrb[0].mxu0
        %3617 = vmatprep.mubr.bf16.mxu0 0
        %3618 = vmatmul.mubr.bf16.gmra.mrb[0].mxu0 %v2131
        %v3619 = vpop.f32.mrb[0].mxu0
        %v3620 = vadd.f32 %v620, %v3619
        %v3621 = vpop.f32.mrb[0].mxu0
        %v3622 = vpop.f32.mrb[0].mxu0
        %v3623 = vadd.f32 %v620, %v3622
        %v3624 = vpop.f32.mrb[0].mxu0
        %3625 = vmatprep.mubr.bf16.mxu0 0
        %3626 = vmatmul.mubr.bf16.gmra.mrb[0].mxu0 %v2134
        %v3627 = vpop.f32.mrb[0].mxu0
        %v3628 = vadd.f32 %v620, %v3627
        %v3629 = vpop.f32.mrb[0].mxu0
        %v3630 = vpop.f32.mrb[0].mxu0
        %v3631 = vadd.f32 %v620, %v3630
        %v3632 = vpop.f32.mrb[0].mxu0
        %3633 = vmatprep.mubr.bf16.mxu0 0
        %3634 = vmatmul.mubr.bf16.gmra.mrb[0].mxu0 %v2137
        %v3635 = vpop.f32.mrb[0].mxu0
        %v3636 = vadd.f32 %v620, %v3635
        %v3637 = vpop.f32.mrb[0].mxu0
        %v3638 = vpop.f32.mrb[0].mxu0
        %v3639 = vadd.f32 %v620, %v3638
        %v3640 = vpop.f32.mrb[0].mxu0
        %3641 = vmatprep.mubr.bf16.mxu0 0
        %3642 = vmatmul.mubr.bf16.gmra.mrb[0].mxu0 %v2140
        %v3643 = vpop.f32.mrb[0].mxu0
        %v3644 = vadd.f32 %v620, %v3643
        %v3645 = vpop.f32.mrb[0].mxu0
        %v3646 = vpop.f32.mrb[0].mxu0
        %v3647 = vadd.f32 %v620, %v3646
        %v3648 = vpop.f32.mrb[0].mxu0
        %3649 = vmatprep.mubr.bf16.mxu0 0
        %3650 = vmatmul.mubr.bf16.gmra.mrb[0].mxu0 %v2143
        %v3651 = vpop.f32.mrb[0].mxu0
        %v3652 = vadd.f32 %v620, %v3651
        %v3653 = vpop.f32.mrb[0].mxu0
        %v3654 = vpop.f32.mrb[0].mxu0
        %v3655 = vadd.f32 %v620, %v3654
        %v3656 = vpop.f32.mrb[0].mxu0
        %3657 = vmatprep.mubr.bf16.mxu0 0
        %3658 = vmatmul.mubr.bf16.gmra.mrb[0].mxu0 %v2146
        %v3659 = vpop.f32.mrb[0].mxu0
        %v3660 = vadd.f32 %v620, %v3659
        %v3661 = vpop.f32.mrb[0].mxu0
        %v3662 = vpop.f32.mrb[0].mxu0
        %v3663 = vadd.f32 %v620, %v3662
        %v3664 = vpop.f32.mrb[0].mxu0
        %3665 = vmatprep.mubr.bf16.mxu0 0
        %3666 = vmatmul.mubr.bf16.gmra.mrb[0].mxu0 %v2149
        %v3667 = vpop.f32.mrb[0].mxu0
        %v3668 = vadd.f32 %v620, %v3667
        %v3669 = vpop.f32.mrb[0].mxu0
        %v3670 = vpop.f32.mrb[0].mxu0
        %v3671 = vadd.f32 %v620, %v3670
        %v3672 = vpop.f32.mrb[0].mxu0
        %3673 = vmatprep.mubr.bf16.mxu0 0
        %3674 = vmatmul.mubr.bf16.gmra.mrb[0].mxu0 %v2152
        %v3675 = vpop.f32.mrb[0].mxu0
        %v3676 = vadd.f32 %v620, %v3675
        %v3677 = vpop.f32.mrb[0].mxu0
        %v3678 = vpop.f32.mrb[0].mxu0
        %v3679 = vadd.f32 %v620, %v3678
        %v3680 = vpop.f32.mrb[0].mxu0
        %3681 = vmatprep.mubr.bf16.mxu0 0
        %3682 = vmatmul.mubr.bf16.gmra.mrb[0].mxu0 %v2155
        %v3683 = vpop.f32.mrb[0].mxu0
        %v3684 = vadd.f32 %v620, %v3683
        %v3685 = vpop.f32.mrb[0].mxu0
        %v3686 = vpop.f32.mrb[0].mxu0
        %v3687 = vadd.f32 %v620, %v3686
        %v3688 = vpop.f32.mrb[0].mxu0
        %3689 = vmatprep.mubr.bf16.mxu0 0
        %3690 = vmatmul.mubr.bf16.gmra.mrb[0].mxu0 %v2158
        %v3691 = vpop.f32.mrb[0].mxu0
        %v3692 = vadd.f32 %v620, %v3691
        %v3693 = vpop.f32.mrb[0].mxu0
        %v3694 = vpop.f32.mrb[0].mxu0
        %v3695 = vadd.f32 %v620, %v3694
        %v3696 = vpop.f32.mrb[0].mxu0
        %3697 = vmatprep.mubr.bf16.mxu0 0
        %3698 = vmatmul.mubr.bf16.gmra.mrb[0].mxu0 %v2161
        %v3699 = vpop.f32.mrb[0].mxu0
        %v3700 = vadd.f32 %v620, %v3699
        %v3701 = vpop.f32.mrb[0].mxu0
        %v3702 = vpop.f32.mrb[0].mxu0
        %v3703 = vadd.f32 %v620, %v3702
        %v3704 = vpop.f32.mrb[0].mxu0
        %3705 = vmatprep.mubr.bf16.mxu0 0
        %3706 = vmatmul.mubr.bf16.gmra.mrb[0].mxu0 %v2164
        %v3707 = vpop.f32.mrb[0].mxu0
        %v3708 = vadd.f32 %v620, %v3707
        %v3709 = vpop.f32.mrb[0].mxu0
        %v3710 = vpop.f32.mrb[0].mxu0
        %v3711 = vadd.f32 %v620, %v3710
        %v3712 = vpop.f32.mrb[0].mxu0
        %3713 = vmatprep.mubr.bf16.mxu0 0
        %3714 = vmatmul.mubr.bf16.gmra.mrb[0].mxu0 %v2167
        %v3715 = vpop.f32.mrb[0].mxu0
        %v3716 = vadd.f32 %v620, %v3715
        %v3717 = vpop.f32.mrb[0].mxu0
        %v3718 = vpop.f32.mrb[0].mxu0
        %v3719 = vadd.f32 %v620, %v3718
        %v3720 = vpop.f32.mrb[0].mxu0
        %3721 = vmatprep.mubr.bf16.mxu0 0
        %3722 = vmatmul.mubr.bf16.gmra.mrb[0].mxu0 %v2170
        %v3723 = vpop.f32.mrb[0].mxu0
        %v3724 = vadd.f32 %v620, %v3723
        %v3725 = vpop.f32.mrb[0].mxu0
        %v3726 = vpop.f32.mrb[0].mxu0
        %v3727 = vadd.f32 %v620, %v3726
        %v3728 = vpop.f32.mrb[0].mxu0
        %3729 = vmatprep.mubr.bf16.mxu0 0
        %3730 = vmatmul.mubr.bf16.gmra.mrb[0].mxu0 %v2173
        %v3731 = vpop.f32.mrb[0].mxu0
        %v3732 = vadd.f32 %v620, %v3731
        %v3733 = vpop.f32.mrb[0].mxu0
        %v3734 = vpop.f32.mrb[0].mxu0
        %v3735 = vadd.f32 %v620, %v3734
        %v3736 = vpop.f32.mrb[0].mxu0
        %3737 = vmatprep.mubr.bf16.mxu0 0
        %3738 = vmatmul.mubr.bf16.gmra.mrb[0].mxu0 %v2176
        %v3739 = vpop.f32.mrb[0].mxu0
        %v3740 = vadd.f32 %v620, %v3739
        %v3741 = vpop.f32.mrb[0].mxu0
        %v3742 = vpop.f32.mrb[0].mxu0
        %v3743 = vadd.f32 %v620, %v3742
        %v3744 = vpop.f32.mrb[0].mxu0
        %3745 = vmatprep.mubr.bf16.mxu0 0
        %3746 = vmatmul.mubr.bf16.gmra.mrb[0].mxu0 %v2179
        %v3747 = vpop.f32.mrb[0].mxu0
        %v3748 = vadd.f32 %v620, %v3747
        %v3749 = vpop.f32.mrb[0].mxu0
        %v3750 = vpop.f32.mrb[0].mxu0
        %v3751 = vadd.f32 %v620, %v3750
        %v3752 = vpop.f32.mrb[0].mxu0
        %3753 = vmatprep.mubr.bf16.mxu0 0
        %3754 = vmatmul.mubr.bf16.gmra.mrb[0].mxu0 %v2182
        %v3755 = vpop.f32.mrb[0].mxu0
        %v3756 = vadd.f32 %v620, %v3755
        %v3757 = vpop.f32.mrb[0].mxu0
        %v3758 = vpop.f32.mrb[0].mxu0
        %v3759 = vadd.f32 %v620, %v3758
        %v3760 = vpop.f32.mrb[0].mxu0
        %3761 = vmatprep.mubr.bf16.mxu0 0
        %3762 = vmatmul.mubr.bf16.gmra.mrb[0].mxu0 %v2185
        %v3763 = vpop.f32.mrb[0].mxu0
        %v3764 = vadd.f32 %v620, %v3763
        %v3765 = vpop.f32.mrb[0].mxu0
        %v3766 = vpop.f32.mrb[0].mxu0
        %v3767 = vadd.f32 %v620, %v3766
        %v3768 = vpop.f32.mrb[0].mxu0
        %3769 = vmatprep.mubr.bf16.mxu0 0
        %3770 = vmatmul.mubr.bf16.gmra.mrb[0].mxu0 %v2188
        %v3771 = vpop.f32.mrb[0].mxu0
        %v3772 = vadd.f32 %v620, %v3771
        %v3773 = vpop.f32.mrb[0].mxu0
        %v3774 = vpop.f32.mrb[0].mxu0
        %v3775 = vadd.f32 %v620, %v3774
        %v3776 = vpop.f32.mrb[0].mxu0
        %3777 = vmatprep.mubr.bf16.mxu0 0
        %3778 = vmatmul.mubr.bf16.gmra.mrb[0].mxu0 %v2191
        %v3779 = vpop.f32.mrb[0].mxu0
        %v3780 = vadd.f32 %v620, %v3779
        %v3781 = vpop.f32.mrb[0].mxu0
        %v3782 = vpop.f32.mrb[0].mxu0
        %v3783 = vadd.f32 %v620, %v3782
        %v3784 = vpop.f32.mrb[0].mxu0
        %3785 = vmatprep.mubr.bf16.mxu0 0
        %3786 = vmatmul.mubr.bf16.gmra.mrb[0].mxu0 %v2194
        %v3787 = vpop.f32.mrb[0].mxu0
        %v3788 = vadd.f32 %v620, %v3787
        %v3789 = vpop.f32.mrb[0].mxu0
        %v3790 = vpop.f32.mrb[0].mxu0
        %v3791 = vadd.f32 %v620, %v3790
        %v3792 = vpop.f32.mrb[0].mxu0
        %3793 = vmatprep.mubr.bf16.mxu0 0
        %3794 = vmatmul.mubr.bf16.gmra.mrb[0].mxu0 %v2197
        %v3795 = vpop.f32.mrb[0].mxu0
        %v3796 = vadd.f32 %v620, %v3795
        %v3797 = vpop.f32.mrb[0].mxu0
        %v3798 = vpop.f32.mrb[0].mxu0
        %v3799 = vadd.f32 %v620, %v3798
        %v3800 = vpop.f32.mrb[0].mxu0
        %3801 = vmatprep.mubr.bf16.mxu0 0
        %3802 = vmatmul.mubr.bf16.gmra.mrb[0].mxu0 %v2200
        %v3803 = vpop.f32.mrb[0].mxu0
        %v3804 = vadd.f32 %v620, %v3803
        %v3805 = vpop.f32.mrb[0].mxu0
        %v3806 = vpop.f32.mrb[0].mxu0
        %v3807 = vadd.f32 %v620, %v3806
        %v3808 = vpop.f32.mrb[0].mxu0
        %3809 = vdwg.mxu0
        %vm3810 = vcmask 97280
        %3811 = vst.msk [vmem:[%s215] sm:$0xff] %vm3810, %v2244
        %3812 = vst.msk [vmem:[%s215 + $0x8] sm:$0xff] %vm3810, %v2247
        %3813 = vst.msk [vmem:[%s215 + $0x10] sm:$0xff] %vm3810, %v2252
        %3814 = vst.msk [vmem:[%s215 + $0x18] sm:$0xff] %vm3810, %v2255
        %3815 = vst.msk [vmem:[%s215 + $0x20] sm:$0xff] %vm3810, %v2260
        %3816 = vst.msk [vmem:[%s215 + $0x28] sm:$0xff] %vm3810, %v2263
        %3817 = vst.msk [vmem:[%s215 + $0x30] sm:$0xff] %vm3810, %v2268
        %3818 = vst.msk [vmem:[%s215 + $0x38] sm:$0xff] %vm3810, %v2271
        %3819 = vst.msk [vmem:[%s215 + $0x40] sm:$0xff] %vm3810, %v2276
        %3820 = vst.msk [vmem:[%s215 + $0x48] sm:$0xff] %vm3810, %v2279
        %3821 = vst.msk [vmem:[%s215 + $0x50] sm:$0xff] %vm3810, %v2284
        %3822 = vst.msk [vmem:[%s215 + $0x58] sm:$0xff] %vm3810, %v2287
        %3823 = vst.msk [vmem:[%s215 + $0x60] sm:$0xff] %vm3810, %v2292
        %3824 = vst.msk [vmem:[%s215 + $0x68] sm:$0xff] %vm3810, %v2295
        %3825 = vst.msk [vmem:[%s215 + $0x70] sm:$0xff] %vm3810, %v2300
        %3826 = vst.msk [vmem:[%s215 + $0x78] sm:$0xff] %vm3810, %v2303
        %3827 = vst.msk [vmem:[%s215 + $0x80] sm:$0xff] %vm3810, %v2308
        %3828 = vst.msk [vmem:[%s215 + $0x88] sm:$0xff] %vm3810, %v2311
        %3829 = vst.msk [vmem:[%s215 + $0x90] sm:$0xff] %vm3810, %v2316
        %3830 = vst.msk [vmem:[%s215 + $0x98] sm:$0xff] %vm3810, %v2319
        %3831 = vst.msk [vmem:[%s215 + $0xa0] sm:$0xff] %vm3810, %v2324
        %3832 = vst.msk [vmem:[%s215 + $0xa8] sm:$0xff] %vm3810, %v2327
        %3833 = vst.msk [vmem:[%s215 + $0xb0] sm:$0xff] %vm3810, %v2332
        %3834 = vst.msk [vmem:[%s215 + $0xb8] sm:$0xff] %vm3810, %v2335
        %3835 = vst.msk [vmem:[%s215 + $0xc0] sm:$0xff] %vm3810, %v2340
        %3836 = vst.msk [vmem:[%s215 + $0xc8] sm:$0xff] %vm3810, %v2343
        %3837 = vst.msk [vmem:[%s215 + $0xd0] sm:$0xff] %vm3810, %v2348
        %3838 = vst.msk [vmem:[%s215 + $0xd8] sm:$0xff] %vm3810, %v2351
        %3839 = vst.msk [vmem:[%s215 + $0xe0] sm:$0xff] %vm3810, %v2356
        %3840 = vst.msk [vmem:[%s215 + $0xe8] sm:$0xff] %vm3810, %v2359
        %3841 = vst.msk [vmem:[%s215 + $0xf0] sm:$0xff] %vm3810, %v2364
        %3842 = vst.msk [vmem:[%s215 + $0xf8] sm:$0xff] %vm3810, %v2367
        %3843 = vst.msk [vmem:[%s215 + $0x100] sm:$0xff] %vm3810, %v2372
        %3844 = vst.msk [vmem:[%s215 + $0x108] sm:$0xff] %vm3810, %v2375
        %3845 = vst.msk [vmem:[%s215 + $0x110] sm:$0xff] %vm3810, %v2380
        %3846 = vst.msk [vmem:[%s215 + $0x118] sm:$0xff] %vm3810, %v2383
        %3847 = vst.msk [vmem:[%s215 + $0x120] sm:$0xff] %vm3810, %v2388
        %3848 = vst.msk [vmem:[%s215 + $0x128] sm:$0xff] %vm3810, %v2391
        %3849 = vst.msk [vmem:[%s215 + $0x130] sm:$0xff] %vm3810, %v2396
        %3850 = vst.msk [vmem:[%s215 + $0x138] sm:$0xff] %vm3810, %v2399
        %3851 = vst.msk [vmem:[%s215 + $0x140] sm:$0xff] %vm3810, %v2404
        %3852 = vst.msk [vmem:[%s215 + $0x148] sm:$0xff] %vm3810, %v2407
        %3853 = vst.msk [vmem:[%s215 + $0x150] sm:$0xff] %vm3810, %v2412
        %3854 = vst.msk [vmem:[%s215 + $0x158] sm:$0xff] %vm3810, %v2415
        %3855 = vst.msk [vmem:[%s215 + $0x160] sm:$0xff] %vm3810, %v2420
        %3856 = vst.msk [vmem:[%s215 + $0x168] sm:$0xff] %vm3810, %v2423
        %3857 = vst.msk [vmem:[%s215 + $0x170] sm:$0xff] %vm3810, %v2428
        %3858 = vst.msk [vmem:[%s215 + $0x178] sm:$0xff] %vm3810, %v2431
        %3859 = vst.msk [vmem:[%s215 + $0x180] sm:$0xff] %vm3810, %v2436
        %3860 = vst.msk [vmem:[%s215 + $0x188] sm:$0xff] %vm3810, %v2439
        %3861 = vst.msk [vmem:[%s215 + $0x190] sm:$0xff] %vm3810, %v2444
        %3862 = vst.msk [vmem:[%s215 + $0x198] sm:$0xff] %vm3810, %v2447
        %3863 = vst.msk [vmem:[%s215 + $0x1a0] sm:$0xff] %vm3810, %v2452
        %3864 = vst.msk [vmem:[%s215 + $0x1a8] sm:$0xff] %vm3810, %v2455
        %3865 = vst.msk [vmem:[%s215 + $0x1b0] sm:$0xff] %vm3810, %v2460
        %3866 = vst.msk [vmem:[%s215 + $0x1b8] sm:$0xff] %vm3810, %v2463
        %3867 = vst.msk [vmem:[%s215 + $0x1c0] sm:$0xff] %vm3810, %v2468
        %3868 = vst.msk [vmem:[%s215 + $0x1c8] sm:$0xff] %vm3810, %v2471
        %3869 = vst.msk [vmem:[%s215 + $0x1d0] sm:$0xff] %vm3810, %v2476
        %3870 = vst.msk [vmem:[%s215 + $0x1d8] sm:$0xff] %vm3810, %v2479
        %3871 = vst.msk [vmem:[%s215 + $0x1e0] sm:$0xff] %vm3810, %v2484
        %3872 = vst.msk [vmem:[%s215 + $0x1e8] sm:$0xff] %vm3810, %v2487
        %3873 = vst.msk [vmem:[%s215 + $0x1f0] sm:$0xff] %vm3810, %v2492
        %3874 = vst.msk [vmem:[%s215 + $0x1f8] sm:$0xff] %vm3810, %v2495
        %3875 = vst.msk [vmem:[%s215 + $0x200] sm:$0xff] %vm3810, %v2500
        %3876 = vst.msk [vmem:[%s215 + $0x208] sm:$0xff] %vm3810, %v2503
        %3877 = vst.msk [vmem:[%s215 + $0x210] sm:$0xff] %vm3810, %v2508
        %3878 = vst.msk [vmem:[%s215 + $0x218] sm:$0xff] %vm3810, %v2511
        %3879 = vst.msk [vmem:[%s215 + $0x220] sm:$0xff] %vm3810, %v2516
        %3880 = vst.msk [vmem:[%s215 + $0x228] sm:$0xff] %vm3810, %v2519
        %3881 = vst.msk [vmem:[%s215 + $0x230] sm:$0xff] %vm3810, %v2524
        %3882 = vst.msk [vmem:[%s215 + $0x238] sm:$0xff] %vm3810, %v2527
        %3883 = vst.msk [vmem:[%s215 + $0x240] sm:$0xff] %vm3810, %v2532
        %3884 = vst.msk [vmem:[%s215 + $0x248] sm:$0xff] %vm3810, %v2535
        %3885 = vst.msk [vmem:[%s215 + $0x250] sm:$0xff] %vm3810, %v2540
        %3886 = vst.msk [vmem:[%s215 + $0x258] sm:$0xff] %vm3810, %v2543
        %3887 = vst.msk [vmem:[%s215 + $0x260] sm:$0xff] %vm3810, %v2548
        %3888 = vst.msk [vmem:[%s215 + $0x268] sm:$0xff] %vm3810, %v2551
        %3889 = vst.msk [vmem:[%s215 + $0x270] sm:$0xff] %vm3810, %v2556
        %3890 = vst.msk [vmem:[%s215 + $0x278] sm:$0xff] %vm3810, %v2559
        %3891 = vst.msk [vmem:[%s215 + $0x280] sm:$0xff] %vm3810, %v2564
        %3892 = vst.msk [vmem:[%s215 + $0x288] sm:$0xff] %vm3810, %v2567
        %3893 = vst.msk [vmem:[%s215 + $0x290] sm:$0xff] %vm3810, %v2572
        %3894 = vst.msk [vmem:[%s215 + $0x298] sm:$0xff] %vm3810, %v2575
        %3895 = vst.msk [vmem:[%s215 + $0x2a0] sm:$0xff] %vm3810, %v2580
        %3896 = vst.msk [vmem:[%s215 + $0x2a8] sm:$0xff] %vm3810, %v2583
        %3897 = vst.msk [vmem:[%s215 + $0x2b0] sm:$0xff] %vm3810, %v2588
        %3898 = vst.msk [vmem:[%s215 + $0x2b8] sm:$0xff] %vm3810, %v2591
        %3899 = vst.msk [vmem:[%s215 + $0x2c0] sm:$0xff] %vm3810, %v2596
        %3900 = vst.msk [vmem:[%s215 + $0x2c8] sm:$0xff] %vm3810, %v2599
        %3901 = vst.msk [vmem:[%s215 + $0x2d0] sm:$0xff] %vm3810, %v2604
        %3902 = vst.msk [vmem:[%s215 + $0x2d8] sm:$0xff] %vm3810, %v2607
        %3903 = vst.msk [vmem:[%s215 + $0x2e0] sm:$0xff] %vm3810, %v2612
        %3904 = vst.msk [vmem:[%s215 + $0x2e8] sm:$0xff] %vm3810, %v2615
        %3905 = vst.msk [vmem:[%s215 + $0x2f0] sm:$0xff] %vm3810, %v2620
        %3906 = vst.msk [vmem:[%s215 + $0x2f8] sm:$0xff] %vm3810, %v2623
        %3907 = vst.msk [vmem:[%s215 + $0x300] sm:$0xff] %vm3810, %v2628
        %3908 = vst.msk [vmem:[%s215 + $0x308] sm:$0xff] %vm3810, %v2631
        %3909 = vst.msk [vmem:[%s215 + $0x310] sm:$0xff] %vm3810, %v2636
        %3910 = vst.msk [vmem:[%s215 + $0x318] sm:$0xff] %vm3810, %v2639
        %3911 = vst.msk [vmem:[%s215 + $0x320] sm:$0xff] %vm3810, %v2644
        %3912 = vst.msk [vmem:[%s215 + $0x328] sm:$0xff] %vm3810, %v2647
        %3913 = vst.msk [vmem:[%s215 + $0x330] sm:$0xff] %vm3810, %v2652
        %3914 = vst.msk [vmem:[%s215 + $0x338] sm:$0xff] %vm3810, %v2655
        %3915 = vst.msk [vmem:[%s215 + $0x340] sm:$0xff] %vm3810, %v2660
        %3916 = vst.msk [vmem:[%s215 + $0x348] sm:$0xff] %vm3810, %v2663
        %3917 = vst.msk [vmem:[%s215 + $0x350] sm:$0xff] %vm3810, %v2668
        %3918 = vst.msk [vmem:[%s215 + $0x358] sm:$0xff] %vm3810, %v2671
        %3919 = vst.msk [vmem:[%s215 + $0x360] sm:$0xff] %vm3810, %v2676
        %3920 = vst.msk [vmem:[%s215 + $0x368] sm:$0xff] %vm3810, %v2679
        %3921 = vst.msk [vmem:[%s215 + $0x370] sm:$0xff] %vm3810, %v2684
        %3922 = vst.msk [vmem:[%s215 + $0x378] sm:$0xff] %vm3810, %v2687
        %3923 = vst.msk [vmem:[%s215 + $0x380] sm:$0xff] %vm3810, %v2692
        %3924 = vst.msk [vmem:[%s215 + $0x388] sm:$0xff] %vm3810, %v2695
        %3925 = vst.msk [vmem:[%s215 + $0x390] sm:$0xff] %vm3810, %v2700
        %3926 = vst.msk [vmem:[%s215 + $0x398] sm:$0xff] %vm3810, %v2703
        %3927 = vst.msk [vmem:[%s215 + $0x3a0] sm:$0xff] %vm3810, %v2708
        %3928 = vst.msk [vmem:[%s215 + $0x3a8] sm:$0xff] %vm3810, %v2711
        %3929 = vst.msk [vmem:[%s215 + $0x3b0] sm:$0xff] %vm3810, %v2716
        %3930 = vst.msk [vmem:[%s215 + $0x3b8] sm:$0xff] %vm3810, %v2719
        %3931 = vst.msk [vmem:[%s215 + $0x3c0] sm:$0xff] %vm3810, %v2724
        %3932 = vst.msk [vmem:[%s215 + $0x3c8] sm:$0xff] %vm3810, %v2727
        %3933 = vst.msk [vmem:[%s215 + $0x3d0] sm:$0xff] %vm3810, %v2732
        %3934 = vst.msk [vmem:[%s215 + $0x3d8] sm:$0xff] %vm3810, %v2735
        %3935 = vst.msk [vmem:[%s215 + $0x3e0] sm:$0xff] %vm3810, %v2740
        %3936 = vst.msk [vmem:[%s215 + $0x3e8] sm:$0xff] %vm3810, %v2743
        %3937 = vst.msk [vmem:[%s215 + $0x3f0] sm:$0xff] %vm3810, %v2748
        %3938 = vst.msk [vmem:[%s215 + $0x3f8] sm:$0xff] %vm3810, %v2751
        %3939 = vst.msk [vmem:[%s215 + $0x400] sm:$0xff] %vm3810, %v2756
        %3940 = vst.msk [vmem:[%s215 + $0x408] sm:$0xff] %vm3810, %v2759
        %3941 = vst.msk [vmem:[%s215 + $0x410] sm:$0xff] %vm3810, %v2764
        %3942 = vst.msk [vmem:[%s215 + $0x418] sm:$0xff] %vm3810, %v2767
        %3943 = vst.msk [vmem:[%s215 + $0x420] sm:$0xff] %vm3810, %v2772
        %3944 = vst.msk [vmem:[%s215 + $0x428] sm:$0xff] %vm3810, %v2775
        %3945 = vst.msk [vmem:[%s215 + $0x430] sm:$0xff] %vm3810, %v2780
        %3946 = vst.msk [vmem:[%s215 + $0x438] sm:$0xff] %vm3810, %v2783
        %3947 = vst.msk [vmem:[%s215 + $0x440] sm:$0xff] %vm3810, %v2788
        %3948 = vst.msk [vmem:[%s215 + $0x448] sm:$0xff] %vm3810, %v2791
        %3949 = vst.msk [vmem:[%s215 + $0x450] sm:$0xff] %vm3810, %v2796
        %3950 = vst.msk [vmem:[%s215 + $0x458] sm:$0xff] %vm3810, %v2799
        %3951 = vst.msk [vmem:[%s215 + $0x460] sm:$0xff] %vm3810, %v2804
        %3952 = vst.msk [vmem:[%s215 + $0x468] sm:$0xff] %vm3810, %v2807
        %3953 = vst.msk [vmem:[%s215 + $0x470] sm:$0xff] %vm3810, %v2812
        %3954 = vst.msk [vmem:[%s215 + $0x478] sm:$0xff] %vm3810, %v2815
        %3955 = vst.msk [vmem:[%s215 + $0x480] sm:$0xff] %vm3810, %v2820
        %3956 = vst.msk [vmem:[%s215 + $0x488] sm:$0xff] %vm3810, %v2823
        %3957 = vst.msk [vmem:[%s215 + $0x490] sm:$0xff] %vm3810, %v2828
        %3958 = vst.msk [vmem:[%s215 + $0x498] sm:$0xff] %vm3810, %v2831
        %3959 = vst.msk [vmem:[%s215 + $0x4a0] sm:$0xff] %vm3810, %v2836
        %3960 = vst.msk [vmem:[%s215 + $0x4a8] sm:$0xff] %vm3810, %v2839
        %3961 = vst.msk [vmem:[%s215 + $0x4b0] sm:$0xff] %vm3810, %v2844
        %3962 = vst.msk [vmem:[%s215 + $0x4b8] sm:$0xff] %vm3810, %v2847
        %3963 = vst.msk [vmem:[%s215 + $0x4c0] sm:$0xff] %vm3810, %v2852
        %3964 = vst.msk [vmem:[%s215 + $0x4c8] sm:$0xff] %vm3810, %v2855
        %3965 = vst.msk [vmem:[%s215 + $0x4d0] sm:$0xff] %vm3810, %v2860
        %3966 = vst.msk [vmem:[%s215 + $0x4d8] sm:$0xff] %vm3810, %v2863
        %3967 = vst.msk [vmem:[%s215 + $0x4e0] sm:$0xff] %vm3810, %v2868
        %3968 = vst.msk [vmem:[%s215 + $0x4e8] sm:$0xff] %vm3810, %v2871
        %3969 = vst.msk [vmem:[%s215 + $0x4f0] sm:$0xff] %vm3810, %v2876
        %3970 = vst.msk [vmem:[%s215 + $0x4f8] sm:$0xff] %vm3810, %v2879
        %3971 = vst.msk [vmem:[%s215 + $0x500] sm:$0xff] %vm3810, %v2884
        %3972 = vst.msk [vmem:[%s215 + $0x508] sm:$0xff] %vm3810, %v2887
        %3973 = vst.msk [vmem:[%s215 + $0x510] sm:$0xff] %vm3810, %v2892
        %3974 = vst.msk [vmem:[%s215 + $0x518] sm:$0xff] %vm3810, %v2895
        %3975 = vst.msk [vmem:[%s215 + $0x520] sm:$0xff] %vm3810, %v2900
        %3976 = vst.msk [vmem:[%s215 + $0x528] sm:$0xff] %vm3810, %v2903
        %3977 = vst.msk [vmem:[%s215 + $0x530] sm:$0xff] %vm3810, %v2908
        %3978 = vst.msk [vmem:[%s215 + $0x538] sm:$0xff] %vm3810, %v2911
        %3979 = vst.msk [vmem:[%s215 + $0x540] sm:$0xff] %vm3810, %v2916
        %3980 = vst.msk [vmem:[%s215 + $0x548] sm:$0xff] %vm3810, %v2919
        %3981 = vst.msk [vmem:[%s215 + $0x550] sm:$0xff] %vm3810, %v2924
        %3982 = vst.msk [vmem:[%s215 + $0x558] sm:$0xff] %vm3810, %v2927
        %3983 = vst.msk [vmem:[%s215 + $0x560] sm:$0xff] %vm3810, %v2932
        %3984 = vst.msk [vmem:[%s215 + $0x568] sm:$0xff] %vm3810, %v2935
        %3985 = vst.msk [vmem:[%s215 + $0x570] sm:$0xff] %vm3810, %v2940
        %3986 = vst.msk [vmem:[%s215 + $0x578] sm:$0xff] %vm3810, %v2943
        %3987 = vst.msk [vmem:[%s215 + $0x580] sm:$0xff] %vm3810, %v2948
        %3988 = vst.msk [vmem:[%s215 + $0x588] sm:$0xff] %vm3810, %v2951
        %3989 = vst.msk [vmem:[%s215 + $0x590] sm:$0xff] %vm3810, %v2956
        %3990 = vst.msk [vmem:[%s215 + $0x598] sm:$0xff] %vm3810, %v2959
        %3991 = vst.msk [vmem:[%s215 + $0x5a0] sm:$0xff] %vm3810, %v2964
        %3992 = vst.msk [vmem:[%s215 + $0x5a8] sm:$0xff] %vm3810, %v2967
        %3993 = vst.msk [vmem:[%s215 + $0x5b0] sm:$0xff] %vm3810, %v2972
        %3994 = vst.msk [vmem:[%s215 + $0x5b8] sm:$0xff] %vm3810, %v2975
        %3995 = vst.msk [vmem:[%s215 + $0x5c0] sm:$0xff] %vm3810, %v2980
        %3996 = vst.msk [vmem:[%s215 + $0x5c8] sm:$0xff] %vm3810, %v2983
        %3997 = vst.msk [vmem:[%s215 + $0x5d0] sm:$0xff] %vm3810, %v2988
        %3998 = vst.msk [vmem:[%s215 + $0x5d8] sm:$0xff] %vm3810, %v2991
        %3999 = vst.msk [vmem:[%s215 + $0x5e0] sm:$0xff] %vm3810, %v2996
        %4000 = vst.msk [vmem:[%s215 + $0x5e8] sm:$0xff] %vm3810, %v2999
        %4001 = vst.msk [vmem:[%s215 + $0x5f0] sm:$0xff] %vm3810, %v3004
        %4002 = vst.msk [vmem:[%s215 + $0x5f8] sm:$0xff] %vm3810, %v3007
        %4003 = vst.msk [vmem:[%s215 + $0x600] sm:$0xff] %vm3810, %v3012
        %4004 = vst.msk [vmem:[%s215 + $0x608] sm:$0xff] %vm3810, %v3015
        %4005 = vst.msk [vmem:[%s215 + $0x610] sm:$0xff] %vm3810, %v3020
        %4006 = vst.msk [vmem:[%s215 + $0x618] sm:$0xff] %vm3810, %v3023
        %4007 = vst.msk [vmem:[%s215 + $0x620] sm:$0xff] %vm3810, %v3028
        %4008 = vst.msk [vmem:[%s215 + $0x628] sm:$0xff] %vm3810, %v3031
        %4009 = vst.msk [vmem:[%s215 + $0x630] sm:$0xff] %vm3810, %v3036
        %4010 = vst.msk [vmem:[%s215 + $0x638] sm:$0xff] %vm3810, %v3039
        %4011 = vst.msk [vmem:[%s215 + $0x640] sm:$0xff] %vm3810, %v3044
        %4012 = vst.msk [vmem:[%s215 + $0x648] sm:$0xff] %vm3810, %v3047
        %4013 = vst.msk [vmem:[%s215 + $0x650] sm:$0xff] %vm3810, %v3052
        %4014 = vst.msk [vmem:[%s215 + $0x658] sm:$0xff] %vm3810, %v3055
        %4015 = vst.msk [vmem:[%s215 + $0x660] sm:$0xff] %vm3810, %v3060
        %4016 = vst.msk [vmem:[%s215 + $0x668] sm:$0xff] %vm3810, %v3063
        %4017 = vst.msk [vmem:[%s215 + $0x670] sm:$0xff] %vm3810, %v3068
        %4018 = vst.msk [vmem:[%s215 + $0x678] sm:$0xff] %vm3810, %v3071
        %4019 = vst.msk [vmem:[%s215 + $0x680] sm:$0xff] %vm3810, %v3076
        %4020 = vst.msk [vmem:[%s215 + $0x688] sm:$0xff] %vm3810, %v3079
        %4021 = vst.msk [vmem:[%s215 + $0x690] sm:$0xff] %vm3810, %v3084
        %4022 = vst.msk [vmem:[%s215 + $0x698] sm:$0xff] %vm3810, %v3087
        %4023 = vst.msk [vmem:[%s215 + $0x6a0] sm:$0xff] %vm3810, %v3092
        %4024 = vst.msk [vmem:[%s215 + $0x6a8] sm:$0xff] %vm3810, %v3095
        %4025 = vst.msk [vmem:[%s215 + $0x6b0] sm:$0xff] %vm3810, %v3100
        %4026 = vst.msk [vmem:[%s215 + $0x6b8] sm:$0xff] %vm3810, %v3103
        %4027 = vst.msk [vmem:[%s215 + $0x6c0] sm:$0xff] %vm3810, %v3108
        %4028 = vst.msk [vmem:[%s215 + $0x6c8] sm:$0xff] %vm3810, %v3111
        %4029 = vst.msk [vmem:[%s215 + $0x6d0] sm:$0xff] %vm3810, %v3116
        %4030 = vst.msk [vmem:[%s215 + $0x6d8] sm:$0xff] %vm3810, %v3119
        %4031 = vst.msk [vmem:[%s215 + $0x6e0] sm:$0xff] %vm3810, %v3124
        %4032 = vst.msk [vmem:[%s215 + $0x6e8] sm:$0xff] %vm3810, %v3127
        %4033 = vst.msk [vmem:[%s215 + $0x6f0] sm:$0xff] %vm3810, %v3132
        %4034 = vst.msk [vmem:[%s215 + $0x6f8] sm:$0xff] %vm3810, %v3135
        %4035 = vst.msk [vmem:[%s215 + $0x700] sm:$0xff] %vm3810, %v3140
        %4036 = vst.msk [vmem:[%s215 + $0x708] sm:$0xff] %vm3810, %v3143
        %4037 = vst.msk [vmem:[%s215 + $0x710] sm:$0xff] %vm3810, %v3148
        %4038 = vst.msk [vmem:[%s215 + $0x718] sm:$0xff] %vm3810, %v3151
        %4039 = vst.msk [vmem:[%s215 + $0x720] sm:$0xff] %vm3810, %v3156
        %4040 = vst.msk [vmem:[%s215 + $0x728] sm:$0xff] %vm3810, %v3159
        %4041 = vst.msk [vmem:[%s215 + $0x730] sm:$0xff] %vm3810, %v3164
        %4042 = vst.msk [vmem:[%s215 + $0x738] sm:$0xff] %vm3810, %v3167
        %4043 = vst.msk [vmem:[%s215 + $0x740] sm:$0xff] %vm3810, %v3172
        %4044 = vst.msk [vmem:[%s215 + $0x748] sm:$0xff] %vm3810, %v3175
        %4045 = vst.msk [vmem:[%s215 + $0x750] sm:$0xff] %vm3810, %v3180
        %4046 = vst.msk [vmem:[%s215 + $0x758] sm:$0xff] %vm3810, %v3183
        %4047 = vst.msk [vmem:[%s215 + $0x760] sm:$0xff] %vm3810, %v3188
        %4048 = vst.msk [vmem:[%s215 + $0x768] sm:$0xff] %vm3810, %v3191
        %4049 = vst.msk [vmem:[%s215 + $0x770] sm:$0xff] %vm3810, %v3196
        %4050 = vst.msk [vmem:[%s215 + $0x778] sm:$0xff] %vm3810, %v3199
        %4051 = vst.msk [vmem:[%s215 + $0x780] sm:$0xff] %vm3810, %v3204
        %4052 = vst.msk [vmem:[%s215 + $0x788] sm:$0xff] %vm3810, %v3207
        %4053 = vst.msk [vmem:[%s215 + $0x790] sm:$0xff] %vm3810, %v3212
        %4054 = vst.msk [vmem:[%s215 + $0x798] sm:$0xff] %vm3810, %v3215
        %4055 = vst.msk [vmem:[%s215 + $0x7a0] sm:$0xff] %vm3810, %v3220
        %4056 = vst.msk [vmem:[%s215 + $0x7a8] sm:$0xff] %vm3810, %v3223
        %4057 = vst.msk [vmem:[%s215 + $0x7b0] sm:$0xff] %vm3810, %v3228
        %4058 = vst.msk [vmem:[%s215 + $0x7b8] sm:$0xff] %vm3810, %v3231
        %4059 = vst.msk [vmem:[%s215 + $0x7c0] sm:$0xff] %vm3810, %v3236
        %4060 = vst.msk [vmem:[%s215 + $0x7c8] sm:$0xff] %vm3810, %v3239
        %4061 = vst.msk [vmem:[%s215 + $0x7d0] sm:$0xff] %vm3810, %v3244
        %4062 = vst.msk [vmem:[%s215 + $0x7d8] sm:$0xff] %vm3810, %v3247
        %4063 = vst.msk [vmem:[%s215 + $0x7e0] sm:$0xff] %vm3810, %v3252
        %4064 = vst.msk [vmem:[%s215 + $0x7e8] sm:$0xff] %vm3810, %v3255
        %4065 = vst.msk [vmem:[%s215 + $0x7f0] sm:$0xff] %vm3810, %v3260
        %4066 = vst.msk [vmem:[%s215 + $0x7f8] sm:$0xff] %vm3810, %v3263
        %4067 = vst.msk [vmem:[%s215 + $0x800] sm:$0xff] %vm3810, %v3268
        %4068 = vst.msk [vmem:[%s215 + $0x808] sm:$0xff] %vm3810, %v3271
        %4069 = vst.msk [vmem:[%s215 + $0x810] sm:$0xff] %vm3810, %v3276
        %4070 = vst.msk [vmem:[%s215 + $0x818] sm:$0xff] %vm3810, %v3279
        %4071 = vst.msk [vmem:[%s215 + $0x820] sm:$0xff] %vm3810, %v3284
        %4072 = vst.msk [vmem:[%s215 + $0x828] sm:$0xff] %vm3810, %v3287
        %4073 = vst.msk [vmem:[%s215 + $0x830] sm:$0xff] %vm3810, %v3292
        %4074 = vst.msk [vmem:[%s215 + $0x838] sm:$0xff] %vm3810, %v3295
        %4075 = vst.msk [vmem:[%s215 + $0x840] sm:$0xff] %vm3810, %v3300
        %4076 = vst.msk [vmem:[%s215 + $0x848] sm:$0xff] %vm3810, %v3303
        %4077 = vst.msk [vmem:[%s215 + $0x850] sm:$0xff] %vm3810, %v3308
        %4078 = vst.msk [vmem:[%s215 + $0x858] sm:$0xff] %vm3810, %v3311
        %4079 = vst.msk [vmem:[%s215 + $0x860] sm:$0xff] %vm3810, %v3316
        %4080 = vst.msk [vmem:[%s215 + $0x868] sm:$0xff] %vm3810, %v3319
        %4081 = vst.msk [vmem:[%s215 + $0x870] sm:$0xff] %vm3810, %v3324
        %4082 = vst.msk [vmem:[%s215 + $0x878] sm:$0xff] %vm3810, %v3327
        %4083 = vst.msk [vmem:[%s215 + $0x880] sm:$0xff] %vm3810, %v3332
        %4084 = vst.msk [vmem:[%s215 + $0x888] sm:$0xff] %vm3810, %v3335
        %4085 = vst.msk [vmem:[%s215 + $0x890] sm:$0xff] %vm3810, %v3340
        %4086 = vst.msk [vmem:[%s215 + $0x898] sm:$0xff] %vm3810, %v3343
        %4087 = vst.msk [vmem:[%s215 + $0x8a0] sm:$0xff] %vm3810, %v3348
        %4088 = vst.msk [vmem:[%s215 + $0x8a8] sm:$0xff] %vm3810, %v3351
        %4089 = vst.msk [vmem:[%s215 + $0x8b0] sm:$0xff] %vm3810, %v3356
        %4090 = vst.msk [vmem:[%s215 + $0x8b8] sm:$0xff] %vm3810, %v3359
        %4091 = vst.msk [vmem:[%s215 + $0x8c0] sm:$0xff] %vm3810, %v3364
        %4092 = vst.msk [vmem:[%s215 + $0x8c8] sm:$0xff] %vm3810, %v3367
        %4093 = vst.msk [vmem:[%s215 + $0x8d0] sm:$0xff] %vm3810, %v3372
        %4094 = vst.msk [vmem:[%s215 + $0x8d8] sm:$0xff] %vm3810, %v3375
        %4095 = vst.msk [vmem:[%s215 + $0x8e0] sm:$0xff] %vm3810, %v3380
        %4096 = vst.msk [vmem:[%s215 + $0x8e8] sm:$0xff] %vm3810, %v3383
        %4097 = vst.msk [vmem:[%s215 + $0x8f0] sm:$0xff] %vm3810, %v3388
        %4098 = vst.msk [vmem:[%s215 + $0x8f8] sm:$0xff] %vm3810, %v3391
        %4099 = vst.msk [vmem:[%s215 + $0x900] sm:$0xff] %vm3810, %v3396
        %4100 = vst.msk [vmem:[%s215 + $0x908] sm:$0xff] %vm3810, %v3399
        %4101 = vst.msk [vmem:[%s215 + $0x910] sm:$0xff] %vm3810, %v3404
        %4102 = vst.msk [vmem:[%s215 + $0x918] sm:$0xff] %vm3810, %v3407
        %4103 = vst.msk [vmem:[%s215 + $0x920] sm:$0xff] %vm3810, %v3412
        %4104 = vst.msk [vmem:[%s215 + $0x928] sm:$0xff] %vm3810, %v3415
        %4105 = vst.msk [vmem:[%s215 + $0x930] sm:$0xff] %vm3810, %v3420
        %4106 = vst.msk [vmem:[%s215 + $0x938] sm:$0xff] %vm3810, %v3423
        %4107 = vst.msk [vmem:[%s215 + $0x940] sm:$0xff] %vm3810, %v3428
        %4108 = vst.msk [vmem:[%s215 + $0x948] sm:$0xff] %vm3810, %v3431
        %4109 = vst.msk [vmem:[%s215 + $0x950] sm:$0xff] %vm3810, %v3436
        %4110 = vst.msk [vmem:[%s215 + $0x958] sm:$0xff] %vm3810, %v3439
        %4111 = vst.msk [vmem:[%s215 + $0x960] sm:$0xff] %vm3810, %v3444
        %4112 = vst.msk [vmem:[%s215 + $0x968] sm:$0xff] %vm3810, %v3447
        %4113 = vst.msk [vmem:[%s215 + $0x970] sm:$0xff] %vm3810, %v3452
        %4114 = vst.msk [vmem:[%s215 + $0x978] sm:$0xff] %vm3810, %v3455
        %4115 = vst.msk [vmem:[%s215 + $0x980] sm:$0xff] %vm3810, %v3460
        %4116 = vst.msk [vmem:[%s215 + $0x988] sm:$0xff] %vm3810, %v3463
        %4117 = vst.msk [vmem:[%s215 + $0x990] sm:$0xff] %vm3810, %v3468
        %4118 = vst.msk [vmem:[%s215 + $0x998] sm:$0xff] %vm3810, %v3471
        %4119 = vst.msk [vmem:[%s215 + $0x9a0] sm:$0xff] %vm3810, %v3476
        %4120 = vst.msk [vmem:[%s215 + $0x9a8] sm:$0xff] %vm3810, %v3479
        %4121 = vst.msk [vmem:[%s215 + $0x9b0] sm:$0xff] %vm3810, %v3484
        %4122 = vst.msk [vmem:[%s215 + $0x9b8] sm:$0xff] %vm3810, %v3487
        %4123 = vst.msk [vmem:[%s215 + $0x9c0] sm:$0xff] %vm3810, %v3492
        %4124 = vst.msk [vmem:[%s215 + $0x9c8] sm:$0xff] %vm3810, %v3495
        %4125 = vst.msk [vmem:[%s215 + $0x9d0] sm:$0xff] %vm3810, %v3500
        %4126 = vst.msk [vmem:[%s215 + $0x9d8] sm:$0xff] %vm3810, %v3503
        %4127 = vst.msk [vmem:[%s215 + $0x9e0] sm:$0xff] %vm3810, %v3508
        %4128 = vst.msk [vmem:[%s215 + $0x9e8] sm:$0xff] %vm3810, %v3511
        %4129 = vst.msk [vmem:[%s215 + $0x9f0] sm:$0xff] %vm3810, %v3516
        %4130 = vst.msk [vmem:[%s215 + $0x9f8] sm:$0xff] %vm3810, %v3519
        %4131 = vst.msk [vmem:[%s215 + $0xa00] sm:$0xff] %vm3810, %v3524
        %4132 = vst.msk [vmem:[%s215 + $0xa08] sm:$0xff] %vm3810, %v3527
        %4133 = vst.msk [vmem:[%s215 + $0xa10] sm:$0xff] %vm3810, %v3532
        %4134 = vst.msk [vmem:[%s215 + $0xa18] sm:$0xff] %vm3810, %v3535
        %4135 = vst.msk [vmem:[%s215 + $0xa20] sm:$0xff] %vm3810, %v3540
        %4136 = vst.msk [vmem:[%s215 + $0xa28] sm:$0xff] %vm3810, %v3543
        %4137 = vst.msk [vmem:[%s215 + $0xa30] sm:$0xff] %vm3810, %v3548
        %4138 = vst.msk [vmem:[%s215 + $0xa38] sm:$0xff] %vm3810, %v3551
        %4139 = vst.msk [vmem:[%s215 + $0xa40] sm:$0xff] %vm3810, %v3556
        %4140 = vst.msk [vmem:[%s215 + $0xa48] sm:$0xff] %vm3810, %v3559
        %4141 = vst.msk [vmem:[%s215 + $0xa50] sm:$0xff] %vm3810, %v3564
        %4142 = vst.msk [vmem:[%s215 + $0xa58] sm:$0xff] %vm3810, %v3567
        %4143 = vst.msk [vmem:[%s215 + $0xa60] sm:$0xff] %vm3810, %v3572
        %4144 = vst.msk [vmem:[%s215 + $0xa68] sm:$0xff] %vm3810, %v3575
        %4145 = vst.msk [vmem:[%s215 + $0xa70] sm:$0xff] %vm3810, %v3580
        %4146 = vst.msk [vmem:[%s215 + $0xa78] sm:$0xff] %vm3810, %v3583
        %4147 = vst.msk [vmem:[%s215 + $0xa80] sm:$0xff] %vm3810, %v3588
        %4148 = vst.msk [vmem:[%s215 + $0xa88] sm:$0xff] %vm3810, %v3591
        %4149 = vst.msk [vmem:[%s215 + $0xa90] sm:$0xff] %vm3810, %v3596
        %4150 = vst.msk [vmem:[%s215 + $0xa98] sm:$0xff] %vm3810, %v3599
        %4151 = vst.msk [vmem:[%s215 + $0xaa0] sm:$0xff] %vm3810, %v3604
        %4152 = vst.msk [vmem:[%s215 + $0xaa8] sm:$0xff] %vm3810, %v3607
        %4153 = vst.msk [vmem:[%s215 + $0xab0] sm:$0xff] %vm3810, %v3612
        %4154 = vst.msk [vmem:[%s215 + $0xab8] sm:$0xff] %vm3810, %v3615
        %4155 = vst.msk [vmem:[%s215 + $0xac0] sm:$0xff] %vm3810, %v3620
        %4156 = vst.msk [vmem:[%s215 + $0xac8] sm:$0xff] %vm3810, %v3623
        %4157 = vst.msk [vmem:[%s215 + $0xad0] sm:$0xff] %vm3810, %v3628
        %4158 = vst.msk [vmem:[%s215 + $0xad8] sm:$0xff] %vm3810, %v3631
        %4159 = vst.msk [vmem:[%s215 + $0xae0] sm:$0xff] %vm3810, %v3636
        %4160 = vst.msk [vmem:[%s215 + $0xae8] sm:$0xff] %vm3810, %v3639
        %4161 = vst.msk [vmem:[%s215 + $0xaf0] sm:$0xff] %vm3810, %v3644
        %4162 = vst.msk [vmem:[%s215 + $0xaf8] sm:$0xff] %vm3810, %v3647
        %4163 = vst.msk [vmem:[%s215 + $0xb00] sm:$0xff] %vm3810, %v3652
        %4164 = vst.msk [vmem:[%s215 + $0xb08] sm:$0xff] %vm3810, %v3655
        %4165 = vst.msk [vmem:[%s215 + $0xb10] sm:$0xff] %vm3810, %v3660
        %4166 = vst.msk [vmem:[%s215 + $0xb18] sm:$0xff] %vm3810, %v3663
        %4167 = vst.msk [vmem:[%s215 + $0xb20] sm:$0xff] %vm3810, %v3668
        %4168 = vst.msk [vmem:[%s215 + $0xb28] sm:$0xff] %vm3810, %v3671
        %4169 = vst.msk [vmem:[%s215 + $0xb30] sm:$0xff] %vm3810, %v3676
        %4170 = vst.msk [vmem:[%s215 + $0xb38] sm:$0xff] %vm3810, %v3679
        %4171 = vst.msk [vmem:[%s215 + $0xb40] sm:$0xff] %vm3810, %v3684
        %4172 = vst.msk [vmem:[%s215 + $0xb48] sm:$0xff] %vm3810, %v3687
        %4173 = vst.msk [vmem:[%s215 + $0xb50] sm:$0xff] %vm3810, %v3692
        %4174 = vst.msk [vmem:[%s215 + $0xb58] sm:$0xff] %vm3810, %v3695
        %4175 = vst.msk [vmem:[%s215 + $0xb60] sm:$0xff] %vm3810, %v3700
        %4176 = vst.msk [vmem:[%s215 + $0xb68] sm:$0xff] %vm3810, %v3703
        %4177 = vst.msk [vmem:[%s215 + $0xb70] sm:$0xff] %vm3810, %v3708
        %4178 = vst.msk [vmem:[%s215 + $0xb78] sm:$0xff] %vm3810, %v3711
        %4179 = vst.msk [vmem:[%s215 + $0xb80] sm:$0xff] %vm3810, %v3716
        %4180 = vst.msk [vmem:[%s215 + $0xb88] sm:$0xff] %vm3810, %v3719
        %4181 = vst.msk [vmem:[%s215 + $0xb90] sm:$0xff] %vm3810, %v3724
        %4182 = vst.msk [vmem:[%s215 + $0xb98] sm:$0xff] %vm3810, %v3727
        %4183 = vst.msk [vmem:[%s215 + $0xba0] sm:$0xff] %vm3810, %v3732
        %4184 = vst.msk [vmem:[%s215 + $0xba8] sm:$0xff] %vm3810, %v3735
        %4185 = vst.msk [vmem:[%s215 + $0xbb0] sm:$0xff] %vm3810, %v3740
        %4186 = vst.msk [vmem:[%s215 + $0xbb8] sm:$0xff] %vm3810, %v3743
        %4187 = vst.msk [vmem:[%s215 + $0xbc0] sm:$0xff] %vm3810, %v3748
        %4188 = vst.msk [vmem:[%s215 + $0xbc8] sm:$0xff] %vm3810, %v3751
        %4189 = vst.msk [vmem:[%s215 + $0xbd0] sm:$0xff] %vm3810, %v3756
        %4190 = vst.msk [vmem:[%s215 + $0xbd8] sm:$0xff] %vm3810, %v3759
        %4191 = vst.msk [vmem:[%s215 + $0xbe0] sm:$0xff] %vm3810, %v3764
        %4192 = vst.msk [vmem:[%s215 + $0xbe8] sm:$0xff] %vm3810, %v3767
        %4193 = vst.msk [vmem:[%s215 + $0xbf0] sm:$0xff] %vm3810, %v3772
        %4194 = vst.msk [vmem:[%s215 + $0xbf8] sm:$0xff] %vm3810, %v3775
        %4195 = vst.msk [vmem:[%s215 + $0xc00] sm:$0xff] %vm3810, %v3780
        %4196 = vst.msk [vmem:[%s215 + $0xc08] sm:$0xff] %vm3810, %v3783
        %4197 = vst.msk [vmem:[%s215 + $0xc10] sm:$0xff] %vm3810, %v3788
        %4198 = vst.msk [vmem:[%s215 + $0xc18] sm:$0xff] %vm3810, %v3791
        %4199 = vst.msk [vmem:[%s215 + $0xc20] sm:$0xff] %vm3810, %v3796
        %4200 = vst.msk [vmem:[%s215 + $0xc28] sm:$0xff] %vm3810, %v3799
        %4201 = vst.msk [vmem:[%s215 + $0xc30] sm:$0xff] %vm3810, %v3804
        %4202 = vst.msk [vmem:[%s215 + $0xc38] sm:$0xff] %vm3810, %v3807
        %s4203 = sand.u32 %s97, 1
        %s4204 = scalar_lea.sflag [#allocation4], %s4203
        %s4205 = sand.u32 %s97, 1
        %s4206 = smul.addr %s4205, 3136
        %s4207 = scalar_lea.vmem [#allocation8], %s4206
        // Predicated region
        $region45: #{visual_modality_forward.5} parent=31 // pred_check
          %p4208 = pneg %p107
        $region46: #{visual_modality_forward.5} parent=31 // pred_check_branch
          %4210 = sbr.rel (%p4208) target = $region48
        $region47: #{visual_modality_forward.5} parent=31 // pred_region
          %s4211 = smul.u32 392, %s21
          %s4213 = ssub.s32 50176, 50176
          %4214 = vsyncadd %s4204, %s4213
          %s4215 = smul.addr %s4211, 128
          %s4216 = scalar_lea.hbm %s3, %s4215
          %s4217 = sshll.u32 %s4207, 4
          %s4218 = int_to_ptr.vmem [resolvable:$true] %s4217
          %4223 = dma.vmem_to_hbm [thread:$0]  %s4218, 50176, %s4216, %s4204, 128, 128, 8
        $region48: #{visual_modality_forward.5} parent=31 // pred_fallthru
          _
      $region32: #{visual_modality_forward.5} parent=5 // pred_fallthru
        _
      %p4224 = scmp.le.s32.totalorder 2, %s16
      // Predicated region
      $region49: #{visual_modality_forward.5} parent=5 // pred_check
        %p4225 = pneg %p4224
      $region50: #{visual_modality_forward.5} parent=5 // pred_check_branch
        %4227 = sbr.rel (%p4225) target = $region52
      $region51: #{visual_modality_forward.5} parent=5 // pred_region
        %s4228 = ssub.s32 %s16, 2
        // Predicated region
        $region53: #{visual_modality_forward.5} parent=51 // pred_check
          %p4229 = pneg %p113
        $region54: #{visual_modality_forward.5} parent=51 // pred_check_branch
          %4231 = sbr.rel (%p4229) target = $region56
        $region55: #{visual_modality_forward.5} parent=51 // pred_region
          %s4232 = sand.u32 %s98, 1
          %s4233 = scalar_lea.sflag [#allocation4], %s4232
          %s4234 = sand.u32 %s98, 1
          %s4235 = smul.addr %s4234, 3136
          %s4236 = scalar_lea.vmem [#allocation8], %s4235
          %4237 = dma.done %s4233, 50176
        $region56: #{visual_modality_forward.5} parent=51 // pred_fallthru
          _
      $region52: #{visual_modality_forward.5} parent=5 // pred_fallthru
        _
    $region6: #{visual_modality_forward.5} parent=1 // loop_footer
      %s20 = sadd.s32 1, %s16
    $region7: #{visual_modality_forward.5} parent=1 // loop_footer_branch
      %15 = sbr.rel target = $region3
    $region8: #{visual_modality_forward.5} parent=1 // loop_exit
      _
    %4238 = vsyncpa [#allocation3], 1
    %s4239 = scalar_lea.sflag [#allocation3], 1
    %4240 = vsyncpa %s4239, 1
    %4241 = vsyncpa [#allocation6], 1
    %4242 = vsyncpa [#allocation4], 1
    %s4243 = scalar_lea.sflag [#allocation4], 1
    %4244 = vsyncpa %s4243, 1

// kernel: visual_modality_forward.6
$region0: #{visual_modality_forward.6}
  #allocation0 [shape = 'u32[]', space=smem, size = 0x4, offset = 0x4, fixed_abs, tag = 'smem constant byte address 0x4 - core index']
  #allocation1 [shape = 'u32[144,128]{1,0:T(1,128)}', space=vmem, size = 0x12000, scoped, tag = 'internal scratch']
  %s0 = inlined_call_operand.hbm [shape: f32[2,56,672], index: 0, kind: input, shape index: {}]
  %s1 = inlined_call_operand.hbm [shape: f32[2,56,684], index: 1, kind: input, shape index: {}]
  %s2 = inlined_call_operand.hbm [shape: f32[2,56,672], index: 2, kind: input, shape index: {}]
  %s3 = inlined_call_operand.hbm [shape: f32[2,56,684], index: 3, kind: input, shape index: {}]
  %s4 = inlined_call_operand.hbm [shape: f32[1,684], index: 4, kind: input, shape index: {}]
  %s5 = inlined_call_operand.hbm [shape: f32[1,684], index: 5, kind: input, shape index: {}]
  %s6 = inlined_call_operand.hbm [shape: f32[2,56,672], index: 6, kind: output, shape index: {}]
  %s7 = sld [smem:[#allocation0]]
  $region81: #{visual_modality_forward.6} parent=0
    _
  %s9 = ssub.s32 1, %s7
  %s10 = scalar_select 0, %s9, %s7
  $region1: #{visual_modality_forward.6} parent=0
    #allocation2 [shape = 'u8[344064]{0}', space=vmem, size = 0x54000, scoped, tag = 'input window, operand 0']
    #allocation3 [shape = 's32[2]{0}', space=sflag, size = 0x8, scoped, tag = 'scoped memory for visual_modality_forward.6']
    #allocation4 [shape = 's32[2]{0}', space=sflag, size = 0x8, scoped, tag = 'scoped memory for visual_modality_forward.6']
    #allocation5 [shape = 'u8[344064]{0}', space=vmem, size = 0x54000, scoped, tag = 'input window, operand 1']
    #allocation6 [shape = 's32[2]{0}', space=sflag, size = 0x8, scoped, tag = 'scoped memory for visual_modality_forward.6']
    #allocation7 [shape = 'u8[344064]{0}', space=vmem, size = 0x54000, scoped, tag = 'input window, operand 2']
    #allocation8 [shape = 'u8[344064]{0}', space=vmem, size = 0x54000, scoped, tag = 'input window, operand 3']
    #allocation9 [shape = 's32[2]{0}', space=sflag, size = 0x8, scoped, tag = 'scoped memory for visual_modality_forward.6']
    #allocation10 [shape = 'u8[3072]{0}', space=vmem, size = 0xc00, scoped, tag = 'input window, operand 4, single buffered']
    #allocation11 [shape = 'u8[3072]{0}', space=vmem, size = 0xc00, scoped, tag = 'input window, operand 5, single buffered']
    #allocation12 [shape = 's32[1]{0}', space=sflag, size = 0x4, scoped, tag = 'scoped memory for visual_modality_forward.6']
    #allocation13 [shape = 'u8[344064]{0}', space=vmem, size = 0x54000, scoped, tag = 'output window, operand 0']
    %11 = vsyncpa [#allocation3], 0
    %s12 = scalar_lea.sflag [#allocation3], 1
    %13 = vsyncpa %s12, 0
    %14 = vsyncpa [#allocation6], 0
    %s15 = scalar_lea.sflag [#allocation6], 1
    %16 = vsyncpa %s15, 0
    %17 = vsyncpa [#allocation9], 0
    %s18 = scalar_lea.sflag [#allocation9], 1
    %19 = vsyncpa %s18, 0
    %20 = vsyncpa [#allocation12], 0
    %21 = vsyncpa [#allocation4], 0
    %s22 = scalar_lea.sflag [#allocation4], 1
    %23 = vsyncpa %s22, 0
    loop: start=0, step=1, limit=4
    $region2: #{visual_modality_forward.6} parent=1 // loop_pre_header
      _
    $region3: #{visual_modality_forward.6} parent=1 // loop_header
      %s25 = sphi 0, %s29
      %p26 = scmp.ge.s32.totalorder %s25, 4
      %s35 = sphi 0, %s37
      %s38 = sphi 0, %s35
      %s39 = sphi 0, %s38
      %s55 = sphi 0, %s39
      %s61 = sphi 0, %s63
      %s64 = sphi 0, %s61
      %s65 = sphi 0, %s64
      %s81 = sphi 0, %s65
      %s87 = sphi 0, %s89
      %s90 = sphi 0, %s87
      %s91 = sphi 0, %s90
      %s107 = sphi 0, %s91
      %s113 = sphi 0, %s115
      %s116 = sphi 0, %s113
      %s117 = sphi 0, %s116
      %s133 = sphi 0, %s117
      %s137 = sphi 0, %s137
      %s139 = sphi 0, %s137
      %s140 = sphi 0, %s139
      %s154 = sphi 0, %s140
      %s158 = sphi 0, %s158
      %s160 = sphi 0, %s158
      %s161 = sphi 0, %s160
      %s175 = sphi 0, %s161
      %s181 = sphi 0, %s183
      %s184 = sphi 0, %s181
      %s185 = sphi 0, %s184
      %s201 = sphi 0, %s185
    $region4: #{visual_modality_forward.6} parent=1 // loop_header_branch
      %28 = sbr.rel (%p26) target = $region8
    $region5: #{visual_modality_forward.6} parent=1 // loop_body
      %s30 = ssub.s32 %s25, 1
      %s31 = ssub.s32 %s25, 2
      %s32 = sadd.s32 %s25, 1
      %s33 = ssub.s32 %s25, %s32
      %p34 = scmp.eq.s32.totalorder %s33, 0
      %s36 = sadd.s32 %s35, 1
      %s37 = scalar_select %p34, %s35, %s36
      %p40 = pneg %p34
      %p41 = scmp.eq.s32.totalorder %s25, 1
      %p42 = por %p40, %p41
      %p43 = scmp.ne.s32.totalorder %s35, %s38
      %p44 = scmp.eq.s32.totalorder %s25, 0
      %p45 = por %p43, %p44
      %p46 = scmp.ne.s32.totalorder %s35, %s38
      %p47 = scmp.eq.s32.totalorder %s30, 1
      %p48 = por %p46, %p47
      %p49 = scmp.ne.s32.totalorder %s38, %s39
      %p50 = scmp.eq.s32.totalorder %s30, 0
      %p51 = por %p49, %p50
      %p52 = scmp.ne.s32.totalorder %s38, %s39
      %p53 = scmp.eq.s32.totalorder %s31, 1
      %p54 = por %p52, %p53
      %p56 = scmp.ne.s32.totalorder %s39, %s55
      %p57 = scmp.eq.s32.totalorder %s31, 0
      %p58 = por %p56, %p57
      %s59 = ssub.s32 %s25, %s32
      %p60 = scmp.eq.s32.totalorder %s59, 0
      %s62 = sadd.s32 %s61, 1
      %s63 = scalar_select %p60, %s61, %s62
      %p66 = pneg %p60
      %p67 = scmp.eq.s32.totalorder %s25, 1
      %p68 = por %p66, %p67
      %p69 = scmp.ne.s32.totalorder %s61, %s64
      %p70 = scmp.eq.s32.totalorder %s25, 0
      %p71 = por %p69, %p70
      %p72 = scmp.ne.s32.totalorder %s61, %s64
      %p73 = scmp.eq.s32.totalorder %s30, 1
      %p74 = por %p72, %p73
      %p75 = scmp.ne.s32.totalorder %s64, %s65
      %p76 = scmp.eq.s32.totalorder %s30, 0
      %p77 = por %p75, %p76
      %p78 = scmp.ne.s32.totalorder %s64, %s65
      %p79 = scmp.eq.s32.totalorder %s31, 1
      %p80 = por %p78, %p79
      %p82 = scmp.ne.s32.totalorder %s65, %s81
      %p83 = scmp.eq.s32.totalorder %s31, 0
      %p84 = por %p82, %p83
      %s85 = ssub.s32 %s25, %s32
      %p86 = scmp.eq.s32.totalorder %s85, 0
      %s88 = sadd.s32 %s87, 1
      %s89 = scalar_select %p86, %s87, %s88
      %p92 = pneg %p86
      %p93 = scmp.eq.s32.totalorder %s25, 1
      %p94 = por %p92, %p93
      %p95 = scmp.ne.s32.totalorder %s87, %s90
      %p96 = scmp.eq.s32.totalorder %s25, 0
      %p97 = por %p95, %p96
      %p98 = scmp.ne.s32.totalorder %s87, %s90
      %p99 = scmp.eq.s32.totalorder %s30, 1
      %p100 = por %p98, %p99
      %p101 = scmp.ne.s32.totalorder %s90, %s91
      %p102 = scmp.eq.s32.totalorder %s30, 0
      %p103 = por %p101, %p102
      %p104 = scmp.ne.s32.totalorder %s90, %s91
      %p105 = scmp.eq.s32.totalorder %s31, 1
      %p106 = por %p104, %p105
      %p108 = scmp.ne.s32.totalorder %s91, %s107
      %p109 = scmp.eq.s32.totalorder %s31, 0
      %p110 = por %p108, %p109
      %s111 = ssub.s32 %s25, %s32
      %p112 = scmp.eq.s32.totalorder %s111, 0
      %s114 = sadd.s32 %s113, 1
      %s115 = scalar_select %p112, %s113, %s114
      %p118 = pneg %p112
      %p119 = scmp.eq.s32.totalorder %s25, 1
      %p120 = por %p118, %p119
      %p121 = scmp.ne.s32.totalorder %s113, %s116
      %p122 = scmp.eq.s32.totalorder %s25, 0
      %p123 = por %p121, %p122
      %p124 = scmp.ne.s32.totalorder %s113, %s116
      %p125 = scmp.eq.s32.totalorder %s30, 1
      %p126 = por %p124, %p125
      %p127 = scmp.ne.s32.totalorder %s116, %s117
      %p128 = scmp.eq.s32.totalorder %s30, 0
      %p129 = por %p127, %p128
      %p130 = scmp.ne.s32.totalorder %s116, %s117
      %p131 = scmp.eq.s32.totalorder %s31, 1
      %p132 = por %p130, %p131
      %p134 = scmp.ne.s32.totalorder %s117, %s133
      %p135 = scmp.eq.s32.totalorder %s31, 0
      %p136 = por %p134, %p135
      %s138 = sadd.s32 %s137, 1
      %p141 = scmp.eq.s32.totalorder %s25, 1
      %p142 = scmp.ne.s32.totalorder %s137, %s139
      %p143 = scmp.eq.s32.totalorder %s25, 0
      %p144 = por %p142, %p143
      %p145 = scmp.ne.s32.totalorder %s137, %s139
      %p146 = scmp.eq.s32.totalorder %s30, 1
      %p147 = por %p145, %p146
      %p148 = scmp.ne.s32.totalorder %s139, %s140
      %p149 = scmp.eq.s32.totalorder %s30, 0
      %p150 = por %p148, %p149
      %p151 = scmp.ne.s32.totalorder %s139, %s140
      %p152 = scmp.eq.s32.totalorder %s31, 1
      %p153 = por %p151, %p152
      %p155 = scmp.ne.s32.totalorder %s140, %s154
      %p156 = scmp.eq.s32.totalorder %s31, 0
      %p157 = por %p155, %p156
      %s159 = sadd.s32 %s158, 1
      %p162 = scmp.eq.s32.totalorder %s25, 1
      %p163 = scmp.ne.s32.totalorder %s158, %s160
      %p164 = scmp.eq.s32.totalorder %s25, 0
      %p165 = por %p163, %p164
      %p166 = scmp.ne.s32.totalorder %s158, %s160
      %p167 = scmp.eq.s32.totalorder %s30, 1
      %p168 = por %p166, %p167
      %p169 = scmp.ne.s32.totalorder %s160, %s161
      %p170 = scmp.eq.s32.totalorder %s30, 0
      %p171 = por %p169, %p170
      %p172 = scmp.ne.s32.totalorder %s160, %s161
      %p173 = scmp.eq.s32.totalorder %s31, 1
      %p174 = por %p172, %p173
      %p176 = scmp.ne.s32.totalorder %s161, %s175
      %p177 = scmp.eq.s32.totalorder %s31, 0
      %p178 = por %p176, %p177
      %s179 = ssub.s32 %s25, %s32
      %p180 = scmp.eq.s32.totalorder %s179, 0
      %s182 = sadd.s32 %s181, 1
      %s183 = scalar_select %p180, %s181, %s182
      %p186 = pneg %p180
      %p187 = scmp.eq.s32.totalorder %s25, 1
      %p188 = por %p186, %p187
      %p189 = scmp.ne.s32.totalorder %s181, %s184
      %p190 = scmp.eq.s32.totalorder %s25, 0
      %p191 = por %p189, %p190
      %p192 = scmp.ne.s32.totalorder %s181, %s184
      %p193 = scmp.eq.s32.totalorder %s30, 1
      %p194 = por %p192, %p193
      %p195 = scmp.ne.s32.totalorder %s184, %s185
      %p196 = scmp.eq.s32.totalorder %s30, 0
      %p197 = por %p195, %p196
      %p198 = scmp.ne.s32.totalorder %s184, %s185
      %p199 = scmp.eq.s32.totalorder %s31, 1
      %p200 = por %p198, %p199
      %p202 = scmp.ne.s32.totalorder %s185, %s201
      %p203 = scmp.eq.s32.totalorder %s31, 0
      %p204 = por %p202, %p203
      %p205 = scmp.le.s32.totalorder 1, %s25
      %p206 = scmp.lt.s32.totalorder %s25, 3
      %p207 = pnand %p205, %p206
      %p208 = pneg %p207
      // Predicated region
      $region9: #{visual_modality_forward.6} parent=5 // pred_check
        _
      $region10: #{visual_modality_forward.6} parent=5 // pred_check_branch
        %210 = sbr.rel (%p207) target = $region12
      $region11: #{visual_modality_forward.6} parent=5 // pred_region
        %s211 = ssub.s32 %s25, 1
        // Predicated region
        $region13: #{visual_modality_forward.6} parent=11 // pred_check
          %p212 = pneg %p150
        $region14: #{visual_modality_forward.6} parent=11 // pred_check_branch
          %214 = sbr.rel (%p212) target = $region16
        $region15: #{visual_modality_forward.6} parent=11 // pred_region
          %s216 = ssub.s32 96, 96
          %217 = vsyncadd [#allocation9], %s216
          %s219 = sshll.u32 [#allocation10], 4
          %s220 = int_to_ptr.vmem [resolvable:$true] %s219
          %222 = dma.hbm_to_vmem [thread:$0]  %s4, 96, %s220, [#allocation9]
        $region16: #{visual_modality_forward.6} parent=11 // pred_fallthru
          _
        // Predicated region
        $region17: #{visual_modality_forward.6} parent=11 // pred_check
          %p223 = pneg %p171
        $region18: #{visual_modality_forward.6} parent=11 // pred_check_branch
          %225 = sbr.rel (%p223) target = $region20
        $region19: #{visual_modality_forward.6} parent=11 // pred_region
          %s227 = ssub.s32 96, 96
          %228 = vsyncadd [#allocation12], %s227
          %s230 = sshll.u32 [#allocation11], 4
          %s231 = int_to_ptr.vmem [resolvable:$true] %s230
          %233 = dma.hbm_to_vmem [thread:$0]  %s5, 96, %s231, [#allocation12]
        $region20: #{visual_modality_forward.6} parent=11 // pred_fallthru
          _
      $region12: #{visual_modality_forward.6} parent=5 // pred_fallthru
        _
      %p234 = scmp.lt.s32.totalorder %s25, 2
      // Predicated region
      $region21: #{visual_modality_forward.6} parent=5 // pred_check
        %p235 = pneg %p234
      $region22: #{visual_modality_forward.6} parent=5 // pred_check_branch
        %237 = sbr.rel (%p235) target = $region24
      $region23: #{visual_modality_forward.6} parent=5 // pred_region
        // Predicated region
        $region25: #{visual_modality_forward.6} parent=23 // pred_check
          %p238 = pneg %p45
        $region26: #{visual_modality_forward.6} parent=23 // pred_check_branch
          %240 = sbr.rel (%p238) target = $region28
        $region27: #{visual_modality_forward.6} parent=23 // pred_region
          %s241 = sand.u32 %s35, 1
          %s242 = scalar_lea.sflag [#allocation3], %s241
          %s243 = sand.u32 %s35, 1
          %s244 = smul.addr %s243, 336
          %s245 = scalar_lea.vmem [#allocation2], %s244
          %s247 = ssub.s32 5376, 5376
          %248 = vsyncadd %s242, %s247
          %s249 = smul.addr %s25, 42
          %s250 = smul.addr %s249, 128
          %s251 = scalar_lea.hbm %s0, %s250
          %s252 = sshll.u32 %s245, 4
          %s253 = int_to_ptr.vmem [resolvable:$true] %s252
          %258 = dma.hbm_to_vmem [thread:$0]  %s251, 5376, %s253, %s242, 768, 768, 48
        $region28: #{visual_modality_forward.6} parent=23 // pred_fallthru
          _
        // Predicated region
        $region29: #{visual_modality_forward.6} parent=23 // pred_check
          %p259 = pneg %p71
        $region30: #{visual_modality_forward.6} parent=23 // pred_check_branch
          %261 = sbr.rel (%p259) target = $region32
        $region31: #{visual_modality_forward.6} parent=23 // pred_region
          %s262 = sand.u32 %s25, 1
          %s263 = scalar_lea.sflag [#allocation6], %s262
          %s264 = sand.u32 %s61, 1
          %s265 = smul.addr %s264, 336
          %s266 = scalar_lea.vmem [#allocation5], %s265
          %s268 = ssub.s32 5376, 5376
          %269 = vsyncadd %s263, %s268
          %s270 = smul.addr %s25, 42
          %s271 = smul.addr %s270, 128
          %s272 = scalar_lea.hbm %s1, %s271
          %s273 = sshll.u32 %s266, 4
          %s274 = int_to_ptr.vmem [resolvable:$true] %s273
          %279 = dma.hbm_to_vmem [thread:$0]  %s272, 5376, %s274, %s263, 768, 768, 48
        $region32: #{visual_modality_forward.6} parent=23 // pred_fallthru
          _
        // Predicated region
        $region33: #{visual_modality_forward.6} parent=23 // pred_check
          %p280 = pneg %p97
        $region34: #{visual_modality_forward.6} parent=23 // pred_check_branch
          %282 = sbr.rel (%p280) target = $region36
        $region35: #{visual_modality_forward.6} parent=23 // pred_region
          %s283 = sand.u32 %s25, 1
          %s284 = scalar_lea.sflag [#allocation6], %s283
          %s285 = sand.u32 %s87, 1
          %s286 = smul.addr %s285, 336
          %s287 = scalar_lea.vmem [#allocation7], %s286
          %s289 = ssub.s32 5376, 5376
          %290 = vsyncadd %s284, %s289
          %s291 = smul.addr %s25, 42
          %s292 = smul.addr %s291, 128
          %s293 = scalar_lea.hbm %s2, %s292
          %s294 = sshll.u32 %s287, 4
          %s295 = int_to_ptr.vmem [resolvable:$true] %s294
          %300 = dma.hbm_to_vmem [thread:$0]  %s293, 5376, %s295, %s284, 768, 768, 48
        $region36: #{visual_modality_forward.6} parent=23 // pred_fallthru
          _
        // Predicated region
        $region37: #{visual_modality_forward.6} parent=23 // pred_check
          %p301 = pneg %p123
        $region38: #{visual_modality_forward.6} parent=23 // pred_check_branch
          %303 = sbr.rel (%p301) target = $region40
        $region39: #{visual_modality_forward.6} parent=23 // pred_region
          %s304 = sand.u32 %s25, 1
          %s305 = scalar_lea.sflag [#allocation9], %s304
          %s306 = sand.u32 %s113, 1
          %s307 = smul.addr %s306, 336
          %s308 = scalar_lea.vmem [#allocation8], %s307
          %s310 = ssub.s32 5376, 5376
          %311 = vsyncadd %s305, %s310
          %s312 = smul.addr %s25, 42
          %s313 = smul.addr %s312, 128
          %s314 = scalar_lea.hbm %s3, %s313
          %s315 = sshll.u32 %s308, 4
          %s316 = int_to_ptr.vmem [resolvable:$true] %s315
          %321 = dma.hbm_to_vmem [thread:$0]  %s314, 5376, %s316, %s305, 768, 768, 48
        $region40: #{visual_modality_forward.6} parent=23 // pred_fallthru
          _
      $region24: #{visual_modality_forward.6} parent=5 // pred_fallthru
        _
      %p322 = scmp.le.s32.totalorder 1, %s25
      %p323 = scmp.lt.s32.totalorder %s25, 3
      %p324 = pnand %p322, %p323
      %p325 = pneg %p324
      // Predicated region
      $region41: #{visual_modality_forward.6} parent=5 // pred_check
        _
      $region42: #{visual_modality_forward.6} parent=5 // pred_check_branch
        %327 = sbr.rel (%p324) target = $region44
      $region43: #{visual_modality_forward.6} parent=5 // pred_region
        %s328 = ssub.s32 %s25, 1
        %s329 = sand.u32 %s38, 1
        %s330 = scalar_lea.sflag [#allocation3], %s329
        %s331 = sand.u32 %s38, 1
        %s332 = smul.addr %s331, 336
        %s333 = scalar_lea.vmem [#allocation2], %s332
        // Predicated region
        $region45: #{visual_modality_forward.6} parent=43 // pred_check
          %p334 = pneg %p51
        $region46: #{visual_modality_forward.6} parent=43 // pred_check_branch
          %336 = sbr.rel (%p334) target = $region48
        $region47: #{visual_modality_forward.6} parent=43 // pred_region
          %337 = dma.done %s330, 5376
        $region48: #{visual_modality_forward.6} parent=43 // pred_fallthru
          _
        %s338 = sand.u32 %s30, 1
        %s339 = scalar_lea.sflag [#allocation6], %s338
        %s340 = sand.u32 %s64, 1
        %s341 = smul.addr %s340, 336
        %s342 = scalar_lea.vmem [#allocation5], %s341
        // Predicated region
        $region49: #{visual_modality_forward.6} parent=43 // pred_check
          %p343 = pneg %p77
        $region50: #{visual_modality_forward.6} parent=43 // pred_check_branch
          %345 = sbr.rel (%p343) target = $region52
        $region51: #{visual_modality_forward.6} parent=43 // pred_region
          %346 = dma.done %s339, 5376
        $region52: #{visual_modality_forward.6} parent=43 // pred_fallthru
          _
        %s347 = sand.u32 %s30, 1
        %s348 = scalar_lea.sflag [#allocation6], %s347
        %s349 = sand.u32 %s90, 1
        %s350 = smul.addr %s349, 336
        %s351 = scalar_lea.vmem [#allocation7], %s350
        // Predicated region
        $region53: #{visual_modality_forward.6} parent=43 // pred_check
          %p352 = pneg %p103
        $region54: #{visual_modality_forward.6} parent=43 // pred_check_branch
          %354 = sbr.rel (%p352) target = $region56
        $region55: #{visual_modality_forward.6} parent=43 // pred_region
          %355 = dma.done %s348, 5376
        $region56: #{visual_modality_forward.6} parent=43 // pred_fallthru
          _
        %s356 = sand.u32 %s30, 1
        %s357 = scalar_lea.sflag [#allocation9], %s356
        %s358 = sand.u32 %s116, 1
        %s359 = smul.addr %s358, 336
        %s360 = scalar_lea.vmem [#allocation8], %s359
        // Predicated region
        $region57: #{visual_modality_forward.6} parent=43 // pred_check
          %p361 = pneg %p129
        $region58: #{visual_modality_forward.6} parent=43 // pred_check_branch
          %363 = sbr.rel (%p361) target = $region60
        $region59: #{visual_modality_forward.6} parent=43 // pred_region
          %364 = dma.done %s357, 5376
        $region60: #{visual_modality_forward.6} parent=43 // pred_fallthru
          _
        // Predicated region
        $region61: #{visual_modality_forward.6} parent=43 // pred_check
          %p365 = pneg %p150
        $region62: #{visual_modality_forward.6} parent=43 // pred_check_branch
          %367 = sbr.rel (%p365) target = $region64
        $region63: #{visual_modality_forward.6} parent=43 // pred_region
          %368 = dma.done [#allocation9], 96
        $region64: #{visual_modality_forward.6} parent=43 // pred_fallthru
          _
        // Predicated region
        $region65: #{visual_modality_forward.6} parent=43 // pred_check
          %p369 = pneg %p171
        $region66: #{visual_modality_forward.6} parent=43 // pred_check_branch
          %371 = sbr.rel (%p369) target = $region68
        $region67: #{visual_modality_forward.6} parent=43 // pred_region
          %372 = dma.done [#allocation12], 96
        $region68: #{visual_modality_forward.6} parent=43 // pred_fallthru
          _
        %s373 = sand.u32 %s38, 1
        %s374 = scalar_lea.sflag [#allocation3], %s373
        %s375 = sand.u32 %s38, 1
        %s376 = smul.addr %s375, 336
        %s377 = scalar_lea.vmem [#allocation2], %s376
        %p378 = pneg %p51
        %p379 = pneg %p48
        %s380 = sand.u32 %s30, 1
        %s381 = scalar_lea.sflag [#allocation6], %s380
        %s382 = sand.u32 %s64, 1
        %s383 = smul.addr %s382, 336
        %s384 = scalar_lea.vmem [#allocation5], %s383
        %p385 = pneg %p77
        %p386 = pneg %p74
        %s387 = sand.u32 %s30, 1
        %s388 = scalar_lea.sflag [#allocation6], %s387
        %s389 = sand.u32 %s90, 1
        %s390 = smul.addr %s389, 336
        %s391 = scalar_lea.vmem [#allocation7], %s390
        %p392 = pneg %p103
        %p393 = pneg %p100
        %s394 = sand.u32 %s30, 1
        %s395 = scalar_lea.sflag [#allocation9], %s394
        %s396 = sand.u32 %s116, 1
        %s397 = smul.addr %s396, 336
        %s398 = scalar_lea.vmem [#allocation8], %s397
        %p399 = pneg %p129
        %p400 = pneg %p126
        %p401 = pneg %p150
        %p402 = pneg %p147
        %p403 = pneg %p171
        %p404 = pneg %p168
        %p405 = pneg %p197
        %p406 = pneg %p194
        %s407 = sand.u32 %s184, 1
        %s408 = scalar_lea.sflag [#allocation4], %s407
        %s409 = sand.u32 %s184, 1
        %s410 = smul.addr %s409, 336
        %s411 = scalar_lea.vmem [#allocation13], %s410
        %v412 = vld [vmem:[#allocation10] sm:$0x3f]
        %v413 = vld [vmem:[#allocation11] sm:$0x3f]
        %v414 = vld [vmem:[%s333] sm:$0xff]
        %v415 = vld [vmem:[%s333 + $0x8] sm:$0xff]
        %v416 = vld [vmem:[%s333 + $0x10] sm:$0xff]
        %v417 = vld [vmem:[%s333 + $0x18] sm:$0xff]
        %v418 = vld [vmem:[%s333 + $0x20] sm:$0xff]
        %v419 = vld [vmem:[%s333 + $0x28] sm:$0xff]
        %v420 = vld [vmem:[%s333 + $0x30] sm:$0xff]
        %v421 = vld [vmem:[%s333 + $0x38] sm:$0xff]
        %v422 = vld [vmem:[%s333 + $0x40] sm:$0xff]
        %v423 = vld [vmem:[%s333 + $0x48] sm:$0xff]
        %v424 = vld [vmem:[%s333 + $0x50] sm:$0xff]
        %v425 = vld [vmem:[%s333 + $0x58] sm:$0xff]
        %v426 = vld [vmem:[%s333 + $0x60] sm:$0xff]
        %v427 = vld [vmem:[%s333 + $0x68] sm:$0xff]
        %v428 = vld [vmem:[%s333 + $0x70] sm:$0xff]
        %v429 = vld [vmem:[%s333 + $0x78] sm:$0xff]
        %v430 = vld [vmem:[%s333 + $0x80] sm:$0xff]
        %v431 = vld [vmem:[%s333 + $0x88] sm:$0xff]
        %v432 = vld [vmem:[%s333 + $0x90] sm:$0xff]
        %v433 = vld [vmem:[%s333 + $0x98] sm:$0xff]
        %v434 = vld [vmem:[%s333 + $0xa0] sm:$0xff]
        %v435 = vld [vmem:[%s333 + $0xa8] sm:$0xff]
        %v436 = vld [vmem:[%s333 + $0xb0] sm:$0xff]
        %v437 = vld [vmem:[%s333 + $0xb8] sm:$0xff]
        %v438 = vld [vmem:[%s333 + $0xc0] sm:$0xff]
        %v439 = vld [vmem:[%s333 + $0xc8] sm:$0xff]
        %v440 = vld [vmem:[%s333 + $0xd0] sm:$0xff]
        %v441 = vld [vmem:[%s333 + $0xd8] sm:$0xff]
        %v442 = vld [vmem:[%s333 + $0xe0] sm:$0xff]
        %v443 = vld [vmem:[%s333 + $0xe8] sm:$0xff]
        %v444 = vld [vmem:[%s333 + $0xf0] sm:$0xff]
        %v445 = vld [vmem:[%s333 + $0xf8] sm:$0xff]
        %v446 = vld [vmem:[%s333 + $0x100] sm:$0xff]
        %v447 = vld [vmem:[%s333 + $0x108] sm:$0xff]
        %v448 = vld [vmem:[%s333 + $0x110] sm:$0xff]
        %v449 = vld [vmem:[%s333 + $0x118] sm:$0xff]
        %v450 = vld [vmem:[%s333 + $0x120] sm:$0xff]
        %v451 = vld [vmem:[%s333 + $0x128] sm:$0xff]
        %v452 = vld [vmem:[%s333 + $0x130] sm:$0xff]
        %v453 = vld [vmem:[%s333 + $0x138] sm:$0xff]
        %v454 = vld [vmem:[%s333 + $0x140] sm:$0xff]
        %v455 = vld [vmem:[%s333 + $0x148] sm:$0xff]
        %v457 = vlaneseq
        %v458 = vshrl.u32 %v457, 7
        %v459 = vsub.s32 0, %v458
        %v460 = vrot.slane %v412, %v459
        %v461 = vlaneseq
        %v462 = vshrl.u32 %v461, 7
        %v463 = vsub.s32 1, %v462
        %v464 = vrot.slane %v412, %v463
        %v465 = vlaneseq
        %v466 = vshrl.u32 %v465, 7
        %v467 = vsub.s32 2, %v466
        %v468 = vrot.slane %v412, %v467
        %v469 = vlaneseq
        %v470 = vshrl.u32 %v469, 7
        %v471 = vsub.s32 3, %v470
        %v472 = vrot.slane %v412, %v471
        %v473 = vlaneseq
        %v474 = vshrl.u32 %v473, 7
        %v475 = vsub.s32 4, %v474
        %v476 = vrot.slane %v412, %v475
        %v477 = vlaneseq
        %v478 = vshrl.u32 %v477, 7
        %v479 = vsub.s32 5, %v478
        %v480 = vrot.slane %v412, %v479
        %481 = vrot.lane.b32.xlu0 %v460, 116
        %v482 = vpop.permute.xlu0 %481
        %483 = vrot.lane.b32.xlu0 %v464, 116
        %v484 = vpop.permute.xlu0 %483
        %485 = vrot.lane.b32.xlu0 %v468, 116
        %v486 = vpop.permute.xlu0 %485
        %487 = vrot.lane.b32.xlu0 %v472, 116
        %v488 = vpop.permute.xlu0 %487
        %489 = vrot.lane.b32.xlu0 %v476, 116
        %v490 = vpop.permute.xlu0 %489
        %491 = vrot.lane.b32.xlu0 %v480, 116
        %v492 = vpop.permute.xlu0 %491
        %vm493 = vcmask 949248
        %v494 = vsel %vm493, %v482, %v484
        %v495 = vsel %vm493, %v484, %v486
        %v496 = vsel %vm493, %v486, %v488
        %v497 = vsel %vm493, %v488, %v490
        %v498 = vsel %vm493, %v490, %v492
        %v505 = vmul.f32 %v414, %v494
        %v506 = vmul.f32 %v415, %v495
        %v507 = vmul.f32 %v416, %v496
        %v508 = vmul.f32 %v417, %v497
        %v509 = vmul.f32 %v418, %v498
        %v510 = vmul.f32 %v419, %v492
        %v511 = vmul.f32 %v420, %v494
        %v512 = vmul.f32 %v421, %v495
        %v513 = vmul.f32 %v422, %v496
        %v514 = vmul.f32 %v423, %v497
        %v515 = vmul.f32 %v424, %v498
        %v516 = vmul.f32 %v425, %v492
        %v517 = vmul.f32 %v426, %v494
        %v518 = vmul.f32 %v427, %v495
        %v519 = vmul.f32 %v428, %v496
        %v520 = vmul.f32 %v429, %v497
        %v521 = vmul.f32 %v430, %v498
        %v522 = vmul.f32 %v431, %v492
        %v523 = vmul.f32 %v432, %v494
        %v524 = vmul.f32 %v433, %v495
        %v525 = vmul.f32 %v434, %v496
        %v526 = vmul.f32 %v435, %v497
        %v527 = vmul.f32 %v436, %v498
        %v528 = vmul.f32 %v437, %v492
        %v529 = vmul.f32 %v438, %v494
        %v530 = vmul.f32 %v439, %v495
        %v531 = vmul.f32 %v440, %v496
        %v532 = vmul.f32 %v441, %v497
        %v533 = vmul.f32 %v442, %v498
        %v534 = vmul.f32 %v443, %v492
        %v535 = vmul.f32 %v444, %v494
        %v536 = vmul.f32 %v445, %v495
        %v537 = vmul.f32 %v446, %v496
        %v538 = vmul.f32 %v447, %v497
        %v539 = vmul.f32 %v448, %v498
        %v540 = vmul.f32 %v449, %v492
        %v541 = vmul.f32 %v450, %v494
        %v542 = vmul.f32 %v451, %v495
        %v543 = vmul.f32 %v452, %v496
        %v544 = vmul.f32 %v453, %v497
        %v545 = vmul.f32 %v454, %v498
        %v546 = vmul.f32 %v455, %v492
        %v548 = vlaneseq
        %v549 = vshrl.u32 %v548, 7
        %v550 = vsub.s32 0, %v549
        %v551 = vrot.slane %v413, %v550
        %v552 = vlaneseq
        %v553 = vshrl.u32 %v552, 7
        %v554 = vsub.s32 1, %v553
        %v555 = vrot.slane %v413, %v554
        %v556 = vlaneseq
        %v557 = vshrl.u32 %v556, 7
        %v558 = vsub.s32 2, %v557
        %v559 = vrot.slane %v413, %v558
        %v560 = vlaneseq
        %v561 = vshrl.u32 %v560, 7
        %v562 = vsub.s32 3, %v561
        %v563 = vrot.slane %v413, %v562
        %v564 = vlaneseq
        %v565 = vshrl.u32 %v564, 7
        %v566 = vsub.s32 4, %v565
        %v567 = vrot.slane %v413, %v566
        %v568 = vlaneseq
        %v569 = vshrl.u32 %v568, 7
        %v570 = vsub.s32 5, %v569
        %v571 = vrot.slane %v413, %v570
        %572 = vrot.lane.b32.xlu0 %v551, 116
        %v573 = vpop.permute.xlu0 %572
        %574 = vrot.lane.b32.xlu0 %v555, 116
        %v575 = vpop.permute.xlu0 %574
        %576 = vrot.lane.b32.xlu0 %v559, 116
        %v577 = vpop.permute.xlu0 %576
        %578 = vrot.lane.b32.xlu0 %v563, 116
        %v579 = vpop.permute.xlu0 %578
        %580 = vrot.lane.b32.xlu0 %v567, 116
        %v581 = vpop.permute.xlu0 %580
        %582 = vrot.lane.b32.xlu0 %v571, 116
        %v583 = vpop.permute.xlu0 %582
        %v584 = vsel %vm493, %v573, %v575
        %v585 = vsel %vm493, %v575, %v577
        %v586 = vsel %vm493, %v577, %v579
        %v587 = vsel %vm493, %v579, %v581
        %v588 = vsel %vm493, %v581, %v583
        %v595 = vadd.f32 %v505, %v584
        %v596 = vadd.f32 %v506, %v585
        %v597 = vadd.f32 %v507, %v586
        %v598 = vadd.f32 %v508, %v587
        %v599 = vadd.f32 %v509, %v588
        %v600 = vadd.f32 %v510, %v583
        %v601 = vadd.f32 %v511, %v584
        %v602 = vadd.f32 %v512, %v585
        %v603 = vadd.f32 %v513, %v586
        %v604 = vadd.f32 %v514, %v587
        %v605 = vadd.f32 %v515, %v588
        %v606 = vadd.f32 %v516, %v583
        %v607 = vadd.f32 %v517, %v584
        %v608 = vadd.f32 %v518, %v585
        %v609 = vadd.f32 %v519, %v586
        %v610 = vadd.f32 %v520, %v587
        %v611 = vadd.f32 %v521, %v588
        %v612 = vadd.f32 %v522, %v583
        %v613 = vadd.f32 %v523, %v584
        %v614 = vadd.f32 %v524, %v585
        %v615 = vadd.f32 %v525, %v586
        %v616 = vadd.f32 %v526, %v587
        %v617 = vadd.f32 %v527, %v588
        %v618 = vadd.f32 %v528, %v583
        %v619 = vadd.f32 %v529, %v584
        %v620 = vadd.f32 %v530, %v585
        %v621 = vadd.f32 %v531, %v586
        %v622 = vadd.f32 %v532, %v587
        %v623 = vadd.f32 %v533, %v588
        %v624 = vadd.f32 %v534, %v583
        %v625 = vadd.f32 %v535, %v584
        %v626 = vadd.f32 %v536, %v585
        %v627 = vadd.f32 %v537, %v586
        %v628 = vadd.f32 %v538, %v587
        %v629 = vadd.f32 %v539, %v588
        %v630 = vadd.f32 %v540, %v583
        %v631 = vadd.f32 %v541, %v584
        %v632 = vadd.f32 %v542, %v585
        %v633 = vadd.f32 %v543, %v586
        %v634 = vadd.f32 %v544, %v587
        %v635 = vadd.f32 %v545, %v588
        %v636 = vadd.f32 %v546, %v583
        %v637 = vmax.f32 %v595, 0.0
        %v638 = vmax.f32 %v596, 0.0
        %v639 = vmax.f32 %v597, 0.0
        %v640 = vmax.f32 %v598, 0.0
        %v641 = vmax.f32 %v599, 0.0
        %v642 = vmax.f32 %v600, 0.0
        %v643 = vmax.f32 %v601, 0.0
        %v644 = vmax.f32 %v602, 0.0
        %v645 = vmax.f32 %v603, 0.0
        %v646 = vmax.f32 %v604, 0.0
        %v647 = vmax.f32 %v605, 0.0
        %v648 = vmax.f32 %v606, 0.0
        %v649 = vmax.f32 %v607, 0.0
        %v650 = vmax.f32 %v608, 0.0
        %v651 = vmax.f32 %v609, 0.0
        %v652 = vmax.f32 %v610, 0.0
        %v653 = vmax.f32 %v611, 0.0
        %v654 = vmax.f32 %v612, 0.0
        %v655 = vmax.f32 %v613, 0.0
        %v656 = vmax.f32 %v614, 0.0
        %v657 = vmax.f32 %v615, 0.0
        %v658 = vmax.f32 %v616, 0.0
        %v659 = vmax.f32 %v617, 0.0
        %v660 = vmax.f32 %v618, 0.0
        %v661 = vmax.f32 %v619, 0.0
        %v662 = vmax.f32 %v620, 0.0
        %v663 = vmax.f32 %v621, 0.0
        %v664 = vmax.f32 %v622, 0.0
        %v665 = vmax.f32 %v623, 0.0
        %v666 = vmax.f32 %v624, 0.0
        %v667 = vmax.f32 %v625, 0.0
        %v668 = vmax.f32 %v626, 0.0
        %v669 = vmax.f32 %v627, 0.0
        %v670 = vmax.f32 %v628, 0.0
        %v671 = vmax.f32 %v629, 0.0
        %v672 = vmax.f32 %v630, 0.0
        %v673 = vmax.f32 %v631, 0.0
        %v674 = vmax.f32 %v632, 0.0
        %v675 = vmax.f32 %v633, 0.0
        %v676 = vmax.f32 %v634, 0.0
        %v677 = vmax.f32 %v635, 0.0
        %v678 = vmax.f32 %v636, 0.0
        %v679 = vld [vmem:[%s351] sm:$0xff]
        %v680 = vld [vmem:[%s351 + $0x8] sm:$0xff]
        %v681 = vld [vmem:[%s351 + $0x10] sm:$0xff]
        %v682 = vld [vmem:[%s351 + $0x18] sm:$0xff]
        %v683 = vld [vmem:[%s351 + $0x20] sm:$0xff]
        %v684 = vld [vmem:[%s351 + $0x28] sm:$0xff]
        %v685 = vld [vmem:[%s351 + $0x30] sm:$0xff]
        %v686 = vld [vmem:[%s351 + $0x38] sm:$0xff]
        %v687 = vld [vmem:[%s351 + $0x40] sm:$0xff]
        %v688 = vld [vmem:[%s351 + $0x48] sm:$0xff]
        %v689 = vld [vmem:[%s351 + $0x50] sm:$0xff]
        %v690 = vld [vmem:[%s351 + $0x58] sm:$0xff]
        %v691 = vld [vmem:[%s351 + $0x60] sm:$0xff]
        %v692 = vld [vmem:[%s351 + $0x68] sm:$0xff]
        %v693 = vld [vmem:[%s351 + $0x70] sm:$0xff]
        %v694 = vld [vmem:[%s351 + $0x78] sm:$0xff]
        %v695 = vld [vmem:[%s351 + $0x80] sm:$0xff]
        %v696 = vld [vmem:[%s351 + $0x88] sm:$0xff]
        %v697 = vld [vmem:[%s351 + $0x90] sm:$0xff]
        %v698 = vld [vmem:[%s351 + $0x98] sm:$0xff]
        %v699 = vld [vmem:[%s351 + $0xa0] sm:$0xff]
        %v700 = vld [vmem:[%s351 + $0xa8] sm:$0xff]
        %v701 = vld [vmem:[%s351 + $0xb0] sm:$0xff]
        %v702 = vld [vmem:[%s351 + $0xb8] sm:$0xff]
        %v703 = vld [vmem:[%s351 + $0xc0] sm:$0xff]
        %v704 = vld [vmem:[%s351 + $0xc8] sm:$0xff]
        %v705 = vld [vmem:[%s351 + $0xd0] sm:$0xff]
        %v706 = vld [vmem:[%s351 + $0xd8] sm:$0xff]
        %v707 = vld [vmem:[%s351 + $0xe0] sm:$0xff]
        %v708 = vld [vmem:[%s351 + $0xe8] sm:$0xff]
        %v709 = vld [vmem:[%s351 + $0xf0] sm:$0xff]
        %v710 = vld [vmem:[%s351 + $0xf8] sm:$0xff]
        %v711 = vld [vmem:[%s351 + $0x100] sm:$0xff]
        %v712 = vld [vmem:[%s351 + $0x108] sm:$0xff]
        %v713 = vld [vmem:[%s351 + $0x110] sm:$0xff]
        %v714 = vld [vmem:[%s351 + $0x118] sm:$0xff]
        %v715 = vld [vmem:[%s351 + $0x120] sm:$0xff]
        %v716 = vld [vmem:[%s351 + $0x128] sm:$0xff]
        %v717 = vld [vmem:[%s351 + $0x130] sm:$0xff]
        %v718 = vld [vmem:[%s351 + $0x138] sm:$0xff]
        %v719 = vld [vmem:[%s351 + $0x140] sm:$0xff]
        %v720 = vld [vmem:[%s351 + $0x148] sm:$0xff]
        %v721 = vmul.f32 %v679, %v494
        %v722 = vmul.f32 %v680, %v495
        %v723 = vmul.f32 %v681, %v496
        %v724 = vmul.f32 %v682, %v497
        %v725 = vmul.f32 %v683, %v498
        %v726 = vmul.f32 %v684, %v492
        %v727 = vmul.f32 %v685, %v494
        %v728 = vmul.f32 %v686, %v495
        %v729 = vmul.f32 %v687, %v496
        %v730 = vmul.f32 %v688, %v497
        %v731 = vmul.f32 %v689, %v498
        %v732 = vmul.f32 %v690, %v492
        %v733 = vmul.f32 %v691, %v494
        %v734 = vmul.f32 %v692, %v495
        %v735 = vmul.f32 %v693, %v496
        %v736 = vmul.f32 %v694, %v497
        %v737 = vmul.f32 %v695, %v498
        %v738 = vmul.f32 %v696, %v492
        %v739 = vmul.f32 %v697, %v494
        %v740 = vmul.f32 %v698, %v495
        %v741 = vmul.f32 %v699, %v496
        %v742 = vmul.f32 %v700, %v497
        %v743 = vmul.f32 %v701, %v498
        %v744 = vmul.f32 %v702, %v492
        %v745 = vmul.f32 %v703, %v494
        %v746 = vmul.f32 %v704, %v495
        %v747 = vmul.f32 %v705, %v496
        %v748 = vmul.f32 %v706, %v497
        %v749 = vmul.f32 %v707, %v498
        %v750 = vmul.f32 %v708, %v492
        %v751 = vmul.f32 %v709, %v494
        %v752 = vmul.f32 %v710, %v495
        %v753 = vmul.f32 %v711, %v496
        %v754 = vmul.f32 %v712, %v497
        %v755 = vmul.f32 %v713, %v498
        %v756 = vmul.f32 %v714, %v492
        %v757 = vmul.f32 %v715, %v494
        %v758 = vmul.f32 %v716, %v495
        %v759 = vmul.f32 %v717, %v496
        %v760 = vmul.f32 %v718, %v497
        %v761 = vmul.f32 %v719, %v498
        %v762 = vmul.f32 %v720, %v492
        %v763 = vadd.f32 %v721, %v584
        %v764 = vadd.f32 %v722, %v585
        %v765 = vadd.f32 %v723, %v586
        %v766 = vadd.f32 %v724, %v587
        %v767 = vadd.f32 %v725, %v588
        %v768 = vadd.f32 %v726, %v583
        %v769 = vadd.f32 %v727, %v584
        %v770 = vadd.f32 %v728, %v585
        %v771 = vadd.f32 %v729, %v586
        %v772 = vadd.f32 %v730, %v587
        %v773 = vadd.f32 %v731, %v588
        %v774 = vadd.f32 %v732, %v583
        %v775 = vadd.f32 %v733, %v584
        %v776 = vadd.f32 %v734, %v585
        %v777 = vadd.f32 %v735, %v586
        %v778 = vadd.f32 %v736, %v587
        %v779 = vadd.f32 %v737, %v588
        %v780 = vadd.f32 %v738, %v583
        %v781 = vadd.f32 %v739, %v584
        %v782 = vadd.f32 %v740, %v585
        %v783 = vadd.f32 %v741, %v586
        %v784 = vadd.f32 %v742, %v587
        %v785 = vadd.f32 %v743, %v588
        %v786 = vadd.f32 %v744, %v583
        %v787 = vadd.f32 %v745, %v584
        %v788 = vadd.f32 %v746, %v585
        %v789 = vadd.f32 %v747, %v586
        %v790 = vadd.f32 %v748, %v587
        %v791 = vadd.f32 %v749, %v588
        %v792 = vadd.f32 %v750, %v583
        %v793 = vadd.f32 %v751, %v584
        %v794 = vadd.f32 %v752, %v585
        %v795 = vadd.f32 %v753, %v586
        %v796 = vadd.f32 %v754, %v587
        %v797 = vadd.f32 %v755, %v588
        %v798 = vadd.f32 %v756, %v583
        %v799 = vadd.f32 %v757, %v584
        %v800 = vadd.f32 %v758, %v585
        %v801 = vadd.f32 %v759, %v586
        %v802 = vadd.f32 %v760, %v587
        %v803 = vadd.f32 %v761, %v588
        %v804 = vadd.f32 %v762, %v583
        %v805 = vmax.f32 %v763, 0.0
        %v806 = vmax.f32 %v764, 0.0
        %v807 = vmax.f32 %v765, 0.0
        %v808 = vmax.f32 %v766, 0.0
        %v809 = vmax.f32 %v767, 0.0
        %v810 = vmax.f32 %v768, 0.0
        %v811 = vmax.f32 %v769, 0.0
        %v812 = vmax.f32 %v770, 0.0
        %v813 = vmax.f32 %v771, 0.0
        %v814 = vmax.f32 %v772, 0.0
        %v815 = vmax.f32 %v773, 0.0
        %v816 = vmax.f32 %v774, 0.0
        %v817 = vmax.f32 %v775, 0.0
        %v818 = vmax.f32 %v776, 0.0
        %v819 = vmax.f32 %v777, 0.0
        %v820 = vmax.f32 %v778, 0.0
        %v821 = vmax.f32 %v779, 0.0
        %v822 = vmax.f32 %v780, 0.0
        %v823 = vmax.f32 %v781, 0.0
        %v824 = vmax.f32 %v782, 0.0
        %v825 = vmax.f32 %v783, 0.0
        %v826 = vmax.f32 %v784, 0.0
        %v827 = vmax.f32 %v785, 0.0
        %v828 = vmax.f32 %v786, 0.0
        %v829 = vmax.f32 %v787, 0.0
        %v830 = vmax.f32 %v788, 0.0
        %v831 = vmax.f32 %v789, 0.0
        %v832 = vmax.f32 %v790, 0.0
        %v833 = vmax.f32 %v791, 0.0
        %v834 = vmax.f32 %v792, 0.0
        %v835 = vmax.f32 %v793, 0.0
        %v836 = vmax.f32 %v794, 0.0
        %v837 = vmax.f32 %v795, 0.0
        %v838 = vmax.f32 %v796, 0.0
        %v839 = vmax.f32 %v797, 0.0
        %v840 = vmax.f32 %v798, 0.0
        %v841 = vmax.f32 %v799, 0.0
        %v842 = vmax.f32 %v800, 0.0
        %v843 = vmax.f32 %v801, 0.0
        %v844 = vmax.f32 %v802, 0.0
        %v845 = vmax.f32 %v803, 0.0
        %v846 = vmax.f32 %v804, 0.0
        %v847 = vld [vmem:[%s342] sm:$0xff]
        %v848 = vld [vmem:[%s342 + $0x8] sm:$0xff]
        %v849 = vld [vmem:[%s342 + $0x10] sm:$0xff]
        %v850 = vld [vmem:[%s342 + $0x18] sm:$0xff]
        %v851 = vld [vmem:[%s342 + $0x20] sm:$0xff]
        %v852 = vld [vmem:[%s342 + $0x28] sm:$0xff]
        %v853 = vld [vmem:[%s342 + $0x30] sm:$0xff]
        %v854 = vld [vmem:[%s342 + $0x38] sm:$0xff]
        %v855 = vld [vmem:[%s342 + $0x40] sm:$0xff]
        %v856 = vld [vmem:[%s342 + $0x48] sm:$0xff]
        %v857 = vld [vmem:[%s342 + $0x50] sm:$0xff]
        %v858 = vld [vmem:[%s342 + $0x58] sm:$0xff]
        %v859 = vld [vmem:[%s342 + $0x60] sm:$0xff]
        %v860 = vld [vmem:[%s342 + $0x68] sm:$0xff]
        %v861 = vld [vmem:[%s342 + $0x70] sm:$0xff]
        %v862 = vld [vmem:[%s342 + $0x78] sm:$0xff]
        %v863 = vld [vmem:[%s342 + $0x80] sm:$0xff]
        %v864 = vld [vmem:[%s342 + $0x88] sm:$0xff]
        %v865 = vld [vmem:[%s342 + $0x90] sm:$0xff]
        %v866 = vld [vmem:[%s342 + $0x98] sm:$0xff]
        %v867 = vld [vmem:[%s342 + $0xa0] sm:$0xff]
        %v868 = vld [vmem:[%s342 + $0xa8] sm:$0xff]
        %v869 = vld [vmem:[%s342 + $0xb0] sm:$0xff]
        %v870 = vld [vmem:[%s342 + $0xb8] sm:$0xff]
        %v871 = vld [vmem:[%s342 + $0xc0] sm:$0xff]
        %v872 = vld [vmem:[%s342 + $0xc8] sm:$0xff]
        %v873 = vld [vmem:[%s342 + $0xd0] sm:$0xff]
        %v874 = vld [vmem:[%s342 + $0xd8] sm:$0xff]
        %v875 = vld [vmem:[%s342 + $0xe0] sm:$0xff]
        %v876 = vld [vmem:[%s342 + $0xe8] sm:$0xff]
        %v877 = vld [vmem:[%s342 + $0xf0] sm:$0xff]
        %v878 = vld [vmem:[%s342 + $0xf8] sm:$0xff]
        %v879 = vld [vmem:[%s342 + $0x100] sm:$0xff]
        %v880 = vld [vmem:[%s342 + $0x108] sm:$0xff]
        %v881 = vld [vmem:[%s342 + $0x110] sm:$0xff]
        %v882 = vld [vmem:[%s342 + $0x118] sm:$0xff]
        %v883 = vld [vmem:[%s342 + $0x120] sm:$0xff]
        %v884 = vld [vmem:[%s342 + $0x128] sm:$0xff]
        %v885 = vld [vmem:[%s342 + $0x130] sm:$0xff]
        %v886 = vld [vmem:[%s342 + $0x138] sm:$0xff]
        %v887 = vld [vmem:[%s342 + $0x140] sm:$0xff]
        %v888 = vld [vmem:[%s342 + $0x148] sm:$0xff]
        %v895 = vmul.f32 %v847, %v460
        %v896 = vmul.f32 %v848, %v464
        %v897 = vmul.f32 %v849, %v468
        %v898 = vmul.f32 %v850, %v472
        %v899 = vmul.f32 %v851, %v476
        %v900 = vmul.f32 %v852, %v480
        %v901 = vmul.f32 %v853, %v460
        %v902 = vmul.f32 %v854, %v464
        %v903 = vmul.f32 %v855, %v468
        %v904 = vmul.f32 %v856, %v472
        %v905 = vmul.f32 %v857, %v476
        %v906 = vmul.f32 %v858, %v480
        %v907 = vmul.f32 %v859, %v460
        %v908 = vmul.f32 %v860, %v464
        %v909 = vmul.f32 %v861, %v468
        %v910 = vmul.f32 %v862, %v472
        %v911 = vmul.f32 %v863, %v476
        %v912 = vmul.f32 %v864, %v480
        %v913 = vmul.f32 %v865, %v460
        %v914 = vmul.f32 %v866, %v464
        %v915 = vmul.f32 %v867, %v468
        %v916 = vmul.f32 %v868, %v472
        %v917 = vmul.f32 %v869, %v476
        %v918 = vmul.f32 %v870, %v480
        %v919 = vmul.f32 %v871, %v460
        %v920 = vmul.f32 %v872, %v464
        %v921 = vmul.f32 %v873, %v468
        %v922 = vmul.f32 %v874, %v472
        %v923 = vmul.f32 %v875, %v476
        %v924 = vmul.f32 %v876, %v480
        %v925 = vmul.f32 %v877, %v460
        %v926 = vmul.f32 %v878, %v464
        %v927 = vmul.f32 %v879, %v468
        %v928 = vmul.f32 %v880, %v472
        %v929 = vmul.f32 %v881, %v476
        %v930 = vmul.f32 %v882, %v480
        %v931 = vmul.f32 %v883, %v460
        %v932 = vmul.f32 %v884, %v464
        %v933 = vmul.f32 %v885, %v468
        %v934 = vmul.f32 %v886, %v472
        %v935 = vmul.f32 %v887, %v476
        %v936 = vmul.f32 %v888, %v480
        %v943 = vadd.f32 %v895, %v551
        %v944 = vadd.f32 %v896, %v555
        %v945 = vadd.f32 %v897, %v559
        %v946 = vadd.f32 %v898, %v563
        %v947 = vadd.f32 %v899, %v567
        %v948 = vadd.f32 %v900, %v571
        %v949 = vadd.f32 %v901, %v551
        %v950 = vadd.f32 %v902, %v555
        %v951 = vadd.f32 %v903, %v559
        %v952 = vadd.f32 %v904, %v563
        %v953 = vadd.f32 %v905, %v567
        %v954 = vadd.f32 %v906, %v571
        %v955 = vadd.f32 %v907, %v551
        %v956 = vadd.f32 %v908, %v555
        %v957 = vadd.f32 %v909, %v559
        %v958 = vadd.f32 %v910, %v563
        %v959 = vadd.f32 %v911, %v567
        %v960 = vadd.f32 %v912, %v571
        %v961 = vadd.f32 %v913, %v551
        %v962 = vadd.f32 %v914, %v555
        %v963 = vadd.f32 %v915, %v559
        %v964 = vadd.f32 %v916, %v563
        %v965 = vadd.f32 %v917, %v567
        %v966 = vadd.f32 %v918, %v571
        %v967 = vadd.f32 %v919, %v551
        %v968 = vadd.f32 %v920, %v555
        %v969 = vadd.f32 %v921, %v559
        %v970 = vadd.f32 %v922, %v563
        %v971 = vadd.f32 %v923, %v567
        %v972 = vadd.f32 %v924, %v571
        %v973 = vadd.f32 %v925, %v551
        %v974 = vadd.f32 %v926, %v555
        %v975 = vadd.f32 %v927, %v559
        %v976 = vadd.f32 %v928, %v563
        %v977 = vadd.f32 %v929, %v567
        %v978 = vadd.f32 %v930, %v571
        %v979 = vadd.f32 %v931, %v551
        %v980 = vadd.f32 %v932, %v555
        %v981 = vadd.f32 %v933, %v559
        %v982 = vadd.f32 %v934, %v563
        %v983 = vadd.f32 %v935, %v567
        %v984 = vadd.f32 %v936, %v571
        %v985 = vmax.f32 %v943, 0.0
        %v986 = vmax.f32 %v944, 0.0
        %v987 = vmax.f32 %v945, 0.0
        %v988 = vmax.f32 %v946, 0.0
        %v989 = vmax.f32 %v947, 0.0
        %v990 = vmax.f32 %v948, 0.0
        %v991 = vmax.f32 %v949, 0.0
        %v992 = vmax.f32 %v950, 0.0
        %v993 = vmax.f32 %v951, 0.0
        %v994 = vmax.f32 %v952, 0.0
        %v995 = vmax.f32 %v953, 0.0
        %v996 = vmax.f32 %v954, 0.0
        %v997 = vmax.f32 %v955, 0.0
        %v998 = vmax.f32 %v956, 0.0
        %v999 = vmax.f32 %v957, 0.0
        %v1000 = vmax.f32 %v958, 0.0
        %v1001 = vmax.f32 %v959, 0.0
        %v1002 = vmax.f32 %v960, 0.0
        %v1003 = vmax.f32 %v961, 0.0
        %v1004 = vmax.f32 %v962, 0.0
        %v1005 = vmax.f32 %v963, 0.0
        %v1006 = vmax.f32 %v964, 0.0
        %v1007 = vmax.f32 %v965, 0.0
        %v1008 = vmax.f32 %v966, 0.0
        %v1009 = vmax.f32 %v967, 0.0
        %v1010 = vmax.f32 %v968, 0.0
        %v1011 = vmax.f32 %v969, 0.0
        %v1012 = vmax.f32 %v970, 0.0
        %v1013 = vmax.f32 %v971, 0.0
        %v1014 = vmax.f32 %v972, 0.0
        %v1015 = vmax.f32 %v973, 0.0
        %v1016 = vmax.f32 %v974, 0.0
        %v1017 = vmax.f32 %v975, 0.0
        %v1018 = vmax.f32 %v976, 0.0
        %v1019 = vmax.f32 %v977, 0.0
        %v1020 = vmax.f32 %v978, 0.0
        %v1021 = vmax.f32 %v979, 0.0
        %v1022 = vmax.f32 %v980, 0.0
        %v1023 = vmax.f32 %v981, 0.0
        %v1024 = vmax.f32 %v982, 0.0
        %v1025 = vmax.f32 %v983, 0.0
        %v1026 = vmax.f32 %v984, 0.0
        %v1027 = vld [vmem:[%s360] sm:$0xff]
        %v1028 = vld [vmem:[%s360 + $0x8] sm:$0xff]
        %v1029 = vld [vmem:[%s360 + $0x10] sm:$0xff]
        %v1030 = vld [vmem:[%s360 + $0x18] sm:$0xff]
        %v1031 = vld [vmem:[%s360 + $0x20] sm:$0xff]
        %v1032 = vld [vmem:[%s360 + $0x28] sm:$0xff]
        %v1033 = vld [vmem:[%s360 + $0x30] sm:$0xff]
        %v1034 = vld [vmem:[%s360 + $0x38] sm:$0xff]
        %v1035 = vld [vmem:[%s360 + $0x40] sm:$0xff]
        %v1036 = vld [vmem:[%s360 + $0x48] sm:$0xff]
        %v1037 = vld [vmem:[%s360 + $0x50] sm:$0xff]
        %v1038 = vld [vmem:[%s360 + $0x58] sm:$0xff]
        %v1039 = vld [vmem:[%s360 + $0x60] sm:$0xff]
        %v1040 = vld [vmem:[%s360 + $0x68] sm:$0xff]
        %v1041 = vld [vmem:[%s360 + $0x70] sm:$0xff]
        %v1042 = vld [vmem:[%s360 + $0x78] sm:$0xff]
        %v1043 = vld [vmem:[%s360 + $0x80] sm:$0xff]
        %v1044 = vld [vmem:[%s360 + $0x88] sm:$0xff]
        %v1045 = vld [vmem:[%s360 + $0x90] sm:$0xff]
        %v1046 = vld [vmem:[%s360 + $0x98] sm:$0xff]
        %v1047 = vld [vmem:[%s360 + $0xa0] sm:$0xff]
        %v1048 = vld [vmem:[%s360 + $0xa8] sm:$0xff]
        %v1049 = vld [vmem:[%s360 + $0xb0] sm:$0xff]
        %v1050 = vld [vmem:[%s360 + $0xb8] sm:$0xff]
        %v1051 = vld [vmem:[%s360 + $0xc0] sm:$0xff]
        %v1052 = vld [vmem:[%s360 + $0xc8] sm:$0xff]
        %v1053 = vld [vmem:[%s360 + $0xd0] sm:$0xff]
        %v1054 = vld [vmem:[%s360 + $0xd8] sm:$0xff]
        %v1055 = vld [vmem:[%s360 + $0xe0] sm:$0xff]
        %v1056 = vld [vmem:[%s360 + $0xe8] sm:$0xff]
        %v1057 = vld [vmem:[%s360 + $0xf0] sm:$0xff]
        %v1058 = vld [vmem:[%s360 + $0xf8] sm:$0xff]
        %v1059 = vld [vmem:[%s360 + $0x100] sm:$0xff]
        %v1060 = vld [vmem:[%s360 + $0x108] sm:$0xff]
        %v1061 = vld [vmem:[%s360 + $0x110] sm:$0xff]
        %v1062 = vld [vmem:[%s360 + $0x118] sm:$0xff]
        %v1063 = vld [vmem:[%s360 + $0x120] sm:$0xff]
        %v1064 = vld [vmem:[%s360 + $0x128] sm:$0xff]
        %v1065 = vld [vmem:[%s360 + $0x130] sm:$0xff]
        %v1066 = vld [vmem:[%s360 + $0x138] sm:$0xff]
        %v1067 = vld [vmem:[%s360 + $0x140] sm:$0xff]
        %v1068 = vld [vmem:[%s360 + $0x148] sm:$0xff]
        %v1069 = vmul.f32 %v1027, %v460
        %v1070 = vmul.f32 %v1028, %v464
        %v1071 = vmul.f32 %v1029, %v468
        %v1072 = vmul.f32 %v1030, %v472
        %v1073 = vmul.f32 %v1031, %v476
        %v1074 = vmul.f32 %v1032, %v480
        %v1075 = vmul.f32 %v1033, %v460
        %v1076 = vmul.f32 %v1034, %v464
        %v1077 = vmul.f32 %v1035, %v468
        %v1078 = vmul.f32 %v1036, %v472
        %v1079 = vmul.f32 %v1037, %v476
        %v1080 = vmul.f32 %v1038, %v480
        %v1081 = vmul.f32 %v1039, %v460
        %v1082 = vmul.f32 %v1040, %v464
        %v1083 = vmul.f32 %v1041, %v468
        %v1084 = vmul.f32 %v1042, %v472
        %v1085 = vmul.f32 %v1043, %v476
        %v1086 = vmul.f32 %v1044, %v480
        %v1087 = vmul.f32 %v1045, %v460
        %v1088 = vmul.f32 %v1046, %v464
        %v1089 = vmul.f32 %v1047, %v468
        %v1090 = vmul.f32 %v1048, %v472
        %v1091 = vmul.f32 %v1049, %v476
        %v1092 = vmul.f32 %v1050, %v480
        %v1093 = vmul.f32 %v1051, %v460
        %v1094 = vmul.f32 %v1052, %v464
        %v1095 = vmul.f32 %v1053, %v468
        %v1096 = vmul.f32 %v1054, %v472
        %v1097 = vmul.f32 %v1055, %v476
        %v1098 = vmul.f32 %v1056, %v480
        %v1099 = vmul.f32 %v1057, %v460
        %v1100 = vmul.f32 %v1058, %v464
        %v1101 = vmul.f32 %v1059, %v468
        %v1102 = vmul.f32 %v1060, %v472
        %v1103 = vmul.f32 %v1061, %v476
        %v1104 = vmul.f32 %v1062, %v480
        %v1105 = vmul.f32 %v1063, %v460
        %v1106 = vmul.f32 %v1064, %v464
        %v1107 = vmul.f32 %v1065, %v468
        %v1108 = vmul.f32 %v1066, %v472
        %v1109 = vmul.f32 %v1067, %v476
        %v1110 = vmul.f32 %v1068, %v480
        %v1111 = vadd.f32 %v1069, %v551
        %v1112 = vadd.f32 %v1070, %v555
        %v1113 = vadd.f32 %v1071, %v559
        %v1114 = vadd.f32 %v1072, %v563
        %v1115 = vadd.f32 %v1073, %v567
        %v1116 = vadd.f32 %v1074, %v571
        %v1117 = vadd.f32 %v1075, %v551
        %v1118 = vadd.f32 %v1076, %v555
        %v1119 = vadd.f32 %v1077, %v559
        %v1120 = vadd.f32 %v1078, %v563
        %v1121 = vadd.f32 %v1079, %v567
        %v1122 = vadd.f32 %v1080, %v571
        %v1123 = vadd.f32 %v1081, %v551
        %v1124 = vadd.f32 %v1082, %v555
        %v1125 = vadd.f32 %v1083, %v559
        %v1126 = vadd.f32 %v1084, %v563
        %v1127 = vadd.f32 %v1085, %v567
        %v1128 = vadd.f32 %v1086, %v571
        %v1129 = vadd.f32 %v1087, %v551
        %v1130 = vadd.f32 %v1088, %v555
        %v1131 = vadd.f32 %v1089, %v559
        %v1132 = vadd.f32 %v1090, %v563
        %v1133 = vadd.f32 %v1091, %v567
        %v1134 = vadd.f32 %v1092, %v571
        %v1135 = vadd.f32 %v1093, %v551
        %v1136 = vadd.f32 %v1094, %v555
        %v1137 = vadd.f32 %v1095, %v559
        %v1138 = vadd.f32 %v1096, %v563
        %v1139 = vadd.f32 %v1097, %v567
        %v1140 = vadd.f32 %v1098, %v571
        %v1141 = vadd.f32 %v1099, %v551
        %v1142 = vadd.f32 %v1100, %v555
        %v1143 = vadd.f32 %v1101, %v559
        %v1144 = vadd.f32 %v1102, %v563
        %v1145 = vadd.f32 %v1103, %v567
        %v1146 = vadd.f32 %v1104, %v571
        %v1147 = vadd.f32 %v1105, %v551
        %v1148 = vadd.f32 %v1106, %v555
        %v1149 = vadd.f32 %v1107, %v559
        %v1150 = vadd.f32 %v1108, %v563
        %v1151 = vadd.f32 %v1109, %v567
        %v1152 = vadd.f32 %v1110, %v571
        %v1153 = vmax.f32 %v1111, 0.0
        %v1154 = vmax.f32 %v1112, 0.0
        %v1155 = vmax.f32 %v1113, 0.0
        %v1156 = vmax.f32 %v1114, 0.0
        %v1157 = vmax.f32 %v1115, 0.0
        %v1158 = vmax.f32 %v1116, 0.0
        %v1159 = vmax.f32 %v1117, 0.0
        %v1160 = vmax.f32 %v1118, 0.0
        %v1161 = vmax.f32 %v1119, 0.0
        %v1162 = vmax.f32 %v1120, 0.0
        %v1163 = vmax.f32 %v1121, 0.0
        %v1164 = vmax.f32 %v1122, 0.0
        %v1165 = vmax.f32 %v1123, 0.0
        %v1166 = vmax.f32 %v1124, 0.0
        %v1167 = vmax.f32 %v1125, 0.0
        %v1168 = vmax.f32 %v1126, 0.0
        %v1169 = vmax.f32 %v1127, 0.0
        %v1170 = vmax.f32 %v1128, 0.0
        %v1171 = vmax.f32 %v1129, 0.0
        %v1172 = vmax.f32 %v1130, 0.0
        %v1173 = vmax.f32 %v1131, 0.0
        %v1174 = vmax.f32 %v1132, 0.0
        %v1175 = vmax.f32 %v1133, 0.0
        %v1176 = vmax.f32 %v1134, 0.0
        %v1177 = vmax.f32 %v1135, 0.0
        %v1178 = vmax.f32 %v1136, 0.0
        %v1179 = vmax.f32 %v1137, 0.0
        %v1180 = vmax.f32 %v1138, 0.0
        %v1181 = vmax.f32 %v1139, 0.0
        %v1182 = vmax.f32 %v1140, 0.0
        %v1183 = vmax.f32 %v1141, 0.0
        %v1184 = vmax.f32 %v1142, 0.0
        %v1185 = vmax.f32 %v1143, 0.0
        %v1186 = vmax.f32 %v1144, 0.0
        %v1187 = vmax.f32 %v1145, 0.0
        %v1188 = vmax.f32 %v1146, 0.0
        %v1189 = vmax.f32 %v1147, 0.0
        %v1190 = vmax.f32 %v1148, 0.0
        %v1191 = vmax.f32 %v1149, 0.0
        %v1192 = vmax.f32 %v1150, 0.0
        %v1193 = vmax.f32 %v1151, 0.0
        %v1194 = vmax.f32 %v1152, 0.0
        %1237 = vrot.lane.b32.xlu0 %v985, 116
        %v1238 = vpop.permute.xlu0 %1237
        %1239 = vrot.lane.b32.xlu0 %v986, 116
        %v1240 = vpop.permute.xlu0 %1239
        %1241 = vrot.lane.b32.xlu0 %v987, 116
        %v1242 = vpop.permute.xlu0 %1241
        %1243 = vrot.lane.b32.xlu0 %v988, 116
        %v1244 = vpop.permute.xlu0 %1243
        %1245 = vrot.lane.b32.xlu0 %v989, 116
        %v1246 = vpop.permute.xlu0 %1245
        %1247 = vrot.lane.b32.xlu0 %v990, 116
        %v1248 = vpop.permute.xlu0 %1247
        %1249 = vrot.lane.b32.xlu0 %v991, 116
        %v1250 = vpop.permute.xlu0 %1249
        %1251 = vrot.lane.b32.xlu0 %v992, 116
        %v1252 = vpop.permute.xlu0 %1251
        %1253 = vrot.lane.b32.xlu0 %v993, 116
        %v1254 = vpop.permute.xlu0 %1253
        %1255 = vrot.lane.b32.xlu0 %v994, 116
        %v1256 = vpop.permute.xlu0 %1255
        %1257 = vrot.lane.b32.xlu0 %v995, 116
        %v1258 = vpop.permute.xlu0 %1257
        %1259 = vrot.lane.b32.xlu0 %v996, 116
        %v1260 = vpop.permute.xlu0 %1259
        %1261 = vrot.lane.b32.xlu0 %v997, 116
        %v1262 = vpop.permute.xlu0 %1261
        %1263 = vrot.lane.b32.xlu0 %v998, 116
        %v1264 = vpop.permute.xlu0 %1263
        %1265 = vrot.lane.b32.xlu0 %v999, 116
        %v1266 = vpop.permute.xlu0 %1265
        %1267 = vrot.lane.b32.xlu0 %v1000, 116
        %v1268 = vpop.permute.xlu0 %1267
        %1269 = vrot.lane.b32.xlu0 %v1001, 116
        %v1270 = vpop.permute.xlu0 %1269
        %1271 = vrot.lane.b32.xlu0 %v1002, 116
        %v1272 = vpop.permute.xlu0 %1271
        %1273 = vrot.lane.b32.xlu0 %v1003, 116
        %v1274 = vpop.permute.xlu0 %1273
        %1275 = vrot.lane.b32.xlu0 %v1004, 116
        %v1276 = vpop.permute.xlu0 %1275
        %1277 = vrot.lane.b32.xlu0 %v1005, 116
        %v1278 = vpop.permute.xlu0 %1277
        %1279 = vrot.lane.b32.xlu0 %v1006, 116
        %v1280 = vpop.permute.xlu0 %1279
        %1281 = vrot.lane.b32.xlu0 %v1007, 116
        %v1282 = vpop.permute.xlu0 %1281
        %1283 = vrot.lane.b32.xlu0 %v1008, 116
        %v1284 = vpop.permute.xlu0 %1283
        %1285 = vrot.lane.b32.xlu0 %v1009, 116
        %v1286 = vpop.permute.xlu0 %1285
        %1287 = vrot.lane.b32.xlu0 %v1010, 116
        %v1288 = vpop.permute.xlu0 %1287
        %1289 = vrot.lane.b32.xlu0 %v1011, 116
        %v1290 = vpop.permute.xlu0 %1289
        %1291 = vrot.lane.b32.xlu0 %v1012, 116
        %v1292 = vpop.permute.xlu0 %1291
        %1293 = vrot.lane.b32.xlu0 %v1013, 116
        %v1294 = vpop.permute.xlu0 %1293
        %1295 = vrot.lane.b32.xlu0 %v1014, 116
        %v1296 = vpop.permute.xlu0 %1295
        %1297 = vrot.lane.b32.xlu0 %v1015, 116
        %v1298 = vpop.permute.xlu0 %1297
        %1299 = vrot.lane.b32.xlu0 %v1016, 116
        %v1300 = vpop.permute.xlu0 %1299
        %1301 = vrot.lane.b32.xlu0 %v1017, 116
        %v1302 = vpop.permute.xlu0 %1301
        %1303 = vrot.lane.b32.xlu0 %v1018, 116
        %v1304 = vpop.permute.xlu0 %1303
        %1305 = vrot.lane.b32.xlu0 %v1019, 116
        %v1306 = vpop.permute.xlu0 %1305
        %1307 = vrot.lane.b32.xlu0 %v1020, 116
        %v1308 = vpop.permute.xlu0 %1307
        %1309 = vrot.lane.b32.xlu0 %v1021, 116
        %v1310 = vpop.permute.xlu0 %1309
        %1311 = vrot.lane.b32.xlu0 %v1022, 116
        %v1312 = vpop.permute.xlu0 %1311
        %1313 = vrot.lane.b32.xlu0 %v1023, 116
        %v1314 = vpop.permute.xlu0 %1313
        %1315 = vrot.lane.b32.xlu0 %v1024, 116
        %v1316 = vpop.permute.xlu0 %1315
        %1317 = vrot.lane.b32.xlu0 %v1025, 116
        %v1318 = vpop.permute.xlu0 %1317
        %1319 = vrot.lane.b32.xlu0 %v1026, 116
        %v1320 = vpop.permute.xlu0 %1319
        %v1321 = vsel %vm493, %v1238, %v1240
        %v1322 = vsel %vm493, %v1240, %v1242
        %v1323 = vsel %vm493, %v1242, %v1244
        %v1324 = vsel %vm493, %v1244, %v1246
        %v1325 = vsel %vm493, %v1246, %v1248
        %v1326 = vsel %vm493, %v1250, %v1252
        %v1327 = vsel %vm493, %v1252, %v1254
        %v1328 = vsel %vm493, %v1254, %v1256
        %v1329 = vsel %vm493, %v1256, %v1258
        %v1330 = vsel %vm493, %v1258, %v1260
        %v1331 = vsel %vm493, %v1262, %v1264
        %v1332 = vsel %vm493, %v1264, %v1266
        %v1333 = vsel %vm493, %v1266, %v1268
        %v1334 = vsel %vm493, %v1268, %v1270
        %v1335 = vsel %vm493, %v1270, %v1272
        %v1336 = vsel %vm493, %v1274, %v1276
        %v1337 = vsel %vm493, %v1276, %v1278
        %v1338 = vsel %vm493, %v1278, %v1280
        %v1339 = vsel %vm493, %v1280, %v1282
        %v1340 = vsel %vm493, %v1282, %v1284
        %v1341 = vsel %vm493, %v1286, %v1288
        %v1342 = vsel %vm493, %v1288, %v1290
        %v1343 = vsel %vm493, %v1290, %v1292
        %v1344 = vsel %vm493, %v1292, %v1294
        %v1345 = vsel %vm493, %v1294, %v1296
        %v1346 = vsel %vm493, %v1298, %v1300
        %v1347 = vsel %vm493, %v1300, %v1302
        %v1348 = vsel %vm493, %v1302, %v1304
        %v1349 = vsel %vm493, %v1304, %v1306
        %v1350 = vsel %vm493, %v1306, %v1308
        %v1351 = vsel %vm493, %v1310, %v1312
        %v1352 = vsel %vm493, %v1312, %v1314
        %v1353 = vsel %vm493, %v1314, %v1316
        %v1354 = vsel %vm493, %v1316, %v1318
        %v1355 = vsel %vm493, %v1318, %v1320
        %v1398 = vmax.f32 %v637, %v1321
        %v1399 = vmax.f32 %v638, %v1322
        %v1400 = vmax.f32 %v639, %v1323
        %v1401 = vmax.f32 %v640, %v1324
        %v1402 = vmax.f32 %v641, %v1325
        %v1403 = vmax.f32 %v642, %v1248
        %v1404 = vmax.f32 %v643, %v1326
        %v1405 = vmax.f32 %v644, %v1327
        %v1406 = vmax.f32 %v645, %v1328
        %v1407 = vmax.f32 %v646, %v1329
        %v1408 = vmax.f32 %v647, %v1330
        %v1409 = vmax.f32 %v648, %v1260
        %v1410 = vmax.f32 %v649, %v1331
        %v1411 = vmax.f32 %v650, %v1332
        %v1412 = vmax.f32 %v651, %v1333
        %v1413 = vmax.f32 %v652, %v1334
        %v1414 = vmax.f32 %v653, %v1335
        %v1415 = vmax.f32 %v654, %v1272
        %v1416 = vmax.f32 %v655, %v1336
        %v1417 = vmax.f32 %v656, %v1337
        %v1418 = vmax.f32 %v657, %v1338
        %v1419 = vmax.f32 %v658, %v1339
        %v1420 = vmax.f32 %v659, %v1340
        %v1421 = vmax.f32 %v660, %v1284
        %v1422 = vmax.f32 %v661, %v1341
        %v1423 = vmax.f32 %v662, %v1342
        %v1424 = vmax.f32 %v663, %v1343
        %v1425 = vmax.f32 %v664, %v1344
        %v1426 = vmax.f32 %v665, %v1345
        %v1427 = vmax.f32 %v666, %v1296
        %v1428 = vmax.f32 %v667, %v1346
        %v1429 = vmax.f32 %v668, %v1347
        %v1430 = vmax.f32 %v669, %v1348
        %v1431 = vmax.f32 %v670, %v1349
        %v1432 = vmax.f32 %v671, %v1350
        %v1433 = vmax.f32 %v672, %v1308
        %v1434 = vmax.f32 %v673, %v1351
        %v1435 = vmax.f32 %v674, %v1352
        %v1436 = vmax.f32 %v675, %v1353
        %v1437 = vmax.f32 %v676, %v1354
        %v1438 = vmax.f32 %v677, %v1355
        %v1439 = vmax.f32 %v678, %v1320
        %v1440 = vmax.f32 %v1398, %v985
        %v1441 = vmax.f32 %v1399, %v986
        %v1442 = vmax.f32 %v1400, %v987
        %v1443 = vmax.f32 %v1401, %v988
        %v1444 = vmax.f32 %v1402, %v989
        %v1445 = vmax.f32 %v1403, %v990
        %v1446 = vmax.f32 %v1404, %v991
        %v1447 = vmax.f32 %v1405, %v992
        %v1448 = vmax.f32 %v1406, %v993
        %v1449 = vmax.f32 %v1407, %v994
        %v1450 = vmax.f32 %v1408, %v995
        %v1451 = vmax.f32 %v1409, %v996
        %v1452 = vmax.f32 %v1410, %v997
        %v1453 = vmax.f32 %v1411, %v998
        %v1454 = vmax.f32 %v1412, %v999
        %v1455 = vmax.f32 %v1413, %v1000
        %v1456 = vmax.f32 %v1414, %v1001
        %v1457 = vmax.f32 %v1415, %v1002
        %v1458 = vmax.f32 %v1416, %v1003
        %v1459 = vmax.f32 %v1417, %v1004
        %v1460 = vmax.f32 %v1418, %v1005
        %v1461 = vmax.f32 %v1419, %v1006
        %v1462 = vmax.f32 %v1420, %v1007
        %v1463 = vmax.f32 %v1421, %v1008
        %v1464 = vmax.f32 %v1422, %v1009
        %v1465 = vmax.f32 %v1423, %v1010
        %v1466 = vmax.f32 %v1424, %v1011
        %v1467 = vmax.f32 %v1425, %v1012
        %v1468 = vmax.f32 %v1426, %v1013
        %v1469 = vmax.f32 %v1427, %v1014
        %v1470 = vmax.f32 %v1428, %v1015
        %v1471 = vmax.f32 %v1429, %v1016
        %v1472 = vmax.f32 %v1430, %v1017
        %v1473 = vmax.f32 %v1431, %v1018
        %v1474 = vmax.f32 %v1432, %v1019
        %v1475 = vmax.f32 %v1433, %v1020
        %v1476 = vmax.f32 %v1434, %v1021
        %v1477 = vmax.f32 %v1435, %v1022
        %v1478 = vmax.f32 %v1436, %v1023
        %v1479 = vmax.f32 %v1437, %v1024
        %v1480 = vmax.f32 %v1438, %v1025
        %v1481 = vmax.f32 %v1439, %v1026
        %1524 = vrot.lane.b32.xlu0 %v1153, 116
        %v1525 = vpop.permute.xlu0 %1524
        %1526 = vrot.lane.b32.xlu0 %v1154, 116
        %v1527 = vpop.permute.xlu0 %1526
        %1528 = vrot.lane.b32.xlu0 %v1155, 116
        %v1529 = vpop.permute.xlu0 %1528
        %1530 = vrot.lane.b32.xlu0 %v1156, 116
        %v1531 = vpop.permute.xlu0 %1530
        %1532 = vrot.lane.b32.xlu0 %v1157, 116
        %v1533 = vpop.permute.xlu0 %1532
        %1534 = vrot.lane.b32.xlu0 %v1158, 116
        %v1535 = vpop.permute.xlu0 %1534
        %1536 = vrot.lane.b32.xlu0 %v1159, 116
        %v1537 = vpop.permute.xlu0 %1536
        %1538 = vrot.lane.b32.xlu0 %v1160, 116
        %v1539 = vpop.permute.xlu0 %1538
        %1540 = vrot.lane.b32.xlu0 %v1161, 116
        %v1541 = vpop.permute.xlu0 %1540
        %1542 = vrot.lane.b32.xlu0 %v1162, 116
        %v1543 = vpop.permute.xlu0 %1542
        %1544 = vrot.lane.b32.xlu0 %v1163, 116
        %v1545 = vpop.permute.xlu0 %1544
        %1546 = vrot.lane.b32.xlu0 %v1164, 116
        %v1547 = vpop.permute.xlu0 %1546
        %1548 = vrot.lane.b32.xlu0 %v1165, 116
        %v1549 = vpop.permute.xlu0 %1548
        %1550 = vrot.lane.b32.xlu0 %v1166, 116
        %v1551 = vpop.permute.xlu0 %1550
        %1552 = vrot.lane.b32.xlu0 %v1167, 116
        %v1553 = vpop.permute.xlu0 %1552
        %1554 = vrot.lane.b32.xlu0 %v1168, 116
        %v1555 = vpop.permute.xlu0 %1554
        %1556 = vrot.lane.b32.xlu0 %v1169, 116
        %v1557 = vpop.permute.xlu0 %1556
        %1558 = vrot.lane.b32.xlu0 %v1170, 116
        %v1559 = vpop.permute.xlu0 %1558
        %1560 = vrot.lane.b32.xlu0 %v1171, 116
        %v1561 = vpop.permute.xlu0 %1560
        %1562 = vrot.lane.b32.xlu0 %v1172, 116
        %v1563 = vpop.permute.xlu0 %1562
        %1564 = vrot.lane.b32.xlu0 %v1173, 116
        %v1565 = vpop.permute.xlu0 %1564
        %1566 = vrot.lane.b32.xlu0 %v1174, 116
        %v1567 = vpop.permute.xlu0 %1566
        %1568 = vrot.lane.b32.xlu0 %v1175, 116
        %v1569 = vpop.permute.xlu0 %1568
        %1570 = vrot.lane.b32.xlu0 %v1176, 116
        %v1571 = vpop.permute.xlu0 %1570
        %1572 = vrot.lane.b32.xlu0 %v1177, 116
        %v1573 = vpop.permute.xlu0 %1572
        %1574 = vrot.lane.b32.xlu0 %v1178, 116
        %v1575 = vpop.permute.xlu0 %1574
        %1576 = vrot.lane.b32.xlu0 %v1179, 116
        %v1577 = vpop.permute.xlu0 %1576
        %1578 = vrot.lane.b32.xlu0 %v1180, 116
        %v1579 = vpop.permute.xlu0 %1578
        %1580 = vrot.lane.b32.xlu0 %v1181, 116
        %v1581 = vpop.permute.xlu0 %1580
        %1582 = vrot.lane.b32.xlu0 %v1182, 116
        %v1583 = vpop.permute.xlu0 %1582
        %1584 = vrot.lane.b32.xlu0 %v1183, 116
        %v1585 = vpop.permute.xlu0 %1584
        %1586 = vrot.lane.b32.xlu0 %v1184, 116
        %v1587 = vpop.permute.xlu0 %1586
        %1588 = vrot.lane.b32.xlu0 %v1185, 116
        %v1589 = vpop.permute.xlu0 %1588
        %1590 = vrot.lane.b32.xlu0 %v1186, 116
        %v1591 = vpop.permute.xlu0 %1590
        %1592 = vrot.lane.b32.xlu0 %v1187, 116
        %v1593 = vpop.permute.xlu0 %1592
        %1594 = vrot.lane.b32.xlu0 %v1188, 116
        %v1595 = vpop.permute.xlu0 %1594
        %1596 = vrot.lane.b32.xlu0 %v1189, 116
        %v1597 = vpop.permute.xlu0 %1596
        %1598 = vrot.lane.b32.xlu0 %v1190, 116
        %v1599 = vpop.permute.xlu0 %1598
        %1600 = vrot.lane.b32.xlu0 %v1191, 116
        %v1601 = vpop.permute.xlu0 %1600
        %1602 = vrot.lane.b32.xlu0 %v1192, 116
        %v1603 = vpop.permute.xlu0 %1602
        %1604 = vrot.lane.b32.xlu0 %v1193, 116
        %v1605 = vpop.permute.xlu0 %1604
        %1606 = vrot.lane.b32.xlu0 %v1194, 116
        %v1607 = vpop.permute.xlu0 %1606
        %v1608 = vsel %vm493, %v1525, %v1527
        %v1609 = vsel %vm493, %v1527, %v1529
        %v1610 = vsel %vm493, %v1529, %v1531
        %v1611 = vsel %vm493, %v1531, %v1533
        %v1612 = vsel %vm493, %v1533, %v1535
        %v1613 = vsel %vm493, %v1537, %v1539
        %v1614 = vsel %vm493, %v1539, %v1541
        %v1615 = vsel %vm493, %v1541, %v1543
        %v1616 = vsel %vm493, %v1543, %v1545
        %v1617 = vsel %vm493, %v1545, %v1547
        %v1618 = vsel %vm493, %v1549, %v1551
        %v1619 = vsel %vm493, %v1551, %v1553
        %v1620 = vsel %vm493, %v1553, %v1555
        %v1621 = vsel %vm493, %v1555, %v1557
        %v1622 = vsel %vm493, %v1557, %v1559
        %v1623 = vsel %vm493, %v1561, %v1563
        %v1624 = vsel %vm493, %v1563, %v1565
        %v1625 = vsel %vm493, %v1565, %v1567
        %v1626 = vsel %vm493, %v1567, %v1569
        %v1627 = vsel %vm493, %v1569, %v1571
        %v1628 = vsel %vm493, %v1573, %v1575
        %v1629 = vsel %vm493, %v1575, %v1577
        %v1630 = vsel %vm493, %v1577, %v1579
        %v1631 = vsel %vm493, %v1579, %v1581
        %v1632 = vsel %vm493, %v1581, %v1583
        %v1633 = vsel %vm493, %v1585, %v1587
        %v1634 = vsel %vm493, %v1587, %v1589
        %v1635 = vsel %vm493, %v1589, %v1591
        %v1636 = vsel %vm493, %v1591, %v1593
        %v1637 = vsel %vm493, %v1593, %v1595
        %v1638 = vsel %vm493, %v1597, %v1599
        %v1639 = vsel %vm493, %v1599, %v1601
        %v1640 = vsel %vm493, %v1601, %v1603
        %v1641 = vsel %vm493, %v1603, %v1605
        %v1642 = vsel %vm493, %v1605, %v1607
        %v1685 = vmax.f32 %v805, %v1608
        %v1686 = vmax.f32 %v806, %v1609
        %v1687 = vmax.f32 %v807, %v1610
        %v1688 = vmax.f32 %v808, %v1611
        %v1689 = vmax.f32 %v809, %v1612
        %v1690 = vmax.f32 %v810, %v1535
        %v1691 = vmax.f32 %v811, %v1613
        %v1692 = vmax.f32 %v812, %v1614
        %v1693 = vmax.f32 %v813, %v1615
        %v1694 = vmax.f32 %v814, %v1616
        %v1695 = vmax.f32 %v815, %v1617
        %v1696 = vmax.f32 %v816, %v1547
        %v1697 = vmax.f32 %v817, %v1618
        %v1698 = vmax.f32 %v818, %v1619
        %v1699 = vmax.f32 %v819, %v1620
        %v1700 = vmax.f32 %v820, %v1621
        %v1701 = vmax.f32 %v821, %v1622
        %v1702 = vmax.f32 %v822, %v1559
        %v1703 = vmax.f32 %v823, %v1623
        %v1704 = vmax.f32 %v824, %v1624
        %v1705 = vmax.f32 %v825, %v1625
        %v1706 = vmax.f32 %v826, %v1626
        %v1707 = vmax.f32 %v827, %v1627
        %v1708 = vmax.f32 %v828, %v1571
        %v1709 = vmax.f32 %v829, %v1628
        %v1710 = vmax.f32 %v830, %v1629
        %v1711 = vmax.f32 %v831, %v1630
        %v1712 = vmax.f32 %v832, %v1631
        %v1713 = vmax.f32 %v833, %v1632
        %v1714 = vmax.f32 %v834, %v1583
        %v1715 = vmax.f32 %v835, %v1633
        %v1716 = vmax.f32 %v836, %v1634
        %v1717 = vmax.f32 %v837, %v1635
        %v1718 = vmax.f32 %v838, %v1636
        %v1719 = vmax.f32 %v839, %v1637
        %v1720 = vmax.f32 %v840, %v1595
        %v1721 = vmax.f32 %v841, %v1638
        %v1722 = vmax.f32 %v842, %v1639
        %v1723 = vmax.f32 %v843, %v1640
        %v1724 = vmax.f32 %v844, %v1641
        %v1725 = vmax.f32 %v845, %v1642
        %v1726 = vmax.f32 %v846, %v1607
        %v1727 = vmax.f32 %v1685, %v1153
        %v1728 = vmax.f32 %v1686, %v1154
        %v1729 = vmax.f32 %v1687, %v1155
        %v1730 = vmax.f32 %v1688, %v1156
        %v1731 = vmax.f32 %v1689, %v1157
        %v1732 = vmax.f32 %v1690, %v1158
        %v1733 = vmax.f32 %v1691, %v1159
        %v1734 = vmax.f32 %v1692, %v1160
        %v1735 = vmax.f32 %v1693, %v1161
        %v1736 = vmax.f32 %v1694, %v1162
        %v1737 = vmax.f32 %v1695, %v1163
        %v1738 = vmax.f32 %v1696, %v1164
        %v1739 = vmax.f32 %v1697, %v1165
        %v1740 = vmax.f32 %v1698, %v1166
        %v1741 = vmax.f32 %v1699, %v1167
        %v1742 = vmax.f32 %v1700, %v1168
        %v1743 = vmax.f32 %v1701, %v1169
        %v1744 = vmax.f32 %v1702, %v1170
        %v1745 = vmax.f32 %v1703, %v1171
        %v1746 = vmax.f32 %v1704, %v1172
        %v1747 = vmax.f32 %v1705, %v1173
        %v1748 = vmax.f32 %v1706, %v1174
        %v1749 = vmax.f32 %v1707, %v1175
        %v1750 = vmax.f32 %v1708, %v1176
        %v1751 = vmax.f32 %v1709, %v1177
        %v1752 = vmax.f32 %v1710, %v1178
        %v1753 = vmax.f32 %v1711, %v1179
        %v1754 = vmax.f32 %v1712, %v1180
        %v1755 = vmax.f32 %v1713, %v1181
        %v1756 = vmax.f32 %v1714, %v1182
        %v1757 = vmax.f32 %v1715, %v1183
        %v1758 = vmax.f32 %v1716, %v1184
        %v1759 = vmax.f32 %v1717, %v1185
        %v1760 = vmax.f32 %v1718, %v1186
        %v1761 = vmax.f32 %v1719, %v1187
        %v1762 = vmax.f32 %v1720, %v1188
        %v1763 = vmax.f32 %v1721, %v1189
        %v1764 = vmax.f32 %v1722, %v1190
        %v1765 = vmax.f32 %v1723, %v1191
        %v1766 = vmax.f32 %v1724, %v1192
        %v1767 = vmax.f32 %v1725, %v1193
        %v1768 = vmax.f32 %v1726, %v1194
        %vm1811 = vcmask 1040384
        %v1812 = vrot.slane %v1727, 7
        %v1813 = vrot.slane %v1728, 7
        %v1814 = vrot.slane %v1729, 7
        %v1815 = vrot.slane %v1730, 7
        %v1816 = vrot.slane %v1731, 7
        %v1817 = vrot.slane %v1732, 7
        %v1818 = vrot.slane %v1733, 7
        %v1819 = vsel %vm1811, %v1812, %v1818
        %v1820 = vrot.slane %v1734, 7
        %v1821 = vsel %vm1811, %v1813, %v1820
        %v1822 = vrot.slane %v1735, 7
        %v1823 = vsel %vm1811, %v1814, %v1822
        %v1824 = vrot.slane %v1736, 7
        %v1825 = vsel %vm1811, %v1815, %v1824
        %v1826 = vrot.slane %v1737, 7
        %v1827 = vsel %vm1811, %v1816, %v1826
        %v1828 = vrot.slane %v1738, 7
        %v1829 = vsel %vm1811, %v1817, %v1828
        %v1830 = vrot.slane %v1739, 7
        %v1831 = vsel %vm1811, %v1818, %v1830
        %v1832 = vrot.slane %v1740, 7
        %v1833 = vsel %vm1811, %v1820, %v1832
        %v1834 = vrot.slane %v1741, 7
        %v1835 = vsel %vm1811, %v1822, %v1834
        %v1836 = vrot.slane %v1742, 7
        %v1837 = vsel %vm1811, %v1824, %v1836
        %v1838 = vrot.slane %v1743, 7
        %v1839 = vsel %vm1811, %v1826, %v1838
        %v1840 = vrot.slane %v1744, 7
        %v1841 = vsel %vm1811, %v1828, %v1840
        %v1842 = vrot.slane %v1745, 7
        %v1843 = vsel %vm1811, %v1830, %v1842
        %v1844 = vrot.slane %v1746, 7
        %v1845 = vsel %vm1811, %v1832, %v1844
        %v1846 = vrot.slane %v1747, 7
        %v1847 = vsel %vm1811, %v1834, %v1846
        %v1848 = vrot.slane %v1748, 7
        %v1849 = vsel %vm1811, %v1836, %v1848
        %v1850 = vrot.slane %v1749, 7
        %v1851 = vsel %vm1811, %v1838, %v1850
        %v1852 = vrot.slane %v1750, 7
        %v1853 = vsel %vm1811, %v1840, %v1852
        %v1854 = vrot.slane %v1751, 7
        %v1855 = vsel %vm1811, %v1842, %v1854
        %v1856 = vrot.slane %v1752, 7
        %v1857 = vsel %vm1811, %v1844, %v1856
        %v1858 = vrot.slane %v1753, 7
        %v1859 = vsel %vm1811, %v1846, %v1858
        %v1860 = vrot.slane %v1754, 7
        %v1861 = vsel %vm1811, %v1848, %v1860
        %v1862 = vrot.slane %v1755, 7
        %v1863 = vsel %vm1811, %v1850, %v1862
        %v1864 = vrot.slane %v1756, 7
        %v1865 = vsel %vm1811, %v1852, %v1864
        %v1866 = vrot.slane %v1757, 7
        %v1867 = vsel %vm1811, %v1854, %v1866
        %v1868 = vrot.slane %v1758, 7
        %v1869 = vsel %vm1811, %v1856, %v1868
        %v1870 = vrot.slane %v1759, 7
        %v1871 = vsel %vm1811, %v1858, %v1870
        %v1872 = vrot.slane %v1760, 7
        %v1873 = vsel %vm1811, %v1860, %v1872
        %v1874 = vrot.slane %v1761, 7
        %v1875 = vsel %vm1811, %v1862, %v1874
        %v1876 = vrot.slane %v1762, 7
        %v1877 = vsel %vm1811, %v1864, %v1876
        %v1878 = vrot.slane %v1763, 7
        %v1879 = vsel %vm1811, %v1866, %v1878
        %v1880 = vrot.slane %v1764, 7
        %v1881 = vsel %vm1811, %v1868, %v1880
        %v1882 = vrot.slane %v1765, 7
        %v1883 = vsel %vm1811, %v1870, %v1882
        %v1884 = vrot.slane %v1766, 7
        %v1885 = vsel %vm1811, %v1872, %v1884
        %v1886 = vrot.slane %v1767, 7
        %v1887 = vsel %vm1811, %v1874, %v1886
        %v1888 = vrot.slane %v1768, 7
        %v1889 = vsel %vm1811, %v1876, %v1888
        %v1932 = vsel %vm1811, 0.0, %v1812
        %v1933 = vsel %vm1811, 0.0, %v1813
        %v1934 = vsel %vm1811, 0.0, %v1814
        %v1935 = vsel %vm1811, 0.0, %v1815
        %v1936 = vsel %vm1811, 0.0, %v1816
        %v1937 = vsel %vm1811, 0.0, %v1817
        %v1938 = vmax.f32 %v1440, %v1727
        %v1939 = vmax.f32 %v1441, %v1728
        %v1940 = vmax.f32 %v1442, %v1729
        %v1941 = vmax.f32 %v1443, %v1730
        %v1942 = vmax.f32 %v1444, %v1731
        %v1943 = vmax.f32 %v1445, %v1732
        %v1944 = vmax.f32 %v1446, %v1733
        %v1945 = vmax.f32 %v1447, %v1734
        %v1946 = vmax.f32 %v1448, %v1735
        %v1947 = vmax.f32 %v1449, %v1736
        %v1948 = vmax.f32 %v1450, %v1737
        %v1949 = vmax.f32 %v1451, %v1738
        %v1950 = vmax.f32 %v1452, %v1739
        %v1951 = vmax.f32 %v1453, %v1740
        %v1952 = vmax.f32 %v1454, %v1741
        %v1953 = vmax.f32 %v1455, %v1742
        %v1954 = vmax.f32 %v1456, %v1743
        %v1955 = vmax.f32 %v1457, %v1744
        %v1956 = vmax.f32 %v1458, %v1745
        %v1957 = vmax.f32 %v1459, %v1746
        %v1958 = vmax.f32 %v1460, %v1747
        %v1959 = vmax.f32 %v1461, %v1748
        %v1960 = vmax.f32 %v1462, %v1749
        %v1961 = vmax.f32 %v1463, %v1750
        %v1962 = vmax.f32 %v1464, %v1751
        %v1963 = vmax.f32 %v1465, %v1752
        %v1964 = vmax.f32 %v1466, %v1753
        %v1965 = vmax.f32 %v1467, %v1754
        %v1966 = vmax.f32 %v1468, %v1755
        %v1967 = vmax.f32 %v1469, %v1756
        %v1968 = vmax.f32 %v1470, %v1757
        %v1969 = vmax.f32 %v1471, %v1758
        %v1970 = vmax.f32 %v1472, %v1759
        %v1971 = vmax.f32 %v1473, %v1760
        %v1972 = vmax.f32 %v1474, %v1761
        %v1973 = vmax.f32 %v1475, %v1762
        %v1974 = vmax.f32 %v1476, %v1763
        %v1975 = vmax.f32 %v1477, %v1764
        %v1976 = vmax.f32 %v1478, %v1765
        %v1977 = vmax.f32 %v1479, %v1766
        %v1978 = vmax.f32 %v1480, %v1767
        %v1979 = vmax.f32 %v1481, %v1768
        %v1980 = vmax.f32 %v1938, %v1932
        %v1981 = vmax.f32 %v1939, %v1933
        %v1982 = vmax.f32 %v1940, %v1934
        %v1983 = vmax.f32 %v1941, %v1935
        %v1984 = vmax.f32 %v1942, %v1936
        %v1985 = vmax.f32 %v1943, %v1937
        %v1986 = vmax.f32 %v1944, %v1819
        %v1987 = vmax.f32 %v1945, %v1821
        %v1988 = vmax.f32 %v1946, %v1823
        %v1989 = vmax.f32 %v1947, %v1825
        %v1990 = vmax.f32 %v1948, %v1827
        %v1991 = vmax.f32 %v1949, %v1829
        %v1992 = vmax.f32 %v1950, %v1831
        %v1993 = vmax.f32 %v1951, %v1833
        %v1994 = vmax.f32 %v1952, %v1835
        %v1995 = vmax.f32 %v1953, %v1837
        %v1996 = vmax.f32 %v1954, %v1839
        %v1997 = vmax.f32 %v1955, %v1841
        %v1998 = vmax.f32 %v1956, %v1843
        %v1999 = vmax.f32 %v1957, %v1845
        %v2000 = vmax.f32 %v1958, %v1847
        %v2001 = vmax.f32 %v1959, %v1849
        %v2002 = vmax.f32 %v1960, %v1851
        %v2003 = vmax.f32 %v1961, %v1853
        %v2004 = vmax.f32 %v1962, %v1855
        %v2005 = vmax.f32 %v1963, %v1857
        %v2006 = vmax.f32 %v1964, %v1859
        %v2007 = vmax.f32 %v1965, %v1861
        %v2008 = vmax.f32 %v1966, %v1863
        %v2009 = vmax.f32 %v1967, %v1865
        %v2010 = vmax.f32 %v1968, %v1867
        %v2011 = vmax.f32 %v1969, %v1869
        %v2012 = vmax.f32 %v1970, %v1871
        %v2013 = vmax.f32 %v1971, %v1873
        %v2014 = vmax.f32 %v1972, %v1875
        %v2015 = vmax.f32 %v1973, %v1877
        %v2016 = vmax.f32 %v1974, %v1879
        %v2017 = vmax.f32 %v1975, %v1881
        %v2018 = vmax.f32 %v1976, %v1883
        %v2019 = vmax.f32 %v1977, %v1885
        %v2020 = vmax.f32 %v1978, %v1887
        %v2021 = vmax.f32 %v1979, %v1889
        %2022 = vst [vmem:[%s411] sm:$0xff] %v1980
        %2023 = vst [vmem:[%s411 + $0x8] sm:$0xff] %v1981
        %2024 = vst [vmem:[%s411 + $0x10] sm:$0xff] %v1982
        %2025 = vst [vmem:[%s411 + $0x18] sm:$0xff] %v1983
        %2026 = vst [vmem:[%s411 + $0x20] sm:$0xff] %v1984
        %vm2027 = vcmask 261120
        %2028 = vst.msk [vmem:[%s411 + $0x28] sm:$0xff] %vm2027, %v1985
        %2029 = vst [vmem:[%s411 + $0x30] sm:$0xff] %v1986
        %2030 = vst [vmem:[%s411 + $0x38] sm:$0xff] %v1987
        %2031 = vst [vmem:[%s411 + $0x40] sm:$0xff] %v1988
        %2032 = vst [vmem:[%s411 + $0x48] sm:$0xff] %v1989
        %2033 = vst [vmem:[%s411 + $0x50] sm:$0xff] %v1990
        %2034 = vst.msk [vmem:[%s411 + $0x58] sm:$0xff] %vm2027, %v1991
        %2035 = vst [vmem:[%s411 + $0x60] sm:$0xff] %v1992
        %2036 = vst [vmem:[%s411 + $0x68] sm:$0xff] %v1993
        %2037 = vst [vmem:[%s411 + $0x70] sm:$0xff] %v1994
        %2038 = vst [vmem:[%s411 + $0x78] sm:$0xff] %v1995
        %2039 = vst [vmem:[%s411 + $0x80] sm:$0xff] %v1996
        %2040 = vst.msk [vmem:[%s411 + $0x88] sm:$0xff] %vm2027, %v1997
        %2041 = vst [vmem:[%s411 + $0x90] sm:$0xff] %v1998
        %2042 = vst [vmem:[%s411 + $0x98] sm:$0xff] %v1999
        %2043 = vst [vmem:[%s411 + $0xa0] sm:$0xff] %v2000
        %2044 = vst [vmem:[%s411 + $0xa8] sm:$0xff] %v2001
        %2045 = vst [vmem:[%s411 + $0xb0] sm:$0xff] %v2002
        %2046 = vst.msk [vmem:[%s411 + $0xb8] sm:$0xff] %vm2027, %v2003
        %2047 = vst [vmem:[%s411 + $0xc0] sm:$0xff] %v2004
        %2048 = vst [vmem:[%s411 + $0xc8] sm:$0xff] %v2005
        %2049 = vst [vmem:[%s411 + $0xd0] sm:$0xff] %v2006
        %2050 = vst [vmem:[%s411 + $0xd8] sm:$0xff] %v2007
        %2051 = vst [vmem:[%s411 + $0xe0] sm:$0xff] %v2008
        %2052 = vst.msk [vmem:[%s411 + $0xe8] sm:$0xff] %vm2027, %v2009
        %2053 = vst [vmem:[%s411 + $0xf0] sm:$0xff] %v2010
        %2054 = vst [vmem:[%s411 + $0xf8] sm:$0xff] %v2011
        %2055 = vst [vmem:[%s411 + $0x100] sm:$0xff] %v2012
        %2056 = vst [vmem:[%s411 + $0x108] sm:$0xff] %v2013
        %2057 = vst [vmem:[%s411 + $0x110] sm:$0xff] %v2014
        %2058 = vst.msk [vmem:[%s411 + $0x118] sm:$0xff] %vm2027, %v2015
        %2059 = vst [vmem:[%s411 + $0x120] sm:$0xff] %v2016
        %2060 = vst [vmem:[%s411 + $0x128] sm:$0xff] %v2017
        %2061 = vst [vmem:[%s411 + $0x130] sm:$0xff] %v2018
        %2062 = vst [vmem:[%s411 + $0x138] sm:$0xff] %v2019
        %2063 = vst [vmem:[%s411 + $0x140] sm:$0xff] %v2020
        %2064 = vst.msk [vmem:[%s411 + $0x148] sm:$0xff] %vm2027, %v2021
        %s2065 = sand.u32 %s184, 1
        %s2066 = scalar_lea.sflag [#allocation4], %s2065
        %s2067 = sand.u32 %s184, 1
        %s2068 = smul.addr %s2067, 336
        %s2069 = scalar_lea.vmem [#allocation13], %s2068
        // Predicated region
        $region69: #{visual_modality_forward.6} parent=43 // pred_check
          %p2070 = pneg %p194
        $region70: #{visual_modality_forward.6} parent=43 // pred_check_branch
          %2072 = sbr.rel (%p2070) target = $region72
        $region71: #{visual_modality_forward.6} parent=43 // pred_region
          %s2074 = ssub.s32 5376, 5376
          %2075 = vsyncadd %s2066, %s2074
          %s2076 = smul.addr %s30, 42
          %s2077 = smul.addr %s2076, 128
          %s2078 = scalar_lea.hbm %s6, %s2077
          %s2079 = sshll.u32 %s2069, 4
          %s2080 = int_to_ptr.vmem [resolvable:$true] %s2079
          %2085 = dma.vmem_to_hbm [thread:$0]  %s2080, 5376, %s2078, %s2066, 768, 768, 48
        $region72: #{visual_modality_forward.6} parent=43 // pred_fallthru
          _
      $region44: #{visual_modality_forward.6} parent=5 // pred_fallthru
        _
      %p2086 = scmp.le.s32.totalorder 2, %s25
      // Predicated region
      $region73: #{visual_modality_forward.6} parent=5 // pred_check
        %p2087 = pneg %p2086
      $region74: #{visual_modality_forward.6} parent=5 // pred_check_branch
        %2089 = sbr.rel (%p2087) target = $region76
      $region75: #{visual_modality_forward.6} parent=5 // pred_region
        %s2090 = ssub.s32 %s25, 2
        // Predicated region
        $region77: #{visual_modality_forward.6} parent=75 // pred_check
          %p2091 = pneg %p200
        $region78: #{visual_modality_forward.6} parent=75 // pred_check_branch
          %2093 = sbr.rel (%p2091) target = $region80
        $region79: #{visual_modality_forward.6} parent=75 // pred_region
          %s2094 = sand.u32 %s185, 1
          %s2095 = scalar_lea.sflag [#allocation4], %s2094
          %s2096 = sand.u32 %s185, 1
          %s2097 = smul.addr %s2096, 336
          %s2098 = scalar_lea.vmem [#allocation13], %s2097
          %2099 = dma.done %s2095, 5376
        $region80: #{visual_modality_forward.6} parent=75 // pred_fallthru
          _
      $region76: #{visual_modality_forward.6} parent=5 // pred_fallthru
        _
    $region6: #{visual_modality_forward.6} parent=1 // loop_footer
      %s29 = sadd.s32 1, %s25
    $region7: #{visual_modality_forward.6} parent=1 // loop_footer_branch
      %24 = sbr.rel target = $region3
    $region8: #{visual_modality_forward.6} parent=1 // loop_exit
      _
    %2100 = vsyncpa [#allocation3], 1
    %s2101 = scalar_lea.sflag [#allocation3], 1
    %2102 = vsyncpa %s2101, 1
    %2103 = vsyncpa [#allocation6], 1
    %s2104 = scalar_lea.sflag [#allocation6], 1
    %2105 = vsyncpa %s2104, 1
    %2106 = vsyncpa [#allocation9], 1
    %s2107 = scalar_lea.sflag [#allocation9], 1
    %2108 = vsyncpa %s2107, 1
    %2109 = vsyncpa [#allocation12], 1
    %2110 = vsyncpa [#allocation4], 1
    %s2111 = scalar_lea.sflag [#allocation4], 1
    %2112 = vsyncpa %s2111, 1

// kernel: tile.33
$region0: #{tile.33}
  #allocation0 [shape = 's32[1]{0}', space=sflag, size = 0x4, scoped, tag = 'scoped memory for tile.33']
  %s0 = inlined_call_operand.vmem [shape: f32[12], index: 0, kind: input, shape index: {}]
  %s1 = inlined_call_operand.vmem [shape: f32[14,12], index: 1, kind: output, shape index: {}]
  // Predicated region
  $region2: #{tile.33} parent=0 // pred_check
    _
  $region3: #{tile.33} parent=0 // pred_check_branch
    %3 = sbr.rel (0) target = $region5
  $region4: #{tile.33} parent=0 // pred_region
    _
  $region5: #{tile.33} parent=0 // pred_fallthru
    _
  %v4 = vld [vmem:[%s0] ss:$0 sm:$0xff]
  %5 = vst [vmem:[%s1] sm:$0xff] %v4
  %s6 = scalar_lea.vmem %s1, 8
  %7 = vst [vmem:[%s6] sm:$0xff] %v4

// kernel: tile.34
$region0: #{tile.34}
  %s0 = inlined_call_operand.vmem [shape: f32[14,12], index: 0, kind: input, shape index: {}]
  %s1 = inlined_call_operand.vmem [shape: f32[168], index: 1, kind: output, shape index: {}]
  $region1: #{tile.34} parent=0
    #allocation0 [shape = 'u8[4096]{0}', space=vmem, size = 0x1000, scoped, tag = 'scoped mem for output reshape']
    %v2 = vld [vmem:[%s0] sm:$0x1]
    %vm3 = vcmask 97280
    %4 = vst.msk [vmem:[#allocation0] sm:$0x1] %vm3, %v2
    %s5 = scalar_lea.vmem %s0, 10
    %v6 = vld [vmem:[%s5] sm:$0x1]
    %s7 = scalar_lea.vmem %s0, 10
    %v8 = vld [vmem:[%s7] sm:$0x1]
    %vm9 = vcmask 64512
    %v10 = vsel %vm9, %v8, %v6
    %11 = vrot.lane.b32.xlu0 %v10, 120
    %v12 = vpop.permute.xlu0 %11
    %vm13 = vcmask 31744
    %s14 = scalar_lea.vmem [#allocation0], 1
    %15 = vst.msk [vmem:[%s14] sm:$0x1] %vm13, %v12
    %vm16 = vcmask 1048512
    %17 = vst.msk [vmem:[#allocation0] sm:$0x1] %vm16, %v12
    %s18 = scalar_lea.vmem %s0, 9
    %v19 = vld [vmem:[%s18] sm:$0x1]
    %20 = vrot.lane.b32.xlu0 %v19, 108
    %v21 = vpop.permute.xlu0 %20
    %vm22 = vcmask 982880
    %23 = vst.msk [vmem:[#allocation0] sm:$0x1] %vm22, %v21
    %s24 = scalar_lea.vmem %s0, 8
    %v25 = vld [vmem:[%s24] sm:$0x1]
    %26 = vrot.lane.b32.xlu0 %v25, 96
    %v27 = vpop.permute.xlu0 %26
    %vm28 = vcmask 884480
    %29 = vst.msk [vmem:[#allocation0] sm:$0x1] %vm28, %v27
    %s30 = scalar_lea.vmem %s0, 7
    %v31 = vld [vmem:[%s30] sm:$0x1]
    %32 = vrot.lane.b32.xlu0 %v31, 84
    %v33 = vpop.permute.xlu0 %32
    %vm34 = vcmask 786080
    %35 = vst.msk [vmem:[#allocation0] sm:$0x1] %vm34, %v33
    %s36 = scalar_lea.vmem %s0, 6
    %v37 = vld [vmem:[%s36] sm:$0x1]
    %38 = vrot.lane.b32.xlu0 %v37, 72
    %v39 = vpop.permute.xlu0 %38
    %vm40 = vcmask 687680
    %41 = vst.msk [vmem:[#allocation0] sm:$0x1] %vm40, %v39
    %s42 = scalar_lea.vmem %s0, 5
    %v43 = vld [vmem:[%s42] sm:$0x1]
    %44 = vrot.lane.b32.xlu0 %v43, 60
    %v45 = vpop.permute.xlu0 %44
    %vm46 = vcmask 589280
    %47 = vst.msk [vmem:[#allocation0] sm:$0x1] %vm46, %v45
    %s48 = scalar_lea.vmem %s0, 4
    %v49 = vld [vmem:[%s48] sm:$0x1]
    %50 = vrot.lane.b32.xlu0 %v49, 48
    %v51 = vpop.permute.xlu0 %50
    %vm52 = vcmask 490880
    %53 = vst.msk [vmem:[#allocation0] sm:$0x1] %vm52, %v51
    %s54 = scalar_lea.vmem %s0, 3
    %v55 = vld [vmem:[%s54] sm:$0x1]
    %56 = vrot.lane.b32.xlu0 %v55, 36
    %v57 = vpop.permute.xlu0 %56
    %vm58 = vcmask 392480
    %59 = vst.msk [vmem:[#allocation0] sm:$0x1] %vm58, %v57
    %s60 = scalar_lea.vmem %s0, 13
    %v61 = vld [vmem:[%s60] sm:$0x1]
    %62 = vrot.lane.b32.xlu0 %v61, 28
    %v63 = vpop.permute.xlu0 %62
    %vm64 = vcmask 326880
    %s65 = scalar_lea.vmem [#allocation0], 1
    %66 = vst.msk [vmem:[%s65] sm:$0x1] %vm64, %v63
    %s67 = scalar_lea.vmem %s0, 2
    %v68 = vld [vmem:[%s67] sm:$0x1]
    %69 = vrot.lane.b32.xlu0 %v68, 24
    %v70 = vpop.permute.xlu0 %69
    %vm71 = vcmask 294080
    %72 = vst.msk [vmem:[#allocation0] sm:$0x1] %vm71, %v70
    %s73 = scalar_lea.vmem %s0, 12
    %v74 = vld [vmem:[%s73] sm:$0x1]
    %75 = vrot.lane.b32.xlu0 %v74, 16
    %v76 = vpop.permute.xlu0 %75
    %vm77 = vcmask 228480
    %s78 = scalar_lea.vmem [#allocation0], 1
    %79 = vst.msk [vmem:[%s78] sm:$0x1] %vm77, %v76
    %s80 = scalar_lea.vmem %s0, 1
    %v81 = vld [vmem:[%s80] sm:$0x1]
    %82 = vrot.lane.b32.xlu0 %v81, 12
    %v83 = vpop.permute.xlu0 %82
    %vm84 = vcmask 195680
    %85 = vst.msk [vmem:[#allocation0] sm:$0x1] %vm84, %v83
    %s86 = scalar_lea.vmem %s0, 11
    %v87 = vld [vmem:[%s86] sm:$0x1]
    %88 = vrot.lane.b32.xlu0 %v87, 4
    %v89 = vpop.permute.xlu0 %88
    %vm90 = vcmask 130080
    %s91 = scalar_lea.vmem [#allocation0], 1
    %92 = vst.msk [vmem:[%s91] sm:$0x1] %vm90, %v89
    %s94 = sshllo.u32 0, 2
    %v96 = vld [vmem:[#allocation0] sm:%s94]
    %s97 = sshllo.u32 0, 2
    %98 = vst [vmem:[%s1] sm:%s97] %v96

// kernel: visual_modality_forward.7
$region0: #{visual_modality_forward.7}
  #allocation0 [shape = 'u32[]', space=smem, size = 0x4, offset = 0x4, fixed_abs, tag = 'smem constant byte address 0x4 - core index']
  #allocation1 [shape = 'u32[144,128]{1,0:T(1,128)}', space=vmem, size = 0x12000, scoped, tag = 'internal scratch']
  %s0 = inlined_call_operand.hbm [shape: bf16[1568,108], index: 0, kind: input, shape index: {}]
  %s1 = inlined_call_operand.hbm [shape: bf16[108,12], index: 1, kind: input, shape index: {}]
  %s2 = inlined_call_operand.hbm [shape: f32[1,12], index: 2, kind: input, shape index: {}]
  %s3 = inlined_call_operand.hbm [shape: f32[1568,12], index: 3, kind: output, shape index: {}]
  %s4 = sld [smem:[#allocation0]]
  $region57: #{visual_modality_forward.7} parent=0
    _
  %s6 = ssub.s32 1, %s4
  %s7 = scalar_select 0, %s6, %s4
  $region1: #{visual_modality_forward.7} parent=0
    #allocation2 [shape = 'u8[401408]{0}', space=vmem, size = 0x62000, scoped, tag = 'input window, operand 0']
    #allocation3 [shape = 's32[2]{0}', space=sflag, size = 0x8, scoped, tag = 'scoped memory for visual_modality_forward.7']
    #allocation4 [shape = 's32[2]{0}', space=sflag, size = 0x8, scoped, tag = 'scoped memory for visual_modality_forward.7']
    #allocation5 [shape = 'u8[28672]{0}', space=vmem, size = 0x7000, scoped, tag = 'input window, operand 1, single buffered']
    #allocation6 [shape = 's32[1]{0}', space=sflag, size = 0x4, scoped, tag = 'scoped memory for visual_modality_forward.7']
    #allocation7 [shape = 'u8[512]{0}', space=vmem, size = 0x400, scoped, tag = 'input window, operand 2, single buffered']
    #allocation8 [shape = 'u8[802816]{0}', space=vmem, size = 0xc4000, scoped, tag = 'output window, operand 0']
    %8 = vsyncpa [#allocation3], 0
    %s9 = scalar_lea.sflag [#allocation3], 1
    %10 = vsyncpa %s9, 0
    %11 = vsyncpa [#allocation6], 0
    %12 = vsyncpa [#allocation4], 0
    %s13 = scalar_lea.sflag [#allocation4], 1
    %14 = vsyncpa %s13, 0
    loop: start=0, step=1, limit=4
    $region2: #{visual_modality_forward.7} parent=1 // loop_pre_header
      _
    $region3: #{visual_modality_forward.7} parent=1 // loop_header
      %s16 = sphi 0, %s20
      %p17 = scmp.ge.s32.totalorder %s16, 4
      %s26 = sphi 0, %s28
      %s29 = sphi 0, %s26
      %s30 = sphi 0, %s29
      %s46 = sphi 0, %s30
      %s50 = sphi 0, %s50
      %s52 = sphi 0, %s50
      %s53 = sphi 0, %s52
      %s67 = sphi 0, %s53
      %s71 = sphi 0, %s71
      %s73 = sphi 0, %s71
      %s74 = sphi 0, %s73
      %s88 = sphi 0, %s74
      %s94 = sphi 0, %s96
      %s97 = sphi 0, %s94
      %s98 = sphi 0, %s97
      %s114 = sphi 0, %s98
    $region4: #{visual_modality_forward.7} parent=1 // loop_header_branch
      %19 = sbr.rel (%p17) target = $region8
    $region5: #{visual_modality_forward.7} parent=1 // loop_body
      %s21 = ssub.s32 %s16, 1
      %s22 = ssub.s32 %s16, 2
      %s23 = sadd.s32 %s16, 1
      %s24 = ssub.s32 %s16, %s23
      %p25 = scmp.eq.s32.totalorder %s24, 0
      %s27 = sadd.s32 %s26, 1
      %s28 = scalar_select %p25, %s26, %s27
      %p31 = pneg %p25
      %p32 = scmp.eq.s32.totalorder %s16, 1
      %p33 = por %p31, %p32
      %p34 = scmp.ne.s32.totalorder %s26, %s29
      %p35 = scmp.eq.s32.totalorder %s16, 0
      %p36 = por %p34, %p35
      %p37 = scmp.ne.s32.totalorder %s26, %s29
      %p38 = scmp.eq.s32.totalorder %s21, 1
      %p39 = por %p37, %p38
      %p40 = scmp.ne.s32.totalorder %s29, %s30
      %p41 = scmp.eq.s32.totalorder %s21, 0
      %p42 = por %p40, %p41
      %p43 = scmp.ne.s32.totalorder %s29, %s30
      %p44 = scmp.eq.s32.totalorder %s22, 1
      %p45 = por %p43, %p44
      %p47 = scmp.ne.s32.totalorder %s30, %s46
      %p48 = scmp.eq.s32.totalorder %s22, 0
      %p49 = por %p47, %p48
      %s51 = sadd.s32 %s50, 1
      %p54 = scmp.eq.s32.totalorder %s16, 1
      %p55 = scmp.ne.s32.totalorder %s50, %s52
      %p56 = scmp.eq.s32.totalorder %s16, 0
      %p57 = por %p55, %p56
      %p58 = scmp.ne.s32.totalorder %s50, %s52
      %p59 = scmp.eq.s32.totalorder %s21, 1
      %p60 = por %p58, %p59
      %p61 = scmp.ne.s32.totalorder %s52, %s53
      %p62 = scmp.eq.s32.totalorder %s21, 0
      %p63 = por %p61, %p62
      %p64 = scmp.ne.s32.totalorder %s52, %s53
      %p65 = scmp.eq.s32.totalorder %s22, 1
      %p66 = por %p64, %p65
      %p68 = scmp.ne.s32.totalorder %s53, %s67
      %p69 = scmp.eq.s32.totalorder %s22, 0
      %p70 = por %p68, %p69
      %s72 = sadd.s32 %s71, 1
      %p75 = scmp.eq.s32.totalorder %s16, 1
      %p76 = scmp.ne.s32.totalorder %s71, %s73
      %p77 = scmp.eq.s32.totalorder %s16, 0
      %p78 = por %p76, %p77
      %p79 = scmp.ne.s32.totalorder %s71, %s73
      %p80 = scmp.eq.s32.totalorder %s21, 1
      %p81 = por %p79, %p80
      %p82 = scmp.ne.s32.totalorder %s73, %s74
      %p83 = scmp.eq.s32.totalorder %s21, 0
      %p84 = por %p82, %p83
      %p85 = scmp.ne.s32.totalorder %s73, %s74
      %p86 = scmp.eq.s32.totalorder %s22, 1
      %p87 = por %p85, %p86
      %p89 = scmp.ne.s32.totalorder %s74, %s88
      %p90 = scmp.eq.s32.totalorder %s22, 0
      %p91 = por %p89, %p90
      %s92 = ssub.s32 %s16, %s23
      %p93 = scmp.eq.s32.totalorder %s92, 0
      %s95 = sadd.s32 %s94, 1
      %s96 = scalar_select %p93, %s94, %s95
      %p99 = pneg %p93
      %p100 = scmp.eq.s32.totalorder %s16, 1
      %p101 = por %p99, %p100
      %p102 = scmp.ne.s32.totalorder %s94, %s97
      %p103 = scmp.eq.s32.totalorder %s16, 0
      %p104 = por %p102, %p103
      %p105 = scmp.ne.s32.totalorder %s94, %s97
      %p106 = scmp.eq.s32.totalorder %s21, 1
      %p107 = por %p105, %p106
      %p108 = scmp.ne.s32.totalorder %s97, %s98
      %p109 = scmp.eq.s32.totalorder %s21, 0
      %p110 = por %p108, %p109
      %p111 = scmp.ne.s32.totalorder %s97, %s98
      %p112 = scmp.eq.s32.totalorder %s22, 1
      %p113 = por %p111, %p112
      %p115 = scmp.ne.s32.totalorder %s98, %s114
      %p116 = scmp.eq.s32.totalorder %s22, 0
      %p117 = por %p115, %p116
      %p118 = scmp.le.s32.totalorder 1, %s16
      %p119 = scmp.lt.s32.totalorder %s16, 3
      %p120 = pnand %p118, %p119
      %p121 = pneg %p120
      // Predicated region
      $region9: #{visual_modality_forward.7} parent=5 // pred_check
        _
      $region10: #{visual_modality_forward.7} parent=5 // pred_check_branch
        %123 = sbr.rel (%p120) target = $region12
      $region11: #{visual_modality_forward.7} parent=5 // pred_region
        %s124 = ssub.s32 %s16, 1
        // Predicated region
        $region13: #{visual_modality_forward.7} parent=11 // pred_check
          %p125 = pneg %p63
        $region14: #{visual_modality_forward.7} parent=11 // pred_check_branch
          %127 = sbr.rel (%p125) target = $region16
        $region15: #{visual_modality_forward.7} parent=11 // pred_region
          %s129 = ssub.s32 896, 896
          %130 = vsyncadd [#allocation6], %s129
          %s131 = sshll.u32 [#allocation5], 4
          %s132 = int_to_ptr.vmem [resolvable:$true] %s131
          %137 = dma.hbm_to_vmem [thread:$0]  %s1, 896, %s132, [#allocation6], 64, 64, 4
        $region16: #{visual_modality_forward.7} parent=11 // pred_fallthru
          _
        // Predicated region
        $region17: #{visual_modality_forward.7} parent=11 // pred_check
          %p138 = pneg %p84
        $region18: #{visual_modality_forward.7} parent=11 // pred_check_branch
          %140 = sbr.rel (%p138) target = $region20
        $region19: #{visual_modality_forward.7} parent=11 // pred_region
          %s142 = ssub.s32 16, 16
          %143 = vsyncadd [#allocation6], %s142
          %s145 = sshll.u32 [#allocation7], 4
          %s146 = int_to_ptr.vmem [resolvable:$true] %s145
          %148 = dma.hbm_to_vmem [thread:$0]  %s2, 16, %s146, [#allocation6]
        $region20: #{visual_modality_forward.7} parent=11 // pred_fallthru
          _
      $region12: #{visual_modality_forward.7} parent=5 // pred_fallthru
        _
      %p149 = scmp.lt.s32.totalorder %s16, 2
      // Predicated region
      $region21: #{visual_modality_forward.7} parent=5 // pred_check
        %p150 = pneg %p149
      $region22: #{visual_modality_forward.7} parent=5 // pred_check_branch
        %152 = sbr.rel (%p150) target = $region24
      $region23: #{visual_modality_forward.7} parent=5 // pred_region
        // Predicated region
        $region25: #{visual_modality_forward.7} parent=23 // pred_check
          %p153 = pneg %p36
        $region26: #{visual_modality_forward.7} parent=23 // pred_check_branch
          %155 = sbr.rel (%p153) target = $region28
        $region27: #{visual_modality_forward.7} parent=23 // pred_region
          %s156 = sand.u32 %s26, 1
          %s157 = scalar_lea.sflag [#allocation3], %s156
          %s158 = sand.u32 %s26, 1
          %s159 = smul.addr %s158, 392
          %s160 = scalar_lea.vmem [#allocation2], %s159
          %s161 = smul.u32 98, %s16
          %s163 = ssub.s32 6272, 6272
          %164 = vsyncadd %s157, %s163
          %s165 = smul.addr %s161, 64
          %s166 = scalar_lea.hbm %s0, %s165
          %s167 = sshll.u32 %s160, 4
          %s168 = int_to_ptr.vmem [resolvable:$true] %s167
          %173 = dma.hbm_to_vmem [thread:$0]  %s166, 6272, %s168, %s157, 64, 64, 4
        $region28: #{visual_modality_forward.7} parent=23 // pred_fallthru
          _
      $region24: #{visual_modality_forward.7} parent=5 // pred_fallthru
        _
      %p174 = scmp.le.s32.totalorder 1, %s16
      %p175 = scmp.lt.s32.totalorder %s16, 3
      %p176 = pnand %p174, %p175
      %p177 = pneg %p176
      // Predicated region
      $region29: #{visual_modality_forward.7} parent=5 // pred_check
        _
      $region30: #{visual_modality_forward.7} parent=5 // pred_check_branch
        %179 = sbr.rel (%p176) target = $region32
      $region31: #{visual_modality_forward.7} parent=5 // pred_region
        %s180 = ssub.s32 %s16, 1
        %s181 = sand.u32 %s29, 1
        %s182 = scalar_lea.sflag [#allocation3], %s181
        %s183 = sand.u32 %s29, 1
        %s184 = smul.addr %s183, 392
        %s185 = scalar_lea.vmem [#allocation2], %s184
        // Predicated region
        $region33: #{visual_modality_forward.7} parent=31 // pred_check
          %p186 = pneg %p42
        $region34: #{visual_modality_forward.7} parent=31 // pred_check_branch
          %188 = sbr.rel (%p186) target = $region36
        $region35: #{visual_modality_forward.7} parent=31 // pred_region
          %189 = dma.done %s182, 6272
        $region36: #{visual_modality_forward.7} parent=31 // pred_fallthru
          _
        // Predicated region
        $region37: #{visual_modality_forward.7} parent=31 // pred_check
          %p190 = pneg %p63
        $region38: #{visual_modality_forward.7} parent=31 // pred_check_branch
          %192 = sbr.rel (%p190) target = $region40
        $region39: #{visual_modality_forward.7} parent=31 // pred_region
          %193 = dma.done [#allocation6], 896
        $region40: #{visual_modality_forward.7} parent=31 // pred_fallthru
          _
        // Predicated region
        $region41: #{visual_modality_forward.7} parent=31 // pred_check
          %p194 = pneg %p84
        $region42: #{visual_modality_forward.7} parent=31 // pred_check_branch
          %196 = sbr.rel (%p194) target = $region44
        $region43: #{visual_modality_forward.7} parent=31 // pred_region
          %197 = dma.done [#allocation6], 16
        $region44: #{visual_modality_forward.7} parent=31 // pred_fallthru
          _
        %s198 = sand.u32 %s29, 1
        %s199 = scalar_lea.sflag [#allocation3], %s198
        %s200 = sand.u32 %s29, 1
        %s201 = smul.addr %s200, 392
        %s202 = scalar_lea.vmem [#allocation2], %s201
        %p203 = pneg %p42
        %p204 = pneg %p39
        %p205 = pneg %p63
        %p206 = pneg %p60
        %p207 = pneg %p84
        %p208 = pneg %p81
        %p209 = pneg %p110
        %p210 = pneg %p107
        %s211 = sand.u32 %s97, 1
        %s212 = scalar_lea.sflag [#allocation4], %s211
        %s213 = sand.u32 %s97, 1
        %s214 = smul.addr %s213, 784
        %s215 = scalar_lea.vmem [#allocation8], %s214
        %s216 = smul.u32 98, %s21
        %s217 = smul.u32 98, %s21
        %v219 = vld [vmem:[%s185] sm:$0xf]
        %v220 = vld [vmem:[%s185 + $0x4] sm:$0xf]
        %v221 = vld [vmem:[%s185 + $0x8] sm:$0xf]
        %v222 = vld [vmem:[%s185 + $0xc] sm:$0xf]
        %v223 = vld [vmem:[%s185 + $0x10] sm:$0xf]
        %v224 = vld [vmem:[%s185 + $0x14] sm:$0xf]
        %v225 = vld [vmem:[%s185 + $0x18] sm:$0xf]
        %v226 = vld [vmem:[%s185 + $0x1c] sm:$0xf]
        %v227 = vld [vmem:[%s185 + $0x20] sm:$0xf]
        %v228 = vld [vmem:[%s185 + $0x24] sm:$0xf]
        %v229 = vld [vmem:[%s185 + $0x28] sm:$0xf]
        %v230 = vld [vmem:[%s185 + $0x2c] sm:$0xf]
        %v231 = vld [vmem:[%s185 + $0x30] sm:$0xf]
        %v232 = vld [vmem:[%s185 + $0x34] sm:$0xf]
        %v233 = vld [vmem:[%s185 + $0x38] sm:$0xf]
        %v234 = vld [vmem:[%s185 + $0x3c] sm:$0xf]
        %v235 = vld [vmem:[%s185 + $0x40] sm:$0xf]
        %v236 = vld [vmem:[%s185 + $0x44] sm:$0xf]
        %v237 = vld [vmem:[%s185 + $0x48] sm:$0xf]
        %v238 = vld [vmem:[%s185 + $0x4c] sm:$0xf]
        %v239 = vld [vmem:[%s185 + $0x50] sm:$0xf]
        %v240 = vld [vmem:[%s185 + $0x54] sm:$0xf]
        %v241 = vld [vmem:[%s185 + $0x58] sm:$0xf]
        %v242 = vld [vmem:[%s185 + $0x5c] sm:$0xf]
        %v243 = vld [vmem:[%s185 + $0x60] sm:$0xf]
        %v244 = vld [vmem:[%s185 + $0x64] sm:$0xf]
        %v245 = vld [vmem:[%s185 + $0x68] sm:$0xf]
        %v246 = vld [vmem:[%s185 + $0x6c] sm:$0xf]
        %v247 = vld [vmem:[%s185 + $0x70] sm:$0xf]
        %v248 = vld [vmem:[%s185 + $0x74] sm:$0xf]
        %v249 = vld [vmem:[%s185 + $0x78] sm:$0xf]
        %v250 = vld [vmem:[%s185 + $0x7c] sm:$0xf]
        %v251 = vld [vmem:[%s185 + $0x80] sm:$0xf]
        %v252 = vld [vmem:[%s185 + $0x84] sm:$0xf]
        %v253 = vld [vmem:[%s185 + $0x88] sm:$0xf]
        %v254 = vld [vmem:[%s185 + $0x8c] sm:$0xf]
        %v255 = vld [vmem:[%s185 + $0x90] sm:$0xf]
        %v256 = vld [vmem:[%s185 + $0x94] sm:$0xf]
        %v257 = vld [vmem:[%s185 + $0x98] sm:$0xf]
        %v258 = vld [vmem:[%s185 + $0x9c] sm:$0xf]
        %v259 = vld [vmem:[%s185 + $0xa0] sm:$0xf]
        %v260 = vld [vmem:[%s185 + $0xa4] sm:$0xf]
        %v261 = vld [vmem:[%s185 + $0xa8] sm:$0xf]
        %v262 = vld [vmem:[%s185 + $0xac] sm:$0xf]
        %v263 = vld [vmem:[%s185 + $0xb0] sm:$0xf]
        %v264 = vld [vmem:[%s185 + $0xb4] sm:$0xf]
        %v265 = vld [vmem:[%s185 + $0xb8] sm:$0xf]
        %v266 = vld [vmem:[%s185 + $0xbc] sm:$0xf]
        %v267 = vld [vmem:[%s185 + $0xc0] sm:$0xf]
        %v268 = vld [vmem:[%s185 + $0xc4] sm:$0xf]
        %v269 = vld [vmem:[%s185 + $0xc8] sm:$0xf]
        %v270 = vld [vmem:[%s185 + $0xcc] sm:$0xf]
        %v271 = vld [vmem:[%s185 + $0xd0] sm:$0xf]
        %v272 = vld [vmem:[%s185 + $0xd4] sm:$0xf]
        %v273 = vld [vmem:[%s185 + $0xd8] sm:$0xf]
        %v274 = vld [vmem:[%s185 + $0xdc] sm:$0xf]
        %v275 = vld [vmem:[%s185 + $0xe0] sm:$0xf]
        %v276 = vld [vmem:[%s185 + $0xe4] sm:$0xf]
        %v277 = vld [vmem:[%s185 + $0xe8] sm:$0xf]
        %v278 = vld [vmem:[%s185 + $0xec] sm:$0xf]
        %v279 = vld [vmem:[%s185 + $0xf0] sm:$0xf]
        %v280 = vld [vmem:[%s185 + $0xf4] sm:$0xf]
        %v281 = vld [vmem:[%s185 + $0xf8] sm:$0xf]
        %v282 = vld [vmem:[%s185 + $0xfc] sm:$0xf]
        %v283 = vld [vmem:[%s185 + $0x100] sm:$0xf]
        %v284 = vld [vmem:[%s185 + $0x104] sm:$0xf]
        %v285 = vld [vmem:[%s185 + $0x108] sm:$0xf]
        %v286 = vld [vmem:[%s185 + $0x10c] sm:$0xf]
        %v287 = vld [vmem:[%s185 + $0x110] sm:$0xf]
        %v288 = vld [vmem:[%s185 + $0x114] sm:$0xf]
        %v289 = vld [vmem:[%s185 + $0x118] sm:$0xf]
        %v290 = vld [vmem:[%s185 + $0x11c] sm:$0xf]
        %v291 = vld [vmem:[%s185 + $0x120] sm:$0xf]
        %v292 = vld [vmem:[%s185 + $0x124] sm:$0xf]
        %v293 = vld [vmem:[%s185 + $0x128] sm:$0xf]
        %v294 = vld [vmem:[%s185 + $0x12c] sm:$0xf]
        %v295 = vld [vmem:[%s185 + $0x130] sm:$0xf]
        %v296 = vld [vmem:[%s185 + $0x134] sm:$0xf]
        %v297 = vld [vmem:[%s185 + $0x138] sm:$0xf]
        %v298 = vld [vmem:[%s185 + $0x13c] sm:$0xf]
        %v299 = vld [vmem:[%s185 + $0x140] sm:$0xf]
        %v300 = vld [vmem:[%s185 + $0x144] sm:$0xf]
        %v301 = vld [vmem:[%s185 + $0x148] sm:$0xf]
        %v302 = vld [vmem:[%s185 + $0x14c] sm:$0xf]
        %v303 = vld [vmem:[%s185 + $0x150] sm:$0xf]
        %v304 = vld [vmem:[%s185 + $0x154] sm:$0xf]
        %v305 = vld [vmem:[%s185 + $0x158] sm:$0xf]
        %v306 = vld [vmem:[%s185 + $0x15c] sm:$0xf]
        %v307 = vld [vmem:[%s185 + $0x160] sm:$0xf]
        %v308 = vld [vmem:[%s185 + $0x164] sm:$0xf]
        %v309 = vld [vmem:[%s185 + $0x168] sm:$0xf]
        %v310 = vld [vmem:[%s185 + $0x16c] sm:$0xf]
        %v311 = vld [vmem:[%s185 + $0x170] sm:$0xf]
        %v312 = vld [vmem:[%s185 + $0x174] sm:$0xf]
        %v313 = vld [vmem:[%s185 + $0x178] sm:$0xf]
        %v314 = vld [vmem:[%s185 + $0x17c] sm:$0xf]
        %v315 = vld [vmem:[%s185 + $0x180] sm:$0xf]
        %v316 = vld [vmem:[%s185 + $0x184] sm:$0xf]
        %v317 = vld [vmem:[#allocation5] sm:$0xf]
        %v318 = vld [vmem:[#allocation5 + $0x4] sm:$0xf]
        %v319 = vld [vmem:[#allocation5 + $0x8] sm:$0xf]
        %v320 = vld [vmem:[#allocation5 + $0xc] sm:$0xf]
        %v321 = vld [vmem:[#allocation5 + $0x10] sm:$0xf]
        %v322 = vld [vmem:[#allocation5 + $0x14] sm:$0xf]
        %v323 = vld [vmem:[#allocation5 + $0x18] sm:$0xf]
        %v324 = vld [vmem:[#allocation5 + $0x1c] sm:$0xf]
        %v325 = vld [vmem:[#allocation5 + $0x20] sm:$0xf]
        %v326 = vld [vmem:[#allocation5 + $0x24] sm:$0xf]
        %v327 = vld [vmem:[#allocation5 + $0x28] sm:$0xf]
        %v328 = vld [vmem:[#allocation5 + $0x2c] sm:$0xf]
        %v329 = vld [vmem:[#allocation5 + $0x30] sm:$0xf]
        %v330 = vld [vmem:[#allocation5 + $0x34] sm:$0x3]
        %v331 = vld [vmem:[#allocation7] sm:$0x1]
        %v333 = vlaneseq
        %v334 = vshrl.u32 %v333, 7
        %v335 = vsub.s32 0, %v334
        %v336 = vrot.slane %v331, %v335
        %v436 = vunpack.c.l.b16 %v219
        %v437 = vunpack.c.l.b16 %v220
        %v438 = vunpack.c.l.b16 %v221
        %v439 = vunpack.c.l.b16 %v222
        %v440 = vunpack.c.l.b16 %v223
        %v441 = vunpack.c.l.b16 %v224
        %v442 = vunpack.c.l.b16 %v225
        %v443 = vunpack.c.l.b16 %v226
        %v444 = vunpack.c.l.b16 %v227
        %v445 = vunpack.c.l.b16 %v228
        %v446 = vunpack.c.l.b16 %v229
        %v447 = vunpack.c.l.b16 %v230
        %v448 = vunpack.c.l.b16 %v231
        %v449 = vunpack.c.l.b16 %v232
        %v450 = vunpack.c.l.b16 %v233
        %v451 = vunpack.c.l.b16 %v234
        %v452 = vunpack.c.l.b16 %v235
        %v453 = vunpack.c.l.b16 %v236
        %v454 = vunpack.c.l.b16 %v237
        %v455 = vunpack.c.l.b16 %v238
        %v456 = vunpack.c.l.b16 %v239
        %v457 = vunpack.c.l.b16 %v240
        %v458 = vunpack.c.l.b16 %v241
        %v459 = vunpack.c.l.b16 %v242
        %v460 = vunpack.c.l.b16 %v243
        %v461 = vunpack.c.l.b16 %v244
        %v462 = vunpack.c.l.b16 %v245
        %v463 = vunpack.c.l.b16 %v246
        %v464 = vunpack.c.l.b16 %v247
        %v465 = vunpack.c.l.b16 %v248
        %v466 = vunpack.c.l.b16 %v249
        %v467 = vunpack.c.l.b16 %v250
        %v468 = vunpack.c.l.b16 %v251
        %v469 = vunpack.c.l.b16 %v252
        %v470 = vunpack.c.l.b16 %v253
        %v471 = vunpack.c.l.b16 %v254
        %v472 = vunpack.c.l.b16 %v255
        %v473 = vunpack.c.l.b16 %v256
        %v474 = vunpack.c.l.b16 %v257
        %v475 = vunpack.c.l.b16 %v258
        %v476 = vunpack.c.l.b16 %v259
        %v477 = vunpack.c.l.b16 %v260
        %v478 = vunpack.c.l.b16 %v261
        %v479 = vunpack.c.l.b16 %v262
        %v480 = vunpack.c.l.b16 %v263
        %v481 = vunpack.c.l.b16 %v264
        %v482 = vunpack.c.l.b16 %v265
        %v483 = vunpack.c.l.b16 %v266
        %v484 = vunpack.c.l.b16 %v267
        %v485 = vunpack.c.l.b16 %v268
        %v486 = vunpack.c.l.b16 %v269
        %v487 = vunpack.c.l.b16 %v270
        %v488 = vunpack.c.l.b16 %v271
        %v489 = vunpack.c.l.b16 %v272
        %v490 = vunpack.c.l.b16 %v273
        %v491 = vunpack.c.l.b16 %v274
        %v492 = vunpack.c.l.b16 %v275
        %v493 = vunpack.c.l.b16 %v276
        %v494 = vunpack.c.l.b16 %v277
        %v495 = vunpack.c.l.b16 %v278
        %v496 = vunpack.c.l.b16 %v279
        %v497 = vunpack.c.l.b16 %v280
        %v498 = vunpack.c.l.b16 %v281
        %v499 = vunpack.c.l.b16 %v282
        %v500 = vunpack.c.l.b16 %v283
        %v501 = vunpack.c.l.b16 %v284
        %v502 = vunpack.c.l.b16 %v285
        %v503 = vunpack.c.l.b16 %v286
        %v504 = vunpack.c.l.b16 %v287
        %v505 = vunpack.c.l.b16 %v288
        %v506 = vunpack.c.l.b16 %v289
        %v507 = vunpack.c.l.b16 %v290
        %v508 = vunpack.c.l.b16 %v291
        %v509 = vunpack.c.l.b16 %v292
        %v510 = vunpack.c.l.b16 %v293
        %v511 = vunpack.c.l.b16 %v294
        %v512 = vunpack.c.l.b16 %v295
        %v513 = vunpack.c.l.b16 %v296
        %v514 = vunpack.c.l.b16 %v297
        %v515 = vunpack.c.l.b16 %v298
        %v516 = vunpack.c.l.b16 %v299
        %v517 = vunpack.c.l.b16 %v300
        %v518 = vunpack.c.l.b16 %v301
        %v519 = vunpack.c.l.b16 %v302
        %v520 = vunpack.c.l.b16 %v303
        %v521 = vunpack.c.l.b16 %v304
        %v522 = vunpack.c.l.b16 %v305
        %v523 = vunpack.c.l.b16 %v306
        %v524 = vunpack.c.l.b16 %v307
        %v525 = vunpack.c.l.b16 %v308
        %v526 = vunpack.c.l.b16 %v309
        %v527 = vunpack.c.l.b16 %v310
        %v528 = vunpack.c.l.b16 %v311
        %v529 = vunpack.c.l.b16 %v312
        %v530 = vunpack.c.l.b16 %v313
        %v531 = vunpack.c.l.b16 %v314
        %v532 = vunpack.c.l.b16 %v315
        %v533 = vunpack.c.l.b16 %v316
        %v534 = vpack.c.b16 %v437, %v436
        %v535 = vpack.c.b16 %v439, %v438
        %v536 = vpack.c.b16 %v441, %v440
        %v537 = vpack.c.b16 %v443, %v442
        %v538 = vpack.c.b16 %v445, %v444
        %v539 = vpack.c.b16 %v447, %v446
        %v540 = vpack.c.b16 %v449, %v448
        %v541 = vpack.c.b16 %v451, %v450
        %v542 = vpack.c.b16 %v453, %v452
        %v543 = vpack.c.b16 %v455, %v454
        %v544 = vpack.c.b16 %v457, %v456
        %v545 = vpack.c.b16 %v459, %v458
        %v546 = vpack.c.b16 %v461, %v460
        %v547 = vpack.c.b16 %v463, %v462
        %v548 = vpack.c.b16 %v465, %v464
        %v549 = vpack.c.b16 %v467, %v466
        %v550 = vpack.c.b16 %v469, %v468
        %v551 = vpack.c.b16 %v471, %v470
        %v552 = vpack.c.b16 %v473, %v472
        %v553 = vpack.c.b16 %v475, %v474
        %v554 = vpack.c.b16 %v477, %v476
        %v555 = vpack.c.b16 %v479, %v478
        %v556 = vpack.c.b16 %v481, %v480
        %v557 = vpack.c.b16 %v483, %v482
        %v558 = vpack.c.b16 %v485, %v484
        %v559 = vpack.c.b16 %v487, %v486
        %v560 = vpack.c.b16 %v489, %v488
        %v561 = vpack.c.b16 %v491, %v490
        %v562 = vpack.c.b16 %v493, %v492
        %v563 = vpack.c.b16 %v495, %v494
        %v564 = vpack.c.b16 %v497, %v496
        %v565 = vpack.c.b16 %v499, %v498
        %v566 = vpack.c.b16 %v501, %v500
        %v567 = vpack.c.b16 %v503, %v502
        %v568 = vpack.c.b16 %v505, %v504
        %v569 = vpack.c.b16 %v507, %v506
        %v570 = vpack.c.b16 %v509, %v508
        %v571 = vpack.c.b16 %v511, %v510
        %v572 = vpack.c.b16 %v513, %v512
        %v573 = vpack.c.b16 %v515, %v514
        %v574 = vpack.c.b16 %v517, %v516
        %v575 = vpack.c.b16 %v519, %v518
        %v576 = vpack.c.b16 %v521, %v520
        %v577 = vpack.c.b16 %v523, %v522
        %v578 = vpack.c.b16 %v525, %v524
        %v579 = vpack.c.b16 %v527, %v526
        %v580 = vpack.c.b16 %v529, %v528
        %v581 = vpack.c.b16 %v531, %v530
        %v582 = vpack.c.b16 %v533, %v532
        %v597 = vunpack.c.l.b16 %v317
        %v598 = vunpack.c.l.b16 %v318
        %v599 = vunpack.c.l.b16 %v319
        %v600 = vunpack.c.l.b16 %v320
        %v601 = vunpack.c.l.b16 %v321
        %v602 = vunpack.c.l.b16 %v322
        %v603 = vunpack.c.l.b16 %v323
        %v604 = vunpack.c.l.b16 %v324
        %v605 = vunpack.c.l.b16 %v325
        %v606 = vunpack.c.l.b16 %v326
        %v607 = vunpack.c.l.b16 %v327
        %v608 = vunpack.c.l.b16 %v328
        %v609 = vunpack.c.l.b16 %v329
        %v610 = vunpack.c.l.b16 %v330
        %v611 = vpack.c.b16 %v598, %v597
        %v612 = vpack.c.b16 %v600, %v599
        %v613 = vpack.c.b16 %v602, %v601
        %v614 = vpack.c.b16 %v604, %v603
        %v615 = vpack.c.b16 %v606, %v605
        %v616 = vpack.c.b16 %v608, %v607
        %v617 = vpack.c.b16 %v610, %v609
        %vm624 = vcmask 883712
        %v626 = vsel %vm624, %v534, 0
        %v629 = vsel %vm624, %v535, 0
        %v632 = vsel %vm624, %v536, 0
        %v635 = vsel %vm624, %v537, 0
        %v638 = vsel %vm624, %v538, 0
        %v641 = vsel %vm624, %v539, 0
        %v644 = vsel %vm624, %v540, 0
        %v647 = vsel %vm624, %v541, 0
        %v650 = vsel %vm624, %v542, 0
        %v653 = vsel %vm624, %v543, 0
        %v656 = vsel %vm624, %v544, 0
        %v659 = vsel %vm624, %v545, 0
        %v662 = vsel %vm624, %v546, 0
        %v665 = vsel %vm624, %v547, 0
        %v668 = vsel %vm624, %v548, 0
        %v671 = vsel %vm624, %v549, 0
        %v674 = vsel %vm624, %v550, 0
        %v677 = vsel %vm624, %v551, 0
        %v680 = vsel %vm624, %v552, 0
        %v683 = vsel %vm624, %v553, 0
        %v686 = vsel %vm624, %v554, 0
        %v689 = vsel %vm624, %v555, 0
        %v692 = vsel %vm624, %v556, 0
        %v695 = vsel %vm624, %v557, 0
        %v698 = vsel %vm624, %v558, 0
        %v701 = vsel %vm624, %v559, 0
        %v704 = vsel %vm624, %v560, 0
        %v707 = vsel %vm624, %v561, 0
        %v710 = vsel %vm624, %v562, 0
        %v713 = vsel %vm624, %v563, 0
        %v716 = vsel %vm624, %v564, 0
        %v719 = vsel %vm624, %v565, 0
        %v722 = vsel %vm624, %v566, 0
        %v725 = vsel %vm624, %v567, 0
        %v728 = vsel %vm624, %v568, 0
        %v731 = vsel %vm624, %v569, 0
        %v734 = vsel %vm624, %v570, 0
        %v737 = vsel %vm624, %v571, 0
        %v740 = vsel %vm624, %v572, 0
        %v743 = vsel %vm624, %v573, 0
        %v746 = vsel %vm624, %v574, 0
        %v749 = vsel %vm624, %v575, 0
        %v752 = vsel %vm624, %v576, 0
        %v755 = vsel %vm624, %v577, 0
        %v758 = vsel %vm624, %v578, 0
        %v761 = vsel %vm624, %v579, 0
        %v764 = vsel %vm624, %v580, 0
        %v767 = vsel %vm624, %v581, 0
        %v770 = vsel %vm624, %v582, 0
        %vm772 = vcmask 1045504
        %v774 = vsel %vm772, %v617, 0
        %776 = vmatprep.subr.bf16.mxu0 0
        %777 = vmatpush1.bf16.msra.mxu0 %v611
        %778 = vmatprep.subr.bf16.mxu0 0
        %779 = vmatpush1.bf16.msra.mxu0 %v612
        %780 = vmatprep.subr.bf16.mxu0 0
        %781 = vmatpush1.bf16.msra.mxu0 %v613
        %782 = vmatprep.subr.bf16.mxu0 0
        %783 = vmatpush1.bf16.msra.mxu0 %v614
        %784 = vmatprep.subr.bf16.mxu0 0
        %785 = vmatpush1.bf16.msra.mxu0 %v615
        %786 = vmatprep.subr.bf16.mxu0 0
        %787 = vmatpush1.bf16.msra.mxu0 %v616
        %788 = vmatprep.subr.bf16.mxu0 0
        %789 = vmatpush1.bf16.msra.mxu0 %v774
        %790 = vmatprep.subr.bf16.mxu0 0
        %791 = vmatpush1.bf16.msra.mxu0 0
        %792 = vmatprep.subr.bf16.mxu0 0
        %793 = vmatpush1.bf16.msra.mxu0 0
        %794 = vmatprep.subr.bf16.mxu0 0
        %795 = vmatpush1.bf16.msra.mxu0 0
        %796 = vmatprep.subr.bf16.mxu0 0
        %797 = vmatpush1.bf16.msra.mxu0 0
        %798 = vmatprep.subr.bf16.mxu0 0
        %799 = vmatpush1.bf16.msra.mxu0 0
        %800 = vmatprep.subr.bf16.mxu0 0
        %801 = vmatpush1.bf16.msra.mxu0 0
        %802 = vmatprep.subr.bf16.mxu0 0
        %803 = vmatpush1.bf16.msra.mxu0 0
        %804 = vmatprep.subr.bf16.mxu0 0
        %805 = vmatpush1.bf16.msra.mxu0 0
        %806 = vmatprep.subr.bf16.mxu0 0
        %807 = vmatpush1.bf16.msra.mxu0 0
        %808 = vmatprep.mubr.bf16.mxu0 0
        %809 = vmatmul.mubr.bf16.gmra.mrb[0].mxu0 %v626
        %v810 = vpop.f32.mrb[0].mxu0
        %v811 = vadd.f32 %v336, %v810
        %v812 = vpop.f32.mrb[0].mxu0
        %v813 = vpop.f32.mrb[0].mxu0
        %v814 = vadd.f32 %v336, %v813
        %v815 = vpop.f32.mrb[0].mxu0
        %816 = vmatprep.mubr.bf16.mxu0 0
        %817 = vmatmul.mubr.bf16.gmra.mrb[0].mxu0 %v629
        %v818 = vpop.f32.mrb[0].mxu0
        %v819 = vadd.f32 %v336, %v818
        %v820 = vpop.f32.mrb[0].mxu0
        %v821 = vpop.f32.mrb[0].mxu0
        %v822 = vadd.f32 %v336, %v821
        %v823 = vpop.f32.mrb[0].mxu0
        %824 = vmatprep.mubr.bf16.mxu0 0
        %825 = vmatmul.mubr.bf16.gmra.mrb[0].mxu0 %v632
        %v826 = vpop.f32.mrb[0].mxu0
        %v827 = vadd.f32 %v336, %v826
        %v828 = vpop.f32.mrb[0].mxu0
        %v829 = vpop.f32.mrb[0].mxu0
        %v830 = vadd.f32 %v336, %v829
        %v831 = vpop.f32.mrb[0].mxu0
        %832 = vmatprep.mubr.bf16.mxu0 0
        %833 = vmatmul.mubr.bf16.gmra.mrb[0].mxu0 %v635
        %v834 = vpop.f32.mrb[0].mxu0
        %v835 = vadd.f32 %v336, %v834
        %v836 = vpop.f32.mrb[0].mxu0
        %v837 = vpop.f32.mrb[0].mxu0
        %v838 = vadd.f32 %v336, %v837
        %v839 = vpop.f32.mrb[0].mxu0
        %840 = vmatprep.mubr.bf16.mxu0 0
        %841 = vmatmul.mubr.bf16.gmra.mrb[0].mxu0 %v638
        %v842 = vpop.f32.mrb[0].mxu0
        %v843 = vadd.f32 %v336, %v842
        %v844 = vpop.f32.mrb[0].mxu0
        %v845 = vpop.f32.mrb[0].mxu0
        %v846 = vadd.f32 %v336, %v845
        %v847 = vpop.f32.mrb[0].mxu0
        %848 = vmatprep.mubr.bf16.mxu0 0
        %849 = vmatmul.mubr.bf16.gmra.mrb[0].mxu0 %v641
        %v850 = vpop.f32.mrb[0].mxu0
        %v851 = vadd.f32 %v336, %v850
        %v852 = vpop.f32.mrb[0].mxu0
        %v853 = vpop.f32.mrb[0].mxu0
        %v854 = vadd.f32 %v336, %v853
        %v855 = vpop.f32.mrb[0].mxu0
        %856 = vmatprep.mubr.bf16.mxu0 0
        %857 = vmatmul.mubr.bf16.gmra.mrb[0].mxu0 %v644
        %v858 = vpop.f32.mrb[0].mxu0
        %v859 = vadd.f32 %v336, %v858
        %v860 = vpop.f32.mrb[0].mxu0
        %v861 = vpop.f32.mrb[0].mxu0
        %v862 = vadd.f32 %v336, %v861
        %v863 = vpop.f32.mrb[0].mxu0
        %864 = vmatprep.mubr.bf16.mxu0 0
        %865 = vmatmul.mubr.bf16.gmra.mrb[0].mxu0 %v647
        %v866 = vpop.f32.mrb[0].mxu0
        %v867 = vadd.f32 %v336, %v866
        %v868 = vpop.f32.mrb[0].mxu0
        %v869 = vpop.f32.mrb[0].mxu0
        %v870 = vadd.f32 %v336, %v869
        %v871 = vpop.f32.mrb[0].mxu0
        %872 = vmatprep.mubr.bf16.mxu0 0
        %873 = vmatmul.mubr.bf16.gmra.mrb[0].mxu0 %v650
        %v874 = vpop.f32.mrb[0].mxu0
        %v875 = vadd.f32 %v336, %v874
        %v876 = vpop.f32.mrb[0].mxu0
        %v877 = vpop.f32.mrb[0].mxu0
        %v878 = vadd.f32 %v336, %v877
        %v879 = vpop.f32.mrb[0].mxu0
        %880 = vmatprep.mubr.bf16.mxu0 0
        %881 = vmatmul.mubr.bf16.gmra.mrb[0].mxu0 %v653
        %v882 = vpop.f32.mrb[0].mxu0
        %v883 = vadd.f32 %v336, %v882
        %v884 = vpop.f32.mrb[0].mxu0
        %v885 = vpop.f32.mrb[0].mxu0
        %v886 = vadd.f32 %v336, %v885
        %v887 = vpop.f32.mrb[0].mxu0
        %888 = vmatprep.mubr.bf16.mxu0 0
        %889 = vmatmul.mubr.bf16.gmra.mrb[0].mxu0 %v656
        %v890 = vpop.f32.mrb[0].mxu0
        %v891 = vadd.f32 %v336, %v890
        %v892 = vpop.f32.mrb[0].mxu0
        %v893 = vpop.f32.mrb[0].mxu0
        %v894 = vadd.f32 %v336, %v893
        %v895 = vpop.f32.mrb[0].mxu0
        %896 = vmatprep.mubr.bf16.mxu0 0
        %897 = vmatmul.mubr.bf16.gmra.mrb[0].mxu0 %v659
        %v898 = vpop.f32.mrb[0].mxu0
        %v899 = vadd.f32 %v336, %v898
        %v900 = vpop.f32.mrb[0].mxu0
        %v901 = vpop.f32.mrb[0].mxu0
        %v902 = vadd.f32 %v336, %v901
        %v903 = vpop.f32.mrb[0].mxu0
        %904 = vmatprep.mubr.bf16.mxu0 0
        %905 = vmatmul.mubr.bf16.gmra.mrb[0].mxu0 %v662
        %v906 = vpop.f32.mrb[0].mxu0
        %v907 = vadd.f32 %v336, %v906
        %v908 = vpop.f32.mrb[0].mxu0
        %v909 = vpop.f32.mrb[0].mxu0
        %v910 = vadd.f32 %v336, %v909
        %v911 = vpop.f32.mrb[0].mxu0
        %912 = vmatprep.mubr.bf16.mxu0 0
        %913 = vmatmul.mubr.bf16.gmra.mrb[0].mxu0 %v665
        %v914 = vpop.f32.mrb[0].mxu0
        %v915 = vadd.f32 %v336, %v914
        %v916 = vpop.f32.mrb[0].mxu0
        %v917 = vpop.f32.mrb[0].mxu0
        %v918 = vadd.f32 %v336, %v917
        %v919 = vpop.f32.mrb[0].mxu0
        %920 = vmatprep.mubr.bf16.mxu0 0
        %921 = vmatmul.mubr.bf16.gmra.mrb[0].mxu0 %v668
        %v922 = vpop.f32.mrb[0].mxu0
        %v923 = vadd.f32 %v336, %v922
        %v924 = vpop.f32.mrb[0].mxu0
        %v925 = vpop.f32.mrb[0].mxu0
        %v926 = vadd.f32 %v336, %v925
        %v927 = vpop.f32.mrb[0].mxu0
        %928 = vmatprep.mubr.bf16.mxu0 0
        %929 = vmatmul.mubr.bf16.gmra.mrb[0].mxu0 %v671
        %v930 = vpop.f32.mrb[0].mxu0
        %v931 = vadd.f32 %v336, %v930
        %v932 = vpop.f32.mrb[0].mxu0
        %v933 = vpop.f32.mrb[0].mxu0
        %v934 = vadd.f32 %v336, %v933
        %v935 = vpop.f32.mrb[0].mxu0
        %936 = vmatprep.mubr.bf16.mxu0 0
        %937 = vmatmul.mubr.bf16.gmra.mrb[0].mxu0 %v674
        %v938 = vpop.f32.mrb[0].mxu0
        %v939 = vadd.f32 %v336, %v938
        %v940 = vpop.f32.mrb[0].mxu0
        %v941 = vpop.f32.mrb[0].mxu0
        %v942 = vadd.f32 %v336, %v941
        %v943 = vpop.f32.mrb[0].mxu0
        %944 = vmatprep.mubr.bf16.mxu0 0
        %945 = vmatmul.mubr.bf16.gmra.mrb[0].mxu0 %v677
        %v946 = vpop.f32.mrb[0].mxu0
        %v947 = vadd.f32 %v336, %v946
        %v948 = vpop.f32.mrb[0].mxu0
        %v949 = vpop.f32.mrb[0].mxu0
        %v950 = vadd.f32 %v336, %v949
        %v951 = vpop.f32.mrb[0].mxu0
        %952 = vmatprep.mubr.bf16.mxu0 0
        %953 = vmatmul.mubr.bf16.gmra.mrb[0].mxu0 %v680
        %v954 = vpop.f32.mrb[0].mxu0
        %v955 = vadd.f32 %v336, %v954
        %v956 = vpop.f32.mrb[0].mxu0
        %v957 = vpop.f32.mrb[0].mxu0
        %v958 = vadd.f32 %v336, %v957
        %v959 = vpop.f32.mrb[0].mxu0
        %960 = vmatprep.mubr.bf16.mxu0 0
        %961 = vmatmul.mubr.bf16.gmra.mrb[0].mxu0 %v683
        %v962 = vpop.f32.mrb[0].mxu0
        %v963 = vadd.f32 %v336, %v962
        %v964 = vpop.f32.mrb[0].mxu0
        %v965 = vpop.f32.mrb[0].mxu0
        %v966 = vadd.f32 %v336, %v965
        %v967 = vpop.f32.mrb[0].mxu0
        %968 = vmatprep.mubr.bf16.mxu0 0
        %969 = vmatmul.mubr.bf16.gmra.mrb[0].mxu0 %v686
        %v970 = vpop.f32.mrb[0].mxu0
        %v971 = vadd.f32 %v336, %v970
        %v972 = vpop.f32.mrb[0].mxu0
        %v973 = vpop.f32.mrb[0].mxu0
        %v974 = vadd.f32 %v336, %v973
        %v975 = vpop.f32.mrb[0].mxu0
        %976 = vmatprep.mubr.bf16.mxu0 0
        %977 = vmatmul.mubr.bf16.gmra.mrb[0].mxu0 %v689
        %v978 = vpop.f32.mrb[0].mxu0
        %v979 = vadd.f32 %v336, %v978
        %v980 = vpop.f32.mrb[0].mxu0
        %v981 = vpop.f32.mrb[0].mxu0
        %v982 = vadd.f32 %v336, %v981
        %v983 = vpop.f32.mrb[0].mxu0
        %984 = vmatprep.mubr.bf16.mxu0 0
        %985 = vmatmul.mubr.bf16.gmra.mrb[0].mxu0 %v692
        %v986 = vpop.f32.mrb[0].mxu0
        %v987 = vadd.f32 %v336, %v986
        %v988 = vpop.f32.mrb[0].mxu0
        %v989 = vpop.f32.mrb[0].mxu0
        %v990 = vadd.f32 %v336, %v989
        %v991 = vpop.f32.mrb[0].mxu0
        %992 = vmatprep.mubr.bf16.mxu0 0
        %993 = vmatmul.mubr.bf16.gmra.mrb[0].mxu0 %v695
        %v994 = vpop.f32.mrb[0].mxu0
        %v995 = vadd.f32 %v336, %v994
        %v996 = vpop.f32.mrb[0].mxu0
        %v997 = vpop.f32.mrb[0].mxu0
        %v998 = vadd.f32 %v336, %v997
        %v999 = vpop.f32.mrb[0].mxu0
        %1000 = vmatprep.mubr.bf16.mxu0 0
        %1001 = vmatmul.mubr.bf16.gmra.mrb[0].mxu0 %v698
        %v1002 = vpop.f32.mrb[0].mxu0
        %v1003 = vadd.f32 %v336, %v1002
        %v1004 = vpop.f32.mrb[0].mxu0
        %v1005 = vpop.f32.mrb[0].mxu0
        %v1006 = vadd.f32 %v336, %v1005
        %v1007 = vpop.f32.mrb[0].mxu0
        %1008 = vmatprep.mubr.bf16.mxu0 0
        %1009 = vmatmul.mubr.bf16.gmra.mrb[0].mxu0 %v701
        %v1010 = vpop.f32.mrb[0].mxu0
        %v1011 = vadd.f32 %v336, %v1010
        %v1012 = vpop.f32.mrb[0].mxu0
        %v1013 = vpop.f32.mrb[0].mxu0
        %v1014 = vadd.f32 %v336, %v1013
        %v1015 = vpop.f32.mrb[0].mxu0
        %1016 = vmatprep.mubr.bf16.mxu0 0
        %1017 = vmatmul.mubr.bf16.gmra.mrb[0].mxu0 %v704
        %v1018 = vpop.f32.mrb[0].mxu0
        %v1019 = vadd.f32 %v336, %v1018
        %v1020 = vpop.f32.mrb[0].mxu0
        %v1021 = vpop.f32.mrb[0].mxu0
        %v1022 = vadd.f32 %v336, %v1021
        %v1023 = vpop.f32.mrb[0].mxu0
        %1024 = vmatprep.mubr.bf16.mxu0 0
        %1025 = vmatmul.mubr.bf16.gmra.mrb[0].mxu0 %v707
        %v1026 = vpop.f32.mrb[0].mxu0
        %v1027 = vadd.f32 %v336, %v1026
        %v1028 = vpop.f32.mrb[0].mxu0
        %v1029 = vpop.f32.mrb[0].mxu0
        %v1030 = vadd.f32 %v336, %v1029
        %v1031 = vpop.f32.mrb[0].mxu0
        %1032 = vmatprep.mubr.bf16.mxu0 0
        %1033 = vmatmul.mubr.bf16.gmra.mrb[0].mxu0 %v710
        %v1034 = vpop.f32.mrb[0].mxu0
        %v1035 = vadd.f32 %v336, %v1034
        %v1036 = vpop.f32.mrb[0].mxu0
        %v1037 = vpop.f32.mrb[0].mxu0
        %v1038 = vadd.f32 %v336, %v1037
        %v1039 = vpop.f32.mrb[0].mxu0
        %1040 = vmatprep.mubr.bf16.mxu0 0
        %1041 = vmatmul.mubr.bf16.gmra.mrb[0].mxu0 %v713
        %v1042 = vpop.f32.mrb[0].mxu0
        %v1043 = vadd.f32 %v336, %v1042
        %v1044 = vpop.f32.mrb[0].mxu0
        %v1045 = vpop.f32.mrb[0].mxu0
        %v1046 = vadd.f32 %v336, %v1045
        %v1047 = vpop.f32.mrb[0].mxu0
        %1048 = vmatprep.mubr.bf16.mxu0 0
        %1049 = vmatmul.mubr.bf16.gmra.mrb[0].mxu0 %v716
        %v1050 = vpop.f32.mrb[0].mxu0
        %v1051 = vadd.f32 %v336, %v1050
        %v1052 = vpop.f32.mrb[0].mxu0
        %v1053 = vpop.f32.mrb[0].mxu0
        %v1054 = vadd.f32 %v336, %v1053
        %v1055 = vpop.f32.mrb[0].mxu0
        %1056 = vmatprep.mubr.bf16.mxu0 0
        %1057 = vmatmul.mubr.bf16.gmra.mrb[0].mxu0 %v719
        %v1058 = vpop.f32.mrb[0].mxu0
        %v1059 = vadd.f32 %v336, %v1058
        %v1060 = vpop.f32.mrb[0].mxu0
        %v1061 = vpop.f32.mrb[0].mxu0
        %v1062 = vadd.f32 %v336, %v1061
        %v1063 = vpop.f32.mrb[0].mxu0
        %1064 = vmatprep.mubr.bf16.mxu0 0
        %1065 = vmatmul.mubr.bf16.gmra.mrb[0].mxu0 %v722
        %v1066 = vpop.f32.mrb[0].mxu0
        %v1067 = vadd.f32 %v336, %v1066
        %v1068 = vpop.f32.mrb[0].mxu0
        %v1069 = vpop.f32.mrb[0].mxu0
        %v1070 = vadd.f32 %v336, %v1069
        %v1071 = vpop.f32.mrb[0].mxu0
        %1072 = vmatprep.mubr.bf16.mxu0 0
        %1073 = vmatmul.mubr.bf16.gmra.mrb[0].mxu0 %v725
        %v1074 = vpop.f32.mrb[0].mxu0
        %v1075 = vadd.f32 %v336, %v1074
        %v1076 = vpop.f32.mrb[0].mxu0
        %v1077 = vpop.f32.mrb[0].mxu0
        %v1078 = vadd.f32 %v336, %v1077
        %v1079 = vpop.f32.mrb[0].mxu0
        %1080 = vmatprep.mubr.bf16.mxu0 0
        %1081 = vmatmul.mubr.bf16.gmra.mrb[0].mxu0 %v728
        %v1082 = vpop.f32.mrb[0].mxu0
        %v1083 = vadd.f32 %v336, %v1082
        %v1084 = vpop.f32.mrb[0].mxu0
        %v1085 = vpop.f32.mrb[0].mxu0
        %v1086 = vadd.f32 %v336, %v1085
        %v1087 = vpop.f32.mrb[0].mxu0
        %1088 = vmatprep.mubr.bf16.mxu0 0
        %1089 = vmatmul.mubr.bf16.gmra.mrb[0].mxu0 %v731
        %v1090 = vpop.f32.mrb[0].mxu0
        %v1091 = vadd.f32 %v336, %v1090
        %v1092 = vpop.f32.mrb[0].mxu0
        %v1093 = vpop.f32.mrb[0].mxu0
        %v1094 = vadd.f32 %v336, %v1093
        %v1095 = vpop.f32.mrb[0].mxu0
        %1096 = vmatprep.mubr.bf16.mxu0 0
        %1097 = vmatmul.mubr.bf16.gmra.mrb[0].mxu0 %v734
        %v1098 = vpop.f32.mrb[0].mxu0
        %v1099 = vadd.f32 %v336, %v1098
        %v1100 = vpop.f32.mrb[0].mxu0
        %v1101 = vpop.f32.mrb[0].mxu0
        %v1102 = vadd.f32 %v336, %v1101
        %v1103 = vpop.f32.mrb[0].mxu0
        %1104 = vmatprep.mubr.bf16.mxu0 0
        %1105 = vmatmul.mubr.bf16.gmra.mrb[0].mxu0 %v737
        %v1106 = vpop.f32.mrb[0].mxu0
        %v1107 = vadd.f32 %v336, %v1106
        %v1108 = vpop.f32.mrb[0].mxu0
        %v1109 = vpop.f32.mrb[0].mxu0
        %v1110 = vadd.f32 %v336, %v1109
        %v1111 = vpop.f32.mrb[0].mxu0
        %1112 = vmatprep.mubr.bf16.mxu0 0
        %1113 = vmatmul.mubr.bf16.gmra.mrb[0].mxu0 %v740
        %v1114 = vpop.f32.mrb[0].mxu0
        %v1115 = vadd.f32 %v336, %v1114
        %v1116 = vpop.f32.mrb[0].mxu0
        %v1117 = vpop.f32.mrb[0].mxu0
        %v1118 = vadd.f32 %v336, %v1117
        %v1119 = vpop.f32.mrb[0].mxu0
        %1120 = vmatprep.mubr.bf16.mxu0 0
        %1121 = vmatmul.mubr.bf16.gmra.mrb[0].mxu0 %v743
        %v1122 = vpop.f32.mrb[0].mxu0
        %v1123 = vadd.f32 %v336, %v1122
        %v1124 = vpop.f32.mrb[0].mxu0
        %v1125 = vpop.f32.mrb[0].mxu0
        %v1126 = vadd.f32 %v336, %v1125
        %v1127 = vpop.f32.mrb[0].mxu0
        %1128 = vmatprep.mubr.bf16.mxu0 0
        %1129 = vmatmul.mubr.bf16.gmra.mrb[0].mxu0 %v746
        %v1130 = vpop.f32.mrb[0].mxu0
        %v1131 = vadd.f32 %v336, %v1130
        %v1132 = vpop.f32.mrb[0].mxu0
        %v1133 = vpop.f32.mrb[0].mxu0
        %v1134 = vadd.f32 %v336, %v1133
        %v1135 = vpop.f32.mrb[0].mxu0
        %1136 = vmatprep.mubr.bf16.mxu0 0
        %1137 = vmatmul.mubr.bf16.gmra.mrb[0].mxu0 %v749
        %v1138 = vpop.f32.mrb[0].mxu0
        %v1139 = vadd.f32 %v336, %v1138
        %v1140 = vpop.f32.mrb[0].mxu0
        %v1141 = vpop.f32.mrb[0].mxu0
        %v1142 = vadd.f32 %v336, %v1141
        %v1143 = vpop.f32.mrb[0].mxu0
        %1144 = vmatprep.mubr.bf16.mxu0 0
        %1145 = vmatmul.mubr.bf16.gmra.mrb[0].mxu0 %v752
        %v1146 = vpop.f32.mrb[0].mxu0
        %v1147 = vadd.f32 %v336, %v1146
        %v1148 = vpop.f32.mrb[0].mxu0
        %v1149 = vpop.f32.mrb[0].mxu0
        %v1150 = vadd.f32 %v336, %v1149
        %v1151 = vpop.f32.mrb[0].mxu0
        %1152 = vmatprep.mubr.bf16.mxu0 0
        %1153 = vmatmul.mubr.bf16.gmra.mrb[0].mxu0 %v755
        %v1154 = vpop.f32.mrb[0].mxu0
        %v1155 = vadd.f32 %v336, %v1154
        %v1156 = vpop.f32.mrb[0].mxu0
        %v1157 = vpop.f32.mrb[0].mxu0
        %v1158 = vadd.f32 %v336, %v1157
        %v1159 = vpop.f32.mrb[0].mxu0
        %1160 = vmatprep.mubr.bf16.mxu0 0
        %1161 = vmatmul.mubr.bf16.gmra.mrb[0].mxu0 %v758
        %v1162 = vpop.f32.mrb[0].mxu0
        %v1163 = vadd.f32 %v336, %v1162
        %v1164 = vpop.f32.mrb[0].mxu0
        %v1165 = vpop.f32.mrb[0].mxu0
        %v1166 = vadd.f32 %v336, %v1165
        %v1167 = vpop.f32.mrb[0].mxu0
        %1168 = vmatprep.mubr.bf16.mxu0 0
        %1169 = vmatmul.mubr.bf16.gmra.mrb[0].mxu0 %v761
        %v1170 = vpop.f32.mrb[0].mxu0
        %v1171 = vadd.f32 %v336, %v1170
        %v1172 = vpop.f32.mrb[0].mxu0
        %v1173 = vpop.f32.mrb[0].mxu0
        %v1174 = vadd.f32 %v336, %v1173
        %v1175 = vpop.f32.mrb[0].mxu0
        %1176 = vmatprep.mubr.bf16.mxu0 0
        %1177 = vmatmul.mubr.bf16.gmra.mrb[0].mxu0 %v764
        %v1178 = vpop.f32.mrb[0].mxu0
        %v1179 = vadd.f32 %v336, %v1178
        %v1180 = vpop.f32.mrb[0].mxu0
        %v1181 = vpop.f32.mrb[0].mxu0
        %v1182 = vadd.f32 %v336, %v1181
        %v1183 = vpop.f32.mrb[0].mxu0
        %1184 = vmatprep.mubr.bf16.mxu0 0
        %1185 = vmatmul.mubr.bf16.gmra.mrb[0].mxu0 %v767
        %v1186 = vpop.f32.mrb[0].mxu0
        %v1187 = vadd.f32 %v336, %v1186
        %v1188 = vpop.f32.mrb[0].mxu0
        %v1189 = vpop.f32.mrb[0].mxu0
        %v1190 = vadd.f32 %v336, %v1189
        %v1191 = vpop.f32.mrb[0].mxu0
        %1192 = vmatprep.mubr.bf16.mxu0 0
        %1193 = vmatmul.mubr.bf16.gmra.mrb[0].mxu0 %v770
        %v1194 = vpop.f32.mrb[0].mxu0
        %v1195 = vadd.f32 %v336, %v1194
        %v1196 = vpop.f32.mrb[0].mxu0
        %v1197 = vpop.f32.mrb[0].mxu0
        %v1198 = vadd.f32 %v336, %v1197
        %v1199 = vpop.f32.mrb[0].mxu0
        %1200 = vdwg.mxu0
        %vm1201 = vcmask 97280
        %1202 = vst.msk [vmem:[%s215] sm:$0xff] %vm1201, %v811
        %1203 = vst.msk [vmem:[%s215 + $0x8] sm:$0xff] %vm1201, %v814
        %1204 = vst.msk [vmem:[%s215 + $0x10] sm:$0xff] %vm1201, %v819
        %1205 = vst.msk [vmem:[%s215 + $0x18] sm:$0xff] %vm1201, %v822
        %1206 = vst.msk [vmem:[%s215 + $0x20] sm:$0xff] %vm1201, %v827
        %1207 = vst.msk [vmem:[%s215 + $0x28] sm:$0xff] %vm1201, %v830
        %1208 = vst.msk [vmem:[%s215 + $0x30] sm:$0xff] %vm1201, %v835
        %1209 = vst.msk [vmem:[%s215 + $0x38] sm:$0xff] %vm1201, %v838
        %1210 = vst.msk [vmem:[%s215 + $0x40] sm:$0xff] %vm1201, %v843
        %1211 = vst.msk [vmem:[%s215 + $0x48] sm:$0xff] %vm1201, %v846
        %1212 = vst.msk [vmem:[%s215 + $0x50] sm:$0xff] %vm1201, %v851
        %1213 = vst.msk [vmem:[%s215 + $0x58] sm:$0xff] %vm1201, %v854
        %1214 = vst.msk [vmem:[%s215 + $0x60] sm:$0xff] %vm1201, %v859
        %1215 = vst.msk [vmem:[%s215 + $0x68] sm:$0xff] %vm1201, %v862
        %1216 = vst.msk [vmem:[%s215 + $0x70] sm:$0xff] %vm1201, %v867
        %1217 = vst.msk [vmem:[%s215 + $0x78] sm:$0xff] %vm1201, %v870
        %1218 = vst.msk [vmem:[%s215 + $0x80] sm:$0xff] %vm1201, %v875
        %1219 = vst.msk [vmem:[%s215 + $0x88] sm:$0xff] %vm1201, %v878
        %1220 = vst.msk [vmem:[%s215 + $0x90] sm:$0xff] %vm1201, %v883
        %1221 = vst.msk [vmem:[%s215 + $0x98] sm:$0xff] %vm1201, %v886
        %1222 = vst.msk [vmem:[%s215 + $0xa0] sm:$0xff] %vm1201, %v891
        %1223 = vst.msk [vmem:[%s215 + $0xa8] sm:$0xff] %vm1201, %v894
        %1224 = vst.msk [vmem:[%s215 + $0xb0] sm:$0xff] %vm1201, %v899
        %1225 = vst.msk [vmem:[%s215 + $0xb8] sm:$0xff] %vm1201, %v902
        %1226 = vst.msk [vmem:[%s215 + $0xc0] sm:$0xff] %vm1201, %v907
        %1227 = vst.msk [vmem:[%s215 + $0xc8] sm:$0xff] %vm1201, %v910
        %1228 = vst.msk [vmem:[%s215 + $0xd0] sm:$0xff] %vm1201, %v915
        %1229 = vst.msk [vmem:[%s215 + $0xd8] sm:$0xff] %vm1201, %v918
        %1230 = vst.msk [vmem:[%s215 + $0xe0] sm:$0xff] %vm1201, %v923
        %1231 = vst.msk [vmem:[%s215 + $0xe8] sm:$0xff] %vm1201, %v926
        %1232 = vst.msk [vmem:[%s215 + $0xf0] sm:$0xff] %vm1201, %v931
        %1233 = vst.msk [vmem:[%s215 + $0xf8] sm:$0xff] %vm1201, %v934
        %1234 = vst.msk [vmem:[%s215 + $0x100] sm:$0xff] %vm1201, %v939
        %1235 = vst.msk [vmem:[%s215 + $0x108] sm:$0xff] %vm1201, %v942
        %1236 = vst.msk [vmem:[%s215 + $0x110] sm:$0xff] %vm1201, %v947
        %1237 = vst.msk [vmem:[%s215 + $0x118] sm:$0xff] %vm1201, %v950
        %1238 = vst.msk [vmem:[%s215 + $0x120] sm:$0xff] %vm1201, %v955
        %1239 = vst.msk [vmem:[%s215 + $0x128] sm:$0xff] %vm1201, %v958
        %1240 = vst.msk [vmem:[%s215 + $0x130] sm:$0xff] %vm1201, %v963
        %1241 = vst.msk [vmem:[%s215 + $0x138] sm:$0xff] %vm1201, %v966
        %1242 = vst.msk [vmem:[%s215 + $0x140] sm:$0xff] %vm1201, %v971
        %1243 = vst.msk [vmem:[%s215 + $0x148] sm:$0xff] %vm1201, %v974
        %1244 = vst.msk [vmem:[%s215 + $0x150] sm:$0xff] %vm1201, %v979
        %1245 = vst.msk [vmem:[%s215 + $0x158] sm:$0xff] %vm1201, %v982
        %1246 = vst.msk [vmem:[%s215 + $0x160] sm:$0xff] %vm1201, %v987
        %1247 = vst.msk [vmem:[%s215 + $0x168] sm:$0xff] %vm1201, %v990
        %1248 = vst.msk [vmem:[%s215 + $0x170] sm:$0xff] %vm1201, %v995
        %1249 = vst.msk [vmem:[%s215 + $0x178] sm:$0xff] %vm1201, %v998
        %1250 = vst.msk [vmem:[%s215 + $0x180] sm:$0xff] %vm1201, %v1003
        %1251 = vst.msk [vmem:[%s215 + $0x188] sm:$0xff] %vm1201, %v1006
        %1252 = vst.msk [vmem:[%s215 + $0x190] sm:$0xff] %vm1201, %v1011
        %1253 = vst.msk [vmem:[%s215 + $0x198] sm:$0xff] %vm1201, %v1014
        %1254 = vst.msk [vmem:[%s215 + $0x1a0] sm:$0xff] %vm1201, %v1019
        %1255 = vst.msk [vmem:[%s215 + $0x1a8] sm:$0xff] %vm1201, %v1022
        %1256 = vst.msk [vmem:[%s215 + $0x1b0] sm:$0xff] %vm1201, %v1027
        %1257 = vst.msk [vmem:[%s215 + $0x1b8] sm:$0xff] %vm1201, %v1030
        %1258 = vst.msk [vmem:[%s215 + $0x1c0] sm:$0xff] %vm1201, %v1035
        %1259 = vst.msk [vmem:[%s215 + $0x1c8] sm:$0xff] %vm1201, %v1038
        %1260 = vst.msk [vmem:[%s215 + $0x1d0] sm:$0xff] %vm1201, %v1043
        %1261 = vst.msk [vmem:[%s215 + $0x1d8] sm:$0xff] %vm1201, %v1046
        %1262 = vst.msk [vmem:[%s215 + $0x1e0] sm:$0xff] %vm1201, %v1051
        %1263 = vst.msk [vmem:[%s215 + $0x1e8] sm:$0xff] %vm1201, %v1054
        %1264 = vst.msk [vmem:[%s215 + $0x1f0] sm:$0xff] %vm1201, %v1059
        %1265 = vst.msk [vmem:[%s215 + $0x1f8] sm:$0xff] %vm1201, %v1062
        %1266 = vst.msk [vmem:[%s215 + $0x200] sm:$0xff] %vm1201, %v1067
        %1267 = vst.msk [vmem:[%s215 + $0x208] sm:$0xff] %vm1201, %v1070
        %1268 = vst.msk [vmem:[%s215 + $0x210] sm:$0xff] %vm1201, %v1075
        %1269 = vst.msk [vmem:[%s215 + $0x218] sm:$0xff] %vm1201, %v1078
        %1270 = vst.msk [vmem:[%s215 + $0x220] sm:$0xff] %vm1201, %v1083
        %1271 = vst.msk [vmem:[%s215 + $0x228] sm:$0xff] %vm1201, %v1086
        %1272 = vst.msk [vmem:[%s215 + $0x230] sm:$0xff] %vm1201, %v1091
        %1273 = vst.msk [vmem:[%s215 + $0x238] sm:$0xff] %vm1201, %v1094
        %1274 = vst.msk [vmem:[%s215 + $0x240] sm:$0xff] %vm1201, %v1099
        %1275 = vst.msk [vmem:[%s215 + $0x248] sm:$0xff] %vm1201, %v1102
        %1276 = vst.msk [vmem:[%s215 + $0x250] sm:$0xff] %vm1201, %v1107
        %1277 = vst.msk [vmem:[%s215 + $0x258] sm:$0xff] %vm1201, %v1110
        %1278 = vst.msk [vmem:[%s215 + $0x260] sm:$0xff] %vm1201, %v1115
        %1279 = vst.msk [vmem:[%s215 + $0x268] sm:$0xff] %vm1201, %v1118
        %1280 = vst.msk [vmem:[%s215 + $0x270] sm:$0xff] %vm1201, %v1123
        %1281 = vst.msk [vmem:[%s215 + $0x278] sm:$0xff] %vm1201, %v1126
        %1282 = vst.msk [vmem:[%s215 + $0x280] sm:$0xff] %vm1201, %v1131
        %1283 = vst.msk [vmem:[%s215 + $0x288] sm:$0xff] %vm1201, %v1134
        %1284 = vst.msk [vmem:[%s215 + $0x290] sm:$0xff] %vm1201, %v1139
        %1285 = vst.msk [vmem:[%s215 + $0x298] sm:$0xff] %vm1201, %v1142
        %1286 = vst.msk [vmem:[%s215 + $0x2a0] sm:$0xff] %vm1201, %v1147
        %1287 = vst.msk [vmem:[%s215 + $0x2a8] sm:$0xff] %vm1201, %v1150
        %1288 = vst.msk [vmem:[%s215 + $0x2b0] sm:$0xff] %vm1201, %v1155
        %1289 = vst.msk [vmem:[%s215 + $0x2b8] sm:$0xff] %vm1201, %v1158
        %1290 = vst.msk [vmem:[%s215 + $0x2c0] sm:$0xff] %vm1201, %v1163
        %1291 = vst.msk [vmem:[%s215 + $0x2c8] sm:$0xff] %vm1201, %v1166
        %1292 = vst.msk [vmem:[%s215 + $0x2d0] sm:$0xff] %vm1201, %v1171
        %1293 = vst.msk [vmem:[%s215 + $0x2d8] sm:$0xff] %vm1201, %v1174
        %1294 = vst.msk [vmem:[%s215 + $0x2e0] sm:$0xff] %vm1201, %v1179
        %1295 = vst.msk [vmem:[%s215 + $0x2e8] sm:$0xff] %vm1201, %v1182
        %1296 = vst.msk [vmem:[%s215 + $0x2f0] sm:$0xff] %vm1201, %v1187
        %1297 = vst.msk [vmem:[%s215 + $0x2f8] sm:$0xff] %vm1201, %v1190
        %1298 = vst.msk [vmem:[%s215 + $0x300] sm:$0xff] %vm1201, %v1195
        %1299 = vst.msk [vmem:[%s215 + $0x308] sm:$0xff] %vm1201, %v1198
        %s1300 = sand.u32 %s97, 1
        %s1301 = scalar_lea.sflag [#allocation4], %s1300
        %s1302 = sand.u32 %s97, 1
        %s1303 = smul.addr %s1302, 784
        %s1304 = scalar_lea.vmem [#allocation8], %s1303
        // Predicated region
        $region45: #{visual_modality_forward.7} parent=31 // pred_check
          %p1305 = pneg %p107
        $region46: #{visual_modality_forward.7} parent=31 // pred_check_branch
          %1307 = sbr.rel (%p1305) target = $region48
        $region47: #{visual_modality_forward.7} parent=31 // pred_region
          %s1308 = smul.u32 98, %s21
          %s1310 = ssub.s32 12544, 12544
          %1311 = vsyncadd %s1301, %s1310
          %s1312 = smul.addr %s1308, 128
          %s1313 = scalar_lea.hbm %s3, %s1312
          %s1314 = sshll.u32 %s1304, 4
          %s1315 = int_to_ptr.vmem [resolvable:$true] %s1314
          %1320 = dma.vmem_to_hbm [thread:$0]  %s1315, 12544, %s1313, %s1301, 128, 128, 8
        $region48: #{visual_modality_forward.7} parent=31 // pred_fallthru
          _
      $region32: #{visual_modality_forward.7} parent=5 // pred_fallthru
        _
      %p1321 = scmp.le.s32.totalorder 2, %s16
      // Predicated region
      $region49: #{visual_modality_forward.7} parent=5 // pred_check
        %p1322 = pneg %p1321
      $region50: #{visual_modality_forward.7} parent=5 // pred_check_branch
        %1324 = sbr.rel (%p1322) target = $region52
      $region51: #{visual_modality_forward.7} parent=5 // pred_region
        %s1325 = ssub.s32 %s16, 2
        // Predicated region
        $region53: #{visual_modality_forward.7} parent=51 // pred_check
          %p1326 = pneg %p113
        $region54: #{visual_modality_forward.7} parent=51 // pred_check_branch
          %1328 = sbr.rel (%p1326) target = $region56
        $region55: #{visual_modality_forward.7} parent=51 // pred_region
          %s1329 = sand.u32 %s98, 1
          %s1330 = scalar_lea.sflag [#allocation4], %s1329
          %s1331 = sand.u32 %s98, 1
          %s1332 = smul.addr %s1331, 784
          %s1333 = scalar_lea.vmem [#allocation8], %s1332
          %1334 = dma.done %s1330, 12544
        $region56: #{visual_modality_forward.7} parent=51 // pred_fallthru
          _
      $region52: #{visual_modality_forward.7} parent=5 // pred_fallthru
        _
    $region6: #{visual_modality_forward.7} parent=1 // loop_footer
      %s20 = sadd.s32 1, %s16
    $region7: #{visual_modality_forward.7} parent=1 // loop_footer_branch
      %15 = sbr.rel target = $region3
    $region8: #{visual_modality_forward.7} parent=1 // loop_exit
      _
    %1335 = vsyncpa [#allocation3], 1
    %s1336 = scalar_lea.sflag [#allocation3], 1
    %1337 = vsyncpa %s1336, 1
    %1338 = vsyncpa [#allocation6], 1
    %1339 = vsyncpa [#allocation4], 1
    %s1340 = scalar_lea.sflag [#allocation4], 1
    %1341 = vsyncpa %s1340, 1

// kernel: visual_modality_forward.8
$region0: #{visual_modality_forward.8}
  #allocation0 [shape = 'u32[]', space=smem, size = 0x4, offset = 0x4, fixed_abs, tag = 'smem constant byte address 0x4 - core index']
  #allocation1 [shape = 'u32[144,128]{1,0:T(1,128)}', space=vmem, size = 0x12000, scoped, tag = 'internal scratch']
  %s0 = inlined_call_operand.hbm [shape: f32[2,14,168], index: 0, kind: input, shape index: {}]
  %s1 = inlined_call_operand.hbm [shape: f32[2,14,180], index: 1, kind: input, shape index: {}]
  %s2 = inlined_call_operand.hbm [shape: f32[2,14,168], index: 2, kind: input, shape index: {}]
  %s3 = inlined_call_operand.hbm [shape: f32[2,14,180], index: 3, kind: input, shape index: {}]
  %s4 = inlined_call_operand.hbm [shape: f32[1,180], index: 4, kind: input, shape index: {}]
  %s5 = inlined_call_operand.hbm [shape: f32[1,180], index: 5, kind: input, shape index: {}]
  %s6 = inlined_call_operand.hbm [shape: f32[2,14,168], index: 6, kind: output, shape index: {}]
  %s7 = sld [smem:[#allocation0]]
  $region81: #{visual_modality_forward.8} parent=0
    _
  %s9 = ssub.s32 1, %s7
  %s10 = scalar_select 0, %s9, %s7
  $region1: #{visual_modality_forward.8} parent=0
    #allocation2 [shape = 'u8[32768]{0}', space=vmem, size = 0x8000, scoped, tag = 'input window, operand 0']
    #allocation3 [shape = 's32[2]{0}', space=sflag, size = 0x8, scoped, tag = 'scoped memory for visual_modality_forward.8']
    #allocation4 [shape = 's32[2]{0}', space=sflag, size = 0x8, scoped, tag = 'scoped memory for visual_modality_forward.8']
    #allocation5 [shape = 'u8[32768]{0}', space=vmem, size = 0x8000, scoped, tag = 'input window, operand 1']
    #allocation6 [shape = 's32[2]{0}', space=sflag, size = 0x8, scoped, tag = 'scoped memory for visual_modality_forward.8']
    #allocation7 [shape = 'u8[32768]{0}', space=vmem, size = 0x8000, scoped, tag = 'input window, operand 2']
    #allocation8 [shape = 'u8[32768]{0}', space=vmem, size = 0x8000, scoped, tag = 'input window, operand 3']
    #allocation9 [shape = 's32[2]{0}', space=sflag, size = 0x8, scoped, tag = 'scoped memory for visual_modality_forward.8']
    #allocation10 [shape = 'u8[1024]{0}', space=vmem, size = 0x400, scoped, tag = 'input window, operand 4, single buffered']
    #allocation11 [shape = 'u8[1024]{0}', space=vmem, size = 0x400, scoped, tag = 'input window, operand 5, single buffered']
    #allocation12 [shape = 's32[1]{0}', space=sflag, size = 0x4, scoped, tag = 'scoped memory for visual_modality_forward.8']
    #allocation13 [shape = 'u8[32768]{0}', space=vmem, size = 0x8000, scoped, tag = 'output window, operand 0']
    %11 = vsyncpa [#allocation3], 0
    %s12 = scalar_lea.sflag [#allocation3], 1
    %13 = vsyncpa %s12, 0
    %14 = vsyncpa [#allocation6], 0
    %s15 = scalar_lea.sflag [#allocation6], 1
    %16 = vsyncpa %s15, 0
    %17 = vsyncpa [#allocation9], 0
    %s18 = scalar_lea.sflag [#allocation9], 1
    %19 = vsyncpa %s18, 0
    %20 = vsyncpa [#allocation12], 0
    %21 = vsyncpa [#allocation4], 0
    %s22 = scalar_lea.sflag [#allocation4], 1
    %23 = vsyncpa %s22, 0
    loop: start=0, step=1, limit=4
    $region2: #{visual_modality_forward.8} parent=1 // loop_pre_header
      _
    $region3: #{visual_modality_forward.8} parent=1 // loop_header
      %s25 = sphi 0, %s29
      %p26 = scmp.ge.s32.totalorder %s25, 4
      %s35 = sphi 0, %s37
      %s38 = sphi 0, %s35
      %s39 = sphi 0, %s38
      %s55 = sphi 0, %s39
      %s61 = sphi 0, %s63
      %s64 = sphi 0, %s61
      %s65 = sphi 0, %s64
      %s81 = sphi 0, %s65
      %s87 = sphi 0, %s89
      %s90 = sphi 0, %s87
      %s91 = sphi 0, %s90
      %s107 = sphi 0, %s91
      %s113 = sphi 0, %s115
      %s116 = sphi 0, %s113
      %s117 = sphi 0, %s116
      %s133 = sphi 0, %s117
      %s137 = sphi 0, %s137
      %s139 = sphi 0, %s137
      %s140 = sphi 0, %s139
      %s154 = sphi 0, %s140
      %s158 = sphi 0, %s158
      %s160 = sphi 0, %s158
      %s161 = sphi 0, %s160
      %s175 = sphi 0, %s161
      %s181 = sphi 0, %s183
      %s184 = sphi 0, %s181
      %s185 = sphi 0, %s184
      %s201 = sphi 0, %s185
    $region4: #{visual_modality_forward.8} parent=1 // loop_header_branch
      %28 = sbr.rel (%p26) target = $region8
    $region5: #{visual_modality_forward.8} parent=1 // loop_body
      %s30 = ssub.s32 %s25, 1
      %s31 = ssub.s32 %s25, 2
      %s32 = sadd.s32 %s25, 1
      %s33 = ssub.s32 %s25, %s32
      %p34 = scmp.eq.s32.totalorder %s33, 0
      %s36 = sadd.s32 %s35, 1
      %s37 = scalar_select %p34, %s35, %s36
      %p40 = pneg %p34
      %p41 = scmp.eq.s32.totalorder %s25, 1
      %p42 = por %p40, %p41
      %p43 = scmp.ne.s32.totalorder %s35, %s38
      %p44 = scmp.eq.s32.totalorder %s25, 0
      %p45 = por %p43, %p44
      %p46 = scmp.ne.s32.totalorder %s35, %s38
      %p47 = scmp.eq.s32.totalorder %s30, 1
      %p48 = por %p46, %p47
      %p49 = scmp.ne.s32.totalorder %s38, %s39
      %p50 = scmp.eq.s32.totalorder %s30, 0
      %p51 = por %p49, %p50
      %p52 = scmp.ne.s32.totalorder %s38, %s39
      %p53 = scmp.eq.s32.totalorder %s31, 1
      %p54 = por %p52, %p53
      %p56 = scmp.ne.s32.totalorder %s39, %s55
      %p57 = scmp.eq.s32.totalorder %s31, 0
      %p58 = por %p56, %p57
      %s59 = ssub.s32 %s25, %s32
      %p60 = scmp.eq.s32.totalorder %s59, 0
      %s62 = sadd.s32 %s61, 1
      %s63 = scalar_select %p60, %s61, %s62
      %p66 = pneg %p60
      %p67 = scmp.eq.s32.totalorder %s25, 1
      %p68 = por %p66, %p67
      %p69 = scmp.ne.s32.totalorder %s61, %s64
      %p70 = scmp.eq.s32.totalorder %s25, 0
      %p71 = por %p69, %p70
      %p72 = scmp.ne.s32.totalorder %s61, %s64
      %p73 = scmp.eq.s32.totalorder %s30, 1
      %p74 = por %p72, %p73
      %p75 = scmp.ne.s32.totalorder %s64, %s65
      %p76 = scmp.eq.s32.totalorder %s30, 0
      %p77 = por %p75, %p76
      %p78 = scmp.ne.s32.totalorder %s64, %s65
      %p79 = scmp.eq.s32.totalorder %s31, 1
      %p80 = por %p78, %p79
      %p82 = scmp.ne.s32.totalorder %s65, %s81
      %p83 = scmp.eq.s32.totalorder %s31, 0
      %p84 = por %p82, %p83
      %s85 = ssub.s32 %s25, %s32
      %p86 = scmp.eq.s32.totalorder %s85, 0
      %s88 = sadd.s32 %s87, 1
      %s89 = scalar_select %p86, %s87, %s88
      %p92 = pneg %p86
      %p93 = scmp.eq.s32.totalorder %s25, 1
      %p94 = por %p92, %p93
      %p95 = scmp.ne.s32.totalorder %s87, %s90
      %p96 = scmp.eq.s32.totalorder %s25, 0
      %p97 = por %p95, %p96
      %p98 = scmp.ne.s32.totalorder %s87, %s90
      %p99 = scmp.eq.s32.totalorder %s30, 1
      %p100 = por %p98, %p99
      %p101 = scmp.ne.s32.totalorder %s90, %s91
      %p102 = scmp.eq.s32.totalorder %s30, 0
      %p103 = por %p101, %p102
      %p104 = scmp.ne.s32.totalorder %s90, %s91
      %p105 = scmp.eq.s32.totalorder %s31, 1
      %p106 = por %p104, %p105
      %p108 = scmp.ne.s32.totalorder %s91, %s107
      %p109 = scmp.eq.s32.totalorder %s31, 0
      %p110 = por %p108, %p109
      %s111 = ssub.s32 %s25, %s32
      %p112 = scmp.eq.s32.totalorder %s111, 0
      %s114 = sadd.s32 %s113, 1
      %s115 = scalar_select %p112, %s113, %s114
      %p118 = pneg %p112
      %p119 = scmp.eq.s32.totalorder %s25, 1
      %p120 = por %p118, %p119
      %p121 = scmp.ne.s32.totalorder %s113, %s116
      %p122 = scmp.eq.s32.totalorder %s25, 0
      %p123 = por %p121, %p122
      %p124 = scmp.ne.s32.totalorder %s113, %s116
      %p125 = scmp.eq.s32.totalorder %s30, 1
      %p126 = por %p124, %p125
      %p127 = scmp.ne.s32.totalorder %s116, %s117
      %p128 = scmp.eq.s32.totalorder %s30, 0
      %p129 = por %p127, %p128
      %p130 = scmp.ne.s32.totalorder %s116, %s117
      %p131 = scmp.eq.s32.totalorder %s31, 1
      %p132 = por %p130, %p131
      %p134 = scmp.ne.s32.totalorder %s117, %s133
      %p135 = scmp.eq.s32.totalorder %s31, 0
      %p136 = por %p134, %p135
      %s138 = sadd.s32 %s137, 1
      %p141 = scmp.eq.s32.totalorder %s25, 1
      %p142 = scmp.ne.s32.totalorder %s137, %s139
      %p143 = scmp.eq.s32.totalorder %s25, 0
      %p144 = por %p142, %p143
      %p145 = scmp.ne.s32.totalorder %s137, %s139
      %p146 = scmp.eq.s32.totalorder %s30, 1
      %p147 = por %p145, %p146
      %p148 = scmp.ne.s32.totalorder %s139, %s140
      %p149 = scmp.eq.s32.totalorder %s30, 0
      %p150 = por %p148, %p149
      %p151 = scmp.ne.s32.totalorder %s139, %s140
      %p152 = scmp.eq.s32.totalorder %s31, 1
      %p153 = por %p151, %p152
      %p155 = scmp.ne.s32.totalorder %s140, %s154
      %p156 = scmp.eq.s32.totalorder %s31, 0
      %p157 = por %p155, %p156
      %s159 = sadd.s32 %s158, 1
      %p162 = scmp.eq.s32.totalorder %s25, 1
      %p163 = scmp.ne.s32.totalorder %s158, %s160
      %p164 = scmp.eq.s32.totalorder %s25, 0
      %p165 = por %p163, %p164
      %p166 = scmp.ne.s32.totalorder %s158, %s160
      %p167 = scmp.eq.s32.totalorder %s30, 1
      %p168 = por %p166, %p167
      %p169 = scmp.ne.s32.totalorder %s160, %s161
      %p170 = scmp.eq.s32.totalorder %s30, 0
      %p171 = por %p169, %p170
      %p172 = scmp.ne.s32.totalorder %s160, %s161
      %p173 = scmp.eq.s32.totalorder %s31, 1
      %p174 = por %p172, %p173
      %p176 = scmp.ne.s32.totalorder %s161, %s175
      %p177 = scmp.eq.s32.totalorder %s31, 0
      %p178 = por %p176, %p177
      %s179 = ssub.s32 %s25, %s32
      %p180 = scmp.eq.s32.totalorder %s179, 0
      %s182 = sadd.s32 %s181, 1
      %s183 = scalar_select %p180, %s181, %s182
      %p186 = pneg %p180
      %p187 = scmp.eq.s32.totalorder %s25, 1
      %p188 = por %p186, %p187
      %p189 = scmp.ne.s32.totalorder %s181, %s184
      %p190 = scmp.eq.s32.totalorder %s25, 0
      %p191 = por %p189, %p190
      %p192 = scmp.ne.s32.totalorder %s181, %s184
      %p193 = scmp.eq.s32.totalorder %s30, 1
      %p194 = por %p192, %p193
      %p195 = scmp.ne.s32.totalorder %s184, %s185
      %p196 = scmp.eq.s32.totalorder %s30, 0
      %p197 = por %p195, %p196
      %p198 = scmp.ne.s32.totalorder %s184, %s185
      %p199 = scmp.eq.s32.totalorder %s31, 1
      %p200 = por %p198, %p199
      %p202 = scmp.ne.s32.totalorder %s185, %s201
      %p203 = scmp.eq.s32.totalorder %s31, 0
      %p204 = por %p202, %p203
      %p205 = scmp.le.s32.totalorder 1, %s25
      %p206 = scmp.lt.s32.totalorder %s25, 3
      %p207 = pnand %p205, %p206
      %p208 = pneg %p207
      // Predicated region
      $region9: #{visual_modality_forward.8} parent=5 // pred_check
        _
      $region10: #{visual_modality_forward.8} parent=5 // pred_check_branch
        %210 = sbr.rel (%p207) target = $region12
      $region11: #{visual_modality_forward.8} parent=5 // pred_region
        %s211 = ssub.s32 %s25, 1
        // Predicated region
        $region13: #{visual_modality_forward.8} parent=11 // pred_check
          %p212 = pneg %p150
        $region14: #{visual_modality_forward.8} parent=11 // pred_check_branch
          %214 = sbr.rel (%p212) target = $region16
        $region15: #{visual_modality_forward.8} parent=11 // pred_region
          %s216 = ssub.s32 32, 32
          %217 = vsyncadd [#allocation9], %s216
          %s219 = sshll.u32 [#allocation10], 4
          %s220 = int_to_ptr.vmem [resolvable:$true] %s219
          %222 = dma.hbm_to_vmem [thread:$0]  %s4, 32, %s220, [#allocation9]
        $region16: #{visual_modality_forward.8} parent=11 // pred_fallthru
          _
        // Predicated region
        $region17: #{visual_modality_forward.8} parent=11 // pred_check
          %p223 = pneg %p171
        $region18: #{visual_modality_forward.8} parent=11 // pred_check_branch
          %225 = sbr.rel (%p223) target = $region20
        $region19: #{visual_modality_forward.8} parent=11 // pred_region
          %s227 = ssub.s32 32, 32
          %228 = vsyncadd [#allocation12], %s227
          %s230 = sshll.u32 [#allocation11], 4
          %s231 = int_to_ptr.vmem [resolvable:$true] %s230
          %233 = dma.hbm_to_vmem [thread:$0]  %s5, 32, %s231, [#allocation12]
        $region20: #{visual_modality_forward.8} parent=11 // pred_fallthru
          _
      $region12: #{visual_modality_forward.8} parent=5 // pred_fallthru
        _
      %p234 = scmp.lt.s32.totalorder %s25, 2
      // Predicated region
      $region21: #{visual_modality_forward.8} parent=5 // pred_check
        %p235 = pneg %p234
      $region22: #{visual_modality_forward.8} parent=5 // pred_check_branch
        %237 = sbr.rel (%p235) target = $region24
      $region23: #{visual_modality_forward.8} parent=5 // pred_region
        // Predicated region
        $region25: #{visual_modality_forward.8} parent=23 // pred_check
          %p238 = pneg %p45
        $region26: #{visual_modality_forward.8} parent=23 // pred_check_branch
          %240 = sbr.rel (%p238) target = $region28
        $region27: #{visual_modality_forward.8} parent=23 // pred_region
          %s241 = sand.u32 %s35, 1
          %s242 = scalar_lea.sflag [#allocation3], %s241
          %s243 = sand.u32 %s35, 1
          %s244 = smul.addr %s243, 32
          %s245 = scalar_lea.vmem [#allocation2], %s244
          %s247 = ssub.s32 512, 512
          %248 = vsyncadd %s242, %s247
          %s249 = smul.addr %s25, 4
          %s250 = smul.addr %s249, 128
          %s251 = scalar_lea.hbm %s0, %s250
          %s252 = sshll.u32 %s245, 4
          %s253 = int_to_ptr.vmem [resolvable:$true] %s252
          %258 = dma.hbm_to_vmem [thread:$0]  %s251, 512, %s253, %s242, 256, 256, 16
        $region28: #{visual_modality_forward.8} parent=23 // pred_fallthru
          _
        // Predicated region
        $region29: #{visual_modality_forward.8} parent=23 // pred_check
          %p259 = pneg %p71
        $region30: #{visual_modality_forward.8} parent=23 // pred_check_branch
          %261 = sbr.rel (%p259) target = $region32
        $region31: #{visual_modality_forward.8} parent=23 // pred_region
          %s262 = sand.u32 %s25, 1
          %s263 = scalar_lea.sflag [#allocation6], %s262
          %s264 = sand.u32 %s61, 1
          %s265 = smul.addr %s264, 32
          %s266 = scalar_lea.vmem [#allocation5], %s265
          %s268 = ssub.s32 512, 512
          %269 = vsyncadd %s263, %s268
          %s270 = smul.addr %s25, 4
          %s271 = smul.addr %s270, 128
          %s272 = scalar_lea.hbm %s1, %s271
          %s273 = sshll.u32 %s266, 4
          %s274 = int_to_ptr.vmem [resolvable:$true] %s273
          %279 = dma.hbm_to_vmem [thread:$0]  %s272, 512, %s274, %s263, 256, 256, 16
        $region32: #{visual_modality_forward.8} parent=23 // pred_fallthru
          _
        // Predicated region
        $region33: #{visual_modality_forward.8} parent=23 // pred_check
          %p280 = pneg %p97
        $region34: #{visual_modality_forward.8} parent=23 // pred_check_branch
          %282 = sbr.rel (%p280) target = $region36
        $region35: #{visual_modality_forward.8} parent=23 // pred_region
          %s283 = sand.u32 %s25, 1
          %s284 = scalar_lea.sflag [#allocation6], %s283
          %s285 = sand.u32 %s87, 1
          %s286 = smul.addr %s285, 32
          %s287 = scalar_lea.vmem [#allocation7], %s286
          %s289 = ssub.s32 512, 512
          %290 = vsyncadd %s284, %s289
          %s291 = smul.addr %s25, 4
          %s292 = smul.addr %s291, 128
          %s293 = scalar_lea.hbm %s2, %s292
          %s294 = sshll.u32 %s287, 4
          %s295 = int_to_ptr.vmem [resolvable:$true] %s294
          %300 = dma.hbm_to_vmem [thread:$0]  %s293, 512, %s295, %s284, 256, 256, 16
        $region36: #{visual_modality_forward.8} parent=23 // pred_fallthru
          _
        // Predicated region
        $region37: #{visual_modality_forward.8} parent=23 // pred_check
          %p301 = pneg %p123
        $region38: #{visual_modality_forward.8} parent=23 // pred_check_branch
          %303 = sbr.rel (%p301) target = $region40
        $region39: #{visual_modality_forward.8} parent=23 // pred_region
          %s304 = sand.u32 %s25, 1
          %s305 = scalar_lea.sflag [#allocation9], %s304
          %s306 = sand.u32 %s113, 1
          %s307 = smul.addr %s306, 32
          %s308 = scalar_lea.vmem [#allocation8], %s307
          %s310 = ssub.s32 512, 512
          %311 = vsyncadd %s305, %s310
          %s312 = smul.addr %s25, 4
          %s313 = smul.addr %s312, 128
          %s314 = scalar_lea.hbm %s3, %s313
          %s315 = sshll.u32 %s308, 4
          %s316 = int_to_ptr.vmem [resolvable:$true] %s315
          %321 = dma.hbm_to_vmem [thread:$0]  %s314, 512, %s316, %s305, 256, 256, 16
        $region40: #{visual_modality_forward.8} parent=23 // pred_fallthru
          _
      $region24: #{visual_modality_forward.8} parent=5 // pred_fallthru
        _
      %p322 = scmp.le.s32.totalorder 1, %s25
      %p323 = scmp.lt.s32.totalorder %s25, 3
      %p324 = pnand %p322, %p323
      %p325 = pneg %p324
      // Predicated region
      $region41: #{visual_modality_forward.8} parent=5 // pred_check
        _
      $region42: #{visual_modality_forward.8} parent=5 // pred_check_branch
        %327 = sbr.rel (%p324) target = $region44
      $region43: #{visual_modality_forward.8} parent=5 // pred_region
        %s328 = ssub.s32 %s25, 1
        %s329 = sand.u32 %s38, 1
        %s330 = scalar_lea.sflag [#allocation3], %s329
        %s331 = sand.u32 %s38, 1
        %s332 = smul.addr %s331, 32
        %s333 = scalar_lea.vmem [#allocation2], %s332
        // Predicated region
        $region45: #{visual_modality_forward.8} parent=43 // pred_check
          %p334 = pneg %p51
        $region46: #{visual_modality_forward.8} parent=43 // pred_check_branch
          %336 = sbr.rel (%p334) target = $region48
        $region47: #{visual_modality_forward.8} parent=43 // pred_region
          %337 = dma.done %s330, 512
        $region48: #{visual_modality_forward.8} parent=43 // pred_fallthru
          _
        %s338 = sand.u32 %s30, 1
        %s339 = scalar_lea.sflag [#allocation6], %s338
        %s340 = sand.u32 %s64, 1
        %s341 = smul.addr %s340, 32
        %s342 = scalar_lea.vmem [#allocation5], %s341
        // Predicated region
        $region49: #{visual_modality_forward.8} parent=43 // pred_check
          %p343 = pneg %p77
        $region50: #{visual_modality_forward.8} parent=43 // pred_check_branch
          %345 = sbr.rel (%p343) target = $region52
        $region51: #{visual_modality_forward.8} parent=43 // pred_region
          %346 = dma.done %s339, 512
        $region52: #{visual_modality_forward.8} parent=43 // pred_fallthru
          _
        %s347 = sand.u32 %s30, 1
        %s348 = scalar_lea.sflag [#allocation6], %s347
        %s349 = sand.u32 %s90, 1
        %s350 = smul.addr %s349, 32
        %s351 = scalar_lea.vmem [#allocation7], %s350
        // Predicated region
        $region53: #{visual_modality_forward.8} parent=43 // pred_check
          %p352 = pneg %p103
        $region54: #{visual_modality_forward.8} parent=43 // pred_check_branch
          %354 = sbr.rel (%p352) target = $region56
        $region55: #{visual_modality_forward.8} parent=43 // pred_region
          %355 = dma.done %s348, 512
        $region56: #{visual_modality_forward.8} parent=43 // pred_fallthru
          _
        %s356 = sand.u32 %s30, 1
        %s357 = scalar_lea.sflag [#allocation9], %s356
        %s358 = sand.u32 %s116, 1
        %s359 = smul.addr %s358, 32
        %s360 = scalar_lea.vmem [#allocation8], %s359
        // Predicated region
        $region57: #{visual_modality_forward.8} parent=43 // pred_check
          %p361 = pneg %p129
        $region58: #{visual_modality_forward.8} parent=43 // pred_check_branch
          %363 = sbr.rel (%p361) target = $region60
        $region59: #{visual_modality_forward.8} parent=43 // pred_region
          %364 = dma.done %s357, 512
        $region60: #{visual_modality_forward.8} parent=43 // pred_fallthru
          _
        // Predicated region
        $region61: #{visual_modality_forward.8} parent=43 // pred_check
          %p365 = pneg %p150
        $region62: #{visual_modality_forward.8} parent=43 // pred_check_branch
          %367 = sbr.rel (%p365) target = $region64
        $region63: #{visual_modality_forward.8} parent=43 // pred_region
          %368 = dma.done [#allocation9], 32
        $region64: #{visual_modality_forward.8} parent=43 // pred_fallthru
          _
        // Predicated region
        $region65: #{visual_modality_forward.8} parent=43 // pred_check
          %p369 = pneg %p171
        $region66: #{visual_modality_forward.8} parent=43 // pred_check_branch
          %371 = sbr.rel (%p369) target = $region68
        $region67: #{visual_modality_forward.8} parent=43 // pred_region
          %372 = dma.done [#allocation12], 32
        $region68: #{visual_modality_forward.8} parent=43 // pred_fallthru
          _
        %s373 = sand.u32 %s38, 1
        %s374 = scalar_lea.sflag [#allocation3], %s373
        %s375 = sand.u32 %s38, 1
        %s376 = smul.addr %s375, 32
        %s377 = scalar_lea.vmem [#allocation2], %s376
        %p378 = pneg %p51
        %p379 = pneg %p48
        %s380 = sand.u32 %s30, 1
        %s381 = scalar_lea.sflag [#allocation6], %s380
        %s382 = sand.u32 %s64, 1
        %s383 = smul.addr %s382, 32
        %s384 = scalar_lea.vmem [#allocation5], %s383
        %p385 = pneg %p77
        %p386 = pneg %p74
        %s387 = sand.u32 %s30, 1
        %s388 = scalar_lea.sflag [#allocation6], %s387
        %s389 = sand.u32 %s90, 1
        %s390 = smul.addr %s389, 32
        %s391 = scalar_lea.vmem [#allocation7], %s390
        %p392 = pneg %p103
        %p393 = pneg %p100
        %s394 = sand.u32 %s30, 1
        %s395 = scalar_lea.sflag [#allocation9], %s394
        %s396 = sand.u32 %s116, 1
        %s397 = smul.addr %s396, 32
        %s398 = scalar_lea.vmem [#allocation8], %s397
        %p399 = pneg %p129
        %p400 = pneg %p126
        %p401 = pneg %p150
        %p402 = pneg %p147
        %p403 = pneg %p171
        %p404 = pneg %p168
        %p405 = pneg %p197
        %p406 = pneg %p194
        %s407 = sand.u32 %s184, 1
        %s408 = scalar_lea.sflag [#allocation4], %s407
        %s409 = sand.u32 %s184, 1
        %s410 = smul.addr %s409, 32
        %s411 = scalar_lea.vmem [#allocation13], %s410
        %v412 = vld [vmem:[#allocation10] sm:$0x3]
        %v413 = vld [vmem:[#allocation11] sm:$0x3]
        %v414 = vld [vmem:[%s333] sm:$0xff]
        %v415 = vld [vmem:[%s333 + $0x8] sm:$0xff]
        %v416 = vld [vmem:[%s333 + $0x10] sm:$0x3f]
        %v417 = vld [vmem:[%s333 + $0x18] sm:$0x3f]
        %v419 = vlaneseq
        %v420 = vshrl.u32 %v419, 7
        %v421 = vsub.s32 0, %v420
        %v422 = vrot.slane %v412, %v421
        %v423 = vlaneseq
        %v424 = vshrl.u32 %v423, 7
        %v425 = vsub.s32 1, %v424
        %v426 = vrot.slane %v412, %v425
        %427 = vrot.lane.b32.xlu0 %v422, 116
        %v428 = vpop.permute.xlu0 %427
        %429 = vrot.lane.b32.xlu0 %v426, 116
        %v430 = vpop.permute.xlu0 %429
        %vm431 = vcmask 949248
        %v432 = vsel %vm431, %v428, %v430
        %v435 = vmul.f32 %v414, %v432
        %v436 = vmul.f32 %v415, %v430
        %v437 = vmul.f32 %v416, %v432
        %v438 = vmul.f32 %v417, %v430
        %v440 = vlaneseq
        %v441 = vshrl.u32 %v440, 7
        %v442 = vsub.s32 0, %v441
        %v443 = vrot.slane %v413, %v442
        %v444 = vlaneseq
        %v445 = vshrl.u32 %v444, 7
        %v446 = vsub.s32 1, %v445
        %v447 = vrot.slane %v413, %v446
        %448 = vrot.lane.b32.xlu0 %v443, 116
        %v449 = vpop.permute.xlu0 %448
        %450 = vrot.lane.b32.xlu0 %v447, 116
        %v451 = vpop.permute.xlu0 %450
        %v452 = vsel %vm431, %v449, %v451
        %v455 = vadd.f32 %v435, %v452
        %v456 = vadd.f32 %v436, %v451
        %v457 = vadd.f32 %v437, %v452
        %v458 = vadd.f32 %v438, %v451
        %v459 = vmax.f32 %v455, 0.0
        %v460 = vmax.f32 %v456, 0.0
        %v461 = vmax.f32 %v457, 0.0
        %v462 = vmax.f32 %v458, 0.0
        %v463 = vld [vmem:[%s351] sm:$0xff]
        %v464 = vld [vmem:[%s351 + $0x8] sm:$0xff]
        %v465 = vld [vmem:[%s351 + $0x10] sm:$0x3f]
        %v466 = vld [vmem:[%s351 + $0x18] sm:$0x3f]
        %v467 = vmul.f32 %v463, %v432
        %v468 = vmul.f32 %v464, %v430
        %v469 = vmul.f32 %v465, %v432
        %v470 = vmul.f32 %v466, %v430
        %v471 = vadd.f32 %v467, %v452
        %v472 = vadd.f32 %v468, %v451
        %v473 = vadd.f32 %v469, %v452
        %v474 = vadd.f32 %v470, %v451
        %v475 = vmax.f32 %v471, 0.0
        %v476 = vmax.f32 %v472, 0.0
        %v477 = vmax.f32 %v473, 0.0
        %v478 = vmax.f32 %v474, 0.0
        %v479 = vld [vmem:[%s342] sm:$0xff]
        %v480 = vld [vmem:[%s342 + $0x8] sm:$0xff]
        %v481 = vld [vmem:[%s342 + $0x10] sm:$0x3f]
        %v482 = vld [vmem:[%s342 + $0x18] sm:$0x3f]
        %v485 = vmul.f32 %v479, %v422
        %v486 = vmul.f32 %v480, %v426
        %v487 = vmul.f32 %v481, %v422
        %v488 = vmul.f32 %v482, %v426
        %v491 = vadd.f32 %v485, %v443
        %v492 = vadd.f32 %v486, %v447
        %v493 = vadd.f32 %v487, %v443
        %v494 = vadd.f32 %v488, %v447
        %v495 = vmax.f32 %v491, 0.0
        %v496 = vmax.f32 %v492, 0.0
        %v497 = vmax.f32 %v493, 0.0
        %v498 = vmax.f32 %v494, 0.0
        %v499 = vld [vmem:[%s360] sm:$0xff]
        %v500 = vld [vmem:[%s360 + $0x8] sm:$0xff]
        %v501 = vld [vmem:[%s360 + $0x10] sm:$0x3f]
        %v502 = vld [vmem:[%s360 + $0x18] sm:$0x3f]
        %v503 = vmul.f32 %v499, %v422
        %v504 = vmul.f32 %v500, %v426
        %v505 = vmul.f32 %v501, %v422
        %v506 = vmul.f32 %v502, %v426
        %v507 = vadd.f32 %v503, %v443
        %v508 = vadd.f32 %v504, %v447
        %v509 = vadd.f32 %v505, %v443
        %v510 = vadd.f32 %v506, %v447
        %v511 = vmax.f32 %v507, 0.0
        %v512 = vmax.f32 %v508, 0.0
        %v513 = vmax.f32 %v509, 0.0
        %v514 = vmax.f32 %v510, 0.0
        %519 = vrot.lane.b32.xlu0 %v495, 116
        %v520 = vpop.permute.xlu0 %519
        %521 = vrot.lane.b32.xlu0 %v496, 116
        %v522 = vpop.permute.xlu0 %521
        %523 = vrot.lane.b32.xlu0 %v497, 116
        %v524 = vpop.permute.xlu0 %523
        %525 = vrot.lane.b32.xlu0 %v498, 116
        %v526 = vpop.permute.xlu0 %525
        %v527 = vsel %vm431, %v520, %v522
        %v528 = vsel %vm431, %v524, %v526
        %v533 = vmax.f32 %v459, %v527
        %v534 = vmax.f32 %v460, %v522
        %v535 = vmax.f32 %v461, %v528
        %v536 = vmax.f32 %v462, %v526
        %v537 = vmax.f32 %v533, %v495
        %v538 = vmax.f32 %v534, %v496
        %v539 = vmax.f32 %v535, %v497
        %v540 = vmax.f32 %v536, %v498
        %545 = vrot.lane.b32.xlu0 %v511, 116
        %v546 = vpop.permute.xlu0 %545
        %547 = vrot.lane.b32.xlu0 %v512, 116
        %v548 = vpop.permute.xlu0 %547
        %549 = vrot.lane.b32.xlu0 %v513, 116
        %v550 = vpop.permute.xlu0 %549
        %551 = vrot.lane.b32.xlu0 %v514, 116
        %v552 = vpop.permute.xlu0 %551
        %v553 = vsel %vm431, %v546, %v548
        %v554 = vsel %vm431, %v550, %v552
        %v559 = vmax.f32 %v475, %v553
        %v560 = vmax.f32 %v476, %v548
        %v561 = vmax.f32 %v477, %v554
        %v562 = vmax.f32 %v478, %v552
        %v563 = vmax.f32 %v559, %v511
        %v564 = vmax.f32 %v560, %v512
        %v565 = vmax.f32 %v561, %v513
        %v566 = vmax.f32 %v562, %v514
        %vm571 = vcmask 1040384
        %v572 = vrot.slane %v563, 7
        %v573 = vrot.slane %v564, 7
        %v574 = vrot.slane %v565, 7
        %v575 = vsel %vm571, %v572, %v574
        %v576 = vrot.slane %v566, 7
        %v577 = vsel %vm571, %v573, %v576
        %v582 = vsel %vm571, 0.0, %v572
        %v583 = vsel %vm571, 0.0, %v573
        %v584 = vmax.f32 %v537, %v563
        %v585 = vmax.f32 %v538, %v564
        %v586 = vmax.f32 %v539, %v565
        %v587 = vmax.f32 %v540, %v566
        %v588 = vmax.f32 %v584, %v582
        %v589 = vmax.f32 %v585, %v583
        %v590 = vmax.f32 %v586, %v575
        %v591 = vmax.f32 %v587, %v577
        %592 = vst [vmem:[%s411] sm:$0xff] %v588
        %vm593 = vcmask 326656
        %594 = vst.msk [vmem:[%s411 + $0x8] sm:$0xff] %vm593, %v589
        %595 = vst [vmem:[%s411 + $0x10] sm:$0x3f] %v590
        %vm596 = vcmask 324608
        %597 = vst.msk [vmem:[%s411 + $0x18] sm:$0x3f] %vm596, %v591
        %s598 = sand.u32 %s184, 1
        %s599 = scalar_lea.sflag [#allocation4], %s598
        %s600 = sand.u32 %s184, 1
        %s601 = smul.addr %s600, 32
        %s602 = scalar_lea.vmem [#allocation13], %s601
        // Predicated region
        $region69: #{visual_modality_forward.8} parent=43 // pred_check
          %p603 = pneg %p194
        $region70: #{visual_modality_forward.8} parent=43 // pred_check_branch
          %605 = sbr.rel (%p603) target = $region72
        $region71: #{visual_modality_forward.8} parent=43 // pred_region
          %s607 = ssub.s32 512, 512
          %608 = vsyncadd %s599, %s607
          %s609 = smul.addr %s30, 4
          %s610 = smul.addr %s609, 128
          %s611 = scalar_lea.hbm %s6, %s610
          %s612 = sshll.u32 %s602, 4
          %s613 = int_to_ptr.vmem [resolvable:$true] %s612
          %618 = dma.vmem_to_hbm [thread:$0]  %s613, 512, %s611, %s599, 256, 256, 16
        $region72: #{visual_modality_forward.8} parent=43 // pred_fallthru
          _
      $region44: #{visual_modality_forward.8} parent=5 // pred_fallthru
        _
      %p619 = scmp.le.s32.totalorder 2, %s25
      // Predicated region
      $region73: #{visual_modality_forward.8} parent=5 // pred_check
        %p620 = pneg %p619
      $region74: #{visual_modality_forward.8} parent=5 // pred_check_branch
        %622 = sbr.rel (%p620) target = $region76
      $region75: #{visual_modality_forward.8} parent=5 // pred_region
        %s623 = ssub.s32 %s25, 2
        // Predicated region
        $region77: #{visual_modality_forward.8} parent=75 // pred_check
          %p624 = pneg %p200
        $region78: #{visual_modality_forward.8} parent=75 // pred_check_branch
          %626 = sbr.rel (%p624) target = $region80
        $region79: #{visual_modality_forward.8} parent=75 // pred_region
          %s627 = sand.u32 %s185, 1
          %s628 = scalar_lea.sflag [#allocation4], %s627
          %s629 = sand.u32 %s185, 1
          %s630 = smul.addr %s629, 32
          %s631 = scalar_lea.vmem [#allocation13], %s630
          %632 = dma.done %s628, 512
        $region80: #{visual_modality_forward.8} parent=75 // pred_fallthru
          _
      $region76: #{visual_modality_forward.8} parent=5 // pred_fallthru
        _
    $region6: #{visual_modality_forward.8} parent=1 // loop_footer
      %s29 = sadd.s32 1, %s25
    $region7: #{visual_modality_forward.8} parent=1 // loop_footer_branch
      %24 = sbr.rel target = $region3
    $region8: #{visual_modality_forward.8} parent=1 // loop_exit
      _
    %633 = vsyncpa [#allocation3], 1
    %s634 = scalar_lea.sflag [#allocation3], 1
    %635 = vsyncpa %s634, 1
    %636 = vsyncpa [#allocation6], 1
    %s637 = scalar_lea.sflag [#allocation6], 1
    %638 = vsyncpa %s637, 1
    %639 = vsyncpa [#allocation9], 1
    %s640 = scalar_lea.sflag [#allocation9], 1
    %641 = vsyncpa %s640, 1
    %642 = vsyncpa [#allocation12], 1
    %643 = vsyncpa [#allocation4], 1
    %s644 = scalar_lea.sflag [#allocation4], 1
    %645 = vsyncpa %s644, 1

// kernel: visual_modality_forward.9
$region0: #{visual_modality_forward.9}
  #allocation0 [shape = 'u32[]', space=smem, size = 0x4, offset = 0x4, fixed_abs, tag = 'smem constant byte address 0x4 - core index']
  #allocation1 [shape = 'u32[144,128]{1,0:T(1,128)}', space=vmem, size = 0x12000, scoped, tag = 'internal scratch']
  %s0 = inlined_call_operand.hbm [shape: bf16[2,2352], index: 0, kind: input, shape index: {}]
  %s1 = inlined_call_operand.hbm [shape: bf16[2352,64], index: 1, kind: input, shape index: {}]
  %s2 = inlined_call_operand.hbm [shape: f32[1,64], index: 2, kind: input, shape index: {}]
  %s3 = inlined_call_operand.hbm [shape: bf16[64,32], index: 3, kind: input, shape index: {}]
  %s4 = inlined_call_operand.hbm [shape: f32[1,32], index: 4, kind: input, shape index: {}]
  %s5 = inlined_call_operand.hbm [shape: bf16[32,10], index: 5, kind: input, shape index: {}]
  %s6 = inlined_call_operand.hbm [shape: f32[1,10], index: 6, kind: input, shape index: {}]
  %s7 = inlined_call_operand.hbm [shape: f32[2,10], index: 7, kind: output, shape index: {}]
  %s8 = sld [smem:[#allocation0]]
  $region66: #{visual_modality_forward.9} parent=0
    _
  %s10 = ssub.s32 1, %s8
  %s11 = scalar_select 0, %s10, %s8
  $region1: #{visual_modality_forward.9} parent=0
    #allocation2 [shape = 'u8[9728]{0}', space=vmem, size = 0x2800, scoped, tag = 'input window, operand 0, single buffered']
    #allocation3 [shape = 's32[1]{0}', space=sflag, size = 0x4, scoped, tag = 'scoped memory for visual_modality_forward.9']
    #allocation4 [shape = 's32[1]{0}', space=sflag, size = 0x4, scoped, tag = 'scoped memory for visual_modality_forward.9']
    #allocation5 [shape = 'u8[602112]{0}', space=vmem, size = 0x93000, scoped, tag = 'input window, operand 1, single buffered']
    #allocation6 [shape = 's32[1]{0}', space=sflag, size = 0x4, scoped, tag = 'scoped memory for visual_modality_forward.9']
    #allocation7 [shape = 'u8[512]{0}', space=vmem, size = 0x400, scoped, tag = 'input window, operand 2, single buffered']
    #allocation8 [shape = 'u8[16384]{0}', space=vmem, size = 0x4000, scoped, tag = 'input window, operand 3, single buffered']
    #allocation9 [shape = 's32[1]{0}', space=sflag, size = 0x4, scoped, tag = 'scoped memory for visual_modality_forward.9']
    #allocation10 [shape = 'u8[512]{0}', space=vmem, size = 0x400, scoped, tag = 'input window, operand 4, single buffered']
    #allocation11 [shape = 'u8[8192]{0}', space=vmem, size = 0x2000, scoped, tag = 'input window, operand 5, single buffered']
    #allocation12 [shape = 's32[1]{0}', space=sflag, size = 0x4, scoped, tag = 'scoped memory for visual_modality_forward.9']
    #allocation13 [shape = 'u8[512]{0}', space=vmem, size = 0x400, scoped, tag = 'input window, operand 6, single buffered']
    #allocation14 [shape = 'u8[1024]{0}', space=vmem, size = 0x400, scoped, tag = 'output window, operand 0, single buffered']
    %12 = vsyncpa [#allocation3], 0
    %13 = vsyncpa [#allocation6], 0
    %14 = vsyncpa [#allocation9], 0
    %15 = vsyncpa [#allocation12], 0
    %16 = vsyncpa [#allocation4], 0
    // Predicated region
    $region2: #{visual_modality_forward.9} parent=1 // pred_check
      _
    $region3: #{visual_modality_forward.9} parent=1 // pred_check_branch
      %18 = sbr.rel (0) target = $region5
    $region4: #{visual_modality_forward.9} parent=1 // pred_region
      %s20 = ssub.s32 304, 304
      %21 = vsyncadd [#allocation3], %s20
      %s23 = sshll.u32 [#allocation2], 4
      %s24 = int_to_ptr.vmem [resolvable:$true] %s23
      %26 = dma.hbm_to_vmem [thread:$0]  %s0, 304, %s24, [#allocation3]
    $region5: #{visual_modality_forward.9} parent=1 // pred_fallthru
      _
    // Predicated region
    $region6: #{visual_modality_forward.9} parent=1 // pred_check
      _
    $region7: #{visual_modality_forward.9} parent=1 // pred_check_branch
      %28 = sbr.rel (0) target = $region9
    $region8: #{visual_modality_forward.9} parent=1 // pred_region
      %s30 = ssub.s32 18816, 18816
      %31 = vsyncadd [#allocation6], %s30
      %s32 = sshll.u32 [#allocation5], 4
      %s33 = int_to_ptr.vmem [resolvable:$true] %s32
      %38 = dma.hbm_to_vmem [thread:$0]  %s1, 18816, %s33, [#allocation6], 64, 64, 4
    $region9: #{visual_modality_forward.9} parent=1 // pred_fallthru
      _
    // Predicated region
    $region10: #{visual_modality_forward.9} parent=1 // pred_check
      _
    $region11: #{visual_modality_forward.9} parent=1 // pred_check_branch
      %40 = sbr.rel (0) target = $region13
    $region12: #{visual_modality_forward.9} parent=1 // pred_region
      %s42 = ssub.s32 16, 16
      %43 = vsyncadd [#allocation6], %s42
      %s45 = sshll.u32 [#allocation7], 4
      %s46 = int_to_ptr.vmem [resolvable:$true] %s45
      %48 = dma.hbm_to_vmem [thread:$0]  %s2, 16, %s46, [#allocation6]
    $region13: #{visual_modality_forward.9} parent=1 // pred_fallthru
      _
    // Predicated region
    $region14: #{visual_modality_forward.9} parent=1 // pred_check
      _
    $region15: #{visual_modality_forward.9} parent=1 // pred_check_branch
      %50 = sbr.rel (0) target = $region17
    $region16: #{visual_modality_forward.9} parent=1 // pred_region
      %s52 = ssub.s32 512, 512
      %53 = vsyncadd [#allocation9], %s52
      %s54 = sshll.u32 [#allocation8], 4
      %s55 = int_to_ptr.vmem [resolvable:$true] %s54
      %60 = dma.hbm_to_vmem [thread:$0]  %s3, 512, %s55, [#allocation9], 64, 64, 4
    $region17: #{visual_modality_forward.9} parent=1 // pred_fallthru
      _
    // Predicated region
    $region18: #{visual_modality_forward.9} parent=1 // pred_check
      _
    $region19: #{visual_modality_forward.9} parent=1 // pred_check_branch
      %62 = sbr.rel (0) target = $region21
    $region20: #{visual_modality_forward.9} parent=1 // pred_region
      %s64 = ssub.s32 16, 16
      %65 = vsyncadd [#allocation9], %s64
      %s67 = sshll.u32 [#allocation10], 4
      %s68 = int_to_ptr.vmem [resolvable:$true] %s67
      %70 = dma.hbm_to_vmem [thread:$0]  %s4, 16, %s68, [#allocation9]
    $region21: #{visual_modality_forward.9} parent=1 // pred_fallthru
      _
    // Predicated region
    $region22: #{visual_modality_forward.9} parent=1 // pred_check
      _
    $region23: #{visual_modality_forward.9} parent=1 // pred_check_branch
      %72 = sbr.rel (0) target = $region25
    $region24: #{visual_modality_forward.9} parent=1 // pred_region
      %s74 = ssub.s32 256, 256
      %75 = vsyncadd [#allocation12], %s74
      %s76 = sshll.u32 [#allocation11], 4
      %s77 = int_to_ptr.vmem [resolvable:$true] %s76
      %82 = dma.hbm_to_vmem [thread:$0]  %s5, 256, %s77, [#allocation12], 64, 64, 4
    $region25: #{visual_modality_forward.9} parent=1 // pred_fallthru
      _
    // Predicated region
    $region26: #{visual_modality_forward.9} parent=1 // pred_check
      _
    $region27: #{visual_modality_forward.9} parent=1 // pred_check_branch
      %84 = sbr.rel (0) target = $region29
    $region28: #{visual_modality_forward.9} parent=1 // pred_region
      %s86 = ssub.s32 16, 16
      %87 = vsyncadd [#allocation12], %s86
      %s89 = sshll.u32 [#allocation13], 4
      %s90 = int_to_ptr.vmem [resolvable:$true] %s89
      %92 = dma.hbm_to_vmem [thread:$0]  %s6, 16, %s90, [#allocation12]
    $region29: #{visual_modality_forward.9} parent=1 // pred_fallthru
      _
    // Predicated region
    $region30: #{visual_modality_forward.9} parent=1 // pred_check
      _
    $region31: #{visual_modality_forward.9} parent=1 // pred_check_branch
      %94 = sbr.rel (0) target = $region33
    $region32: #{visual_modality_forward.9} parent=1 // pred_region
      %95 = dma.done [#allocation3], 304
    $region33: #{visual_modality_forward.9} parent=1 // pred_fallthru
      _
    // Predicated region
    $region34: #{visual_modality_forward.9} parent=1 // pred_check
      _
    $region35: #{visual_modality_forward.9} parent=1 // pred_check_branch
      %97 = sbr.rel (0) target = $region37
    $region36: #{visual_modality_forward.9} parent=1 // pred_region
      %98 = dma.done [#allocation6], 18816
    $region37: #{visual_modality_forward.9} parent=1 // pred_fallthru
      _
    // Predicated region
    $region38: #{visual_modality_forward.9} parent=1 // pred_check
      _
    $region39: #{visual_modality_forward.9} parent=1 // pred_check_branch
      %100 = sbr.rel (0) target = $region41
    $region40: #{visual_modality_forward.9} parent=1 // pred_region
      %101 = dma.done [#allocation6], 16
    $region41: #{visual_modality_forward.9} parent=1 // pred_fallthru
      _
    // Predicated region
    $region42: #{visual_modality_forward.9} parent=1 // pred_check
      _
    $region43: #{visual_modality_forward.9} parent=1 // pred_check_branch
      %103 = sbr.rel (0) target = $region45
    $region44: #{visual_modality_forward.9} parent=1 // pred_region
      %104 = dma.done [#allocation9], 512
    $region45: #{visual_modality_forward.9} parent=1 // pred_fallthru
      _
    // Predicated region
    $region46: #{visual_modality_forward.9} parent=1 // pred_check
      _
    $region47: #{visual_modality_forward.9} parent=1 // pred_check_branch
      %106 = sbr.rel (0) target = $region49
    $region48: #{visual_modality_forward.9} parent=1 // pred_region
      %107 = dma.done [#allocation9], 16
    $region49: #{visual_modality_forward.9} parent=1 // pred_fallthru
      _
    // Predicated region
    $region50: #{visual_modality_forward.9} parent=1 // pred_check
      _
    $region51: #{visual_modality_forward.9} parent=1 // pred_check_branch
      %109 = sbr.rel (0) target = $region53
    $region52: #{visual_modality_forward.9} parent=1 // pred_region
      %110 = dma.done [#allocation12], 256
    $region53: #{visual_modality_forward.9} parent=1 // pred_fallthru
      _
    // Predicated region
    $region54: #{visual_modality_forward.9} parent=1 // pred_check
      _
    $region55: #{visual_modality_forward.9} parent=1 // pred_check_branch
      %112 = sbr.rel (0) target = $region57
    $region56: #{visual_modality_forward.9} parent=1 // pred_region
      %113 = dma.done [#allocation12], 16
    $region57: #{visual_modality_forward.9} parent=1 // pred_fallthru
      _
    %v115 = vld [vmem:[#allocation2] sm:$0xff]
    %v116 = vld [vmem:[#allocation2 + $0x8] sm:$0xff]
    %v117 = vld [vmem:[#allocation2 + $0x10] sm:$0x7]
    %v118 = vld [vmem:[#allocation5] sm:$0xf]
    %v119 = vld [vmem:[#allocation5 + $0x4] sm:$0xf]
    %v120 = vld [vmem:[#allocation5 + $0x8] sm:$0xf]
    %v121 = vld [vmem:[#allocation5 + $0xc] sm:$0xf]
    %v122 = vld [vmem:[#allocation5 + $0x10] sm:$0xf]
    %v123 = vld [vmem:[#allocation5 + $0x14] sm:$0xf]
    %v124 = vld [vmem:[#allocation5 + $0x18] sm:$0xf]
    %v125 = vld [vmem:[#allocation5 + $0x1c] sm:$0xf]
    %v126 = vld [vmem:[#allocation5 + $0x20] sm:$0xf]
    %v127 = vld [vmem:[#allocation5 + $0x24] sm:$0xf]
    %v128 = vld [vmem:[#allocation5 + $0x28] sm:$0xf]
    %v129 = vld [vmem:[#allocation5 + $0x2c] sm:$0xf]
    %v130 = vld [vmem:[#allocation5 + $0x30] sm:$0xf]
    %v131 = vld [vmem:[#allocation5 + $0x34] sm:$0xf]
    %v132 = vld [vmem:[#allocation5 + $0x38] sm:$0xf]
    %v133 = vld [vmem:[#allocation5 + $0x3c] sm:$0xf]
    %v134 = vld [vmem:[#allocation5 + $0x40] sm:$0xf]
    %v135 = vld [vmem:[#allocation5 + $0x44] sm:$0xf]
    %v136 = vld [vmem:[#allocation5 + $0x48] sm:$0xf]
    %v137 = vld [vmem:[#allocation5 + $0x4c] sm:$0xf]
    %v138 = vld [vmem:[#allocation5 + $0x50] sm:$0xf]
    %v139 = vld [vmem:[#allocation5 + $0x54] sm:$0xf]
    %v140 = vld [vmem:[#allocation5 + $0x58] sm:$0xf]
    %v141 = vld [vmem:[#allocation5 + $0x5c] sm:$0xf]
    %v142 = vld [vmem:[#allocation5 + $0x60] sm:$0xf]
    %v143 = vld [vmem:[#allocation5 + $0x64] sm:$0xf]
    %v144 = vld [vmem:[#allocation5 + $0x68] sm:$0xf]
    %v145 = vld [vmem:[#allocation5 + $0x6c] sm:$0xf]
    %v146 = vld [vmem:[#allocation5 + $0x70] sm:$0xf]
    %v147 = vld [vmem:[#allocation5 + $0x74] sm:$0xf]
    %v148 = vld [vmem:[#allocation5 + $0x78] sm:$0xf]
    %v149 = vld [vmem:[#allocation5 + $0x7c] sm:$0xf]
    %v150 = vld [vmem:[#allocation5 + $0x80] sm:$0xf]
    %v151 = vld [vmem:[#allocation5 + $0x84] sm:$0xf]
    %v152 = vld [vmem:[#allocation5 + $0x88] sm:$0xf]
    %v153 = vld [vmem:[#allocation5 + $0x8c] sm:$0xf]
    %v154 = vld [vmem:[#allocation5 + $0x90] sm:$0xf]
    %v155 = vld [vmem:[#allocation5 + $0x94] sm:$0xf]
    %v156 = vld [vmem:[#allocation5 + $0x98] sm:$0xf]
    %v157 = vld [vmem:[#allocation5 + $0x9c] sm:$0xf]
    %v158 = vld [vmem:[#allocation5 + $0xa0] sm:$0xf]
    %v159 = vld [vmem:[#allocation5 + $0xa4] sm:$0xf]
    %v160 = vld [vmem:[#allocation5 + $0xa8] sm:$0xf]
    %v161 = vld [vmem:[#allocation5 + $0xac] sm:$0xf]
    %v162 = vld [vmem:[#allocation5 + $0xb0] sm:$0xf]
    %v163 = vld [vmem:[#allocation5 + $0xb4] sm:$0xf]
    %v164 = vld [vmem:[#allocation5 + $0xb8] sm:$0xf]
    %v165 = vld [vmem:[#allocation5 + $0xbc] sm:$0xf]
    %v166 = vld [vmem:[#allocation5 + $0xc0] sm:$0xf]
    %v167 = vld [vmem:[#allocation5 + $0xc4] sm:$0xf]
    %v168 = vld [vmem:[#allocation5 + $0xc8] sm:$0xf]
    %v169 = vld [vmem:[#allocation5 + $0xcc] sm:$0xf]
    %v170 = vld [vmem:[#allocation5 + $0xd0] sm:$0xf]
    %v171 = vld [vmem:[#allocation5 + $0xd4] sm:$0xf]
    %v172 = vld [vmem:[#allocation5 + $0xd8] sm:$0xf]
    %v173 = vld [vmem:[#allocation5 + $0xdc] sm:$0xf]
    %v174 = vld [vmem:[#allocation5 + $0xe0] sm:$0xf]
    %v175 = vld [vmem:[#allocation5 + $0xe4] sm:$0xf]
    %v176 = vld [vmem:[#allocation5 + $0xe8] sm:$0xf]
    %v177 = vld [vmem:[#allocation5 + $0xec] sm:$0xf]
    %v178 = vld [vmem:[#allocation5 + $0xf0] sm:$0xf]
    %v179 = vld [vmem:[#allocation5 + $0xf4] sm:$0xf]
    %v180 = vld [vmem:[#allocation5 + $0xf8] sm:$0xf]
    %v181 = vld [vmem:[#allocation5 + $0xfc] sm:$0xf]
    %v182 = vld [vmem:[#allocation5 + $0x100] sm:$0xf]
    %v183 = vld [vmem:[#allocation5 + $0x104] sm:$0xf]
    %v184 = vld [vmem:[#allocation5 + $0x108] sm:$0xf]
    %v185 = vld [vmem:[#allocation5 + $0x10c] sm:$0xf]
    %v186 = vld [vmem:[#allocation5 + $0x110] sm:$0xf]
    %v187 = vld [vmem:[#allocation5 + $0x114] sm:$0xf]
    %v188 = vld [vmem:[#allocation5 + $0x118] sm:$0xf]
    %v189 = vld [vmem:[#allocation5 + $0x11c] sm:$0xf]
    %v190 = vld [vmem:[#allocation5 + $0x120] sm:$0xf]
    %v191 = vld [vmem:[#allocation5 + $0x124] sm:$0xf]
    %v192 = vld [vmem:[#allocation5 + $0x128] sm:$0xf]
    %v193 = vld [vmem:[#allocation5 + $0x12c] sm:$0xf]
    %v194 = vld [vmem:[#allocation5 + $0x130] sm:$0xf]
    %v195 = vld [vmem:[#allocation5 + $0x134] sm:$0xf]
    %v196 = vld [vmem:[#allocation5 + $0x138] sm:$0xf]
    %v197 = vld [vmem:[#allocation5 + $0x13c] sm:$0xf]
    %v198 = vld [vmem:[#allocation5 + $0x140] sm:$0xf]
    %v199 = vld [vmem:[#allocation5 + $0x144] sm:$0xf]
    %v200 = vld [vmem:[#allocation5 + $0x148] sm:$0xf]
    %v201 = vld [vmem:[#allocation5 + $0x14c] sm:$0xf]
    %v202 = vld [vmem:[#allocation5 + $0x150] sm:$0xf]
    %v203 = vld [vmem:[#allocation5 + $0x154] sm:$0xf]
    %v204 = vld [vmem:[#allocation5 + $0x158] sm:$0xf]
    %v205 = vld [vmem:[#allocation5 + $0x15c] sm:$0xf]
    %v206 = vld [vmem:[#allocation5 + $0x160] sm:$0xf]
    %v207 = vld [vmem:[#allocation5 + $0x164] sm:$0xf]
    %v208 = vld [vmem:[#allocation5 + $0x168] sm:$0xf]
    %v209 = vld [vmem:[#allocation5 + $0x16c] sm:$0xf]
    %v210 = vld [vmem:[#allocation5 + $0x170] sm:$0xf]
    %v211 = vld [vmem:[#allocation5 + $0x174] sm:$0xf]
    %v212 = vld [vmem:[#allocation5 + $0x178] sm:$0xf]
    %v213 = vld [vmem:[#allocation5 + $0x17c] sm:$0xf]
    %v214 = vld [vmem:[#allocation5 + $0x180] sm:$0xf]
    %v215 = vld [vmem:[#allocation5 + $0x184] sm:$0xf]
    %v216 = vld [vmem:[#allocation5 + $0x188] sm:$0xf]
    %v217 = vld [vmem:[#allocation5 + $0x18c] sm:$0xf]
    %v218 = vld [vmem:[#allocation5 + $0x190] sm:$0xf]
    %v219 = vld [vmem:[#allocation5 + $0x194] sm:$0xf]
    %v220 = vld [vmem:[#allocation5 + $0x198] sm:$0xf]
    %v221 = vld [vmem:[#allocation5 + $0x19c] sm:$0xf]
    %v222 = vld [vmem:[#allocation5 + $0x1a0] sm:$0xf]
    %v223 = vld [vmem:[#allocation5 + $0x1a4] sm:$0xf]
    %v224 = vld [vmem:[#allocation5 + $0x1a8] sm:$0xf]
    %v225 = vld [vmem:[#allocation5 + $0x1ac] sm:$0xf]
    %v226 = vld [vmem:[#allocation5 + $0x1b0] sm:$0xf]
    %v227 = vld [vmem:[#allocation5 + $0x1b4] sm:$0xf]
    %v228 = vld [vmem:[#allocation5 + $0x1b8] sm:$0xf]
    %v229 = vld [vmem:[#allocation5 + $0x1bc] sm:$0xf]
    %v230 = vld [vmem:[#allocation5 + $0x1c0] sm:$0xf]
    %v231 = vld [vmem:[#allocation5 + $0x1c4] sm:$0xf]
    %v232 = vld [vmem:[#allocation5 + $0x1c8] sm:$0xf]
    %v233 = vld [vmem:[#allocation5 + $0x1cc] sm:$0xf]
    %v234 = vld [vmem:[#allocation5 + $0x1d0] sm:$0xf]
    %v235 = vld [vmem:[#allocation5 + $0x1d4] sm:$0xf]
    %v236 = vld [vmem:[#allocation5 + $0x1d8] sm:$0xf]
    %v237 = vld [vmem:[#allocation5 + $0x1dc] sm:$0xf]
    %v238 = vld [vmem:[#allocation5 + $0x1e0] sm:$0xf]
    %v239 = vld [vmem:[#allocation5 + $0x1e4] sm:$0xf]
    %v240 = vld [vmem:[#allocation5 + $0x1e8] sm:$0xf]
    %v241 = vld [vmem:[#allocation5 + $0x1ec] sm:$0xf]
    %v242 = vld [vmem:[#allocation5 + $0x1f0] sm:$0xf]
    %v243 = vld [vmem:[#allocation5 + $0x1f4] sm:$0xf]
    %v244 = vld [vmem:[#allocation5 + $0x1f8] sm:$0xf]
    %v245 = vld [vmem:[#allocation5 + $0x1fc] sm:$0xf]
    %v246 = vld [vmem:[#allocation5 + $0x200] sm:$0xf]
    %v247 = vld [vmem:[#allocation5 + $0x204] sm:$0xf]
    %v248 = vld [vmem:[#allocation5 + $0x208] sm:$0xf]
    %v249 = vld [vmem:[#allocation5 + $0x20c] sm:$0xf]
    %v250 = vld [vmem:[#allocation5 + $0x210] sm:$0xf]
    %v251 = vld [vmem:[#allocation5 + $0x214] sm:$0xf]
    %v252 = vld [vmem:[#allocation5 + $0x218] sm:$0xf]
    %v253 = vld [vmem:[#allocation5 + $0x21c] sm:$0xf]
    %v254 = vld [vmem:[#allocation5 + $0x220] sm:$0xf]
    %v255 = vld [vmem:[#allocation5 + $0x224] sm:$0xf]
    %v256 = vld [vmem:[#allocation5 + $0x228] sm:$0xf]
    %v257 = vld [vmem:[#allocation5 + $0x22c] sm:$0xf]
    %v258 = vld [vmem:[#allocation5 + $0x230] sm:$0xf]
    %v259 = vld [vmem:[#allocation5 + $0x234] sm:$0xf]
    %v260 = vld [vmem:[#allocation5 + $0x238] sm:$0xf]
    %v261 = vld [vmem:[#allocation5 + $0x23c] sm:$0xf]
    %v262 = vld [vmem:[#allocation5 + $0x240] sm:$0xf]
    %v263 = vld [vmem:[#allocation5 + $0x244] sm:$0xf]
    %v264 = vld [vmem:[#allocation5 + $0x248] sm:$0xf]
    %v265 = vld [vmem:[#allocation5 + $0x24c] sm:$0xf]
    %v266 = vld [vmem:[#allocation5 + $0x250] sm:$0xf]
    %v267 = vld [vmem:[#allocation5 + $0x254] sm:$0xf]
    %v268 = vld [vmem:[#allocation5 + $0x258] sm:$0xf]
    %v269 = vld [vmem:[#allocation5 + $0x25c] sm:$0xf]
    %v270 = vld [vmem:[#allocation5 + $0x260] sm:$0xf]
    %v271 = vld [vmem:[#allocation5 + $0x264] sm:$0xf]
    %v272 = vld [vmem:[#allocation5 + $0x268] sm:$0xf]
    %v273 = vld [vmem:[#allocation5 + $0x26c] sm:$0xf]
    %v274 = vld [vmem:[#allocation5 + $0x270] sm:$0xf]
    %v275 = vld [vmem:[#allocation5 + $0x274] sm:$0xf]
    %v276 = vld [vmem:[#allocation5 + $0x278] sm:$0xf]
    %v277 = vld [vmem:[#allocation5 + $0x27c] sm:$0xf]
    %v278 = vld [vmem:[#allocation5 + $0x280] sm:$0xf]
    %v279 = vld [vmem:[#allocation5 + $0x284] sm:$0xf]
    %v280 = vld [vmem:[#allocation5 + $0x288] sm:$0xf]
    %v281 = vld [vmem:[#allocation5 + $0x28c] sm:$0xf]
    %v282 = vld [vmem:[#allocation5 + $0x290] sm:$0xf]
    %v283 = vld [vmem:[#allocation5 + $0x294] sm:$0xf]
    %v284 = vld [vmem:[#allocation5 + $0x298] sm:$0xf]
    %v285 = vld [vmem:[#allocation5 + $0x29c] sm:$0xf]
    %v286 = vld [vmem:[#allocation5 + $0x2a0] sm:$0xf]
    %v287 = vld [vmem:[#allocation5 + $0x2a4] sm:$0xf]
    %v288 = vld [vmem:[#allocation5 + $0x2a8] sm:$0xf]
    %v289 = vld [vmem:[#allocation5 + $0x2ac] sm:$0xf]
    %v290 = vld [vmem:[#allocation5 + $0x2b0] sm:$0xf]
    %v291 = vld [vmem:[#allocation5 + $0x2b4] sm:$0xf]
    %v292 = vld [vmem:[#allocation5 + $0x2b8] sm:$0xf]
    %v293 = vld [vmem:[#allocation5 + $0x2bc] sm:$0xf]
    %v294 = vld [vmem:[#allocation5 + $0x2c0] sm:$0xf]
    %v295 = vld [vmem:[#allocation5 + $0x2c4] sm:$0xf]
    %v296 = vld [vmem:[#allocation5 + $0x2c8] sm:$0xf]
    %v297 = vld [vmem:[#allocation5 + $0x2cc] sm:$0xf]
    %v298 = vld [vmem:[#allocation5 + $0x2d0] sm:$0xf]
    %v299 = vld [vmem:[#allocation5 + $0x2d4] sm:$0xf]
    %v300 = vld [vmem:[#allocation5 + $0x2d8] sm:$0xf]
    %v301 = vld [vmem:[#allocation5 + $0x2dc] sm:$0xf]
    %v302 = vld [vmem:[#allocation5 + $0x2e0] sm:$0xf]
    %v303 = vld [vmem:[#allocation5 + $0x2e4] sm:$0xf]
    %v304 = vld [vmem:[#allocation5 + $0x2e8] sm:$0xf]
    %v305 = vld [vmem:[#allocation5 + $0x2ec] sm:$0xf]
    %v306 = vld [vmem:[#allocation5 + $0x2f0] sm:$0xf]
    %v307 = vld [vmem:[#allocation5 + $0x2f4] sm:$0xf]
    %v308 = vld [vmem:[#allocation5 + $0x2f8] sm:$0xf]
    %v309 = vld [vmem:[#allocation5 + $0x2fc] sm:$0xf]
    %v310 = vld [vmem:[#allocation5 + $0x300] sm:$0xf]
    %v311 = vld [vmem:[#allocation5 + $0x304] sm:$0xf]
    %v312 = vld [vmem:[#allocation5 + $0x308] sm:$0xf]
    %v313 = vld [vmem:[#allocation5 + $0x30c] sm:$0xf]
    %v314 = vld [vmem:[#allocation5 + $0x310] sm:$0xf]
    %v315 = vld [vmem:[#allocation5 + $0x314] sm:$0xf]
    %v316 = vld [vmem:[#allocation5 + $0x318] sm:$0xf]
    %v317 = vld [vmem:[#allocation5 + $0x31c] sm:$0xf]
    %v318 = vld [vmem:[#allocation5 + $0x320] sm:$0xf]
    %v319 = vld [vmem:[#allocation5 + $0x324] sm:$0xf]
    %v320 = vld [vmem:[#allocation5 + $0x328] sm:$0xf]
    %v321 = vld [vmem:[#allocation5 + $0x32c] sm:$0xf]
    %v322 = vld [vmem:[#allocation5 + $0x330] sm:$0xf]
    %v323 = vld [vmem:[#allocation5 + $0x334] sm:$0xf]
    %v324 = vld [vmem:[#allocation5 + $0x338] sm:$0xf]
    %v325 = vld [vmem:[#allocation5 + $0x33c] sm:$0xf]
    %v326 = vld [vmem:[#allocation5 + $0x340] sm:$0xf]
    %v327 = vld [vmem:[#allocation5 + $0x344] sm:$0xf]
    %v328 = vld [vmem:[#allocation5 + $0x348] sm:$0xf]
    %v329 = vld [vmem:[#allocation5 + $0x34c] sm:$0xf]
    %v330 = vld [vmem:[#allocation5 + $0x350] sm:$0xf]
    %v331 = vld [vmem:[#allocation5 + $0x354] sm:$0xf]
    %v332 = vld [vmem:[#allocation5 + $0x358] sm:$0xf]
    %v333 = vld [vmem:[#allocation5 + $0x35c] sm:$0xf]
    %v334 = vld [vmem:[#allocation5 + $0x360] sm:$0xf]
    %v335 = vld [vmem:[#allocation5 + $0x364] sm:$0xf]
    %v336 = vld [vmem:[#allocation5 + $0x368] sm:$0xf]
    %v337 = vld [vmem:[#allocation5 + $0x36c] sm:$0xf]
    %v338 = vld [vmem:[#allocation5 + $0x370] sm:$0xf]
    %v339 = vld [vmem:[#allocation5 + $0x374] sm:$0xf]
    %v340 = vld [vmem:[#allocation5 + $0x378] sm:$0xf]
    %v341 = vld [vmem:[#allocation5 + $0x37c] sm:$0xf]
    %v342 = vld [vmem:[#allocation5 + $0x380] sm:$0xf]
    %v343 = vld [vmem:[#allocation5 + $0x384] sm:$0xf]
    %v344 = vld [vmem:[#allocation5 + $0x388] sm:$0xf]
    %v345 = vld [vmem:[#allocation5 + $0x38c] sm:$0xf]
    %v346 = vld [vmem:[#allocation5 + $0x390] sm:$0xf]
    %v347 = vld [vmem:[#allocation5 + $0x394] sm:$0xf]
    %v348 = vld [vmem:[#allocation5 + $0x398] sm:$0xf]
    %v349 = vld [vmem:[#allocation5 + $0x39c] sm:$0xf]
    %v350 = vld [vmem:[#allocation5 + $0x3a0] sm:$0xf]
    %v351 = vld [vmem:[#allocation5 + $0x3a4] sm:$0xf]
    %v352 = vld [vmem:[#allocation5 + $0x3a8] sm:$0xf]
    %v353 = vld [vmem:[#allocation5 + $0x3ac] sm:$0xf]
    %v354 = vld [vmem:[#allocation5 + $0x3b0] sm:$0xf]
    %v355 = vld [vmem:[#allocation5 + $0x3b4] sm:$0xf]
    %v356 = vld [vmem:[#allocation5 + $0x3b8] sm:$0xf]
    %v357 = vld [vmem:[#allocation5 + $0x3bc] sm:$0xf]
    %v358 = vld [vmem:[#allocation5 + $0x3c0] sm:$0xf]
    %v359 = vld [vmem:[#allocation5 + $0x3c4] sm:$0xf]
    %v360 = vld [vmem:[#allocation5 + $0x3c8] sm:$0xf]
    %v361 = vld [vmem:[#allocation5 + $0x3cc] sm:$0xf]
    %v362 = vld [vmem:[#allocation5 + $0x3d0] sm:$0xf]
    %v363 = vld [vmem:[#allocation5 + $0x3d4] sm:$0xf]
    %v364 = vld [vmem:[#allocation5 + $0x3d8] sm:$0xf]
    %v365 = vld [vmem:[#allocation5 + $0x3dc] sm:$0xf]
    %v366 = vld [vmem:[#allocation5 + $0x3e0] sm:$0xf]
    %v367 = vld [vmem:[#allocation5 + $0x3e4] sm:$0xf]
    %v368 = vld [vmem:[#allocation5 + $0x3e8] sm:$0xf]
    %v369 = vld [vmem:[#allocation5 + $0x3ec] sm:$0xf]
    %v370 = vld [vmem:[#allocation5 + $0x3f0] sm:$0xf]
    %v371 = vld [vmem:[#allocation5 + $0x3f4] sm:$0xf]
    %v372 = vld [vmem:[#allocation5 + $0x3f8] sm:$0xf]
    %v373 = vld [vmem:[#allocation5 + $0x3fc] sm:$0xf]
    %v374 = vld [vmem:[#allocation5 + $0x400] sm:$0xf]
    %v375 = vld [vmem:[#allocation5 + $0x404] sm:$0xf]
    %v376 = vld [vmem:[#allocation5 + $0x408] sm:$0xf]
    %v377 = vld [vmem:[#allocation5 + $0x40c] sm:$0xf]
    %v378 = vld [vmem:[#allocation5 + $0x410] sm:$0xf]
    %v379 = vld [vmem:[#allocation5 + $0x414] sm:$0xf]
    %v380 = vld [vmem:[#allocation5 + $0x418] sm:$0xf]
    %v381 = vld [vmem:[#allocation5 + $0x41c] sm:$0xf]
    %v382 = vld [vmem:[#allocation5 + $0x420] sm:$0xf]
    %v383 = vld [vmem:[#allocation5 + $0x424] sm:$0xf]
    %v384 = vld [vmem:[#allocation5 + $0x428] sm:$0xf]
    %v385 = vld [vmem:[#allocation5 + $0x42c] sm:$0xf]
    %v386 = vld [vmem:[#allocation5 + $0x430] sm:$0xf]
    %v387 = vld [vmem:[#allocation5 + $0x434] sm:$0xf]
    %v388 = vld [vmem:[#allocation5 + $0x438] sm:$0xf]
    %v389 = vld [vmem:[#allocation5 + $0x43c] sm:$0xf]
    %v390 = vld [vmem:[#allocation5 + $0x440] sm:$0xf]
    %v391 = vld [vmem:[#allocation5 + $0x444] sm:$0xf]
    %v392 = vld [vmem:[#allocation5 + $0x448] sm:$0xf]
    %v393 = vld [vmem:[#allocation5 + $0x44c] sm:$0xf]
    %v394 = vld [vmem:[#allocation5 + $0x450] sm:$0xf]
    %v395 = vld [vmem:[#allocation5 + $0x454] sm:$0xf]
    %v396 = vld [vmem:[#allocation5 + $0x458] sm:$0xf]
    %v397 = vld [vmem:[#allocation5 + $0x45c] sm:$0xf]
    %v398 = vld [vmem:[#allocation5 + $0x460] sm:$0xf]
    %v399 = vld [vmem:[#allocation5 + $0x464] sm:$0xf]
    %v400 = vld [vmem:[#allocation5 + $0x468] sm:$0xf]
    %v401 = vld [vmem:[#allocation5 + $0x46c] sm:$0xf]
    %v402 = vld [vmem:[#allocation5 + $0x470] sm:$0xf]
    %v403 = vld [vmem:[#allocation5 + $0x474] sm:$0xf]
    %v404 = vld [vmem:[#allocation5 + $0x478] sm:$0xf]
    %v405 = vld [vmem:[#allocation5 + $0x47c] sm:$0xf]
    %v406 = vld [vmem:[#allocation5 + $0x480] sm:$0xf]
    %v407 = vld [vmem:[#allocation5 + $0x484] sm:$0xf]
    %v408 = vld [vmem:[#allocation5 + $0x488] sm:$0xf]
    %v409 = vld [vmem:[#allocation5 + $0x48c] sm:$0xf]
    %v410 = vld [vmem:[#allocation5 + $0x490] sm:$0xf]
    %v411 = vld [vmem:[#allocation5 + $0x494] sm:$0xf]
    %v412 = vld [vmem:[#allocation7] sm:$0x1]
    %v414 = vlaneseq
    %v415 = vshrl.u32 %v414, 7
    %v416 = vsub.s32 0, %v415
    %v417 = vrot.slane %v412, %v416
    %v422 = vcombine.high %v115, %v115
    %v424 = vunpack.c.l.s4 1966171168
    %v425 = vunpack.c.0.s8 %v424
    %v426 = vlaneseq
    %v427 = vshrl.u32 %v426, 7
    %v428 = vsub.s32 %v425, %v427
    %v429 = vrot.slane %v115, %v428
    %v431 = vunpack.c.l.s4 1966171168
    %v432 = vunpack.c.0.s8 %v431
    %v433 = vlaneseq
    %v434 = vshrl.u32 %v433, 7
    %v435 = vsub.s32 %v432, %v434
    %v436 = vrot.slane %v422, %v435
    %v437 = vcombine.high %v429, %v429
    %v438 = vcombine.high %v436, %v436
    %v440 = vunpack.c.l.s4 1966171168
    %v441 = vunpack.c.0.s8 %v440
    %v442 = vlaneseq
    %v443 = vshrl.u32 %v442, 7
    %v444 = vsub.s32 %v441, %v443
    %v445 = vrot.slane %v429, %v444
    %v447 = vunpack.c.l.s4 1966171168
    %v448 = vunpack.c.0.s8 %v447
    %v449 = vlaneseq
    %v450 = vshrl.u32 %v449, 7
    %v451 = vsub.s32 %v448, %v450
    %v452 = vrot.slane %v436, %v451
    %v454 = vunpack.c.l.s4 1966171168
    %v455 = vunpack.c.0.s8 %v454
    %v456 = vlaneseq
    %v457 = vshrl.u32 %v456, 7
    %v458 = vsub.s32 %v455, %v457
    %v459 = vrot.slane %v437, %v458
    %v461 = vunpack.c.l.s4 1966171168
    %v462 = vunpack.c.0.s8 %v461
    %v463 = vlaneseq
    %v464 = vshrl.u32 %v463, 7
    %v465 = vsub.s32 %v462, %v464
    %v466 = vrot.slane %v438, %v465
    %v467 = vcombine.high %v445, %v445
    %v468 = vcombine.high %v452, %v452
    %v469 = vcombine.high %v459, %v459
    %v470 = vcombine.high %v466, %v466
    %v471 = vcombine.high %v116, %v116
    %v473 = vunpack.c.l.s4 1966171168
    %v474 = vunpack.c.0.s8 %v473
    %v475 = vlaneseq
    %v476 = vshrl.u32 %v475, 7
    %v477 = vsub.s32 %v474, %v476
    %v478 = vrot.slane %v116, %v477
    %v480 = vunpack.c.l.s4 1966171168
    %v481 = vunpack.c.0.s8 %v480
    %v482 = vlaneseq
    %v483 = vshrl.u32 %v482, 7
    %v484 = vsub.s32 %v481, %v483
    %v485 = vrot.slane %v471, %v484
    %v486 = vcombine.high %v478, %v478
    %v487 = vcombine.high %v485, %v485
    %v489 = vunpack.c.l.s4 1966171168
    %v490 = vunpack.c.0.s8 %v489
    %v491 = vlaneseq
    %v492 = vshrl.u32 %v491, 7
    %v493 = vsub.s32 %v490, %v492
    %v494 = vrot.slane %v478, %v493
    %v496 = vunpack.c.l.s4 1966171168
    %v497 = vunpack.c.0.s8 %v496
    %v498 = vlaneseq
    %v499 = vshrl.u32 %v498, 7
    %v500 = vsub.s32 %v497, %v499
    %v501 = vrot.slane %v485, %v500
    %v503 = vunpack.c.l.s4 1966171168
    %v504 = vunpack.c.0.s8 %v503
    %v505 = vlaneseq
    %v506 = vshrl.u32 %v505, 7
    %v507 = vsub.s32 %v504, %v506
    %v508 = vrot.slane %v486, %v507
    %v510 = vunpack.c.l.s4 1966171168
    %v511 = vunpack.c.0.s8 %v510
    %v512 = vlaneseq
    %v513 = vshrl.u32 %v512, 7
    %v514 = vsub.s32 %v511, %v513
    %v515 = vrot.slane %v487, %v514
    %v516 = vcombine.high %v494, %v494
    %v517 = vcombine.high %v501, %v501
    %v518 = vcombine.high %v508, %v508
    %v519 = vcombine.high %v515, %v515
    %v521 = vunpack.c.l.s4 1966171168
    %v522 = vunpack.c.0.s8 %v521
    %v523 = vlaneseq
    %v524 = vshrl.u32 %v523, 7
    %v525 = vsub.s32 %v522, %v524
    %v526 = vrot.slane %v117, %v525
    %v527 = vcombine.high %v526, %v526
    %v529 = vunpack.c.l.s4 1966171168
    %v530 = vunpack.c.0.s8 %v529
    %v531 = vlaneseq
    %v532 = vshrl.u32 %v531, 7
    %v533 = vsub.s32 %v530, %v532
    %v534 = vrot.slane %v526, %v533
    %v536 = vunpack.c.l.s4 1966171168
    %v537 = vunpack.c.0.s8 %v536
    %v538 = vlaneseq
    %v539 = vshrl.u32 %v538, 7
    %v540 = vsub.s32 %v537, %v539
    %v541 = vrot.slane %v527, %v540
    %v542 = vcombine.high %v534, %v534
    %v855 = vunpack.c.l.b16 %v118
    %v856 = vunpack.c.l.b16 %v119
    %v857 = vunpack.c.l.b16 %v120
    %v858 = vunpack.c.l.b16 %v121
    %v859 = vunpack.c.l.b16 %v122
    %v860 = vunpack.c.l.b16 %v123
    %v861 = vunpack.c.l.b16 %v124
    %v862 = vunpack.c.l.b16 %v125
    %v863 = vunpack.c.l.b16 %v126
    %v864 = vunpack.c.l.b16 %v127
    %v865 = vunpack.c.l.b16 %v128
    %v866 = vunpack.c.l.b16 %v129
    %v867 = vunpack.c.l.b16 %v130
    %v868 = vunpack.c.l.b16 %v131
    %v869 = vunpack.c.l.b16 %v132
    %v870 = vunpack.c.l.b16 %v133
    %v871 = vunpack.c.l.b16 %v134
    %v872 = vunpack.c.l.b16 %v135
    %v873 = vunpack.c.l.b16 %v136
    %v874 = vunpack.c.l.b16 %v137
    %v875 = vunpack.c.l.b16 %v138
    %v876 = vunpack.c.l.b16 %v139
    %v877 = vunpack.c.l.b16 %v140
    %v878 = vunpack.c.l.b16 %v141
    %v879 = vunpack.c.l.b16 %v142
    %v880 = vunpack.c.l.b16 %v143
    %v881 = vunpack.c.l.b16 %v144
    %v882 = vunpack.c.l.b16 %v145
    %v883 = vunpack.c.l.b16 %v146
    %v884 = vunpack.c.l.b16 %v147
    %v885 = vunpack.c.l.b16 %v148
    %v886 = vunpack.c.l.b16 %v149
    %v887 = vunpack.c.l.b16 %v150
    %v888 = vunpack.c.l.b16 %v151
    %v889 = vunpack.c.l.b16 %v152
    %v890 = vunpack.c.l.b16 %v153
    %v891 = vunpack.c.l.b16 %v154
    %v892 = vunpack.c.l.b16 %v155
    %v893 = vunpack.c.l.b16 %v156
    %v894 = vunpack.c.l.b16 %v157
    %v895 = vunpack.c.l.b16 %v158
    %v896 = vunpack.c.l.b16 %v159
    %v897 = vunpack.c.l.b16 %v160
    %v898 = vunpack.c.l.b16 %v161
    %v899 = vunpack.c.l.b16 %v162
    %v900 = vunpack.c.l.b16 %v163
    %v901 = vunpack.c.l.b16 %v164
    %v902 = vunpack.c.l.b16 %v165
    %v903 = vunpack.c.l.b16 %v166
    %v904 = vunpack.c.l.b16 %v167
    %v905 = vunpack.c.l.b16 %v168
    %v906 = vunpack.c.l.b16 %v169
    %v907 = vunpack.c.l.b16 %v170
    %v908 = vunpack.c.l.b16 %v171
    %v909 = vunpack.c.l.b16 %v172
    %v910 = vunpack.c.l.b16 %v173
    %v911 = vunpack.c.l.b16 %v174
    %v912 = vunpack.c.l.b16 %v175
    %v913 = vunpack.c.l.b16 %v176
    %v914 = vunpack.c.l.b16 %v177
    %v915 = vunpack.c.l.b16 %v178
    %v916 = vunpack.c.l.b16 %v179
    %v917 = vunpack.c.l.b16 %v180
    %v918 = vunpack.c.l.b16 %v181
    %v919 = vunpack.c.l.b16 %v182
    %v920 = vunpack.c.l.b16 %v183
    %v921 = vunpack.c.l.b16 %v184
    %v922 = vunpack.c.l.b16 %v185
    %v923 = vunpack.c.l.b16 %v186
    %v924 = vunpack.c.l.b16 %v187
    %v925 = vunpack.c.l.b16 %v188
    %v926 = vunpack.c.l.b16 %v189
    %v927 = vunpack.c.l.b16 %v190
    %v928 = vunpack.c.l.b16 %v191
    %v929 = vunpack.c.l.b16 %v192
    %v930 = vunpack.c.l.b16 %v193
    %v931 = vunpack.c.l.b16 %v194
    %v932 = vunpack.c.l.b16 %v195
    %v933 = vunpack.c.l.b16 %v196
    %v934 = vunpack.c.l.b16 %v197
    %v935 = vunpack.c.l.b16 %v198
    %v936 = vunpack.c.l.b16 %v199
    %v937 = vunpack.c.l.b16 %v200
    %v938 = vunpack.c.l.b16 %v201
    %v939 = vunpack.c.l.b16 %v202
    %v940 = vunpack.c.l.b16 %v203
    %v941 = vunpack.c.l.b16 %v204
    %v942 = vunpack.c.l.b16 %v205
    %v943 = vunpack.c.l.b16 %v206
    %v944 = vunpack.c.l.b16 %v207
    %v945 = vunpack.c.l.b16 %v208
    %v946 = vunpack.c.l.b16 %v209
    %v947 = vunpack.c.l.b16 %v210
    %v948 = vunpack.c.l.b16 %v211
    %v949 = vunpack.c.l.b16 %v212
    %v950 = vunpack.c.l.b16 %v213
    %v951 = vunpack.c.l.b16 %v214
    %v952 = vunpack.c.l.b16 %v215
    %v953 = vunpack.c.l.b16 %v216
    %v954 = vunpack.c.l.b16 %v217
    %v955 = vunpack.c.l.b16 %v218
    %v956 = vunpack.c.l.b16 %v219
    %v957 = vunpack.c.l.b16 %v220
    %v958 = vunpack.c.l.b16 %v221
    %v959 = vunpack.c.l.b16 %v222
    %v960 = vunpack.c.l.b16 %v223
    %v961 = vunpack.c.l.b16 %v224
    %v962 = vunpack.c.l.b16 %v225
    %v963 = vunpack.c.l.b16 %v226
    %v964 = vunpack.c.l.b16 %v227
    %v965 = vunpack.c.l.b16 %v228
    %v966 = vunpack.c.l.b16 %v229
    %v967 = vunpack.c.l.b16 %v230
    %v968 = vunpack.c.l.b16 %v231
    %v969 = vunpack.c.l.b16 %v232
    %v970 = vunpack.c.l.b16 %v233
    %v971 = vunpack.c.l.b16 %v234
    %v972 = vunpack.c.l.b16 %v235
    %v973 = vunpack.c.l.b16 %v236
    %v974 = vunpack.c.l.b16 %v237
    %v975 = vunpack.c.l.b16 %v238
    %v976 = vunpack.c.l.b16 %v239
    %v977 = vunpack.c.l.b16 %v240
    %v978 = vunpack.c.l.b16 %v241
    %v979 = vunpack.c.l.b16 %v242
    %v980 = vunpack.c.l.b16 %v243
    %v981 = vunpack.c.l.b16 %v244
    %v982 = vunpack.c.l.b16 %v245
    %v983 = vunpack.c.l.b16 %v246
    %v984 = vunpack.c.l.b16 %v247
    %v985 = vunpack.c.l.b16 %v248
    %v986 = vunpack.c.l.b16 %v249
    %v987 = vunpack.c.l.b16 %v250
    %v988 = vunpack.c.l.b16 %v251
    %v989 = vunpack.c.l.b16 %v252
    %v990 = vunpack.c.l.b16 %v253
    %v991 = vunpack.c.l.b16 %v254
    %v992 = vunpack.c.l.b16 %v255
    %v993 = vunpack.c.l.b16 %v256
    %v994 = vunpack.c.l.b16 %v257
    %v995 = vunpack.c.l.b16 %v258
    %v996 = vunpack.c.l.b16 %v259
    %v997 = vunpack.c.l.b16 %v260
    %v998 = vunpack.c.l.b16 %v261
    %v999 = vunpack.c.l.b16 %v262
    %v1000 = vunpack.c.l.b16 %v263
    %v1001 = vunpack.c.l.b16 %v264
    %v1002 = vunpack.c.l.b16 %v265
    %v1003 = vunpack.c.l.b16 %v266
    %v1004 = vunpack.c.l.b16 %v267
    %v1005 = vunpack.c.l.b16 %v268
    %v1006 = vunpack.c.l.b16 %v269
    %v1007 = vunpack.c.l.b16 %v270
    %v1008 = vunpack.c.l.b16 %v271
    %v1009 = vunpack.c.l.b16 %v272
    %v1010 = vunpack.c.l.b16 %v273
    %v1011 = vunpack.c.l.b16 %v274
    %v1012 = vunpack.c.l.b16 %v275
    %v1013 = vunpack.c.l.b16 %v276
    %v1014 = vunpack.c.l.b16 %v277
    %v1015 = vunpack.c.l.b16 %v278
    %v1016 = vunpack.c.l.b16 %v279
    %v1017 = vunpack.c.l.b16 %v280
    %v1018 = vunpack.c.l.b16 %v281
    %v1019 = vunpack.c.l.b16 %v282
    %v1020 = vunpack.c.l.b16 %v283
    %v1021 = vunpack.c.l.b16 %v284
    %v1022 = vunpack.c.l.b16 %v285
    %v1023 = vunpack.c.l.b16 %v286
    %v1024 = vunpack.c.l.b16 %v287
    %v1025 = vunpack.c.l.b16 %v288
    %v1026 = vunpack.c.l.b16 %v289
    %v1027 = vunpack.c.l.b16 %v290
    %v1028 = vunpack.c.l.b16 %v291
    %v1029 = vunpack.c.l.b16 %v292
    %v1030 = vunpack.c.l.b16 %v293
    %v1031 = vunpack.c.l.b16 %v294
    %v1032 = vunpack.c.l.b16 %v295
    %v1033 = vunpack.c.l.b16 %v296
    %v1034 = vunpack.c.l.b16 %v297
    %v1035 = vunpack.c.l.b16 %v298
    %v1036 = vunpack.c.l.b16 %v299
    %v1037 = vunpack.c.l.b16 %v300
    %v1038 = vunpack.c.l.b16 %v301
    %v1039 = vunpack.c.l.b16 %v302
    %v1040 = vunpack.c.l.b16 %v303
    %v1041 = vunpack.c.l.b16 %v304
    %v1042 = vunpack.c.l.b16 %v305
    %v1043 = vunpack.c.l.b16 %v306
    %v1044 = vunpack.c.l.b16 %v307
    %v1045 = vunpack.c.l.b16 %v308
    %v1046 = vunpack.c.l.b16 %v309
    %v1047 = vunpack.c.l.b16 %v310
    %v1048 = vunpack.c.l.b16 %v311
    %v1049 = vunpack.c.l.b16 %v312
    %v1050 = vunpack.c.l.b16 %v313
    %v1051 = vunpack.c.l.b16 %v314
    %v1052 = vunpack.c.l.b16 %v315
    %v1053 = vunpack.c.l.b16 %v316
    %v1054 = vunpack.c.l.b16 %v317
    %v1055 = vunpack.c.l.b16 %v318
    %v1056 = vunpack.c.l.b16 %v319
    %v1057 = vunpack.c.l.b16 %v320
    %v1058 = vunpack.c.l.b16 %v321
    %v1059 = vunpack.c.l.b16 %v322
    %v1060 = vunpack.c.l.b16 %v323
    %v1061 = vunpack.c.l.b16 %v324
    %v1062 = vunpack.c.l.b16 %v325
    %v1063 = vunpack.c.l.b16 %v326
    %v1064 = vunpack.c.l.b16 %v327
    %v1065 = vunpack.c.l.b16 %v328
    %v1066 = vunpack.c.l.b16 %v329
    %v1067 = vunpack.c.l.b16 %v330
    %v1068 = vunpack.c.l.b16 %v331
    %v1069 = vunpack.c.l.b16 %v332
    %v1070 = vunpack.c.l.b16 %v333
    %v1071 = vunpack.c.l.b16 %v334
    %v1072 = vunpack.c.l.b16 %v335
    %v1073 = vunpack.c.l.b16 %v336
    %v1074 = vunpack.c.l.b16 %v337
    %v1075 = vunpack.c.l.b16 %v338
    %v1076 = vunpack.c.l.b16 %v339
    %v1077 = vunpack.c.l.b16 %v340
    %v1078 = vunpack.c.l.b16 %v341
    %v1079 = vunpack.c.l.b16 %v342
    %v1080 = vunpack.c.l.b16 %v343
    %v1081 = vunpack.c.l.b16 %v344
    %v1082 = vunpack.c.l.b16 %v345
    %v1083 = vunpack.c.l.b16 %v346
    %v1084 = vunpack.c.l.b16 %v347
    %v1085 = vunpack.c.l.b16 %v348
    %v1086 = vunpack.c.l.b16 %v349
    %v1087 = vunpack.c.l.b16 %v350
    %v1088 = vunpack.c.l.b16 %v351
    %v1089 = vunpack.c.l.b16 %v352
    %v1090 = vunpack.c.l.b16 %v353
    %v1091 = vunpack.c.l.b16 %v354
    %v1092 = vunpack.c.l.b16 %v355
    %v1093 = vunpack.c.l.b16 %v356
    %v1094 = vunpack.c.l.b16 %v357
    %v1095 = vunpack.c.l.b16 %v358
    %v1096 = vunpack.c.l.b16 %v359
    %v1097 = vunpack.c.l.b16 %v360
    %v1098 = vunpack.c.l.b16 %v361
    %v1099 = vunpack.c.l.b16 %v362
    %v1100 = vunpack.c.l.b16 %v363
    %v1101 = vunpack.c.l.b16 %v364
    %v1102 = vunpack.c.l.b16 %v365
    %v1103 = vunpack.c.l.b16 %v366
    %v1104 = vunpack.c.l.b16 %v367
    %v1105 = vunpack.c.l.b16 %v368
    %v1106 = vunpack.c.l.b16 %v369
    %v1107 = vunpack.c.l.b16 %v370
    %v1108 = vunpack.c.l.b16 %v371
    %v1109 = vunpack.c.l.b16 %v372
    %v1110 = vunpack.c.l.b16 %v373
    %v1111 = vunpack.c.l.b16 %v374
    %v1112 = vunpack.c.l.b16 %v375
    %v1113 = vunpack.c.l.b16 %v376
    %v1114 = vunpack.c.l.b16 %v377
    %v1115 = vunpack.c.l.b16 %v378
    %v1116 = vunpack.c.l.b16 %v379
    %v1117 = vunpack.c.l.b16 %v380
    %v1118 = vunpack.c.l.b16 %v381
    %v1119 = vunpack.c.l.b16 %v382
    %v1120 = vunpack.c.l.b16 %v383
    %v1121 = vunpack.c.l.b16 %v384
    %v1122 = vunpack.c.l.b16 %v385
    %v1123 = vunpack.c.l.b16 %v386
    %v1124 = vunpack.c.l.b16 %v387
    %v1125 = vunpack.c.l.b16 %v388
    %v1126 = vunpack.c.l.b16 %v389
    %v1127 = vunpack.c.l.b16 %v390
    %v1128 = vunpack.c.l.b16 %v391
    %v1129 = vunpack.c.l.b16 %v392
    %v1130 = vunpack.c.l.b16 %v393
    %v1131 = vunpack.c.l.b16 %v394
    %v1132 = vunpack.c.l.b16 %v395
    %v1133 = vunpack.c.l.b16 %v396
    %v1134 = vunpack.c.l.b16 %v397
    %v1135 = vunpack.c.l.b16 %v398
    %v1136 = vunpack.c.l.b16 %v399
    %v1137 = vunpack.c.l.b16 %v400
    %v1138 = vunpack.c.l.b16 %v401
    %v1139 = vunpack.c.l.b16 %v402
    %v1140 = vunpack.c.l.b16 %v403
    %v1141 = vunpack.c.l.b16 %v404
    %v1142 = vunpack.c.l.b16 %v405
    %v1143 = vunpack.c.l.b16 %v406
    %v1144 = vunpack.c.l.b16 %v407
    %v1145 = vunpack.c.l.b16 %v408
    %v1146 = vunpack.c.l.b16 %v409
    %v1147 = vunpack.c.l.b16 %v410
    %v1148 = vunpack.c.l.b16 %v411
    %v1149 = vpack.c.b16 %v856, %v855
    %v1150 = vpack.c.b16 %v858, %v857
    %v1151 = vpack.c.b16 %v860, %v859
    %v1152 = vpack.c.b16 %v862, %v861
    %v1153 = vpack.c.b16 %v864, %v863
    %v1154 = vpack.c.b16 %v866, %v865
    %v1155 = vpack.c.b16 %v868, %v867
    %v1156 = vpack.c.b16 %v870, %v869
    %v1157 = vpack.c.b16 %v872, %v871
    %v1158 = vpack.c.b16 %v874, %v873
    %v1159 = vpack.c.b16 %v876, %v875
    %v1160 = vpack.c.b16 %v878, %v877
    %v1161 = vpack.c.b16 %v880, %v879
    %v1162 = vpack.c.b16 %v882, %v881
    %v1163 = vpack.c.b16 %v884, %v883
    %v1164 = vpack.c.b16 %v886, %v885
    %v1165 = vpack.c.b16 %v888, %v887
    %v1166 = vpack.c.b16 %v890, %v889
    %v1167 = vpack.c.b16 %v892, %v891
    %v1168 = vpack.c.b16 %v894, %v893
    %v1169 = vpack.c.b16 %v896, %v895
    %v1170 = vpack.c.b16 %v898, %v897
    %v1171 = vpack.c.b16 %v900, %v899
    %v1172 = vpack.c.b16 %v902, %v901
    %v1173 = vpack.c.b16 %v904, %v903
    %v1174 = vpack.c.b16 %v906, %v905
    %v1175 = vpack.c.b16 %v908, %v907
    %v1176 = vpack.c.b16 %v910, %v909
    %v1177 = vpack.c.b16 %v912, %v911
    %v1178 = vpack.c.b16 %v914, %v913
    %v1179 = vpack.c.b16 %v916, %v915
    %v1180 = vpack.c.b16 %v918, %v917
    %v1181 = vpack.c.b16 %v920, %v919
    %v1182 = vpack.c.b16 %v922, %v921
    %v1183 = vpack.c.b16 %v924, %v923
    %v1184 = vpack.c.b16 %v926, %v925
    %v1185 = vpack.c.b16 %v928, %v927
    %v1186 = vpack.c.b16 %v930, %v929
    %v1187 = vpack.c.b16 %v932, %v931
    %v1188 = vpack.c.b16 %v934, %v933
    %v1189 = vpack.c.b16 %v936, %v935
    %v1190 = vpack.c.b16 %v938, %v937
    %v1191 = vpack.c.b16 %v940, %v939
    %v1192 = vpack.c.b16 %v942, %v941
    %v1193 = vpack.c.b16 %v944, %v943
    %v1194 = vpack.c.b16 %v946, %v945
    %v1195 = vpack.c.b16 %v948, %v947
    %v1196 = vpack.c.b16 %v950, %v949
    %v1197 = vpack.c.b16 %v952, %v951
    %v1198 = vpack.c.b16 %v954, %v953
    %v1199 = vpack.c.b16 %v956, %v955
    %v1200 = vpack.c.b16 %v958, %v957
    %v1201 = vpack.c.b16 %v960, %v959
    %v1202 = vpack.c.b16 %v962, %v961
    %v1203 = vpack.c.b16 %v964, %v963
    %v1204 = vpack.c.b16 %v966, %v965
    %v1205 = vpack.c.b16 %v968, %v967
    %v1206 = vpack.c.b16 %v970, %v969
    %v1207 = vpack.c.b16 %v972, %v971
    %v1208 = vpack.c.b16 %v974, %v973
    %v1209 = vpack.c.b16 %v976, %v975
    %v1210 = vpack.c.b16 %v978, %v977
    %v1211 = vpack.c.b16 %v980, %v979
    %v1212 = vpack.c.b16 %v982, %v981
    %v1213 = vpack.c.b16 %v984, %v983
    %v1214 = vpack.c.b16 %v986, %v985
    %v1215 = vpack.c.b16 %v988, %v987
    %v1216 = vpack.c.b16 %v990, %v989
    %v1217 = vpack.c.b16 %v992, %v991
    %v1218 = vpack.c.b16 %v994, %v993
    %v1219 = vpack.c.b16 %v996, %v995
    %v1220 = vpack.c.b16 %v998, %v997
    %v1221 = vpack.c.b16 %v1000, %v999
    %v1222 = vpack.c.b16 %v1002, %v1001
    %v1223 = vpack.c.b16 %v1004, %v1003
    %v1224 = vpack.c.b16 %v1006, %v1005
    %v1225 = vpack.c.b16 %v1008, %v1007
    %v1226 = vpack.c.b16 %v1010, %v1009
    %v1227 = vpack.c.b16 %v1012, %v1011
    %v1228 = vpack.c.b16 %v1014, %v1013
    %v1229 = vpack.c.b16 %v1016, %v1015
    %v1230 = vpack.c.b16 %v1018, %v1017
    %v1231 = vpack.c.b16 %v1020, %v1019
    %v1232 = vpack.c.b16 %v1022, %v1021
    %v1233 = vpack.c.b16 %v1024, %v1023
    %v1234 = vpack.c.b16 %v1026, %v1025
    %v1235 = vpack.c.b16 %v1028, %v1027
    %v1236 = vpack.c.b16 %v1030, %v1029
    %v1237 = vpack.c.b16 %v1032, %v1031
    %v1238 = vpack.c.b16 %v1034, %v1033
    %v1239 = vpack.c.b16 %v1036, %v1035
    %v1240 = vpack.c.b16 %v1038, %v1037
    %v1241 = vpack.c.b16 %v1040, %v1039
    %v1242 = vpack.c.b16 %v1042, %v1041
    %v1243 = vpack.c.b16 %v1044, %v1043
    %v1244 = vpack.c.b16 %v1046, %v1045
    %v1245 = vpack.c.b16 %v1048, %v1047
    %v1246 = vpack.c.b16 %v1050, %v1049
    %v1247 = vpack.c.b16 %v1052, %v1051
    %v1248 = vpack.c.b16 %v1054, %v1053
    %v1249 = vpack.c.b16 %v1056, %v1055
    %v1250 = vpack.c.b16 %v1058, %v1057
    %v1251 = vpack.c.b16 %v1060, %v1059
    %v1252 = vpack.c.b16 %v1062, %v1061
    %v1253 = vpack.c.b16 %v1064, %v1063
    %v1254 = vpack.c.b16 %v1066, %v1065
    %v1255 = vpack.c.b16 %v1068, %v1067
    %v1256 = vpack.c.b16 %v1070, %v1069
    %v1257 = vpack.c.b16 %v1072, %v1071
    %v1258 = vpack.c.b16 %v1074, %v1073
    %v1259 = vpack.c.b16 %v1076, %v1075
    %v1260 = vpack.c.b16 %v1078, %v1077
    %v1261 = vpack.c.b16 %v1080, %v1079
    %v1262 = vpack.c.b16 %v1082, %v1081
    %v1263 = vpack.c.b16 %v1084, %v1083
    %v1264 = vpack.c.b16 %v1086, %v1085
    %v1265 = vpack.c.b16 %v1088, %v1087
    %v1266 = vpack.c.b16 %v1090, %v1089
    %v1267 = vpack.c.b16 %v1092, %v1091
    %v1268 = vpack.c.b16 %v1094, %v1093
    %v1269 = vpack.c.b16 %v1096, %v1095
    %v1270 = vpack.c.b16 %v1098, %v1097
    %v1271 = vpack.c.b16 %v1100, %v1099
    %v1272 = vpack.c.b16 %v1102, %v1101
    %v1273 = vpack.c.b16 %v1104, %v1103
    %v1274 = vpack.c.b16 %v1106, %v1105
    %v1275 = vpack.c.b16 %v1108, %v1107
    %v1276 = vpack.c.b16 %v1110, %v1109
    %v1277 = vpack.c.b16 %v1112, %v1111
    %v1278 = vpack.c.b16 %v1114, %v1113
    %v1279 = vpack.c.b16 %v1116, %v1115
    %v1280 = vpack.c.b16 %v1118, %v1117
    %v1281 = vpack.c.b16 %v1120, %v1119
    %v1282 = vpack.c.b16 %v1122, %v1121
    %v1283 = vpack.c.b16 %v1124, %v1123
    %v1284 = vpack.c.b16 %v1126, %v1125
    %v1285 = vpack.c.b16 %v1128, %v1127
    %v1286 = vpack.c.b16 %v1130, %v1129
    %v1287 = vpack.c.b16 %v1132, %v1131
    %v1288 = vpack.c.b16 %v1134, %v1133
    %v1289 = vpack.c.b16 %v1136, %v1135
    %v1290 = vpack.c.b16 %v1138, %v1137
    %v1291 = vpack.c.b16 %v1140, %v1139
    %v1292 = vpack.c.b16 %v1142, %v1141
    %v1293 = vpack.c.b16 %v1144, %v1143
    %v1294 = vpack.c.b16 %v1146, %v1145
    %v1295 = vpack.c.b16 %v1148, %v1147
    %vm1443 = vcmask 392192
    %v1445 = vsel %vm1443, %v542, 0
    %1447 = vmatprep.subr.bf16.mxu0 0
    %1448 = vmatpush1.bf16.msra.mxu0 %v1149
    %1449 = vmatprep.subr.bf16.mxu0 0
    %1450 = vmatpush1.bf16.msra.mxu0 %v1150
    %1451 = vmatprep.subr.bf16.mxu0 0
    %1452 = vmatpush1.bf16.msra.mxu0 %v1151
    %1453 = vmatprep.subr.bf16.mxu0 0
    %1454 = vmatpush1.bf16.msra.mxu0 %v1152
    %1455 = vmatprep.subr.bf16.mxu0 0
    %1456 = vmatpush1.bf16.msra.mxu0 %v1153
    %1457 = vmatprep.subr.bf16.mxu0 0
    %1458 = vmatpush1.bf16.msra.mxu0 %v1154
    %1459 = vmatprep.subr.bf16.mxu0 0
    %1460 = vmatpush1.bf16.msra.mxu0 %v1155
    %1461 = vmatprep.subr.bf16.mxu0 0
    %1462 = vmatpush1.bf16.msra.mxu0 %v1156
    %1463 = vmatprep.subr.bf16.mxu0 0
    %1464 = vmatpush1.bf16.msra.mxu0 %v1157
    %1465 = vmatprep.subr.bf16.mxu0 0
    %1466 = vmatpush1.bf16.msra.mxu0 %v1158
    %1467 = vmatprep.subr.bf16.mxu0 0
    %1468 = vmatpush1.bf16.msra.mxu0 %v1159
    %1469 = vmatprep.subr.bf16.mxu0 0
    %1470 = vmatpush1.bf16.msra.mxu0 %v1160
    %1471 = vmatprep.subr.bf16.mxu0 0
    %1472 = vmatpush1.bf16.msra.mxu0 %v1161
    %1473 = vmatprep.subr.bf16.mxu0 0
    %1474 = vmatpush1.bf16.msra.mxu0 %v1162
    %1475 = vmatprep.subr.bf16.mxu0 0
    %1476 = vmatpush1.bf16.msra.mxu0 %v1163
    %1477 = vmatprep.subr.bf16.mxu0 0
    %1478 = vmatpush1.bf16.msra.mxu0 %v1164
    %1479 = vmatprep.mubr.bf16.mxu0 %v459
    %1480 = vmatmul.mubr.bf16.gmra.mrb[0].mxu0 %v445
    %v1481 = vpop.f32.mrb[0].mxu0
    %v1482 = vadd.f32 %v417, %v1481
    %v1483 = vpop.f32.mrb[0].mxu0
    %v1484 = vpop.f32.mrb[0].mxu0
    %v1485 = vpop.f32.mrb[0].mxu0
    %1486 = vdwg.mxu0
    %1487 = vmatprep.subr.bf16.mxu0 0
    %1488 = vmatpush1.bf16.msra.mxu0 %v1165
    %1489 = vmatprep.subr.bf16.mxu0 0
    %1490 = vmatpush1.bf16.msra.mxu0 %v1166
    %1491 = vmatprep.subr.bf16.mxu0 0
    %1492 = vmatpush1.bf16.msra.mxu0 %v1167
    %1493 = vmatprep.subr.bf16.mxu0 0
    %1494 = vmatpush1.bf16.msra.mxu0 %v1168
    %1495 = vmatprep.subr.bf16.mxu0 0
    %1496 = vmatpush1.bf16.msra.mxu0 %v1169
    %1497 = vmatprep.subr.bf16.mxu0 0
    %1498 = vmatpush1.bf16.msra.mxu0 %v1170
    %1499 = vmatprep.subr.bf16.mxu0 0
    %1500 = vmatpush1.bf16.msra.mxu0 %v1171
    %1501 = vmatprep.subr.bf16.mxu0 0
    %1502 = vmatpush1.bf16.msra.mxu0 %v1172
    %1503 = vmatprep.subr.bf16.mxu0 0
    %1504 = vmatpush1.bf16.msra.mxu0 %v1173
    %1505 = vmatprep.subr.bf16.mxu0 0
    %1506 = vmatpush1.bf16.msra.mxu0 %v1174
    %1507 = vmatprep.subr.bf16.mxu0 0
    %1508 = vmatpush1.bf16.msra.mxu0 %v1175
    %1509 = vmatprep.subr.bf16.mxu0 0
    %1510 = vmatpush1.bf16.msra.mxu0 %v1176
    %1511 = vmatprep.subr.bf16.mxu0 0
    %1512 = vmatpush1.bf16.msra.mxu0 %v1177
    %1513 = vmatprep.subr.bf16.mxu0 0
    %1514 = vmatpush1.bf16.msra.mxu0 %v1178
    %1515 = vmatprep.subr.bf16.mxu0 0
    %1516 = vmatpush1.bf16.msra.mxu0 %v1179
    %1517 = vmatprep.subr.bf16.mxu0 0
    %1518 = vmatpush1.bf16.msra.mxu0 %v1180
    %1519 = vmatprep.mubr.bf16.mxu0 %v469
    %1520 = vmatmul.mubr.bf16.gmra.mrb[0].mxu0 %v467
    %v1521 = vpop.f32.mrb[0].mxu0
    %v1522 = vadd.f32 %v1482, %v1521
    %v1523 = vpop.f32.mrb[0].mxu0
    %v1524 = vpop.f32.mrb[0].mxu0
    %v1525 = vpop.f32.mrb[0].mxu0
    %1526 = vdwg.mxu0
    %1527 = vmatprep.subr.bf16.mxu0 0
    %1528 = vmatpush1.bf16.msra.mxu0 %v1181
    %1529 = vmatprep.subr.bf16.mxu0 0
    %1530 = vmatpush1.bf16.msra.mxu0 %v1182
    %1531 = vmatprep.subr.bf16.mxu0 0
    %1532 = vmatpush1.bf16.msra.mxu0 %v1183
    %1533 = vmatprep.subr.bf16.mxu0 0
    %1534 = vmatpush1.bf16.msra.mxu0 %v1184
    %1535 = vmatprep.subr.bf16.mxu0 0
    %1536 = vmatpush1.bf16.msra.mxu0 %v1185
    %1537 = vmatprep.subr.bf16.mxu0 0
    %1538 = vmatpush1.bf16.msra.mxu0 %v1186
    %1539 = vmatprep.subr.bf16.mxu0 0
    %1540 = vmatpush1.bf16.msra.mxu0 %v1187
    %1541 = vmatprep.subr.bf16.mxu0 0
    %1542 = vmatpush1.bf16.msra.mxu0 %v1188
    %1543 = vmatprep.subr.bf16.mxu0 0
    %1544 = vmatpush1.bf16.msra.mxu0 %v1189
    %1545 = vmatprep.subr.bf16.mxu0 0
    %1546 = vmatpush1.bf16.msra.mxu0 %v1190
    %1547 = vmatprep.subr.bf16.mxu0 0
    %1548 = vmatpush1.bf16.msra.mxu0 %v1191
    %1549 = vmatprep.subr.bf16.mxu0 0
    %1550 = vmatpush1.bf16.msra.mxu0 %v1192
    %1551 = vmatprep.subr.bf16.mxu0 0
    %1552 = vmatpush1.bf16.msra.mxu0 %v1193
    %1553 = vmatprep.subr.bf16.mxu0 0
    %1554 = vmatpush1.bf16.msra.mxu0 %v1194
    %1555 = vmatprep.subr.bf16.mxu0 0
    %1556 = vmatpush1.bf16.msra.mxu0 %v1195
    %1557 = vmatprep.subr.bf16.mxu0 0
    %1558 = vmatpush1.bf16.msra.mxu0 %v1196
    %1559 = vmatprep.mubr.bf16.mxu0 %v466
    %1560 = vmatmul.mubr.bf16.gmra.mrb[0].mxu0 %v452
    %v1561 = vpop.f32.mrb[0].mxu0
    %v1562 = vadd.f32 %v1522, %v1561
    %v1563 = vpop.f32.mrb[0].mxu0
    %v1564 = vpop.f32.mrb[0].mxu0
    %v1565 = vpop.f32.mrb[0].mxu0
    %1566 = vdwg.mxu0
    %1567 = vmatprep.subr.bf16.mxu0 0
    %1568 = vmatpush1.bf16.msra.mxu0 %v1197
    %1569 = vmatprep.subr.bf16.mxu0 0
    %1570 = vmatpush1.bf16.msra.mxu0 %v1198
    %1571 = vmatprep.subr.bf16.mxu0 0
    %1572 = vmatpush1.bf16.msra.mxu0 %v1199
    %1573 = vmatprep.subr.bf16.mxu0 0
    %1574 = vmatpush1.bf16.msra.mxu0 %v1200
    %1575 = vmatprep.subr.bf16.mxu0 0
    %1576 = vmatpush1.bf16.msra.mxu0 %v1201
    %1577 = vmatprep.subr.bf16.mxu0 0
    %1578 = vmatpush1.bf16.msra.mxu0 %v1202
    %1579 = vmatprep.subr.bf16.mxu0 0
    %1580 = vmatpush1.bf16.msra.mxu0 %v1203
    %1581 = vmatprep.subr.bf16.mxu0 0
    %1582 = vmatpush1.bf16.msra.mxu0 %v1204
    %1583 = vmatprep.subr.bf16.mxu0 0
    %1584 = vmatpush1.bf16.msra.mxu0 %v1205
    %1585 = vmatprep.subr.bf16.mxu0 0
    %1586 = vmatpush1.bf16.msra.mxu0 %v1206
    %1587 = vmatprep.subr.bf16.mxu0 0
    %1588 = vmatpush1.bf16.msra.mxu0 %v1207
    %1589 = vmatprep.subr.bf16.mxu0 0
    %1590 = vmatpush1.bf16.msra.mxu0 %v1208
    %1591 = vmatprep.subr.bf16.mxu0 0
    %1592 = vmatpush1.bf16.msra.mxu0 %v1209
    %1593 = vmatprep.subr.bf16.mxu0 0
    %1594 = vmatpush1.bf16.msra.mxu0 %v1210
    %1595 = vmatprep.subr.bf16.mxu0 0
    %1596 = vmatpush1.bf16.msra.mxu0 %v1211
    %1597 = vmatprep.subr.bf16.mxu0 0
    %1598 = vmatpush1.bf16.msra.mxu0 %v1212
    %1599 = vmatprep.mubr.bf16.mxu0 %v470
    %1600 = vmatmul.mubr.bf16.gmra.mrb[0].mxu0 %v468
    %v1601 = vpop.f32.mrb[0].mxu0
    %v1602 = vadd.f32 %v1562, %v1601
    %v1603 = vpop.f32.mrb[0].mxu0
    %v1604 = vpop.f32.mrb[0].mxu0
    %v1605 = vpop.f32.mrb[0].mxu0
    %1606 = vdwg.mxu0
    %1607 = vmatprep.subr.bf16.mxu0 0
    %1608 = vmatpush1.bf16.msra.mxu0 %v1213
    %1609 = vmatprep.subr.bf16.mxu0 0
    %1610 = vmatpush1.bf16.msra.mxu0 %v1214
    %1611 = vmatprep.subr.bf16.mxu0 0
    %1612 = vmatpush1.bf16.msra.mxu0 %v1215
    %1613 = vmatprep.subr.bf16.mxu0 0
    %1614 = vmatpush1.bf16.msra.mxu0 %v1216
    %1615 = vmatprep.subr.bf16.mxu0 0
    %1616 = vmatpush1.bf16.msra.mxu0 %v1217
    %1617 = vmatprep.subr.bf16.mxu0 0
    %1618 = vmatpush1.bf16.msra.mxu0 %v1218
    %1619 = vmatprep.subr.bf16.mxu0 0
    %1620 = vmatpush1.bf16.msra.mxu0 %v1219
    %1621 = vmatprep.subr.bf16.mxu0 0
    %1622 = vmatpush1.bf16.msra.mxu0 %v1220
    %1623 = vmatprep.subr.bf16.mxu0 0
    %1624 = vmatpush1.bf16.msra.mxu0 %v1221
    %1625 = vmatprep.subr.bf16.mxu0 0
    %1626 = vmatpush1.bf16.msra.mxu0 %v1222
    %1627 = vmatprep.subr.bf16.mxu0 0
    %1628 = vmatpush1.bf16.msra.mxu0 %v1223
    %1629 = vmatprep.subr.bf16.mxu0 0
    %1630 = vmatpush1.bf16.msra.mxu0 %v1224
    %1631 = vmatprep.subr.bf16.mxu0 0
    %1632 = vmatpush1.bf16.msra.mxu0 %v1225
    %1633 = vmatprep.subr.bf16.mxu0 0
    %1634 = vmatpush1.bf16.msra.mxu0 %v1226
    %1635 = vmatprep.subr.bf16.mxu0 0
    %1636 = vmatpush1.bf16.msra.mxu0 %v1227
    %1637 = vmatprep.subr.bf16.mxu0 0
    %1638 = vmatpush1.bf16.msra.mxu0 %v1228
    %1639 = vmatprep.mubr.bf16.mxu0 %v508
    %1640 = vmatmul.mubr.bf16.gmra.mrb[0].mxu0 %v494
    %v1641 = vpop.f32.mrb[0].mxu0
    %v1642 = vadd.f32 %v1602, %v1641
    %v1643 = vpop.f32.mrb[0].mxu0
    %v1644 = vpop.f32.mrb[0].mxu0
    %v1645 = vpop.f32.mrb[0].mxu0
    %1646 = vdwg.mxu0
    %1647 = vmatprep.subr.bf16.mxu0 0
    %1648 = vmatpush1.bf16.msra.mxu0 %v1229
    %1649 = vmatprep.subr.bf16.mxu0 0
    %1650 = vmatpush1.bf16.msra.mxu0 %v1230
    %1651 = vmatprep.subr.bf16.mxu0 0
    %1652 = vmatpush1.bf16.msra.mxu0 %v1231
    %1653 = vmatprep.subr.bf16.mxu0 0
    %1654 = vmatpush1.bf16.msra.mxu0 %v1232
    %1655 = vmatprep.subr.bf16.mxu0 0
    %1656 = vmatpush1.bf16.msra.mxu0 %v1233
    %1657 = vmatprep.subr.bf16.mxu0 0
    %1658 = vmatpush1.bf16.msra.mxu0 %v1234
    %1659 = vmatprep.subr.bf16.mxu0 0
    %1660 = vmatpush1.bf16.msra.mxu0 %v1235
    %1661 = vmatprep.subr.bf16.mxu0 0
    %1662 = vmatpush1.bf16.msra.mxu0 %v1236
    %1663 = vmatprep.subr.bf16.mxu0 0
    %1664 = vmatpush1.bf16.msra.mxu0 %v1237
    %1665 = vmatprep.subr.bf16.mxu0 0
    %1666 = vmatpush1.bf16.msra.mxu0 %v1238
    %1667 = vmatprep.subr.bf16.mxu0 0
    %1668 = vmatpush1.bf16.msra.mxu0 %v1239
    %1669 = vmatprep.subr.bf16.mxu0 0
    %1670 = vmatpush1.bf16.msra.mxu0 %v1240
    %1671 = vmatprep.subr.bf16.mxu0 0
    %1672 = vmatpush1.bf16.msra.mxu0 %v1241
    %1673 = vmatprep.subr.bf16.mxu0 0
    %1674 = vmatpush1.bf16.msra.mxu0 %v1242
    %1675 = vmatprep.subr.bf16.mxu0 0
    %1676 = vmatpush1.bf16.msra.mxu0 %v1243
    %1677 = vmatprep.subr.bf16.mxu0 0
    %1678 = vmatpush1.bf16.msra.mxu0 %v1244
    %1679 = vmatprep.mubr.bf16.mxu0 %v518
    %1680 = vmatmul.mubr.bf16.gmra.mrb[0].mxu0 %v516
    %v1681 = vpop.f32.mrb[0].mxu0
    %v1682 = vadd.f32 %v1642, %v1681
    %v1683 = vpop.f32.mrb[0].mxu0
    %v1684 = vpop.f32.mrb[0].mxu0
    %v1685 = vpop.f32.mrb[0].mxu0
    %1686 = vdwg.mxu0
    %1687 = vmatprep.subr.bf16.mxu0 0
    %1688 = vmatpush1.bf16.msra.mxu0 %v1245
    %1689 = vmatprep.subr.bf16.mxu0 0
    %1690 = vmatpush1.bf16.msra.mxu0 %v1246
    %1691 = vmatprep.subr.bf16.mxu0 0
    %1692 = vmatpush1.bf16.msra.mxu0 %v1247
    %1693 = vmatprep.subr.bf16.mxu0 0
    %1694 = vmatpush1.bf16.msra.mxu0 %v1248
    %1695 = vmatprep.subr.bf16.mxu0 0
    %1696 = vmatpush1.bf16.msra.mxu0 %v1249
    %1697 = vmatprep.subr.bf16.mxu0 0
    %1698 = vmatpush1.bf16.msra.mxu0 %v1250
    %1699 = vmatprep.subr.bf16.mxu0 0
    %1700 = vmatpush1.bf16.msra.mxu0 %v1251
    %1701 = vmatprep.subr.bf16.mxu0 0
    %1702 = vmatpush1.bf16.msra.mxu0 %v1252
    %1703 = vmatprep.subr.bf16.mxu0 0
    %1704 = vmatpush1.bf16.msra.mxu0 %v1253
    %1705 = vmatprep.subr.bf16.mxu0 0
    %1706 = vmatpush1.bf16.msra.mxu0 %v1254
    %1707 = vmatprep.subr.bf16.mxu0 0
    %1708 = vmatpush1.bf16.msra.mxu0 %v1255
    %1709 = vmatprep.subr.bf16.mxu0 0
    %1710 = vmatpush1.bf16.msra.mxu0 %v1256
    %1711 = vmatprep.subr.bf16.mxu0 0
    %1712 = vmatpush1.bf16.msra.mxu0 %v1257
    %1713 = vmatprep.subr.bf16.mxu0 0
    %1714 = vmatpush1.bf16.msra.mxu0 %v1258
    %1715 = vmatprep.subr.bf16.mxu0 0
    %1716 = vmatpush1.bf16.msra.mxu0 %v1259
    %1717 = vmatprep.subr.bf16.mxu0 0
    %1718 = vmatpush1.bf16.msra.mxu0 %v1260
    %1719 = vmatprep.mubr.bf16.mxu0 %v515
    %1720 = vmatmul.mubr.bf16.gmra.mrb[0].mxu0 %v501
    %v1721 = vpop.f32.mrb[0].mxu0
    %v1722 = vadd.f32 %v1682, %v1721
    %v1723 = vpop.f32.mrb[0].mxu0
    %v1724 = vpop.f32.mrb[0].mxu0
    %v1725 = vpop.f32.mrb[0].mxu0
    %1726 = vdwg.mxu0
    %1727 = vmatprep.subr.bf16.mxu0 0
    %1728 = vmatpush1.bf16.msra.mxu0 %v1261
    %1729 = vmatprep.subr.bf16.mxu0 0
    %1730 = vmatpush1.bf16.msra.mxu0 %v1262
    %1731 = vmatprep.subr.bf16.mxu0 0
    %1732 = vmatpush1.bf16.msra.mxu0 %v1263
    %1733 = vmatprep.subr.bf16.mxu0 0
    %1734 = vmatpush1.bf16.msra.mxu0 %v1264
    %1735 = vmatprep.subr.bf16.mxu0 0
    %1736 = vmatpush1.bf16.msra.mxu0 %v1265
    %1737 = vmatprep.subr.bf16.mxu0 0
    %1738 = vmatpush1.bf16.msra.mxu0 %v1266
    %1739 = vmatprep.subr.bf16.mxu0 0
    %1740 = vmatpush1.bf16.msra.mxu0 %v1267
    %1741 = vmatprep.subr.bf16.mxu0 0
    %1742 = vmatpush1.bf16.msra.mxu0 %v1268
    %1743 = vmatprep.subr.bf16.mxu0 0
    %1744 = vmatpush1.bf16.msra.mxu0 %v1269
    %1745 = vmatprep.subr.bf16.mxu0 0
    %1746 = vmatpush1.bf16.msra.mxu0 %v1270
    %1747 = vmatprep.subr.bf16.mxu0 0
    %1748 = vmatpush1.bf16.msra.mxu0 %v1271
    %1749 = vmatprep.subr.bf16.mxu0 0
    %1750 = vmatpush1.bf16.msra.mxu0 %v1272
    %1751 = vmatprep.subr.bf16.mxu0 0
    %1752 = vmatpush1.bf16.msra.mxu0 %v1273
    %1753 = vmatprep.subr.bf16.mxu0 0
    %1754 = vmatpush1.bf16.msra.mxu0 %v1274
    %1755 = vmatprep.subr.bf16.mxu0 0
    %1756 = vmatpush1.bf16.msra.mxu0 %v1275
    %1757 = vmatprep.subr.bf16.mxu0 0
    %1758 = vmatpush1.bf16.msra.mxu0 %v1276
    %1759 = vmatprep.mubr.bf16.mxu0 %v519
    %1760 = vmatmul.mubr.bf16.gmra.mrb[0].mxu0 %v517
    %v1761 = vpop.f32.mrb[0].mxu0
    %v1762 = vadd.f32 %v1722, %v1761
    %v1763 = vpop.f32.mrb[0].mxu0
    %v1764 = vpop.f32.mrb[0].mxu0
    %v1765 = vpop.f32.mrb[0].mxu0
    %1766 = vdwg.mxu0
    %1767 = vmatprep.subr.bf16.mxu0 0
    %1768 = vmatpush1.bf16.msra.mxu0 %v1277
    %1769 = vmatprep.subr.bf16.mxu0 0
    %1770 = vmatpush1.bf16.msra.mxu0 %v1278
    %1771 = vmatprep.subr.bf16.mxu0 0
    %1772 = vmatpush1.bf16.msra.mxu0 %v1279
    %1773 = vmatprep.subr.bf16.mxu0 0
    %1774 = vmatpush1.bf16.msra.mxu0 %v1280
    %1775 = vmatprep.subr.bf16.mxu0 0
    %1776 = vmatpush1.bf16.msra.mxu0 %v1281
    %1777 = vmatprep.subr.bf16.mxu0 0
    %1778 = vmatpush1.bf16.msra.mxu0 %v1282
    %1779 = vmatprep.subr.bf16.mxu0 0
    %1780 = vmatpush1.bf16.msra.mxu0 %v1283
    %1781 = vmatprep.subr.bf16.mxu0 0
    %1782 = vmatpush1.bf16.msra.mxu0 %v1284
    %1783 = vmatprep.subr.bf16.mxu0 0
    %1784 = vmatpush1.bf16.msra.mxu0 %v1285
    %1785 = vmatprep.subr.bf16.mxu0 0
    %1786 = vmatpush1.bf16.msra.mxu0 %v1286
    %1787 = vmatprep.subr.bf16.mxu0 0
    %1788 = vmatpush1.bf16.msra.mxu0 %v1287
    %1789 = vmatprep.subr.bf16.mxu0 0
    %1790 = vmatpush1.bf16.msra.mxu0 %v1288
    %1791 = vmatprep.subr.bf16.mxu0 0
    %1792 = vmatpush1.bf16.msra.mxu0 %v1289
    %1793 = vmatprep.subr.bf16.mxu0 0
    %1794 = vmatpush1.bf16.msra.mxu0 %v1290
    %1795 = vmatprep.subr.bf16.mxu0 0
    %1796 = vmatpush1.bf16.msra.mxu0 %v1291
    %1797 = vmatprep.subr.bf16.mxu0 0
    %1798 = vmatpush1.bf16.msra.mxu0 %v1292
    %1799 = vmatprep.mubr.bf16.mxu0 %v541
    %1800 = vmatmul.mubr.bf16.gmra.mrb[0].mxu0 %v534
    %v1801 = vpop.f32.mrb[0].mxu0
    %v1802 = vadd.f32 %v1762, %v1801
    %v1803 = vpop.f32.mrb[0].mxu0
    %v1804 = vpop.f32.mrb[0].mxu0
    %v1805 = vpop.f32.mrb[0].mxu0
    %1806 = vdwg.mxu0
    %1807 = vmatprep.subr.bf16.mxu0 0
    %1808 = vmatpush1.bf16.msra.mxu0 %v1293
    %1809 = vmatprep.subr.bf16.mxu0 0
    %1810 = vmatpush1.bf16.msra.mxu0 %v1294
    %1811 = vmatprep.subr.bf16.mxu0 0
    %1812 = vmatpush1.bf16.msra.mxu0 %v1295
    %1813 = vmatprep.subr.bf16.mxu0 0
    %1814 = vmatpush1.bf16.msra.mxu0 0
    %1815 = vmatprep.subr.bf16.mxu0 0
    %1816 = vmatpush1.bf16.msra.mxu0 0
    %1817 = vmatprep.subr.bf16.mxu0 0
    %1818 = vmatpush1.bf16.msra.mxu0 0
    %1819 = vmatprep.subr.bf16.mxu0 0
    %1820 = vmatpush1.bf16.msra.mxu0 0
    %1821 = vmatprep.subr.bf16.mxu0 0
    %1822 = vmatpush1.bf16.msra.mxu0 0
    %1823 = vmatprep.subr.bf16.mxu0 0
    %1824 = vmatpush1.bf16.msra.mxu0 0
    %1825 = vmatprep.subr.bf16.mxu0 0
    %1826 = vmatpush1.bf16.msra.mxu0 0
    %1827 = vmatprep.subr.bf16.mxu0 0
    %1828 = vmatpush1.bf16.msra.mxu0 0
    %1829 = vmatprep.subr.bf16.mxu0 0
    %1830 = vmatpush1.bf16.msra.mxu0 0
    %1831 = vmatprep.subr.bf16.mxu0 0
    %1832 = vmatpush1.bf16.msra.mxu0 0
    %1833 = vmatprep.subr.bf16.mxu0 0
    %1834 = vmatpush1.bf16.msra.mxu0 0
    %1835 = vmatprep.subr.bf16.mxu0 0
    %1836 = vmatpush1.bf16.msra.mxu0 0
    %1837 = vmatprep.subr.bf16.mxu0 0
    %1838 = vmatpush1.bf16.msra.mxu0 0
    %1839 = vmatprep.mubr.bf16.mxu0 0
    %1840 = vmatmul.mubr.bf16.gmra.mrb[0].mxu0 %v1445
    %v1841 = vpop.f32.mrb[0].mxu0
    %v1842 = vadd.f32 %v1802, %v1841
    %v1843 = vpop.f32.mrb[0].mxu0
    %v1844 = vpop.f32.mrb[0].mxu0
    %v1845 = vpop.f32.mrb[0].mxu0
    %1846 = vdwg.mxu0
    %v1847 = vmax.f32 %v1842, 0.0
    %v1848 = vpack.c.bf16 %v1847, %v1847
    %v1849 = vld [vmem:[#allocation8] sm:$0xf]
    %v1850 = vld [vmem:[#allocation8 + $0x4] sm:$0xf]
    %v1851 = vld [vmem:[#allocation8 + $0x8] sm:$0xf]
    %v1852 = vld [vmem:[#allocation8 + $0xc] sm:$0xf]
    %v1853 = vld [vmem:[#allocation8 + $0x10] sm:$0xf]
    %v1854 = vld [vmem:[#allocation8 + $0x14] sm:$0xf]
    %v1855 = vld [vmem:[#allocation8 + $0x18] sm:$0xf]
    %v1856 = vld [vmem:[#allocation8 + $0x1c] sm:$0xf]
    %v1857 = vld [vmem:[#allocation10] sm:$0x1]
    %v1859 = vlaneseq
    %v1860 = vshrl.u32 %v1859, 7
    %v1861 = vsub.s32 0, %v1860
    %v1862 = vrot.slane %v1857, %v1861
    %v1872 = vunpack.c.l.b16 %v1849
    %v1873 = vunpack.c.l.b16 %v1850
    %v1874 = vunpack.c.l.b16 %v1851
    %v1875 = vunpack.c.l.b16 %v1852
    %v1876 = vunpack.c.l.b16 %v1853
    %v1877 = vunpack.c.l.b16 %v1854
    %v1878 = vunpack.c.l.b16 %v1855
    %v1879 = vunpack.c.l.b16 %v1856
    %v1880 = vpack.c.b16 %v1873, %v1872
    %v1881 = vpack.c.b16 %v1875, %v1874
    %v1882 = vpack.c.b16 %v1877, %v1876
    %v1883 = vpack.c.b16 %v1879, %v1878
    %vm1888 = vcmask 523264
    %v1890 = vsel %vm1888, %v1848, 0
    %1892 = vmatprep.subr.bf16.mxu0 0
    %1893 = vmatpush1.bf16.msra.mxu0 %v1880
    %1894 = vmatprep.subr.bf16.mxu0 0
    %1895 = vmatpush1.bf16.msra.mxu0 %v1881
    %1896 = vmatprep.subr.bf16.mxu0 0
    %1897 = vmatpush1.bf16.msra.mxu0 %v1882
    %1898 = vmatprep.subr.bf16.mxu0 0
    %1899 = vmatpush1.bf16.msra.mxu0 %v1883
    %1900 = vmatprep.subr.bf16.mxu0 0
    %1901 = vmatpush1.bf16.msra.mxu0 0
    %1902 = vmatprep.subr.bf16.mxu0 0
    %1903 = vmatpush1.bf16.msra.mxu0 0
    %1904 = vmatprep.subr.bf16.mxu0 0
    %1905 = vmatpush1.bf16.msra.mxu0 0
    %1906 = vmatprep.subr.bf16.mxu0 0
    %1907 = vmatpush1.bf16.msra.mxu0 0
    %1908 = vmatprep.subr.bf16.mxu0 0
    %1909 = vmatpush1.bf16.msra.mxu0 0
    %1910 = vmatprep.subr.bf16.mxu0 0
    %1911 = vmatpush1.bf16.msra.mxu0 0
    %1912 = vmatprep.subr.bf16.mxu0 0
    %1913 = vmatpush1.bf16.msra.mxu0 0
    %1914 = vmatprep.subr.bf16.mxu0 0
    %1915 = vmatpush1.bf16.msra.mxu0 0
    %1916 = vmatprep.subr.bf16.mxu0 0
    %1917 = vmatpush1.bf16.msra.mxu0 0
    %1918 = vmatprep.subr.bf16.mxu0 0
    %1919 = vmatpush1.bf16.msra.mxu0 0
    %1920 = vmatprep.subr.bf16.mxu0 0
    %1921 = vmatpush1.bf16.msra.mxu0 0
    %1922 = vmatprep.subr.bf16.mxu0 0
    %1923 = vmatpush1.bf16.msra.mxu0 0
    %1924 = vmatprep.mubr.bf16.mxu0 0
    %1925 = vmatmul.mubr.bf16.gmra.mrb[0].mxu0 %v1890
    %v1926 = vpop.f32.mrb[0].mxu0
    %v1927 = vadd.f32 %v1862, %v1926
    %v1928 = vpop.f32.mrb[0].mxu0
    %v1929 = vpop.f32.mrb[0].mxu0
    %v1930 = vpop.f32.mrb[0].mxu0
    %1931 = vdwg.mxu0
    %v1932 = vmax.f32 %v1927, 0.0
    %v1933 = vpack.c.bf16 %v1932, %v1932
    %v1934 = vld [vmem:[#allocation11] sm:$0xf]
    %v1935 = vld [vmem:[#allocation11 + $0x4] sm:$0xf]
    %v1936 = vld [vmem:[#allocation11 + $0x8] sm:$0xf]
    %v1937 = vld [vmem:[#allocation11 + $0xc] sm:$0xf]
    %v1938 = vld [vmem:[#allocation13] sm:$0x1]
    %v1940 = vlaneseq
    %v1941 = vshrl.u32 %v1940, 7
    %v1942 = vsub.s32 0, %v1941
    %v1943 = vrot.slane %v1938, %v1942
    %v1949 = vunpack.c.l.b16 %v1934
    %v1950 = vunpack.c.l.b16 %v1935
    %v1951 = vunpack.c.l.b16 %v1936
    %v1952 = vunpack.c.l.b16 %v1937
    %v1953 = vpack.c.b16 %v1950, %v1949
    %v1954 = vpack.c.b16 %v1952, %v1951
    %vm1957 = vcmask 261120
    %v1959 = vsel %vm1957, %v1933, 0
    %1961 = vmatprep.subr.bf16.mxu0 0
    %1962 = vmatpush1.bf16.msra.mxu0 %v1953
    %1963 = vmatprep.subr.bf16.mxu0 0
    %1964 = vmatpush1.bf16.msra.mxu0 %v1954
    %1965 = vmatprep.subr.bf16.mxu0 0
    %1966 = vmatpush1.bf16.msra.mxu0 0
    %1967 = vmatprep.subr.bf16.mxu0 0
    %1968 = vmatpush1.bf16.msra.mxu0 0
    %1969 = vmatprep.subr.bf16.mxu0 0
    %1970 = vmatpush1.bf16.msra.mxu0 0
    %1971 = vmatprep.subr.bf16.mxu0 0
    %1972 = vmatpush1.bf16.msra.mxu0 0
    %1973 = vmatprep.subr.bf16.mxu0 0
    %1974 = vmatpush1.bf16.msra.mxu0 0
    %1975 = vmatprep.subr.bf16.mxu0 0
    %1976 = vmatpush1.bf16.msra.mxu0 0
    %1977 = vmatprep.subr.bf16.mxu0 0
    %1978 = vmatpush1.bf16.msra.mxu0 0
    %1979 = vmatprep.subr.bf16.mxu0 0
    %1980 = vmatpush1.bf16.msra.mxu0 0
    %1981 = vmatprep.subr.bf16.mxu0 0
    %1982 = vmatpush1.bf16.msra.mxu0 0
    %1983 = vmatprep.subr.bf16.mxu0 0
    %1984 = vmatpush1.bf16.msra.mxu0 0
    %1985 = vmatprep.subr.bf16.mxu0 0
    %1986 = vmatpush1.bf16.msra.mxu0 0
    %1987 = vmatprep.subr.bf16.mxu0 0
    %1988 = vmatpush1.bf16.msra.mxu0 0
    %1989 = vmatprep.subr.bf16.mxu0 0
    %1990 = vmatpush1.bf16.msra.mxu0 0
    %1991 = vmatprep.subr.bf16.mxu0 0
    %1992 = vmatpush1.bf16.msra.mxu0 0
    %1993 = vmatprep.mubr.bf16.mxu0 0
    %1994 = vmatmul.mubr.bf16.gmra.mrb[0].mxu0 %v1959
    %v1995 = vpop.f32.mrb[0].mxu0
    %v1996 = vadd.f32 %v1943, %v1995
    %v1997 = vpop.f32.mrb[0].mxu0
    %v1998 = vpop.f32.mrb[0].mxu0
    %v1999 = vpop.f32.mrb[0].mxu0
    %2000 = vdwg.mxu0
    %vm2001 = vcmask 74752
    %2002 = vst.msk [vmem:[#allocation14] sm:$0x3] %vm2001, %v1996
    // Predicated region
    $region58: #{visual_modality_forward.9} parent=1 // pred_check
      _
    $region59: #{visual_modality_forward.9} parent=1 // pred_check_branch
      %2004 = sbr.rel (0) target = $region61
    $region60: #{visual_modality_forward.9} parent=1 // pred_region
      %s2006 = ssub.s32 32, 32
      %2007 = vsyncadd [#allocation4], %s2006
      %s2009 = sshll.u32 [#allocation14], 4
      %s2010 = int_to_ptr.vmem [resolvable:$true] %s2009
      %2012 = dma.vmem_to_hbm [thread:$0]  %s2010, 32, %s7, [#allocation4]
    $region61: #{visual_modality_forward.9} parent=1 // pred_fallthru
      _
    // Predicated region
    $region62: #{visual_modality_forward.9} parent=1 // pred_check
      _
    $region63: #{visual_modality_forward.9} parent=1 // pred_check_branch
      %2014 = sbr.rel (0) target = $region65
    $region64: #{visual_modality_forward.9} parent=1 // pred_region
      %2015 = dma.done [#allocation4], 32
    $region65: #{visual_modality_forward.9} parent=1 // pred_fallthru
      _
    %2016 = vsyncpa [#allocation3], 1
    %2017 = vsyncpa [#allocation6], 1
    %2018 = vsyncpa [#allocation9], 1
    %2019 = vsyncpa [#allocation12], 1
    %2020 = vsyncpa [#allocation4], 1

</llo_original>
